<compile_context>
chip_gen: v5e
topology: v5e:2x2
jax: 0.10.0
libtpu: 0.0.40
codegen_flags: <defaults>
</compile_context>

<pallas_src>
import functools

import jax
import jax.numpy as jnp
from jax.experimental import pallas as pl
from jax.experimental.pallas import tpu as pltpu


# 32 MiB: <= the scoped default on v6e/v7x and well below physical VMEM on
# v5e/v6e (128 MiB) and v7x (64 MiB).
_VMEM_LIMIT_BYTES = 32 * 1024 * 1024


def _pick_spatial_tile(s, max_tile=2048):
    """Largest lane tile (multiple of 128) dividing S, capped at max_tile."""
    if s <= max_tile:
        return s
    for t in range(max_tile, 127, -128):
        if s % t == 0:
            return t
    # TODO(synk): ragged spatial tails would need a masked last tile.
    return s


# ----------------------------------------------------------------------------
# Kernel 1: fused pointwise chain
#   BN+ReLU -> 1x1x1(in1) -> BN+ReLU -> 1x1x1(in2) -> BN+ReLU(of m1)
#   [+ BN+ReLU -> 1x1x1 shortcut], all on a (C, S_tile) channels-first block.
# ----------------------------------------------------------------------------
def fused_pointwise_chain(x3d, p_in1, p_in2, m1_scale, m1_shift, p_sc, *, ts):
    """x3d: (N, Cin, S) f32.  Returns (h2 bf16 (N,Cmid,S), sc f32 or None)."""
    N, Cin, S = x3d.shape
    Cmid = p_in2["w"].shape[0]
    has_sc = p_sc is not None
    Cout = p_sc["w"].shape[0] if has_sc else None

    def col(v):  # per-channel vector -> (C, 1) for broadcast along lanes
        return v.reshape(-1, 1).astype(jnp.float32)

    def kernel(*refs):
        (x_ref, s1_ref, b1_ref, w1_ref, s2_ref, b2_ref, w2_ref,
         s3_ref, b3_ref) = refs[:9]
        i = 9
        if has_sc:
            ssc_ref, bsc_ref, wsc_ref = refs[i:i + 3]
            i += 3
        h2_ref = refs[i]
        if has_sc:
            sc_ref = refs[i + 1]

        x = x_ref[0]                                              # (Cin, ts)
        # conv1x1x1_in1
        h0 = jnp.maximum(x * s1_ref[...] + b1_ref[...], 0.0)
        y1 = jnp.dot(w1_ref[...], h0.astype(jnp.bfloat16),
                     preferred_element_type=jnp.float32)          # (C1, ts)
        # conv1x1x1_in2
        h1 = jnp.maximum(y1 * s2_ref[...] + b2_ref[...], 0.0)
        y2 = jnp.dot(w2_ref[...], h1.astype(jnp.bfloat16),
                     preferred_element_type=jnp.float32)          # (Cmid, ts)
        # BN+ReLU of conv3x3x3_m1 (pre-activation of the first 3D conv)
        h2 = jnp.maximum(y2 * s3_ref[...] + b3_ref[...], 0.0)
        h2_ref[...] = h2.reshape(h2_ref.shape).astype(h2_ref.dtype)
        if has_sc:
            hs = jnp.maximum(x * ssc_ref[...] + bsc_ref[...], 0.0)
            sc = jnp.dot(wsc_ref[...], hs.astype(jnp.bfloat16),
                         preferred_element_type=jnp.float32)      # (Cout, ts)
            sc_ref[...] = sc.reshape(sc_ref.shape).astype(sc_ref.dtype)

    def full(a):  # whole-array block, constant index map
        return pl.BlockSpec(a.shape, lambda n, m: (0,) * a.ndim)

    inputs = [
        x3d,
        col(p_in1["scale"]), col(p_in1["shift"]),
        p_in1["w"].astype(jnp.bfloat16),
        col(p_in2["scale"]), col(p_in2["shift"]),
        p_in2["w"].astype(jnp.bfloat16),
        col(m1_scale), col(m1_shift),
    ]
    in_specs = [pl.BlockSpec((1, Cin, ts), lambda n, m: (n, 0, m))]
    in_specs += [full(a) for a in inputs[1:]]
    if has_sc:
        sc_inputs = [col(p_sc["scale"]), col(p_sc["shift"]),
                     p_sc["w"].astype(jnp.bfloat16)]
        inputs += sc_inputs
        in_specs += [full(a) for a in sc_inputs]

    out_shape = [jax.ShapeDtypeStruct((N, Cmid, S), jnp.bfloat16)]
    out_specs = [pl.BlockSpec((1, Cmid, ts), lambda n, m: (n, 0, m))]
    if has_sc:
        out_shape.append(jax.ShapeDtypeStruct((N, Cout, S), jnp.float32))
        out_specs.append(pl.BlockSpec((1, Cout, ts), lambda n, m: (n, 0, m)))

    outs = pl.pallas_call(
        kernel,
        out_shape=tuple(out_shape),
        grid_spec=pltpu.PrefetchScalarGridSpec(
            num_scalar_prefetch=0,
            grid=(N, S // ts),
            in_specs=in_specs,
            out_specs=tuple(out_specs),
        ),
        compiler_params=pltpu.CompilerParams(
            dimension_semantics=("parallel", "parallel"),
            vmem_limit_bytes=_VMEM_LIMIT_BYTES),
    )(*inputs)
    if has_sc:
        return outs[0], outs[1]
    return outs[0], None


# ----------------------------------------------------------------------------
# Kernel 2: channels-first dilated 3D conv (stride 1, "same" zero padding).
# Taps are lane-axis rolls of the resident (Cin, S) block; zero padding is
# reproduced with boundary masks (no padded HBM copy).  Optional fused
# BN+ReLU epilogue (post_scale/post_shift) and fused residual add.
# ----------------------------------------------------------------------------
def dilated_conv3d_cf(h, w, *, dilation, spatial, post_scale=None,
                      post_shift=None, residual=None, out_dtype=jnp.float32):
    N, Cin, S = h.shape
    D, H, W = spatial
    assert S == D * H * W
    KD, KH, KW, Cout, _ = w.shape
    dd, dh, dw = dilation
    pd, ph, pw = (KD - 1) // 2 * dd, (KH - 1) // 2 * dh, (KW - 1) // 2 * dw
    HW = H * W
    has_post = post_scale is not None
    has_res = residual is not None

    # Flattened-spatial coordinates, computed once outside the kernel (avoids
    # in-kernel integer div/mod).
    flat = jnp.arange(S, dtype=jnp.int32)
    zz = (flat // HW).reshape(1, S)
    yy = ((flat // W) % H).reshape(1, S)
    xx = (flat % W).reshape(1, S)

    def kernel(*refs):
        h_ref, w_ref, zz_ref, yy_ref, xx_ref = refs[:5]
        i = 5
        if has_post:
            psc_ref, psh_ref = refs[i:i + 2]
            i += 2
        if has_res:
            res_ref = refs[i]
            i += 1
        o_ref = refs[i]

        x = h_ref[0].astype(jnp.float32)                      # (Cin, S)
        z, y, xw = zz_ref[...], yy_ref[...], xx_ref[...]       # (1, S) int32

        acc = jnp.zeros((Cout, S), jnp.float32)
        for kd in range(KD):
            od = kd * dd - pd
            for kh in range(KH):
                oy = kh * dh - ph
                for kw in range(KW):
                    ox = kw * dw - pw
                    off = od * HW + oy * W + ox
                    src = x if off == 0 else pltpu.roll(x, (-off) % S, 1)
                    conds = []
                    if od != 0:
                        conds += [z >= -od, z < D - od]
                    if oy != 0:
                        conds += [y >= -oy, y < H - oy]
                    if ox != 0:
                        conds += [xw >= -ox, xw < W - ox]
                    if conds:
                        valid = functools.reduce(lambda a, b: a & b, conds)
                        src = jnp.where(valid, src, 0.0)
                    acc = acc + jnp.dot(
                        w_ref[kd, kh, kw], src.astype(jnp.bfloat16),
                        preferred_element_type=jnp.float32)
        if has_post:   # fused BN+ReLU of the *next* conv block
            acc = jnp.maximum(acc * psc_ref[...] + psh_ref[...], 0.0)
        if has_res:    # fused residual / shortcut add
            acc = acc + res_ref[0].astype(jnp.float32)
        o_ref[...] = acc.reshape(o_ref.shape).astype(o_ref.dtype)

    def full(a):
        return pl.BlockSpec(a.shape, lambda n: (0,) * a.ndim)

    w_bf16 = w.astype(jnp.bfloat16)
    inputs = [h, w_bf16, zz, yy, xx]
    in_specs = [
        pl.BlockSpec((1, Cin, S), lambda n: (n, 0, 0)),
        full(w_bf16), full(zz), full(yy), full(xx),
    ]
    if has_post:
        ps = post_scale.reshape(Cout, 1).astype(jnp.float32)
        pb = post_shift.reshape(Cout, 1).astype(jnp.float32)
        inputs += [ps, pb]
        in_specs += [full(ps), full(pb)]
    if has_res:
        inputs.append(residual)
        in_specs.append(pl.BlockSpec((1, Cout, S), lambda n: (n, 0, 0)))

    return pl.pallas_call(
        kernel,
        out_shape=jax.ShapeDtypeStruct((N, Cout, S), out_dtype),
        grid_spec=pltpu.PrefetchScalarGridSpec(
            num_scalar_prefetch=0,
            grid=(N,),
            in_specs=in_specs,
            out_specs=pl.BlockSpec((1, Cout, S), lambda n: (n, 0, 0)),
        ),
        compiler_params=pltpu.CompilerParams(
            dimension_semantics=("parallel",),
            vmem_limit_bytes=_VMEM_LIMIT_BYTES),
    )(*inputs)


# ----------------------------------------------------------------------------
# Parameters (deterministic, synthetic).  BN eval-mode stats folded into
# per-channel (scale, shift).  1x1 weights are (Cout, Cin); 3D conv weights
# are (KD, KH, KW, Cout, Cin).
# ----------------------------------------------------------------------------
def _bn_affine(key, c):
    k1, k2, k3, k4 = jax.random.split(key, 4)
    gamma = jax.random.uniform(k1, (c,), minval=0.5, maxval=1.5)
    beta = 0.1 * jax.random.normal(k2, (c,))
    mean = 0.1 * jax.random.normal(k3, (c,))
    var = jax.random.uniform(k4, (c,), minval=0.5, maxval=1.5)
    eps = 1e-5
    scale = gamma / jnp.sqrt(var + eps)
    shift = beta - mean * scale
    return scale.astype(jnp.float32), shift.astype(jnp.float32)


def init_params(key, num_in, num_out):
    num_mid = num_in if num_in <= num_out else num_out
    keys = jax.random.split(key, 10)
    p = {}

    def block_1x1(kb, kw, cin, cout):
        s, sh = _bn_affine(kb, cin)
        w = (0.3 * jax.random.normal(kw, (cout, cin))).astype(jnp.float32)
        return {"scale": s, "shift": sh, "w": w}

    def block_3d(kb, kw, cin, cout, ks):
        s, sh = _bn_affine(kb, cin)
        w = (0.3 * jax.random.normal(kw, ks + (cout, cin))).astype(jnp.float32)
        return {"scale": s, "shift": sh, "w": w}

    p["in1"] = block_1x1(keys[0], keys[1], num_in, num_in // 4)
    p["in2"] = block_1x1(keys[2], keys[3], num_in // 4, num_mid)
    p["m1"] = block_3d(keys[4], keys[5], num_mid, num_out, (3, 3, 3))
    p["m2"] = block_3d(keys[6], keys[7], num_out, num_out, (3, 3, 1))
    if num_in != num_out:
        p["sc"] = block_1x1(keys[8], keys[9], num_in, num_out)
    return p


# ----------------------------------------------------------------------------
# MFunit forward (Pallas), channels-first end-to-end.
# ----------------------------------------------------------------------------
def mfunit_forward(x_ncdhw, params, *, num_in, num_out, stride=1, d=(1, 1)):
    assert stride == 1, "only stride=1 implemented"  # TODO(synk): stride=2 path
    N, C, D, H, W = x_ncdhw.shape
    assert C == num_in
    S = D * H * W
    x3d = x_ncdhw.reshape(N, C, S).astype(jnp.float32)  # free, channels-first
    ts = _pick_spatial_tile(S)

    has_sc = num_in != num_out
    h2, sc = fused_pointwise_chain(
        x3d, params["in1"], params["in2"],
        params["m1"]["scale"], params["m1"]["shift"],
        params["sc"] if has_sc else None, ts=ts)
    if not has_sc:
        sc = x3d  # identity shortcut

    # conv3x3x3_m1, with the BN+ReLU of conv3x3x3_m2 fused into its epilogue.
    h3 = dilated_conv3d_cf(
        h2, params["m1"]["w"], dilation=(d[0], d[0], d[0]), spatial=(D, H, W),
        post_scale=params["m2"]["scale"], post_shift=params["m2"]["shift"],
        out_dtype=jnp.bfloat16)

    # conv3x3x3_m2 (3x3x1 taps), with the shortcut add fused.
    x4 = dilated_conv3d_cf(
        h3, params["m2"]["w"], dilation=(d[1], d[1], 1), spatial=(D, H, W),
        residual=sc, out_dtype=jnp.float32)

    return x4.reshape(N, num_out, D, H, W)


# ----------------------------------------------------------------------------
# Pure-JAX reference (f32) for the correctness check.
# ----------------------------------------------------------------------------
def ref_forward(x, params, *, num_in, num_out, d=(1, 1)):
    x = x.astype(jnp.float32)

    def bnrelu(a, scale, shift):
        return jnp.maximum(
            a * scale[None, :, None, None, None]
            + shift[None, :, None, None, None], 0.0)

    def conv1x1(a, p):
        h = bnrelu(a, p["scale"], p["shift"])
        return jnp.einsum("ncdhw,oc->nodhw", h, p["w"])

    def conv3d(a, p, dil):
        h = bnrelu(a, p["scale"], p["shift"])
        w = jnp.transpose(p["w"], (3, 4, 0, 1, 2))  # -> OIDHW
        KD, KH, KW = p["w"].shape[:3]
        pad = [((k - 1) // 2 * dd, (k - 1) // 2 * dd)
               for k, dd in zip((KD, KH, KW), dil)]
        return jax.lax.conv_general_dilated(
            h, w, window_strides=(1, 1, 1), padding=pad, rhs_dilation=dil,
            dimension_numbers=("NCDHW", "OIDHW", "NCDHW"))

    x1 = conv1x1(x, params["in1"])
    x2 = conv1x1(x1, params["in2"])
    x3 = conv3d(x2, params["m1"], (d[0], d[0], d[0]))
    x4 = conv3d(x3, params["m2"], (d[1], d[1], 1))
    sc = conv1x1(x, params["sc"]) if num_in != num_out else x
    return x4 + sc


if __name__ == "__main__":
    key = jax.random.PRNGKey(0)
    kx, kp = jax.random.split(key)

    N, C_in, C_out, D, H, W = 2, 8, 16, 8, 8, 8
    x = jax.random.normal(kx, (N, C_in, D, H, W), dtype=jnp.float32)
    params = init_params(kp, C_in, C_out)

    fwd = jax.jit(functools.partial(
        mfunit_forward, num_in=C_in, num_out=C_out, stride=1, d=(1, 1)))
    out = jax.block_until_ready(fwd(x, params))
    assert out.shape == (N, C_out, D, H, W), out.shape

    ref = jax.block_until_ready(
        ref_forward(x, params, num_in=C_in, num_out=C_out, d=(1, 1)))
    err = float(jnp.max(jnp.abs(out - ref)))
    scale = float(jnp.max(jnp.abs(ref)))
    # bf16 MXU operands (f32 accumulation) through a 5-matmul chain: expect
    # O(1%) of the output dynamic range; allow 5% + small absolute slack.
    assert err <= 5e-2 * scale + 5e-2, (err, scale)

    print("KERNEL_OK")
</pallas_src>

<mosaic_0001>
module attributes {stable_mosaic.version = 11 : i64} {
  func.func @kernel(%arg0: i32, %arg1: i32, %arg2: memref<1x8x512xf32, #tpu.memory_space<vmem>>, %arg3: memref<8x1xf32, #tpu.memory_space<vmem>>, %arg4: memref<8x1xf32, #tpu.memory_space<vmem>>, %arg5: memref<2x8xbf16, #tpu.memory_space<vmem>>, %arg6: memref<2x1xf32, #tpu.memory_space<vmem>>, %arg7: memref<2x1xf32, #tpu.memory_space<vmem>>, %arg8: memref<8x2xbf16, #tpu.memory_space<vmem>>, %arg9: memref<8x1xf32, #tpu.memory_space<vmem>>, %arg10: memref<8x1xf32, #tpu.memory_space<vmem>>, %arg11: memref<8x1xf32, #tpu.memory_space<vmem>>, %arg12: memref<8x1xf32, #tpu.memory_space<vmem>>, %arg13: memref<16x8xbf16, #tpu.memory_space<vmem>>, %arg14: memref<1x8x512xbf16, #tpu.memory_space<vmem>>, %arg15: memref<1x16x512xf32, #tpu.memory_space<vmem>>) attributes {dimension_semantics = [#tpu.dimension_semantics<parallel>, #tpu.dimension_semantics<parallel>], iteration_bounds = array<i64: 2, 1>, scalar_prefetch = 0 : i64, scratch_operands = 0 : i64, tpu.core_type = #tpu.core_type<tc>, window_params = [{transform_indices = @transform_0, window_bounds = array<i64: 1, 8, 512>}, {pipeline_mode = #tpu.pipeline_mode<synchronous>, transform_indices = @transform_1, window_bounds = array<i64: 8, 1>}, {pipeline_mode = #tpu.pipeline_mode<synchronous>, transform_indices = @transform_2, window_bounds = array<i64: 8, 1>}, {pipeline_mode = #tpu.pipeline_mode<synchronous>, transform_indices = @transform_3, window_bounds = array<i64: 2, 8>}, {pipeline_mode = #tpu.pipeline_mode<synchronous>, transform_indices = @transform_4, window_bounds = array<i64: 2, 1>}, {pipeline_mode = #tpu.pipeline_mode<synchronous>, transform_indices = @transform_5, window_bounds = array<i64: 2, 1>}, {pipeline_mode = #tpu.pipeline_mode<synchronous>, transform_indices = @transform_6, window_bounds = array<i64: 8, 2>}, {pipeline_mode = #tpu.pipeline_mode<synchronous>, transform_indices = @transform_7, window_bounds = array<i64: 8, 1>}, {pipeline_mode = #tpu.pipeline_mode<synchronous>, transform_indices = @transform_8, window_bounds = array<i64: 8, 1>}, {pipeline_mode = #tpu.pipeline_mode<synchronous>, transform_indices = @transform_9, window_bounds = array<i64: 8, 1>}, {pipeline_mode = #tpu.pipeline_mode<synchronous>, transform_indices = @transform_10, window_bounds = array<i64: 8, 1>}, {pipeline_mode = #tpu.pipeline_mode<synchronous>, transform_indices = @transform_11, window_bounds = array<i64: 16, 8>}, {transform_indices = @transform_12, window_bounds = array<i64: 1, 8, 512>}, {transform_indices = @transform_13, window_bounds = array<i64: 1, 16, 512>}]} {
    %c0 = arith.constant 0 : index
    %c0_0 = arith.constant 0 : index
    %c0_1 = arith.constant 0 : index
    %0 = vector.load %arg2[%c0, %c0_0, %c0_1] : memref<1x8x512xf32, #tpu.memory_space<vmem>>, vector<1x8x512xf32>
    %1 = vector.shape_cast %0 : vector<1x8x512xf32> to vector<8x512xf32>
    %c0_2 = arith.constant 0 : index
    %c0_3 = arith.constant 0 : index
    %2 = vector.load %arg3[%c0_2, %c0_3] : memref<8x1xf32, #tpu.memory_space<vmem>>, vector<8x1xf32>
    %3 = vector.broadcast %2 : vector<8x1xf32> to vector<8x512xf32>
    %4 = arith.mulf %1, %3 : vector<8x512xf32>
    %c0_4 = arith.constant 0 : index
    %c0_5 = arith.constant 0 : index
    %5 = vector.load %arg4[%c0_4, %c0_5] : memref<8x1xf32, #tpu.memory_space<vmem>>, vector<8x1xf32>
    %6 = vector.broadcast %5 : vector<8x1xf32> to vector<8x512xf32>
    %7 = arith.addf %4, %6 : vector<8x512xf32>
    %cst = arith.constant 0.000000e+00 : f32
    %8 = vector.broadcast %cst : f32 to vector<8x512xf32>
    %9 = arith.maximumf %7, %8 : vector<8x512xf32>
    %c0_6 = arith.constant 0 : index
    %c0_7 = arith.constant 0 : index
    %10 = vector.load %arg5[%c0_6, %c0_7] : memref<2x8xbf16, #tpu.memory_space<vmem>>, vector<2x8xbf16>
    %11 = arith.truncf %9 : vector<8x512xf32> to vector<8x512xbf16>
    %cst_8 = arith.constant dense<0.000000e+00> : vector<2x512xf32>
    %12 = tpu.matmul %10, %11, %cst_8 {dimension_numbers = #tpu.dot_dimension_numbers<[1], [0], [0], [1], [0, 0, 1, 1], [], []>} : vector<2x8xbf16>, vector<8x512xbf16>, vector<2x512xf32> -> vector<2x512xf32>
    %c0_9 = arith.constant 0 : index
    %c0_10 = arith.constant 0 : index
    %13 = vector.load %arg6[%c0_9, %c0_10] : memref<2x1xf32, #tpu.memory_space<vmem>>, vector<2x1xf32>
    %14 = vector.broadcast %13 : vector<2x1xf32> to vector<2x512xf32>
    %15 = arith.mulf %12, %14 : vector<2x512xf32>
    %c0_11 = arith.constant 0 : index
    %c0_12 = arith.constant 0 : index
    %16 = vector.load %arg7[%c0_11, %c0_12] : memref<2x1xf32, #tpu.memory_space<vmem>>, vector<2x1xf32>
    %17 = vector.broadcast %16 : vector<2x1xf32> to vector<2x512xf32>
    %18 = arith.addf %15, %17 : vector<2x512xf32>
    %cst_13 = arith.constant 0.000000e+00 : f32
    %19 = vector.broadcast %cst_13 : f32 to vector<2x512xf32>
    %20 = arith.maximumf %18, %19 : vector<2x512xf32>
    %c0_14 = arith.constant 0 : index
    %c0_15 = arith.constant 0 : index
    %21 = vector.load %arg8[%c0_14, %c0_15] : memref<8x2xbf16, #tpu.memory_space<vmem>>, vector<8x2xbf16>
    %22 = arith.truncf %20 : vector<2x512xf32> to vector<2x512xbf16>
    %cst_16 = arith.constant dense<0.000000e+00> : vector<8x512xf32>
    %23 = tpu.matmul %21, %22, %cst_16 {dimension_numbers = #tpu.dot_dimension_numbers<[1], [0], [0], [1], [0, 0, 1, 1], [], []>} : vector<8x2xbf16>, vector<2x512xbf16>, vector<8x512xf32> -> vector<8x512xf32>
    %c0_17 = arith.constant 0 : index
    %c0_18 = arith.constant 0 : index
    %24 = vector.load %arg9[%c0_17, %c0_18] : memref<8x1xf32, #tpu.memory_space<vmem>>, vector<8x1xf32>
    %25 = vector.broadcast %24 : vector<8x1xf32> to vector<8x512xf32>
    %26 = arith.mulf %23, %25 : vector<8x512xf32>
    %c0_19 = arith.constant 0 : index
    %c0_20 = arith.constant 0 : index
    %27 = vector.load %arg10[%c0_19, %c0_20] : memref<8x1xf32, #tpu.memory_space<vmem>>, vector<8x1xf32>
    %28 = vector.broadcast %27 : vector<8x1xf32> to vector<8x512xf32>
    %29 = arith.addf %26, %28 : vector<8x512xf32>
    %cst_21 = arith.constant 0.000000e+00 : f32
    %30 = vector.broadcast %cst_21 : f32 to vector<8x512xf32>
    %31 = arith.maximumf %29, %30 : vector<8x512xf32>
    %32 = vector.shape_cast %31 : vector<8x512xf32> to vector<1x8x512xf32>
    %33 = arith.truncf %32 : vector<1x8x512xf32> to vector<1x8x512xbf16>
    %c0_22 = arith.constant 0 : index
    %c0_23 = arith.constant 0 : index
    %c0_24 = arith.constant 0 : index
    %34 = vector.load %arg14[%c0_22, %c0_23, %c0_24] : memref<1x8x512xbf16, #tpu.memory_space<vmem>>, vector<1x8x512xbf16>
    tpu.vector_store %arg14[%c0_22, %c0_23, %c0_24], %33 {strides = array<i32>} : memref<1x8x512xbf16, #tpu.memory_space<vmem>>, vector<1x8x512xbf16>,
    %c0_25 = arith.constant 0 : index
    %c0_26 = arith.constant 0 : index
    %35 = vector.load %arg11[%c0_25, %c0_26] : memref<8x1xf32, #tpu.memory_space<vmem>>, vector<8x1xf32>
    %36 = vector.broadcast %35 : vector<8x1xf32> to vector<8x512xf32>
    %37 = arith.mulf %1, %36 : vector<8x512xf32>
    %c0_27 = arith.constant 0 : index
    %c0_28 = arith.constant 0 : index
    %38 = vector.load %arg12[%c0_27, %c0_28] : memref<8x1xf32, #tpu.memory_space<vmem>>, vector<8x1xf32>
    %39 = vector.broadcast %38 : vector<8x1xf32> to vector<8x512xf32>
    %40 = arith.addf %37, %39 : vector<8x512xf32>
    %cst_29 = arith.constant 0.000000e+00 : f32
    %41 = vector.broadcast %cst_29 : f32 to vector<8x512xf32>
    %42 = arith.maximumf %40, %41 : vector<8x512xf32>
    %c0_30 = arith.constant 0 : index
    %c0_31 = arith.constant 0 : index
    %43 = vector.load %arg13[%c0_30, %c0_31] : memref<16x8xbf16, #tpu.memory_space<vmem>>, vector<16x8xbf16>
    %44 = arith.truncf %42 : vector<8x512xf32> to vector<8x512xbf16>
    %cst_32 = arith.constant dense<0.000000e+00> : vector<16x512xf32>
    %45 = tpu.matmul %43, %44, %cst_32 {dimension_numbers = #tpu.dot_dimension_numbers<[1], [0], [0], [1], [0, 0, 1, 1], [], []>} : vector<16x8xbf16>, vector<8x512xbf16>, vector<16x512xf32> -> vector<16x512xf32>
    %46 = vector.shape_cast %45 : vector<16x512xf32> to vector<1x16x512xf32>
    %c0_33 = arith.constant 0 : index
    %c0_34 = arith.constant 0 : index
    %c0_35 = arith.constant 0 : index
    %47 = vector.load %arg15[%c0_33, %c0_34, %c0_35] : memref<1x16x512xf32, #tpu.memory_space<vmem>>, vector<1x16x512xf32>
    tpu.vector_store %arg15[%c0_33, %c0_34, %c0_35], %46 {strides = array<i32>} : memref<1x16x512xf32, #tpu.memory_space<vmem>>, vector<1x16x512xf32>,
    return
  }
  func.func @transform_0(%arg0: i32, %arg1: i32) -> (i32, i32, i32) {
    %c0_i32 = arith.constant 0 : i32
    %c0_i32_0 = arith.constant 0 : i32
    return %arg0, %c0_i32, %arg1 : i32, i32, i32
  }
  func.func @transform_1(%arg0: i32, %arg1: i32) -> (i32, i32) {
    %c0_i32 = arith.constant 0 : i32
    %c0_i32_0 = arith.constant 0 : i32
    %c0_i32_1 = arith.constant 0 : i32
    return %c0_i32, %c0_i32_0 : i32, i32
  }
  func.func @transform_2(%arg0: i32, %arg1: i32) -> (i32, i32) {
    %c0_i32 = arith.constant 0 : i32
    %c0_i32_0 = arith.constant 0 : i32
    %c0_i32_1 = arith.constant 0 : i32
    return %c0_i32, %c0_i32_0 : i32, i32
  }
  func.func @transform_3(%arg0: i32, %arg1: i32) -> (i32, i32) {
    %c0_i32 = arith.constant 0 : i32
    %c0_i32_0 = arith.constant 0 : i32
    %c0_i32_1 = arith.constant 0 : i32
    return %c0_i32, %c0_i32_0 : i32, i32
  }
  func.func @transform_4(%arg0: i32, %arg1: i32) -> (i32, i32) {
    %c0_i32 = arith.constant 0 : i32
    %c0_i32_0 = arith.constant 0 : i32
    %c0_i32_1 = arith.constant 0 : i32
    return %c0_i32, %c0_i32_0 : i32, i32
  }
  func.func @transform_5(%arg0: i32, %arg1: i32) -> (i32, i32) {
    %c0_i32 = arith.constant 0 : i32
    %c0_i32_0 = arith.constant 0 : i32
    %c0_i32_1 = arith.constant 0 : i32
    return %c0_i32, %c0_i32_0 : i32, i32
  }
  func.func @transform_6(%arg0: i32, %arg1: i32) -> (i32, i32) {
    %c0_i32 = arith.constant 0 : i32
    %c0_i32_0 = arith.constant 0 : i32
    %c0_i32_1 = arith.constant 0 : i32
    return %c0_i32, %c0_i32_0 : i32, i32
  }
  func.func @transform_7(%arg0: i32, %arg1: i32) -> (i32, i32) {
    %c0_i32 = arith.constant 0 : i32
    %c0_i32_0 = arith.constant 0 : i32
    %c0_i32_1 = arith.constant 0 : i32
    return %c0_i32, %c0_i32_0 : i32, i32
  }
  func.func @transform_8(%arg0: i32, %arg1: i32) -> (i32, i32) {
    %c0_i32 = arith.constant 0 : i32
    %c0_i32_0 = arith.constant 0 : i32
    %c0_i32_1 = arith.constant 0 : i32
    return %c0_i32, %c0_i32_0 : i32, i32
  }
  func.func @transform_9(%arg0: i32, %arg1: i32) -> (i32, i32) {
    %c0_i32 = arith.constant 0 : i32
    %c0_i32_0 = arith.constant 0 : i32
    %c0_i32_1 = arith.constant 0 : i32
    return %c0_i32, %c0_i32_0 : i32, i32
  }
  func.func @transform_10(%arg0: i32, %arg1: i32) -> (i32, i32) {
    %c0_i32 = arith.constant 0 : i32
    %c0_i32_0 = arith.constant 0 : i32
    %c0_i32_1 = arith.constant 0 : i32
    return %c0_i32, %c0_i32_0 : i32, i32
  }
  func.func @transform_11(%arg0: i32, %arg1: i32) -> (i32, i32) {
    %c0_i32 = arith.constant 0 : i32
    %c0_i32_0 = arith.constant 0 : i32
    %c0_i32_1 = arith.constant 0 : i32
    return %c0_i32, %c0_i32_0 : i32, i32
  }
  func.func @transform_12(%arg0: i32, %arg1: i32) -> (i32, i32, i32) {
    %c0_i32 = arith.constant 0 : i32
    %c0_i32_0 = arith.constant 0 : i32
    return %arg0, %c0_i32, %arg1 : i32, i32, i32
  }
  func.func @transform_13(%arg0: i32, %arg1: i32) -> (i32, i32, i32) {
    %c0_i32 = arith.constant 0 : i32
    %c0_i32_0 = arith.constant 0 : i32
    return %arg0, %c0_i32, %arg1 : i32, i32, i32
  }
}

module attributes {stable_mosaic.version = 11 : i64} {
  func.func @kernel(%arg0: i32, %arg1: memref<1x16x512xbf16, #tpu.memory_space<vmem>>, %arg2: memref<3x3x1x16x16xbf16, #tpu.memory_space<vmem>>, %arg3: memref<1x512xi32, #tpu.memory_space<vmem>>, %arg4: memref<1x512xi32, #tpu.memory_space<vmem>>, %arg5: memref<1x512xi32, #tpu.memory_space<vmem>>, %arg6: memref<1x16x512xf32, #tpu.memory_space<vmem>>, %arg7: memref<1x16x512xf32, #tpu.memory_space<vmem>>) attributes {dimension_semantics = [#tpu.dimension_semantics<parallel>], iteration_bounds = array<i64: 2>, scalar_prefetch = 0 : i64, scratch_operands = 0 : i64, tpu.core_type = #tpu.core_type<tc>, window_params = [{transform_indices = @transform_0, window_bounds = array<i64: 1, 16, 512>}, {pipeline_mode = #tpu.pipeline_mode<synchronous>, transform_indices = @transform_1, window_bounds = array<i64: 3, 3, 1, 16, 16>}, {pipeline_mode = #tpu.pipeline_mode<synchronous>, transform_indices = @transform_2, window_bounds = array<i64: 1, 512>}, {pipeline_mode = #tpu.pipeline_mode<synchronous>, transform_indices = @transform_3, window_bounds = array<i64: 1, 512>}, {pipeline_mode = #tpu.pipeline_mode<synchronous>, transform_indices = @transform_4, window_bounds = array<i64: 1, 512>}, {transform_indices = @transform_5, window_bounds = array<i64: 1, 16, 512>}, {transform_indices = @transform_6, window_bounds = array<i64: 1, 16, 512>}]} {
    %c0 = arith.constant 0 : index
    %c0_0 = arith.constant 0 : index
    %c0_1 = arith.constant 0 : index
    %0 = vector.load %arg1[%c0, %c0_0, %c0_1] : memref<1x16x512xbf16, #tpu.memory_space<vmem>>, vector<1x16x512xbf16>
    %1 = vector.shape_cast %0 : vector<1x16x512xbf16> to vector<16x512xbf16>
    %2 = arith.extf %1 : vector<16x512xbf16> to vector<16x512xf32>
    %c0_2 = arith.constant 0 : index
    %c0_3 = arith.constant 0 : index
    %3 = vector.load %arg3[%c0_2, %c0_3] : memref<1x512xi32, #tpu.memory_space<vmem>>, vector<1x512xi32>
    %c0_4 = arith.constant 0 : index
    %c0_5 = arith.constant 0 : index
    %4 = vector.load %arg4[%c0_4, %c0_5] : memref<1x512xi32, #tpu.memory_space<vmem>>, vector<1x512xi32>
    %cst = arith.constant 0.000000e+00 : f32
    %5 = vector.broadcast %cst : f32 to vector<16x512xf32>
    %c72_i32 = arith.constant 72 : i32
    %6 = tpu.dynamic_rotate %2 by %c72_i32 dim 1 : vector<16x512xf32>, i32 -> vector<16x512xf32>
    %c1_i32 = arith.constant 1 : i32
    %7 = vector.broadcast %c1_i32 : i32 to vector<1x512xi32>
    %8 = arith.cmpi sge, %3, %7 : vector<1x512xi32>
    %c9_i32 = arith.constant 9 : i32
    %9 = vector.broadcast %c9_i32 : i32 to vector<1x512xi32>
    %10 = arith.cmpi slt, %3, %9 : vector<1x512xi32>
    %c1_i32_6 = arith.constant 1 : i32
    %11 = vector.broadcast %c1_i32_6 : i32 to vector<1x512xi32>
    %12 = arith.cmpi sge, %4, %11 : vector<1x512xi32>
    %c9_i32_7 = arith.constant 9 : i32
    %13 = vector.broadcast %c9_i32_7 : i32 to vector<1x512xi32>
    %14 = arith.cmpi slt, %4, %13 : vector<1x512xi32>
    %15 = arith.andi %8, %10 : vector<1x512xi1>
    %16 = arith.andi %15, %12 : vector<1x512xi1>
    %17 = arith.andi %16, %14 : vector<1x512xi1>
    %cst_8 = arith.constant 0.000000e+00 : f32
    %18 = vector.shape_cast %17 : vector<1x512xi1> to vector<1x512xi1>
    %19 = vector.broadcast %18 : vector<1x512xi1> to vector<16x512xi1>
    %20 = vector.broadcast %cst_8 : f32 to vector<16x512xf32>
    %21 = arith.select %19, %6, %20 : vector<16x512xi1>, vector<16x512xf32>
    %c0_9 = arith.constant 0 : index
    %c0_10 = arith.constant 0 : index
    %c0_11 = arith.constant 0 : index
    %c0_12 = arith.constant 0 : index
    %c0_13 = arith.constant 0 : index
    %22 = vector.load %arg2[%c0_9, %c0_10, %c0_11, %c0_12, %c0_13] : memref<3x3x1x16x16xbf16, #tpu.memory_space<vmem>>, vector<1x1x1x16x16xbf16>
    %23 = vector.shape_cast %22 : vector<1x1x1x16x16xbf16> to vector<16x16xbf16>
    %24 = arith.truncf %21 : vector<16x512xf32> to vector<16x512xbf16>
    %cst_14 = arith.constant dense<0.000000e+00> : vector<16x512xf32>
    %25 = tpu.matmul %23, %24, %cst_14 {dimension_numbers = #tpu.dot_dimension_numbers<[1], [0], [0], [1], [0, 0, 1, 1], [], []>} : vector<16x16xbf16>, vector<16x512xbf16>, vector<16x512xf32> -> vector<16x512xf32>
    %26 = arith.addf %5, %25 : vector<16x512xf32>
    %c64_i32 = arith.constant 64 : i32
    %27 = tpu.dynamic_rotate %2 by %c64_i32 dim 1 : vector<16x512xf32>, i32 -> vector<16x512xf32>
    %c1_i32_15 = arith.constant 1 : i32
    %28 = vector.broadcast %c1_i32_15 : i32 to vector<1x512xi32>
    %29 = arith.cmpi sge, %3, %28 : vector<1x512xi32>
    %c9_i32_16 = arith.constant 9 : i32
    %30 = vector.broadcast %c9_i32_16 : i32 to vector<1x512xi32>
    %31 = arith.cmpi slt, %3, %30 : vector<1x512xi32>
    %32 = arith.andi %29, %31 : vector<1x512xi1>
    %cst_17 = arith.constant 0.000000e+00 : f32
    %33 = vector.shape_cast %32 : vector<1x512xi1> to vector<1x512xi1>
    %34 = vector.broadcast %33 : vector<1x512xi1> to vector<16x512xi1>
    %35 = vector.broadcast %cst_17 : f32 to vector<16x512xf32>
    %36 = arith.select %34, %27, %35 : vector<16x512xi1>, vector<16x512xf32>
    %c0_18 = arith.constant 0 : index
    %c1 = arith.constant 1 : index
    %c0_19 = arith.constant 0 : index
    %c0_20 = arith.constant 0 : index
    %c0_21 = arith.constant 0 : index
    %37 = vector.load %arg2[%c0_18, %c1, %c0_19, %c0_20, %c0_21] : memref<3x3x1x16x16xbf16, #tpu.memory_space<vmem>>, vector<1x1x1x16x16xbf16>
    %38 = vector.shape_cast %37 : vector<1x1x1x16x16xbf16> to vector<16x16xbf16>
    %39 = arith.truncf %36 : vector<16x512xf32> to vector<16x512xbf16>
    %cst_22 = arith.constant dense<0.000000e+00> : vector<16x512xf32>
    %40 = tpu.matmul %38, %39, %cst_22 {dimension_numbers = #tpu.dot_dimension_numbers<[1], [0], [0], [1], [0, 0, 1, 1], [], []>} : vector<16x16xbf16>, vector<16x512xbf16>, vector<16x512xf32> -> vector<16x512xf32>
    %41 = arith.addf %26, %40 : vector<16x512xf32>
    %c56_i32 = arith.constant 56 : i32
    %42 = tpu.dynamic_rotate %2 by %c56_i32 dim 1 : vector<16x512xf32>, i32 -> vector<16x512xf32>
    %c1_i32_23 = arith.constant 1 : i32
    %43 = vector.broadcast %c1_i32_23 : i32 to vector<1x512xi32>
    %44 = arith.cmpi sge, %3, %43 : vector<1x512xi32>
    %c9_i32_24 = arith.constant 9 : i32
    %45 = vector.broadcast %c9_i32_24 : i32 to vector<1x512xi32>
    %46 = arith.cmpi slt, %3, %45 : vector<1x512xi32>
    %c-1_i32 = arith.constant -1 : i32
    %47 = vector.broadcast %c-1_i32 : i32 to vector<1x512xi32>
    %48 = arith.cmpi sge, %4, %47 : vector<1x512xi32>
    %c7_i32 = arith.constant 7 : i32
    %49 = vector.broadcast %c7_i32 : i32 to vector<1x512xi32>
    %50 = arith.cmpi slt, %4, %49 : vector<1x512xi32>
    %51 = arith.andi %44, %46 : vector<1x512xi1>
    %52 = arith.andi %51, %48 : vector<1x512xi1>
    %53 = arith.andi %52, %50 : vector<1x512xi1>
    %cst_25 = arith.constant 0.000000e+00 : f32
    %54 = vector.shape_cast %53 : vector<1x512xi1> to vector<1x512xi1>
    %55 = vector.broadcast %54 : vector<1x512xi1> to vector<16x512xi1>
    %56 = vector.broadcast %cst_25 : f32 to vector<16x512xf32>
    %57 = arith.select %55, %42, %56 : vector<16x512xi1>, vector<16x512xf32>
    %c0_26 = arith.constant 0 : index
    %c2 = arith.constant 2 : index
    %c0_27 = arith.constant 0 : index
    %c0_28 = arith.constant 0 : index
    %c0_29 = arith.constant 0 : index
    %58 = vector.load %arg2[%c0_26, %c2, %c0_27, %c0_28, %c0_29] : memref<3x3x1x16x16xbf16, #tpu.memory_space<vmem>>, vector<1x1x1x16x16xbf16>
    %59 = vector.shape_cast %58 : vector<1x1x1x16x16xbf16> to vector<16x16xbf16>
    %60 = arith.truncf %57 : vector<16x512xf32> to vector<16x512xbf16>
    %cst_30 = arith.constant dense<0.000000e+00> : vector<16x512xf32>
    %61 = tpu.matmul %59, %60, %cst_30 {dimension_numbers = #tpu.dot_dimension_numbers<[1], [0], [0], [1], [0, 0, 1, 1], [], []>} : vector<16x16xbf16>, vector<16x512xbf16>, vector<16x512xf32> -> vector<16x512xf32>
    %62 = arith.addf %41, %61 : vector<16x512xf32>
    %c8_i32 = arith.constant 8 : i32
    %63 = tpu.dynamic_rotate %2 by %c8_i32 dim 1 : vector<16x512xf32>, i32 -> vector<16x512xf32>
    %c1_i32_31 = arith.constant 1 : i32
    %64 = vector.broadcast %c1_i32_31 : i32 to vector<1x512xi32>
    %65 = arith.cmpi sge, %4, %64 : vector<1x512xi32>
    %c9_i32_32 = arith.constant 9 : i32
    %66 = vector.broadcast %c9_i32_32 : i32 to vector<1x512xi32>
    %67 = arith.cmpi slt, %4, %66 : vector<1x512xi32>
    %68 = arith.andi %65, %67 : vector<1x512xi1>
    %cst_33 = arith.constant 0.000000e+00 : f32
    %69 = vector.shape_cast %68 : vector<1x512xi1> to vector<1x512xi1>
    %70 = vector.broadcast %69 : vector<1x512xi1> to vector<16x512xi1>
    %71 = vector.broadcast %cst_33 : f32 to vector<16x512xf32>
    %72 = arith.select %70, %63, %71 : vector<16x512xi1>, vector<16x512xf32>
    %c1_34 = arith.constant 1 : index
    %c0_35 = arith.constant 0 : index
    %c0_36 = arith.constant 0 : index
    %c0_37 = arith.constant 0 : index
    %c0_38 = arith.constant 0 : index
    %73 = vector.load %arg2[%c1_34, %c0_35, %c0_36, %c0_37, %c0_38] : memref<3x3x1x16x16xbf16, #tpu.memory_space<vmem>>, vector<1x1x1x16x16xbf16>
    %74 = vector.shape_cast %73 : vector<1x1x1x16x16xbf16> to vector<16x16xbf16>
    %75 = arith.truncf %72 : vector<16x512xf32> to vector<16x512xbf16>
    %cst_39 = arith.constant dense<0.000000e+00> : vector<16x512xf32>
    %76 = tpu.matmul %74, %75, %cst_39 {dimension_numbers = #tpu.dot_dimension_numbers<[1], [0], [0], [1], [0, 0, 1, 1], [], []>} : vector<16x16xbf16>, vector<16x512xbf16>, vector<16x512xf32> -> vector<16x512xf32>
    %77 = arith.addf %62, %76 : vector<16x512xf32>
    %c1_40 = arith.constant 1 : index
    %c1_41 = arith.constant 1 : index
    %c0_42 = arith.constant 0 : index
    %c0_43 = arith.constant 0 : index
    %c0_44 = arith.constant 0 : index
    %78 = vector.load %arg2[%c1_40, %c1_41, %c0_42, %c0_43, %c0_44] : memref<3x3x1x16x16xbf16, #tpu.memory_space<vmem>>, vector<1x1x1x16x16xbf16>
    %79 = vector.shape_cast %78 : vector<1x1x1x16x16xbf16> to vector<16x16xbf16>
    %80 = arith.truncf %2 : vector<16x512xf32> to vector<16x512xbf16>
    %cst_45 = arith.constant dense<0.000000e+00> : vector<16x512xf32>
    %81 = tpu.matmul %79, %80, %cst_45 {dimension_numbers = #tpu.dot_dimension_numbers<[1], [0], [0], [1], [0, 0, 1, 1], [], []>} : vector<16x16xbf16>, vector<16x512xbf16>, vector<16x512xf32> -> vector<16x512xf32>
    %82 = arith.addf %77, %81 : vector<16x512xf32>
    %c504_i32 = arith.constant 504 : i32
    %83 = tpu.dynamic_rotate %2 by %c504_i32 dim 1 : vector<16x512xf32>, i32 -> vector<16x512xf32>
    %c-1_i32_46 = arith.constant -1 : i32
    %84 = vector.broadcast %c-1_i32_46 : i32 to vector<1x512xi32>
    %85 = arith.cmpi sge, %4, %84 : vector<1x512xi32>
    %c7_i32_47 = arith.constant 7 : i32
    %86 = vector.broadcast %c7_i32_47 : i32 to vector<1x512xi32>
    %87 = arith.cmpi slt, %4, %86 : vector<1x512xi32>
    %88 = arith.andi %85, %87 : vector<1x512xi1>
    %cst_48 = arith.constant 0.000000e+00 : f32
    %89 = vector.shape_cast %88 : vector<1x512xi1> to vector<1x512xi1>
    %90 = vector.broadcast %89 : vector<1x512xi1> to vector<16x512xi1>
    %91 = vector.broadcast %cst_48 : f32 to vector<16x512xf32>
    %92 = arith.select %90, %83, %91 : vector<16x512xi1>, vector<16x512xf32>
    %c1_49 = arith.constant 1 : index
    %c2_50 = arith.constant 2 : index
    %c0_51 = arith.constant 0 : index
    %c0_52 = arith.constant 0 : index
    %c0_53 = arith.constant 0 : index
    %93 = vector.load %arg2[%c1_49, %c2_50, %c0_51, %c0_52, %c0_53] : memref<3x3x1x16x16xbf16, #tpu.memory_space<vmem>>, vector<1x1x1x16x16xbf16>
    %94 = vector.shape_cast %93 : vector<1x1x1x16x16xbf16> to vector<16x16xbf16>
    %95 = arith.truncf %92 : vector<16x512xf32> to vector<16x512xbf16>
    %cst_54 = arith.constant dense<0.000000e+00> : vector<16x512xf32>
    %96 = tpu.matmul %94, %95, %cst_54 {dimension_numbers = #tpu.dot_dimension_numbers<[1], [0], [0], [1], [0, 0, 1, 1], [], []>} : vector<16x16xbf16>, vector<16x512xbf16>, vector<16x512xf32> -> vector<16x512xf32>
    %97 = arith.addf %82, %96 : vector<16x512xf32>
    %c456_i32 = arith.constant 456 : i32
    %98 = tpu.dynamic_rotate %2 by %c456_i32 dim 1 : vector<16x512xf32>, i32 -> vector<16x512xf32>
    %c-1_i32_55 = arith.constant -1 : i32
    %99 = vector.broadcast %c-1_i32_55 : i32 to vector<1x512xi32>
    %100 = arith.cmpi sge, %3, %99 : vector<1x512xi32>
    %c7_i32_56 = arith.constant 7 : i32
    %101 = vector.broadcast %c7_i32_56 : i32 to vector<1x512xi32>
    %102 = arith.cmpi slt, %3, %101 : vector<1x512xi32>
    %c1_i32_57 = arith.constant 1 : i32
    %103 = vector.broadcast %c1_i32_57 : i32 to vector<1x512xi32>
    %104 = arith.cmpi sge, %4, %103 : vector<1x512xi32>
    %c9_i32_58 = arith.constant 9 : i32
    %105 = vector.broadcast %c9_i32_58 : i32 to vector<1x512xi32>
    %106 = arith.cmpi slt, %4, %105 : vector<1x512xi32>
    %107 = arith.andi %100, %102 : vector<1x512xi1>
    %108 = arith.andi %107, %104 : vector<1x512xi1>
    %109 = arith.andi %108, %106 : vector<1x512xi1>
    %cst_59 = arith.constant 0.000000e+00 : f32
    %110 = vector.shape_cast %109 : vector<1x512xi1> to vector<1x512xi1>
    %111 = vector.broadcast %110 : vector<1x512xi1> to vector<16x512xi1>
    %112 = vector.broadcast %cst_59 : f32 to vector<16x512xf32>
    %113 = arith.select %111, %98, %112 : vector<16x512xi1>, vector<16x512xf32>
    %c2_60 = arith.constant 2 : index
    %c0_61 = arith.constant 0 : index
    %c0_62 = arith.constant 0 : index
    %c0_63 = arith.constant 0 : index
    %c0_64 = arith.constant 0 : index
    %114 = vector.load %arg2[%c2_60, %c0_61, %c0_62, %c0_63, %c0_64] : memref<3x3x1x16x16xbf16, #tpu.memory_space<vmem>>, vector<1x1x1x16x16xbf16>
    %115 = vector.shape_cast %114 : vector<1x1x1x16x16xbf16> to vector<16x16xbf16>
    %116 = arith.truncf %113 : vector<16x512xf32> to vector<16x512xbf16>
    %cst_65 = arith.constant dense<0.000000e+00> : vector<16x512xf32>
    %117 = tpu.matmul %115, %116, %cst_65 {dimension_numbers = #tpu.dot_dimension_numbers<[1], [0], [0], [1], [0, 0, 1, 1], [], []>} : vector<16x16xbf16>, vector<16x512xbf16>, vector<16x512xf32> -> vector<16x512xf32>
    %118 = arith.addf %97, %117 : vector<16x512xf32>
    %c448_i32 = arith.constant 448 : i32
    %119 = tpu.dynamic_rotate %2 by %c448_i32 dim 1 : vector<16x512xf32>, i32 -> vector<16x512xf32>
    %c-1_i32_66 = arith.constant -1 : i32
    %120 = vector.broadcast %c-1_i32_66 : i32 to vector<1x512xi32>
    %121 = arith.cmpi sge, %3, %120 : vector<1x512xi32>
    %c7_i32_67 = arith.constant 7 : i32
    %122 = vector.broadcast %c7_i32_67 : i32 to vector<1x512xi32>
    %123 = arith.cmpi slt, %3, %122 : vector<1x512xi32>
    %124 = arith.andi %121, %123 : vector<1x512xi1>
    %cst_68 = arith.constant 0.000000e+00 : f32
    %125 = vector.shape_cast %124 : vector<1x512xi1> to vector<1x512xi1>
    %126 = vector.broadcast %125 : vector<1x512xi1> to vector<16x512xi1>
    %127 = vector.broadcast %cst_68 : f32 to vector<16x512xf32>
    %128 = arith.select %126, %119, %127 : vector<16x512xi1>, vector<16x512xf32>
    %c2_69 = arith.constant 2 : index
    %c1_70 = arith.constant 1 : index
    %c0_71 = arith.constant 0 : index
    %c0_72 = arith.constant 0 : index
    %c0_73 = arith.constant 0 : index
    %129 = vector.load %arg2[%c2_69, %c1_70, %c0_71, %c0_72, %c0_73] : memref<3x3x1x16x16xbf16, #tpu.memory_space<vmem>>, vector<1x1x1x16x16xbf16>
    %130 = vector.shape_cast %129 : vector<1x1x1x16x16xbf16> to vector<16x16xbf16>
    %131 = arith.truncf %128 : vector<16x512xf32> to vector<16x512xbf16>
    %cst_74 = arith.constant dense<0.000000e+00> : vector<16x512xf32>
    %132 = tpu.matmul %130, %131, %cst_74 {dimension_numbers = #tpu.dot_dimension_numbers<[1], [0], [0], [1], [0, 0, 1, 1], [], []>} : vector<16x16xbf16>, vector<16x512xbf16>, vector<16x512xf32> -> vector<16x512xf32>
    %133 = arith.addf %118, %132 : vector<16x512xf32>
    %c440_i32 = arith.constant 440 : i32
    %134 = tpu.dynamic_rotate %2 by %c440_i32 dim 1 : vector<16x512xf32>, i32 -> vector<16x512xf32>
    %c-1_i32_75 = arith.constant -1 : i32
    %135 = vector.broadcast %c-1_i32_75 : i32 to vector<1x512xi32>
    %136 = arith.cmpi sge, %3, %135 : vector<1x512xi32>
    %c7_i32_76 = arith.constant 7 : i32
    %137 = vector.broadcast %c7_i32_76 : i32 to vector<1x512xi32>
    %138 = arith.cmpi slt, %3, %137 : vector<1x512xi32>
    %c-1_i32_77 = arith.constant -1 : i32
    %139 = vector.broadcast %c-1_i32_77 : i32 to vector<1x512xi32>
    %140 = arith.cmpi sge, %4, %139 : vector<1x512xi32>
    %c7_i32_78 = arith.constant 7 : i32
    %141 = vector.broadcast %c7_i32_78 : i32 to vector<1x512xi32>
    %142 = arith.cmpi slt, %4, %141 : vector<1x512xi32>
    %143 = arith.andi %136, %138 : vector<1x512xi1>
    %144 = arith.andi %143, %140 : vector<1x512xi1>
    %145 = arith.andi %144, %142 : vector<1x512xi1>
    %cst_79 = arith.constant 0.000000e+00 : f32
    %146 = vector.shape_cast %145 : vector<1x512xi1> to vector<1x512xi1>
    %147 = vector.broadcast %146 : vector<1x512xi1> to vector<16x512xi1>
    %148 = vector.broadcast %cst_79 : f32 to vector<16x512xf32>
    %149 = arith.select %147, %134, %148 : vector<16x512xi1>, vector<16x512xf32>
    %c2_80 = arith.constant 2 : index
    %c2_81 = arith.constant 2 : index
    %c0_82 = arith.constant 0 : index
    %c0_83 = arith.constant 0 : index
    %c0_84 = arith.constant 0 : index
    %150 = vector.load %arg2[%c2_80, %c2_81, %c0_82, %c0_83, %c0_84] : memref<3x3x1x16x16xbf16, #tpu.memory_space<vmem>>, vector<1x1x1x16x16xbf16>
    %151 = vector.shape_cast %150 : vector<1x1x1x16x16xbf16> to vector<16x16xbf16>
    %152 = arith.truncf %149 : vector<16x512xf32> to vector<16x512xbf16>
    %cst_85 = arith.constant dense<0.000000e+00> : vector<16x512xf32>
    %153 = tpu.matmul %151, %152, %cst_85 {dimension_numbers = #tpu.dot_dimension_numbers<[1], [0], [0], [1], [0, 0, 1, 1], [], []>} : vector<16x16xbf16>, vector<16x512xbf16>, vector<16x512xf32> -> vector<16x512xf32>
    %154 = arith.addf %133, %153 : vector<16x512xf32>
    %c0_86 = arith.constant 0 : index
    %c0_87 = arith.constant 0 : index
    %c0_88 = arith.constant 0 : index
    %155 = vector.load %arg6[%c0_86, %c0_87, %c0_88] : memref<1x16x512xf32, #tpu.memory_space<vmem>>, vector<1x16x512xf32>
    %156 = vector.shape_cast %155 : vector<1x16x512xf32> to vector<16x512xf32>
    %157 = arith.addf %154, %156 : vector<16x512xf32>
    %158 = vector.shape_cast %157 : vector<16x512xf32> to vector<1x16x512xf32>
    %c0_89 = arith.constant 0 : index
    %c0_90 = arith.constant 0 : index
    %c0_91 = arith.constant 0 : index
    %159 = vector.load %arg7[%c0_89, %c0_90, %c0_91] : memref<1x16x512xf32, #tpu.memory_space<vmem>>, vector<1x16x512xf32>
    tpu.vector_store %arg7[%c0_89, %c0_90, %c0_91], %158 {strides = array<i32>} : memref<1x16x512xf32, #tpu.memory_space<vmem>>, vector<1x16x512xf32>,
    return
  }
  func.func @transform_0(%arg0: i32) -> (i32, i32, i32) {
    %c0_i32 = arith.constant 0 : i32
    %c0_i32_0 = arith.constant 0 : i32
    %c0_i32_1 = arith.constant 0 : i32
    return %arg0, %c0_i32, %c0_i32_0 : i32, i32, i32
  }
  func.func @transform_1(%arg0: i32) -> (i32, i32, i32, i32, i32) {
    %c0_i32 = arith.constant 0 : i32
    %c0_i32_0 = arith.constant 0 : i32
    %c0_i32_1 = arith.constant 0 : i32
    %c0_i32_2 = arith.constant 0 : i32
    %c0_i32_3 = arith.constant 0 : i32
    %c0_i32_4 = arith.constant 0 : i32
    return %c0_i32, %c0_i32_0, %c0_i32_1, %c0_i32_2, %c0_i32_3 : i32, i32, i32, i32, i32
  }
  func.func @transform_2(%arg0: i32) -> (i32, i32) {
    %c0_i32 = arith.constant 0 : i32
    %c0_i32_0 = arith.constant 0 : i32
    %c0_i32_1 = arith.constant 0 : i32
    return %c0_i32, %c0_i32_0 : i32, i32
  }
  func.func @transform_3(%arg0: i32) -> (i32, i32) {
    %c0_i32 = arith.constant 0 : i32
    %c0_i32_0 = arith.constant 0 : i32
    %c0_i32_1 = arith.constant 0 : i32
    return %c0_i32, %c0_i32_0 : i32, i32
  }
  func.func @transform_4(%arg0: i32) -> (i32, i32) {
    %c0_i32 = arith.constant 0 : i32
    %c0_i32_0 = arith.constant 0 : i32
    %c0_i32_1 = arith.constant 0 : i32
    return %c0_i32, %c0_i32_0 : i32, i32
  }
  func.func @transform_5(%arg0: i32) -> (i32, i32, i32) {
    %c0_i32 = arith.constant 0 : i32
    %c0_i32_0 = arith.constant 0 : i32
    %c0_i32_1 = arith.constant 0 : i32
    return %arg0, %c0_i32, %c0_i32_0 : i32, i32, i32
  }
  func.func @transform_6(%arg0: i32) -> (i32, i32, i32) {
    %c0_i32 = arith.constant 0 : i32
    %c0_i32_0 = arith.constant 0 : i32
    %c0_i32_1 = arith.constant 0 : i32
    return %arg0, %c0_i32, %c0_i32_0 : i32, i32, i32
  }
}

module attributes {stable_mosaic.version = 11 : i64} {
  func.func @kernel(%arg0: i32, %arg1: memref<1x8x512xbf16, #tpu.memory_space<vmem>>, %arg2: memref<3x3x3x16x8xbf16, #tpu.memory_space<vmem>>, %arg3: memref<1x512xi32, #tpu.memory_space<vmem>>, %arg4: memref<1x512xi32, #tpu.memory_space<vmem>>, %arg5: memref<1x512xi32, #tpu.memory_space<vmem>>, %arg6: memref<16x1xf32, #tpu.memory_space<vmem>>, %arg7: memref<16x1xf32, #tpu.memory_space<vmem>>, %arg8: memref<1x16x512xbf16, #tpu.memory_space<vmem>>) attributes {dimension_semantics = [#tpu.dimension_semantics<parallel>], iteration_bounds = array<i64: 2>, scalar_prefetch = 0 : i64, scratch_operands = 0 : i64, tpu.core_type = #tpu.core_type<tc>, window_params = [{transform_indices = @transform_0, window_bounds = array<i64: 1, 8, 512>}, {pipeline_mode = #tpu.pipeline_mode<synchronous>, transform_indices = @transform_1, window_bounds = array<i64: 3, 3, 3, 16, 8>}, {pipeline_mode = #tpu.pipeline_mode<synchronous>, transform_indices = @transform_2, window_bounds = array<i64: 1, 512>}, {pipeline_mode = #tpu.pipeline_mode<synchronous>, transform_indices = @transform_3, window_bounds = array<i64: 1, 512>}, {pipeline_mode = #tpu.pipeline_mode<synchronous>, transform_indices = @transform_4, window_bounds = array<i64: 1, 512>}, {pipeline_mode = #tpu.pipeline_mode<synchronous>, transform_indices = @transform_5, window_bounds = array<i64: 16, 1>}, {pipeline_mode = #tpu.pipeline_mode<synchronous>, transform_indices = @transform_6, window_bounds = array<i64: 16, 1>}, {transform_indices = @transform_7, window_bounds = array<i64: 1, 16, 512>}]} {
    %c0 = arith.constant 0 : index
    %c0_0 = arith.constant 0 : index
    %c0_1 = arith.constant 0 : index
    %0 = vector.load %arg1[%c0, %c0_0, %c0_1] : memref<1x8x512xbf16, #tpu.memory_space<vmem>>, vector<1x8x512xbf16>
    %1 = vector.shape_cast %0 : vector<1x8x512xbf16> to vector<8x512xbf16>
    %2 = arith.extf %1 : vector<8x512xbf16> to vector<8x512xf32>
    %c0_2 = arith.constant 0 : index
    %c0_3 = arith.constant 0 : index
    %3 = vector.load %arg3[%c0_2, %c0_3] : memref<1x512xi32, #tpu.memory_space<vmem>>, vector<1x512xi32>
    %c0_4 = arith.constant 0 : index
    %c0_5 = arith.constant 0 : index
    %4 = vector.load %arg4[%c0_4, %c0_5] : memref<1x512xi32, #tpu.memory_space<vmem>>, vector<1x512xi32>
    %c0_6 = arith.constant 0 : index
    %c0_7 = arith.constant 0 : index
    %5 = vector.load %arg5[%c0_6, %c0_7] : memref<1x512xi32, #tpu.memory_space<vmem>>, vector<1x512xi32>
    %cst = arith.constant 0.000000e+00 : f32
    %6 = vector.broadcast %cst : f32 to vector<16x512xf32>
    %c73_i32 = arith.constant 73 : i32
    %7 = tpu.dynamic_rotate %2 by %c73_i32 dim 1 : vector<8x512xf32>, i32 -> vector<8x512xf32>
    %c1_i32 = arith.constant 1 : i32
    %8 = vector.broadcast %c1_i32 : i32 to vector<1x512xi32>
    %9 = arith.cmpi sge, %3, %8 : vector<1x512xi32>
    %c9_i32 = arith.constant 9 : i32
    %10 = vector.broadcast %c9_i32 : i32 to vector<1x512xi32>
    %11 = arith.cmpi slt, %3, %10 : vector<1x512xi32>
    %c1_i32_8 = arith.constant 1 : i32
    %12 = vector.broadcast %c1_i32_8 : i32 to vector<1x512xi32>
    %13 = arith.cmpi sge, %4, %12 : vector<1x512xi32>
    %c9_i32_9 = arith.constant 9 : i32
    %14 = vector.broadcast %c9_i32_9 : i32 to vector<1x512xi32>
    %15 = arith.cmpi slt, %4, %14 : vector<1x512xi32>
    %c1_i32_10 = arith.constant 1 : i32
    %16 = vector.broadcast %c1_i32_10 : i32 to vector<1x512xi32>
    %17 = arith.cmpi sge, %5, %16 : vector<1x512xi32>
    %c9_i32_11 = arith.constant 9 : i32
    %18 = vector.broadcast %c9_i32_11 : i32 to vector<1x512xi32>
    %19 = arith.cmpi slt, %5, %18 : vector<1x512xi32>
    %20 = arith.andi %9, %11 : vector<1x512xi1>
    %21 = arith.andi %20, %13 : vector<1x512xi1>
    %22 = arith.andi %21, %15 : vector<1x512xi1>
    %23 = arith.andi %22, %17 : vector<1x512xi1>
    %24 = arith.andi %23, %19 : vector<1x512xi1>
    %cst_12 = arith.constant 0.000000e+00 : f32
    %25 = vector.shape_cast %24 : vector<1x512xi1> to vector<1x512xi1>
    %26 = vector.broadcast %25 : vector<1x512xi1> to vector<8x512xi1>
    %27 = vector.broadcast %cst_12 : f32 to vector<8x512xf32>
    %28 = arith.select %26, %7, %27 : vector<8x512xi1>, vector<8x512xf32>
    %c0_13 = arith.constant 0 : index
    %c0_14 = arith.constant 0 : index
    %c0_15 = arith.constant 0 : index
    %c0_16 = arith.constant 0 : index
    %c0_17 = arith.constant 0 : index
    %29 = vector.load %arg2[%c0_13, %c0_14, %c0_15, %c0_16, %c0_17] : memref<3x3x3x16x8xbf16, #tpu.memory_space<vmem>>, vector<1x1x1x16x8xbf16>
    %30 = vector.shape_cast %29 : vector<1x1x1x16x8xbf16> to vector<16x8xbf16>
    %31 = arith.truncf %28 : vector<8x512xf32> to vector<8x512xbf16>
    %cst_18 = arith.constant dense<0.000000e+00> : vector<16x512xf32>
    %32 = tpu.matmul %30, %31, %cst_18 {dimension_numbers = #tpu.dot_dimension_numbers<[1], [0], [0], [1], [0, 0, 1, 1], [], []>} : vector<16x8xbf16>, vector<8x512xbf16>, vector<16x512xf32> -> vector<16x512xf32>
    %33 = arith.addf %6, %32 : vector<16x512xf32>
    %c72_i32 = arith.constant 72 : i32
    %34 = tpu.dynamic_rotate %2 by %c72_i32 dim 1 : vector<8x512xf32>, i32 -> vector<8x512xf32>
    %c1_i32_19 = arith.constant 1 : i32
    %35 = vector.broadcast %c1_i32_19 : i32 to vector<1x512xi32>
    %36 = arith.cmpi sge, %3, %35 : vector<1x512xi32>
    %c9_i32_20 = arith.constant 9 : i32
    %37 = vector.broadcast %c9_i32_20 : i32 to vector<1x512xi32>
    %38 = arith.cmpi slt, %3, %37 : vector<1x512xi32>
    %c1_i32_21 = arith.constant 1 : i32
    %39 = vector.broadcast %c1_i32_21 : i32 to vector<1x512xi32>
    %40 = arith.cmpi sge, %4, %39 : vector<1x512xi32>
    %c9_i32_22 = arith.constant 9 : i32
    %41 = vector.broadcast %c9_i32_22 : i32 to vector<1x512xi32>
    %42 = arith.cmpi slt, %4, %41 : vector<1x512xi32>
    %43 = arith.andi %36, %38 : vector<1x512xi1>
    %44 = arith.andi %43, %40 : vector<1x512xi1>
    %45 = arith.andi %44, %42 : vector<1x512xi1>
    %cst_23 = arith.constant 0.000000e+00 : f32
    %46 = vector.shape_cast %45 : vector<1x512xi1> to vector<1x512xi1>
    %47 = vector.broadcast %46 : vector<1x512xi1> to vector<8x512xi1>
    %48 = vector.broadcast %cst_23 : f32 to vector<8x512xf32>
    %49 = arith.select %47, %34, %48 : vector<8x512xi1>, vector<8x512xf32>
    %c0_24 = arith.constant 0 : index
    %c0_25 = arith.constant 0 : index
    %c1 = arith.constant 1 : index
    %c0_26 = arith.constant 0 : index
    %c0_27 = arith.constant 0 : index
    %50 = vector.load %arg2[%c0_24, %c0_25, %c1, %c0_26, %c0_27] : memref<3x3x3x16x8xbf16, #tpu.memory_space<vmem>>, vector<1x1x1x16x8xbf16>
    %51 = vector.shape_cast %50 : vector<1x1x1x16x8xbf16> to vector<16x8xbf16>
    %52 = arith.truncf %49 : vector<8x512xf32> to vector<8x512xbf16>
    %cst_28 = arith.constant dense<0.000000e+00> : vector<16x512xf32>
    %53 = tpu.matmul %51, %52, %cst_28 {dimension_numbers = #tpu.dot_dimension_numbers<[1], [0], [0], [1], [0, 0, 1, 1], [], []>} : vector<16x8xbf16>, vector<8x512xbf16>, vector<16x512xf32> -> vector<16x512xf32>
    %54 = arith.addf %33, %53 : vector<16x512xf32>
    %c71_i32 = arith.constant 71 : i32
    %55 = tpu.dynamic_rotate %2 by %c71_i32 dim 1 : vector<8x512xf32>, i32 -> vector<8x512xf32>
    %c1_i32_29 = arith.constant 1 : i32
    %56 = vector.broadcast %c1_i32_29 : i32 to vector<1x512xi32>
    %57 = arith.cmpi sge, %3, %56 : vector<1x512xi32>
    %c9_i32_30 = arith.constant 9 : i32
    %58 = vector.broadcast %c9_i32_30 : i32 to vector<1x512xi32>
    %59 = arith.cmpi slt, %3, %58 : vector<1x512xi32>
    %c1_i32_31 = arith.constant 1 : i32
    %60 = vector.broadcast %c1_i32_31 : i32 to vector<1x512xi32>
    %61 = arith.cmpi sge, %4, %60 : vector<1x512xi32>
    %c9_i32_32 = arith.constant 9 : i32
    %62 = vector.broadcast %c9_i32_32 : i32 to vector<1x512xi32>
    %63 = arith.cmpi slt, %4, %62 : vector<1x512xi32>
    %c-1_i32 = arith.constant -1 : i32
    %64 = vector.broadcast %c-1_i32 : i32 to vector<1x512xi32>
    %65 = arith.cmpi sge, %5, %64 : vector<1x512xi32>
    %c7_i32 = arith.constant 7 : i32
    %66 = vector.broadcast %c7_i32 : i32 to vector<1x512xi32>
    %67 = arith.cmpi slt, %5, %66 : vector<1x512xi32>
    %68 = arith.andi %57, %59 : vector<1x512xi1>
    %69 = arith.andi %68, %61 : vector<1x512xi1>
    %70 = arith.andi %69, %63 : vector<1x512xi1>
    %71 = arith.andi %70, %65 : vector<1x512xi1>
    %72 = arith.andi %71, %67 : vector<1x512xi1>
    %cst_33 = arith.constant 0.000000e+00 : f32
    %73 = vector.shape_cast %72 : vector<1x512xi1> to vector<1x512xi1>
    %74 = vector.broadcast %73 : vector<1x512xi1> to vector<8x512xi1>
    %75 = vector.broadcast %cst_33 : f32 to vector<8x512xf32>
    %76 = arith.select %74, %55, %75 : vector<8x512xi1>, vector<8x512xf32>
    %c0_34 = arith.constant 0 : index
    %c0_35 = arith.constant 0 : index
    %c2 = arith.constant 2 : index
    %c0_36 = arith.constant 0 : index
    %c0_37 = arith.constant 0 : index
    %77 = vector.load %arg2[%c0_34, %c0_35, %c2, %c0_36, %c0_37] : memref<3x3x3x16x8xbf16, #tpu.memory_space<vmem>>, vector<1x1x1x16x8xbf16>
    %78 = vector.shape_cast %77 : vector<1x1x1x16x8xbf16> to vector<16x8xbf16>
    %79 = arith.truncf %76 : vector<8x512xf32> to vector<8x512xbf16>
    %cst_38 = arith.constant dense<0.000000e+00> : vector<16x512xf32>
    %80 = tpu.matmul %78, %79, %cst_38 {dimension_numbers = #tpu.dot_dimension_numbers<[1], [0], [0], [1], [0, 0, 1, 1], [], []>} : vector<16x8xbf16>, vector<8x512xbf16>, vector<16x512xf32> -> vector<16x512xf32>
    %81 = arith.addf %54, %80 : vector<16x512xf32>
    %c65_i32 = arith.constant 65 : i32
    %82 = tpu.dynamic_rotate %2 by %c65_i32 dim 1 : vector<8x512xf32>, i32 -> vector<8x512xf32>
    %c1_i32_39 = arith.constant 1 : i32
    %83 = vector.broadcast %c1_i32_39 : i32 to vector<1x512xi32>
    %84 = arith.cmpi sge, %3, %83 : vector<1x512xi32>
    %c9_i32_40 = arith.constant 9 : i32
    %85 = vector.broadcast %c9_i32_40 : i32 to vector<1x512xi32>
    %86 = arith.cmpi slt, %3, %85 : vector<1x512xi32>
    %c1_i32_41 = arith.constant 1 : i32
    %87 = vector.broadcast %c1_i32_41 : i32 to vector<1x512xi32>
    %88 = arith.cmpi sge, %5, %87 : vector<1x512xi32>
    %c9_i32_42 = arith.constant 9 : i32
    %89 = vector.broadcast %c9_i32_42 : i32 to vector<1x512xi32>
    %90 = arith.cmpi slt, %5, %89 : vector<1x512xi32>
    %91 = arith.andi %84, %86 : vector<1x512xi1>
    %92 = arith.andi %91, %88 : vector<1x512xi1>
    %93 = arith.andi %92, %90 : vector<1x512xi1>
    %cst_43 = arith.constant 0.000000e+00 : f32
    %94 = vector.shape_cast %93 : vector<1x512xi1> to vector<1x512xi1>
    %95 = vector.broadcast %94 : vector<1x512xi1> to vector<8x512xi1>
    %96 = vector.broadcast %cst_43 : f32 to vector<8x512xf32>
    %97 = arith.select %95, %82, %96 : vector<8x512xi1>, vector<8x512xf32>
    %c0_44 = arith.constant 0 : index
    %c1_45 = arith.constant 1 : index
    %c0_46 = arith.constant 0 : index
    %c0_47 = arith.constant 0 : index
    %c0_48 = arith.constant 0 : index
    %98 = vector.load %arg2[%c0_44, %c1_45, %c0_46, %c0_47, %c0_48] : memref<3x3x3x16x8xbf16, #tpu.memory_space<vmem>>, vector<1x1x1x16x8xbf16>
    %99 = vector.shape_cast %98 : vector<1x1x1x16x8xbf16> to vector<16x8xbf16>
    %100 = arith.truncf %97 : vector<8x512xf32> to vector<8x512xbf16>
    %cst_49 = arith.constant dense<0.000000e+00> : vector<16x512xf32>
    %101 = tpu.matmul %99, %100, %cst_49 {dimension_numbers = #tpu.dot_dimension_numbers<[1], [0], [0], [1], [0, 0, 1, 1], [], []>} : vector<16x8xbf16>, vector<8x512xbf16>, vector<16x512xf32> -> vector<16x512xf32>
    %102 = arith.addf %81, %101 : vector<16x512xf32>
    %c64_i32 = arith.constant 64 : i32
    %103 = tpu.dynamic_rotate %2 by %c64_i32 dim 1 : vector<8x512xf32>, i32 -> vector<8x512xf32>
    %c1_i32_50 = arith.constant 1 : i32
    %104 = vector.broadcast %c1_i32_50 : i32 to vector<1x512xi32>
    %105 = arith.cmpi sge, %3, %104 : vector<1x512xi32>
    %c9_i32_51 = arith.constant 9 : i32
    %106 = vector.broadcast %c9_i32_51 : i32 to vector<1x512xi32>
    %107 = arith.cmpi slt, %3, %106 : vector<1x512xi32>
    %108 = arith.andi %105, %107 : vector<1x512xi1>
    %cst_52 = arith.constant 0.000000e+00 : f32
    %109 = vector.shape_cast %108 : vector<1x512xi1> to vector<1x512xi1>
    %110 = vector.broadcast %109 : vector<1x512xi1> to vector<8x512xi1>
    %111 = vector.broadcast %cst_52 : f32 to vector<8x512xf32>
    %112 = arith.select %110, %103, %111 : vector<8x512xi1>, vector<8x512xf32>
    %c0_53 = arith.constant 0 : index
    %c1_54 = arith.constant 1 : index
    %c1_55 = arith.constant 1 : index
    %c0_56 = arith.constant 0 : index
    %c0_57 = arith.constant 0 : index
    %113 = vector.load %arg2[%c0_53, %c1_54, %c1_55, %c0_56, %c0_57] : memref<3x3x3x16x8xbf16, #tpu.memory_space<vmem>>, vector<1x1x1x16x8xbf16>
    %114 = vector.shape_cast %113 : vector<1x1x1x16x8xbf16> to vector<16x8xbf16>
    %115 = arith.truncf %112 : vector<8x512xf32> to vector<8x512xbf16>
    %cst_58 = arith.constant dense<0.000000e+00> : vector<16x512xf32>
    %116 = tpu.matmul %114, %115, %cst_58 {dimension_numbers = #tpu.dot_dimension_numbers<[1], [0], [0], [1], [0, 0, 1, 1], [], []>} : vector<16x8xbf16>, vector<8x512xbf16>, vector<16x512xf32> -> vector<16x512xf32>
    %117 = arith.addf %102, %116 : vector<16x512xf32>
    %c63_i32 = arith.constant 63 : i32
    %118 = tpu.dynamic_rotate %2 by %c63_i32 dim 1 : vector<8x512xf32>, i32 -> vector<8x512xf32>
    %c1_i32_59 = arith.constant 1 : i32
    %119 = vector.broadcast %c1_i32_59 : i32 to vector<1x512xi32>
    %120 = arith.cmpi sge, %3, %119 : vector<1x512xi32>
    %c9_i32_60 = arith.constant 9 : i32
    %121 = vector.broadcast %c9_i32_60 : i32 to vector<1x512xi32>
    %122 = arith.cmpi slt, %3, %121 : vector<1x512xi32>
    %c-1_i32_61 = arith.constant -1 : i32
    %123 = vector.broadcast %c-1_i32_61 : i32 to vector<1x512xi32>
    %124 = arith.cmpi sge, %5, %123 : vector<1x512xi32>
    %c7_i32_62 = arith.constant 7 : i32
    %125 = vector.broadcast %c7_i32_62 : i32 to vector<1x512xi32>
    %126 = arith.cmpi slt, %5, %125 : vector<1x512xi32>
    %127 = arith.andi %120, %122 : vector<1x512xi1>
    %128 = arith.andi %127, %124 : vector<1x512xi1>
    %129 = arith.andi %128, %126 : vector<1x512xi1>
    %cst_63 = arith.constant 0.000000e+00 : f32
    %130 = vector.shape_cast %129 : vector<1x512xi1> to vector<1x512xi1>
    %131 = vector.broadcast %130 : vector<1x512xi1> to vector<8x512xi1>
    %132 = vector.broadcast %cst_63 : f32 to vector<8x512xf32>
    %133 = arith.select %131, %118, %132 : vector<8x512xi1>, vector<8x512xf32>
    %c0_64 = arith.constant 0 : index
    %c1_65 = arith.constant 1 : index
    %c2_66 = arith.constant 2 : index
    %c0_67 = arith.constant 0 : index
    %c0_68 = arith.constant 0 : index
    %134 = vector.load %arg2[%c0_64, %c1_65, %c2_66, %c0_67, %c0_68] : memref<3x3x3x16x8xbf16, #tpu.memory_space<vmem>>, vector<1x1x1x16x8xbf16>
    %135 = vector.shape_cast %134 : vector<1x1x1x16x8xbf16> to vector<16x8xbf16>
    %136 = arith.truncf %133 : vector<8x512xf32> to vector<8x512xbf16>
    %cst_69 = arith.constant dense<0.000000e+00> : vector<16x512xf32>
    %137 = tpu.matmul %135, %136, %cst_69 {dimension_numbers = #tpu.dot_dimension_numbers<[1], [0], [0], [1], [0, 0, 1, 1], [], []>} : vector<16x8xbf16>, vector<8x512xbf16>, vector<16x512xf32> -> vector<16x512xf32>
    %138 = arith.addf %117, %137 : vector<16x512xf32>
    %c57_i32 = arith.constant 57 : i32
    %139 = tpu.dynamic_rotate %2 by %c57_i32 dim 1 : vector<8x512xf32>, i32 -> vector<8x512xf32>
    %c1_i32_70 = arith.constant 1 : i32
    %140 = vector.broadcast %c1_i32_70 : i32 to vector<1x512xi32>
    %141 = arith.cmpi sge, %3, %140 : vector<1x512xi32>
    %c9_i32_71 = arith.constant 9 : i32
    %142 = vector.broadcast %c9_i32_71 : i32 to vector<1x512xi32>
    %143 = arith.cmpi slt, %3, %142 : vector<1x512xi32>
    %c-1_i32_72 = arith.constant -1 : i32
    %144 = vector.broadcast %c-1_i32_72 : i32 to vector<1x512xi32>
    %145 = arith.cmpi sge, %4, %144 : vector<1x512xi32>
    %c7_i32_73 = arith.constant 7 : i32
    %146 = vector.broadcast %c7_i32_73 : i32 to vector<1x512xi32>
    %147 = arith.cmpi slt, %4, %146 : vector<1x512xi32>
    %c1_i32_74 = arith.constant 1 : i32
    %148 = vector.broadcast %c1_i32_74 : i32 to vector<1x512xi32>
    %149 = arith.cmpi sge, %5, %148 : vector<1x512xi32>
    %c9_i32_75 = arith.constant 9 : i32
    %150 = vector.broadcast %c9_i32_75 : i32 to vector<1x512xi32>
    %151 = arith.cmpi slt, %5, %150 : vector<1x512xi32>
    %152 = arith.andi %141, %143 : vector<1x512xi1>
    %153 = arith.andi %152, %145 : vector<1x512xi1>
    %154 = arith.andi %153, %147 : vector<1x512xi1>
    %155 = arith.andi %154, %149 : vector<1x512xi1>
    %156 = arith.andi %155, %151 : vector<1x512xi1>
    %cst_76 = arith.constant 0.000000e+00 : f32
    %157 = vector.shape_cast %156 : vector<1x512xi1> to vector<1x512xi1>
    %158 = vector.broadcast %157 : vector<1x512xi1> to vector<8x512xi1>
    %159 = vector.broadcast %cst_76 : f32 to vector<8x512xf32>
    %160 = arith.select %158, %139, %159 : vector<8x512xi1>, vector<8x512xf32>
    %c0_77 = arith.constant 0 : index
    %c2_78 = arith.constant 2 : index
    %c0_79 = arith.constant 0 : index
    %c0_80 = arith.constant 0 : index
    %c0_81 = arith.constant 0 : index
    %161 = vector.load %arg2[%c0_77, %c2_78, %c0_79, %c0_80, %c0_81] : memref<3x3x3x16x8xbf16, #tpu.memory_space<vmem>>, vector<1x1x1x16x8xbf16>
    %162 = vector.shape_cast %161 : vector<1x1x1x16x8xbf16> to vector<16x8xbf16>
    %163 = arith.truncf %160 : vector<8x512xf32> to vector<8x512xbf16>
    %cst_82 = arith.constant dense<0.000000e+00> : vector<16x512xf32>
    %164 = tpu.matmul %162, %163, %cst_82 {dimension_numbers = #tpu.dot_dimension_numbers<[1], [0], [0], [1], [0, 0, 1, 1], [], []>} : vector<16x8xbf16>, vector<8x512xbf16>, vector<16x512xf32> -> vector<16x512xf32>
    %165 = arith.addf %138, %164 : vector<16x512xf32>
    %c56_i32 = arith.constant 56 : i32
    %166 = tpu.dynamic_rotate %2 by %c56_i32 dim 1 : vector<8x512xf32>, i32 -> vector<8x512xf32>
    %c1_i32_83 = arith.constant 1 : i32
    %167 = vector.broadcast %c1_i32_83 : i32 to vector<1x512xi32>
    %168 = arith.cmpi sge, %3, %167 : vector<1x512xi32>
    %c9_i32_84 = arith.constant 9 : i32
    %169 = vector.broadcast %c9_i32_84 : i32 to vector<1x512xi32>
    %170 = arith.cmpi slt, %3, %169 : vector<1x512xi32>
    %c-1_i32_85 = arith.constant -1 : i32
    %171 = vector.broadcast %c-1_i32_85 : i32 to vector<1x512xi32>
    %172 = arith.cmpi sge, %4, %171 : vector<1x512xi32>
    %c7_i32_86 = arith.constant 7 : i32
    %173 = vector.broadcast %c7_i32_86 : i32 to vector<1x512xi32>
    %174 = arith.cmpi slt, %4, %173 : vector<1x512xi32>
    %175 = arith.andi %168, %170 : vector<1x512xi1>
    %176 = arith.andi %175, %172 : vector<1x512xi1>
    %177 = arith.andi %176, %174 : vector<1x512xi1>
    %cst_87 = arith.constant 0.000000e+00 : f32
    %178 = vector.shape_cast %177 : vector<1x512xi1> to vector<1x512xi1>
    %179 = vector.broadcast %178 : vector<1x512xi1> to vector<8x512xi1>
    %180 = vector.broadcast %cst_87 : f32 to vector<8x512xf32>
    %181 = arith.select %179, %166, %180 : vector<8x512xi1>, vector<8x512xf32>
    %c0_88 = arith.constant 0 : index
    %c2_89 = arith.constant 2 : index
    %c1_90 = arith.constant 1 : index
    %c0_91 = arith.constant 0 : index
    %c0_92 = arith.constant 0 : index
    %182 = vector.load %arg2[%c0_88, %c2_89, %c1_90, %c0_91, %c0_92] : memref<3x3x3x16x8xbf16, #tpu.memory_space<vmem>>, vector<1x1x1x16x8xbf16>
    %183 = vector.shape_cast %182 : vector<1x1x1x16x8xbf16> to vector<16x8xbf16>
    %184 = arith.truncf %181 : vector<8x512xf32> to vector<8x512xbf16>
    %cst_93 = arith.constant dense<0.000000e+00> : vector<16x512xf32>
    %185 = tpu.matmul %183, %184, %cst_93 {dimension_numbers = #tpu.dot_dimension_numbers<[1], [0], [0], [1], [0, 0, 1, 1], [], []>} : vector<16x8xbf16>, vector<8x512xbf16>, vector<16x512xf32> -> vector<16x512xf32>
    %186 = arith.addf %165, %185 : vector<16x512xf32>
    %c55_i32 = arith.constant 55 : i32
    %187 = tpu.dynamic_rotate %2 by %c55_i32 dim 1 : vector<8x512xf32>, i32 -> vector<8x512xf32>
    %c1_i32_94 = arith.constant 1 : i32
    %188 = vector.broadcast %c1_i32_94 : i32 to vector<1x512xi32>
    %189 = arith.cmpi sge, %3, %188 : vector<1x512xi32>
    %c9_i32_95 = arith.constant 9 : i32
    %190 = vector.broadcast %c9_i32_95 : i32 to vector<1x512xi32>
    %191 = arith.cmpi slt, %3, %190 : vector<1x512xi32>
    %c-1_i32_96 = arith.constant -1 : i32
    %192 = vector.broadcast %c-1_i32_96 : i32 to vector<1x512xi32>
    %193 = arith.cmpi sge, %4, %192 : vector<1x512xi32>
    %c7_i32_97 = arith.constant 7 : i32
    %194 = vector.broadcast %c7_i32_97 : i32 to vector<1x512xi32>
    %195 = arith.cmpi slt, %4, %194 : vector<1x512xi32>
    %c-1_i32_98 = arith.constant -1 : i32
    %196 = vector.broadcast %c-1_i32_98 : i32 to vector<1x512xi32>
    %197 = arith.cmpi sge, %5, %196 : vector<1x512xi32>
    %c7_i32_99 = arith.constant 7 : i32
    %198 = vector.broadcast %c7_i32_99 : i32 to vector<1x512xi32>
    %199 = arith.cmpi slt, %5, %198 : vector<1x512xi32>
    %200 = arith.andi %189, %191 : vector<1x512xi1>
    %201 = arith.andi %200, %193 : vector<1x512xi1>
    %202 = arith.andi %201, %195 : vector<1x512xi1>
    %203 = arith.andi %202, %197 : vector<1x512xi1>
    %204 = arith.andi %203, %199 : vector<1x512xi1>
    %cst_100 = arith.constant 0.000000e+00 : f32
    %205 = vector.shape_cast %204 : vector<1x512xi1> to vector<1x512xi1>
    %206 = vector.broadcast %205 : vector<1x512xi1> to vector<8x512xi1>
    %207 = vector.broadcast %cst_100 : f32 to vector<8x512xf32>
    %208 = arith.select %206, %187, %207 : vector<8x512xi1>, vector<8x512xf32>
    %c0_101 = arith.constant 0 : index
    %c2_102 = arith.constant 2 : index
    %c2_103 = arith.constant 2 : index
    %c0_104 = arith.constant 0 : index
    %c0_105 = arith.constant 0 : index
    %209 = vector.load %arg2[%c0_101, %c2_102, %c2_103, %c0_104, %c0_105] : memref<3x3x3x16x8xbf16, #tpu.memory_space<vmem>>, vector<1x1x1x16x8xbf16>
    %210 = vector.shape_cast %209 : vector<1x1x1x16x8xbf16> to vector<16x8xbf16>
    %211 = arith.truncf %208 : vector<8x512xf32> to vector<8x512xbf16>
    %cst_106 = arith.constant dense<0.000000e+00> : vector<16x512xf32>
    %212 = tpu.matmul %210, %211, %cst_106 {dimension_numbers = #tpu.dot_dimension_numbers<[1], [0], [0], [1], [0, 0, 1, 1], [], []>} : vector<16x8xbf16>, vector<8x512xbf16>, vector<16x512xf32> -> vector<16x512xf32>
    %213 = arith.addf %186, %212 : vector<16x512xf32>
    %c9_i32_107 = arith.constant 9 : i32
    %214 = tpu.dynamic_rotate %2 by %c9_i32_107 dim 1 : vector<8x512xf32>, i32 -> vector<8x512xf32>
    %c1_i32_108 = arith.constant 1 : i32
    %215 = vector.broadcast %c1_i32_108 : i32 to vector<1x512xi32>
    %216 = arith.cmpi sge, %4, %215 : vector<1x512xi32>
    %c9_i32_109 = arith.constant 9 : i32
    %217 = vector.broadcast %c9_i32_109 : i32 to vector<1x512xi32>
    %218 = arith.cmpi slt, %4, %217 : vector<1x512xi32>
    %c1_i32_110 = arith.constant 1 : i32
    %219 = vector.broadcast %c1_i32_110 : i32 to vector<1x512xi32>
    %220 = arith.cmpi sge, %5, %219 : vector<1x512xi32>
    %c9_i32_111 = arith.constant 9 : i32
    %221 = vector.broadcast %c9_i32_111 : i32 to vector<1x512xi32>
    %222 = arith.cmpi slt, %5, %221 : vector<1x512xi32>
    %223 = arith.andi %216, %218 : vector<1x512xi1>
    %224 = arith.andi %223, %220 : vector<1x512xi1>
    %225 = arith.andi %224, %222 : vector<1x512xi1>
    %cst_112 = arith.constant 0.000000e+00 : f32
    %226 = vector.shape_cast %225 : vector<1x512xi1> to vector<1x512xi1>
    %227 = vector.broadcast %226 : vector<1x512xi1> to vector<8x512xi1>
    %228 = vector.broadcast %cst_112 : f32 to vector<8x512xf32>
    %229 = arith.select %227, %214, %228 : vector<8x512xi1>, vector<8x512xf32>
    %c1_113 = arith.constant 1 : index
    %c0_114 = arith.constant 0 : index
    %c0_115 = arith.constant 0 : index
    %c0_116 = arith.constant 0 : index
    %c0_117 = arith.constant 0 : index
    %230 = vector.load %arg2[%c1_113, %c0_114, %c0_115, %c0_116, %c0_117] : memref<3x3x3x16x8xbf16, #tpu.memory_space<vmem>>, vector<1x1x1x16x8xbf16>
    %231 = vector.shape_cast %230 : vector<1x1x1x16x8xbf16> to vector<16x8xbf16>
    %232 = arith.truncf %229 : vector<8x512xf32> to vector<8x512xbf16>
    %cst_118 = arith.constant dense<0.000000e+00> : vector<16x512xf32>
    %233 = tpu.matmul %231, %232, %cst_118 {dimension_numbers = #tpu.dot_dimension_numbers<[1], [0], [0], [1], [0, 0, 1, 1], [], []>} : vector<16x8xbf16>, vector<8x512xbf16>, vector<16x512xf32> -> vector<16x512xf32>
    %234 = arith.addf %213, %233 : vector<16x512xf32>
    %c8_i32 = arith.constant 8 : i32
    %235 = tpu.dynamic_rotate %2 by %c8_i32 dim 1 : vector<8x512xf32>, i32 -> vector<8x512xf32>
    %c1_i32_119 = arith.constant 1 : i32
    %236 = vector.broadcast %c1_i32_119 : i32 to vector<1x512xi32>
    %237 = arith.cmpi sge, %4, %236 : vector<1x512xi32>
    %c9_i32_120 = arith.constant 9 : i32
    %238 = vector.broadcast %c9_i32_120 : i32 to vector<1x512xi32>
    %239 = arith.cmpi slt, %4, %238 : vector<1x512xi32>
    %240 = arith.andi %237, %239 : vector<1x512xi1>
    %cst_121 = arith.constant 0.000000e+00 : f32
    %241 = vector.shape_cast %240 : vector<1x512xi1> to vector<1x512xi1>
    %242 = vector.broadcast %241 : vector<1x512xi1> to vector<8x512xi1>
    %243 = vector.broadcast %cst_121 : f32 to vector<8x512xf32>
    %244 = arith.select %242, %235, %243 : vector<8x512xi1>, vector<8x512xf32>
    %c1_122 = arith.constant 1 : index
    %c0_123 = arith.constant 0 : index
    %c1_124 = arith.constant 1 : index
    %c0_125 = arith.constant 0 : index
    %c0_126 = arith.constant 0 : index
    %245 = vector.load %arg2[%c1_122, %c0_123, %c1_124, %c0_125, %c0_126] : memref<3x3x3x16x8xbf16, #tpu.memory_space<vmem>>, vector<1x1x1x16x8xbf16>
    %246 = vector.shape_cast %245 : vector<1x1x1x16x8xbf16> to vector<16x8xbf16>
    %247 = arith.truncf %244 : vector<8x512xf32> to vector<8x512xbf16>
    %cst_127 = arith.constant dense<0.000000e+00> : vector<16x512xf32>
    %248 = tpu.matmul %246, %247, %cst_127 {dimension_numbers = #tpu.dot_dimension_numbers<[1], [0], [0], [1], [0, 0, 1, 1], [], []>} : vector<16x8xbf16>, vector<8x512xbf16>, vector<16x512xf32> -> vector<16x512xf32>
    %249 = arith.addf %234, %248 : vector<16x512xf32>
    %c7_i32_128 = arith.constant 7 : i32
    %250 = tpu.dynamic_rotate %2 by %c7_i32_128 dim 1 : vector<8x512xf32>, i32 -> vector<8x512xf32>
    %c1_i32_129 = arith.constant 1 : i32
    %251 = vector.broadcast %c1_i32_129 : i32 to vector<1x512xi32>
    %252 = arith.cmpi sge, %4, %251 : vector<1x512xi32>
    %c9_i32_130 = arith.constant 9 : i32
    %253 = vector.broadcast %c9_i32_130 : i32 to vector<1x512xi32>
    %254 = arith.cmpi slt, %4, %253 : vector<1x512xi32>
    %c-1_i32_131 = arith.constant -1 : i32
    %255 = vector.broadcast %c-1_i32_131 : i32 to vector<1x512xi32>
    %256 = arith.cmpi sge, %5, %255 : vector<1x512xi32>
    %c7_i32_132 = arith.constant 7 : i32
    %257 = vector.broadcast %c7_i32_132 : i32 to vector<1x512xi32>
    %258 = arith.cmpi slt, %5, %257 : vector<1x512xi32>
    %259 = arith.andi %252, %254 : vector<1x512xi1>
    %260 = arith.andi %259, %256 : vector<1x512xi1>
    %261 = arith.andi %260, %258 : vector<1x512xi1>
    %cst_133 = arith.constant 0.000000e+00 : f32
    %262 = vector.shape_cast %261 : vector<1x512xi1> to vector<1x512xi1>
    %263 = vector.broadcast %262 : vector<1x512xi1> to vector<8x512xi1>
    %264 = vector.broadcast %cst_133 : f32 to vector<8x512xf32>
    %265 = arith.select %263, %250, %264 : vector<8x512xi1>, vector<8x512xf32>
    %c1_134 = arith.constant 1 : index
    %c0_135 = arith.constant 0 : index
    %c2_136 = arith.constant 2 : index
    %c0_137 = arith.constant 0 : index
    %c0_138 = arith.constant 0 : index
    %266 = vector.load %arg2[%c1_134, %c0_135, %c2_136, %c0_137, %c0_138] : memref<3x3x3x16x8xbf16, #tpu.memory_space<vmem>>, vector<1x1x1x16x8xbf16>
    %267 = vector.shape_cast %266 : vector<1x1x1x16x8xbf16> to vector<16x8xbf16>
    %268 = arith.truncf %265 : vector<8x512xf32> to vector<8x512xbf16>
    %cst_139 = arith.constant dense<0.000000e+00> : vector<16x512xf32>
    %269 = tpu.matmul %267, %268, %cst_139 {dimension_numbers = #tpu.dot_dimension_numbers<[1], [0], [0], [1], [0, 0, 1, 1], [], []>} : vector<16x8xbf16>, vector<8x512xbf16>, vector<16x512xf32> -> vector<16x512xf32>
    %270 = arith.addf %249, %269 : vector<16x512xf32>
    %c1_i32_140 = arith.constant 1 : i32
    %271 = tpu.dynamic_rotate %2 by %c1_i32_140 dim 1 : vector<8x512xf32>, i32 -> vector<8x512xf32>
    %c1_i32_141 = arith.constant 1 : i32
    %272 = vector.broadcast %c1_i32_141 : i32 to vector<1x512xi32>
    %273 = arith.cmpi sge, %5, %272 : vector<1x512xi32>
    %c9_i32_142 = arith.constant 9 : i32
    %274 = vector.broadcast %c9_i32_142 : i32 to vector<1x512xi32>
    %275 = arith.cmpi slt, %5, %274 : vector<1x512xi32>
    %276 = arith.andi %273, %275 : vector<1x512xi1>
    %cst_143 = arith.constant 0.000000e+00 : f32
    %277 = vector.shape_cast %276 : vector<1x512xi1> to vector<1x512xi1>
    %278 = vector.broadcast %277 : vector<1x512xi1> to vector<8x512xi1>
    %279 = vector.broadcast %cst_143 : f32 to vector<8x512xf32>
    %280 = arith.select %278, %271, %279 : vector<8x512xi1>, vector<8x512xf32>
    %c1_144 = arith.constant 1 : index
    %c1_145 = arith.constant 1 : index
    %c0_146 = arith.constant 0 : index
    %c0_147 = arith.constant 0 : index
    %c0_148 = arith.constant 0 : index
    %281 = vector.load %arg2[%c1_144, %c1_145, %c0_146, %c0_147, %c0_148] : memref<3x3x3x16x8xbf16, #tpu.memory_space<vmem>>, vector<1x1x1x16x8xbf16>
    %282 = vector.shape_cast %281 : vector<1x1x1x16x8xbf16> to vector<16x8xbf16>
    %283 = arith.truncf %280 : vector<8x512xf32> to vector<8x512xbf16>
    %cst_149 = arith.constant dense<0.000000e+00> : vector<16x512xf32>
    %284 = tpu.matmul %282, %283, %cst_149 {dimension_numbers = #tpu.dot_dimension_numbers<[1], [0], [0], [1], [0, 0, 1, 1], [], []>} : vector<16x8xbf16>, vector<8x512xbf16>, vector<16x512xf32> -> vector<16x512xf32>
    %285 = arith.addf %270, %284 : vector<16x512xf32>
    %c1_150 = arith.constant 1 : index
    %c1_151 = arith.constant 1 : index
    %c1_152 = arith.constant 1 : index
    %c0_153 = arith.constant 0 : index
    %c0_154 = arith.constant 0 : index
    %286 = vector.load %arg2[%c1_150, %c1_151, %c1_152, %c0_153, %c0_154] : memref<3x3x3x16x8xbf16, #tpu.memory_space<vmem>>, vector<1x1x1x16x8xbf16>
    %287 = vector.shape_cast %286 : vector<1x1x1x16x8xbf16> to vector<16x8xbf16>
    %288 = arith.truncf %2 : vector<8x512xf32> to vector<8x512xbf16>
    %cst_155 = arith.constant dense<0.000000e+00> : vector<16x512xf32>
    %289 = tpu.matmul %287, %288, %cst_155 {dimension_numbers = #tpu.dot_dimension_numbers<[1], [0], [0], [1], [0, 0, 1, 1], [], []>} : vector<16x8xbf16>, vector<8x512xbf16>, vector<16x512xf32> -> vector<16x512xf32>
    %290 = arith.addf %285, %289 : vector<16x512xf32>
    %c511_i32 = arith.constant 511 : i32
    %291 = tpu.dynamic_rotate %2 by %c511_i32 dim 1 : vector<8x512xf32>, i32 -> vector<8x512xf32>
    %c-1_i32_156 = arith.constant -1 : i32
    %292 = vector.broadcast %c-1_i32_156 : i32 to vector<1x512xi32>
    %293 = arith.cmpi sge, %5, %292 : vector<1x512xi32>
    %c7_i32_157 = arith.constant 7 : i32
    %294 = vector.broadcast %c7_i32_157 : i32 to vector<1x512xi32>
    %295 = arith.cmpi slt, %5, %294 : vector<1x512xi32>
    %296 = arith.andi %293, %295 : vector<1x512xi1>
    %cst_158 = arith.constant 0.000000e+00 : f32
    %297 = vector.shape_cast %296 : vector<1x512xi1> to vector<1x512xi1>
    %298 = vector.broadcast %297 : vector<1x512xi1> to vector<8x512xi1>
    %299 = vector.broadcast %cst_158 : f32 to vector<8x512xf32>
    %300 = arith.select %298, %291, %299 : vector<8x512xi1>, vector<8x512xf32>
    %c1_159 = arith.constant 1 : index
    %c1_160 = arith.constant 1 : index
    %c2_161 = arith.constant 2 : index
    %c0_162 = arith.constant 0 : index
    %c0_163 = arith.constant 0 : index
    %301 = vector.load %arg2[%c1_159, %c1_160, %c2_161, %c0_162, %c0_163] : memref<3x3x3x16x8xbf16, #tpu.memory_space<vmem>>, vector<1x1x1x16x8xbf16>
    %302 = vector.shape_cast %301 : vector<1x1x1x16x8xbf16> to vector<16x8xbf16>
    %303 = arith.truncf %300 : vector<8x512xf32> to vector<8x512xbf16>
    %cst_164 = arith.constant dense<0.000000e+00> : vector<16x512xf32>
    %304 = tpu.matmul %302, %303, %cst_164 {dimension_numbers = #tpu.dot_dimension_numbers<[1], [0], [0], [1], [0, 0, 1, 1], [], []>} : vector<16x8xbf16>, vector<8x512xbf16>, vector<16x512xf32> -> vector<16x512xf32>
    %305 = arith.addf %290, %304 : vector<16x512xf32>
    %c505_i32 = arith.constant 505 : i32
    %306 = tpu.dynamic_rotate %2 by %c505_i32 dim 1 : vector<8x512xf32>, i32 -> vector<8x512xf32>
    %c-1_i32_165 = arith.constant -1 : i32
    %307 = vector.broadcast %c-1_i32_165 : i32 to vector<1x512xi32>
    %308 = arith.cmpi sge, %4, %307 : vector<1x512xi32>
    %c7_i32_166 = arith.constant 7 : i32
    %309 = vector.broadcast %c7_i32_166 : i32 to vector<1x512xi32>
    %310 = arith.cmpi slt, %4, %309 : vector<1x512xi32>
    %c1_i32_167 = arith.constant 1 : i32
    %311 = vector.broadcast %c1_i32_167 : i32 to vector<1x512xi32>
    %312 = arith.cmpi sge, %5, %311 : vector<1x512xi32>
    %c9_i32_168 = arith.constant 9 : i32
    %313 = vector.broadcast %c9_i32_168 : i32 to vector<1x512xi32>
    %314 = arith.cmpi slt, %5, %313 : vector<1x512xi32>
    %315 = arith.andi %308, %310 : vector<1x512xi1>
    %316 = arith.andi %315, %312 : vector<1x512xi1>
    %317 = arith.andi %316, %314 : vector<1x512xi1>
    %cst_169 = arith.constant 0.000000e+00 : f32
    %318 = vector.shape_cast %317 : vector<1x512xi1> to vector<1x512xi1>
    %319 = vector.broadcast %318 : vector<1x512xi1> to vector<8x512xi1>
    %320 = vector.broadcast %cst_169 : f32 to vector<8x512xf32>
    %321 = arith.select %319, %306, %320 : vector<8x512xi1>, vector<8x512xf32>
    %c1_170 = arith.constant 1 : index
    %c2_171 = arith.constant 2 : index
    %c0_172 = arith.constant 0 : index
    %c0_173 = arith.constant 0 : index
    %c0_174 = arith.constant 0 : index
    %322 = vector.load %arg2[%c1_170, %c2_171, %c0_172, %c0_173, %c0_174] : memref<3x3x3x16x8xbf16, #tpu.memory_space<vmem>>, vector<1x1x1x16x8xbf16>
    %323 = vector.shape_cast %322 : vector<1x1x1x16x8xbf16> to vector<16x8xbf16>
    %324 = arith.truncf %321 : vector<8x512xf32> to vector<8x512xbf16>
    %cst_175 = arith.constant dense<0.000000e+00> : vector<16x512xf32>
    %325 = tpu.matmul %323, %324, %cst_175 {dimension_numbers = #tpu.dot_dimension_numbers<[1], [0], [0], [1], [0, 0, 1, 1], [], []>} : vector<16x8xbf16>, vector<8x512xbf16>, vector<16x512xf32> -> vector<16x512xf32>
    %326 = arith.addf %305, %325 : vector<16x512xf32>
    %c504_i32 = arith.constant 504 : i32
    %327 = tpu.dynamic_rotate %2 by %c504_i32 dim 1 : vector<8x512xf32>, i32 -> vector<8x512xf32>
    %c-1_i32_176 = arith.constant -1 : i32
    %328 = vector.broadcast %c-1_i32_176 : i32 to vector<1x512xi32>
    %329 = arith.cmpi sge, %4, %328 : vector<1x512xi32>
    %c7_i32_177 = arith.constant 7 : i32
    %330 = vector.broadcast %c7_i32_177 : i32 to vector<1x512xi32>
    %331 = arith.cmpi slt, %4, %330 : vector<1x512xi32>
    %332 = arith.andi %329, %331 : vector<1x512xi1>
    %cst_178 = arith.constant 0.000000e+00 : f32
    %333 = vector.shape_cast %332 : vector<1x512xi1> to vector<1x512xi1>
    %334 = vector.broadcast %333 : vector<1x512xi1> to vector<8x512xi1>
    %335 = vector.broadcast %cst_178 : f32 to vector<8x512xf32>
    %336 = arith.select %334, %327, %335 : vector<8x512xi1>, vector<8x512xf32>
    %c1_179 = arith.constant 1 : index
    %c2_180 = arith.constant 2 : index
    %c1_181 = arith.constant 1 : index
    %c0_182 = arith.constant 0 : index
    %c0_183 = arith.constant 0 : index
    %337 = vector.load %arg2[%c1_179, %c2_180, %c1_181, %c0_182, %c0_183] : memref<3x3x3x16x8xbf16, #tpu.memory_space<vmem>>, vector<1x1x1x16x8xbf16>
    %338 = vector.shape_cast %337 : vector<1x1x1x16x8xbf16> to vector<16x8xbf16>
    %339 = arith.truncf %336 : vector<8x512xf32> to vector<8x512xbf16>
    %cst_184 = arith.constant dense<0.000000e+00> : vector<16x512xf32>
    %340 = tpu.matmul %338, %339, %cst_184 {dimension_numbers = #tpu.dot_dimension_numbers<[1], [0], [0], [1], [0, 0, 1, 1], [], []>} : vector<16x8xbf16>, vector<8x512xbf16>, vector<16x512xf32> -> vector<16x512xf32>
    %341 = arith.addf %326, %340 : vector<16x512xf32>
    %c503_i32 = arith.constant 503 : i32
    %342 = tpu.dynamic_rotate %2 by %c503_i32 dim 1 : vector<8x512xf32>, i32 -> vector<8x512xf32>
    %c-1_i32_185 = arith.constant -1 : i32
    %343 = vector.broadcast %c-1_i32_185 : i32 to vector<1x512xi32>
    %344 = arith.cmpi sge, %4, %343 : vector<1x512xi32>
    %c7_i32_186 = arith.constant 7 : i32
    %345 = vector.broadcast %c7_i32_186 : i32 to vector<1x512xi32>
    %346 = arith.cmpi slt, %4, %345 : vector<1x512xi32>
    %c-1_i32_187 = arith.constant -1 : i32
    %347 = vector.broadcast %c-1_i32_187 : i32 to vector<1x512xi32>
    %348 = arith.cmpi sge, %5, %347 : vector<1x512xi32>
    %c7_i32_188 = arith.constant 7 : i32
    %349 = vector.broadcast %c7_i32_188 : i32 to vector<1x512xi32>
    %350 = arith.cmpi slt, %5, %349 : vector<1x512xi32>
    %351 = arith.andi %344, %346 : vector<1x512xi1>
    %352 = arith.andi %351, %348 : vector<1x512xi1>
    %353 = arith.andi %352, %350 : vector<1x512xi1>
    %cst_189 = arith.constant 0.000000e+00 : f32
    %354 = vector.shape_cast %353 : vector<1x512xi1> to vector<1x512xi1>
    %355 = vector.broadcast %354 : vector<1x512xi1> to vector<8x512xi1>
    %356 = vector.broadcast %cst_189 : f32 to vector<8x512xf32>
    %357 = arith.select %355, %342, %356 : vector<8x512xi1>, vector<8x512xf32>
    %c1_190 = arith.constant 1 : index
    %c2_191 = arith.constant 2 : index
    %c2_192 = arith.constant 2 : index
    %c0_193 = arith.constant 0 : index
    %c0_194 = arith.constant 0 : index
    %358 = vector.load %arg2[%c1_190, %c2_191, %c2_192, %c0_193, %c0_194] : memref<3x3x3x16x8xbf16, #tpu.memory_space<vmem>>, vector<1x1x1x16x8xbf16>
    %359 = vector.shape_cast %358 : vector<1x1x1x16x8xbf16> to vector<16x8xbf16>
    %360 = arith.truncf %357 : vector<8x512xf32> to vector<8x512xbf16>
    %cst_195 = arith.constant dense<0.000000e+00> : vector<16x512xf32>
    %361 = tpu.matmul %359, %360, %cst_195 {dimension_numbers = #tpu.dot_dimension_numbers<[1], [0], [0], [1], [0, 0, 1, 1], [], []>} : vector<16x8xbf16>, vector<8x512xbf16>, vector<16x512xf32> -> vector<16x512xf32>
    %362 = arith.addf %341, %361 : vector<16x512xf32>
    %c457_i32 = arith.constant 457 : i32
    %363 = tpu.dynamic_rotate %2 by %c457_i32 dim 1 : vector<8x512xf32>, i32 -> vector<8x512xf32>
    %c-1_i32_196 = arith.constant -1 : i32
    %364 = vector.broadcast %c-1_i32_196 : i32 to vector<1x512xi32>
    %365 = arith.cmpi sge, %3, %364 : vector<1x512xi32>
    %c7_i32_197 = arith.constant 7 : i32
    %366 = vector.broadcast %c7_i32_197 : i32 to vector<1x512xi32>
    %367 = arith.cmpi slt, %3, %366 : vector<1x512xi32>
    %c1_i32_198 = arith.constant 1 : i32
    %368 = vector.broadcast %c1_i32_198 : i32 to vector<1x512xi32>
    %369 = arith.cmpi sge, %4, %368 : vector<1x512xi32>
    %c9_i32_199 = arith.constant 9 : i32
    %370 = vector.broadcast %c9_i32_199 : i32 to vector<1x512xi32>
    %371 = arith.cmpi slt, %4, %370 : vector<1x512xi32>
    %c1_i32_200 = arith.constant 1 : i32
    %372 = vector.broadcast %c1_i32_200 : i32 to vector<1x512xi32>
    %373 = arith.cmpi sge, %5, %372 : vector<1x512xi32>
    %c9_i32_201 = arith.constant 9 : i32
    %374 = vector.broadcast %c9_i32_201 : i32 to vector<1x512xi32>
    %375 = arith.cmpi slt, %5, %374 : vector<1x512xi32>
    %376 = arith.andi %365, %367 : vector<1x512xi1>
    %377 = arith.andi %376, %369 : vector<1x512xi1>
    %378 = arith.andi %377, %371 : vector<1x512xi1>
    %379 = arith.andi %378, %373 : vector<1x512xi1>
    %380 = arith.andi %379, %375 : vector<1x512xi1>
    %cst_202 = arith.constant 0.000000e+00 : f32
    %381 = vector.shape_cast %380 : vector<1x512xi1> to vector<1x512xi1>
    %382 = vector.broadcast %381 : vector<1x512xi1> to vector<8x512xi1>
    %383 = vector.broadcast %cst_202 : f32 to vector<8x512xf32>
    %384 = arith.select %382, %363, %383 : vector<8x512xi1>, vector<8x512xf32>
    %c2_203 = arith.constant 2 : index
    %c0_204 = arith.constant 0 : index
    %c0_205 = arith.constant 0 : index
    %c0_206 = arith.constant 0 : index
    %c0_207 = arith.constant 0 : index
    %385 = vector.load %arg2[%c2_203, %c0_204, %c0_205, %c0_206, %c0_207] : memref<3x3x3x16x8xbf16, #tpu.memory_space<vmem>>, vector<1x1x1x16x8xbf16>
    %386 = vector.shape_cast %385 : vector<1x1x1x16x8xbf16> to vector<16x8xbf16>
    %387 = arith.truncf %384 : vector<8x512xf32> to vector<8x512xbf16>
    %cst_208 = arith.constant dense<0.000000e+00> : vector<16x512xf32>
    %388 = tpu.matmul %386, %387, %cst_208 {dimension_numbers = #tpu.dot_dimension_numbers<[1], [0], [0], [1], [0, 0, 1, 1], [], []>} : vector<16x8xbf16>, vector<8x512xbf16>, vector<16x512xf32> -> vector<16x512xf32>
    %389 = arith.addf %362, %388 : vector<16x512xf32>
    %c456_i32 = arith.constant 456 : i32
    %390 = tpu.dynamic_rotate %2 by %c456_i32 dim 1 : vector<8x512xf32>, i32 -> vector<8x512xf32>
    %c-1_i32_209 = arith.constant -1 : i32
    %391 = vector.broadcast %c-1_i32_209 : i32 to vector<1x512xi32>
    %392 = arith.cmpi sge, %3, %391 : vector<1x512xi32>
    %c7_i32_210 = arith.constant 7 : i32
    %393 = vector.broadcast %c7_i32_210 : i32 to vector<1x512xi32>
    %394 = arith.cmpi slt, %3, %393 : vector<1x512xi32>
    %c1_i32_211 = arith.constant 1 : i32
    %395 = vector.broadcast %c1_i32_211 : i32 to vector<1x512xi32>
    %396 = arith.cmpi sge, %4, %395 : vector<1x512xi32>
    %c9_i32_212 = arith.constant 9 : i32
    %397 = vector.broadcast %c9_i32_212 : i32 to vector<1x512xi32>
    %398 = arith.cmpi slt, %4, %397 : vector<1x512xi32>
    %399 = arith.andi %392, %394 : vector<1x512xi1>
    %400 = arith.andi %399, %396 : vector<1x512xi1>
    %401 = arith.andi %400, %398 : vector<1x512xi1>
    %cst_213 = arith.constant 0.000000e+00 : f32
    %402 = vector.shape_cast %401 : vector<1x512xi1> to vector<1x512xi1>
    %403 = vector.broadcast %402 : vector<1x512xi1> to vector<8x512xi1>
    %404 = vector.broadcast %cst_213 : f32 to vector<8x512xf32>
    %405 = arith.select %403, %390, %404 : vector<8x512xi1>, vector<8x512xf32>
    %c2_214 = arith.constant 2 : index
    %c0_215 = arith.constant 0 : index
    %c1_216 = arith.constant 1 : index
    %c0_217 = arith.constant 0 : index
    %c0_218 = arith.constant 0 : index
    %406 = vector.load %arg2[%c2_214, %c0_215, %c1_216, %c0_217, %c0_218] : memref<3x3x3x16x8xbf16, #tpu.memory_space<vmem>>, vector<1x1x1x16x8xbf16>
    %407 = vector.shape_cast %406 : vector<1x1x1x16x8xbf16> to vector<16x8xbf16>
    %408 = arith.truncf %405 : vector<8x512xf32> to vector<8x512xbf16>
    %cst_219 = arith.constant dense<0.000000e+00> : vector<16x512xf32>
    %409 = tpu.matmul %407, %408, %cst_219 {dimension_numbers = #tpu.dot_dimension_numbers<[1], [0], [0], [1], [0, 0, 1, 1], [], []>} : vector<16x8xbf16>, vector<8x512xbf16>, vector<16x512xf32> -> vector<16x512xf32>
    %410 = arith.addf %389, %409 : vector<16x512xf32>
    %c455_i32 = arith.constant 455 : i32
    %411 = tpu.dynamic_rotate %2 by %c455_i32 dim 1 : vector<8x512xf32>, i32 -> vector<8x512xf32>
    %c-1_i32_220 = arith.constant -1 : i32
    %412 = vector.broadcast %c-1_i32_220 : i32 to vector<1x512xi32>
    %413 = arith.cmpi sge, %3, %412 : vector<1x512xi32>
    %c7_i32_221 = arith.constant 7 : i32
    %414 = vector.broadcast %c7_i32_221 : i32 to vector<1x512xi32>
    %415 = arith.cmpi slt, %3, %414 : vector<1x512xi32>
    %c1_i32_222 = arith.constant 1 : i32
    %416 = vector.broadcast %c1_i32_222 : i32 to vector<1x512xi32>
    %417 = arith.cmpi sge, %4, %416 : vector<1x512xi32>
    %c9_i32_223 = arith.constant 9 : i32
    %418 = vector.broadcast %c9_i32_223 : i32 to vector<1x512xi32>
    %419 = arith.cmpi slt, %4, %418 : vector<1x512xi32>
    %c-1_i32_224 = arith.constant -1 : i32
    %420 = vector.broadcast %c-1_i32_224 : i32 to vector<1x512xi32>
    %421 = arith.cmpi sge, %5, %420 : vector<1x512xi32>
    %c7_i32_225 = arith.constant 7 : i32
    %422 = vector.broadcast %c7_i32_225 : i32 to vector<1x512xi32>
    %423 = arith.cmpi slt, %5, %422 : vector<1x512xi32>
    %424 = arith.andi %413, %415 : vector<1x512xi1>
    %425 = arith.andi %424, %417 : vector<1x512xi1>
    %426 = arith.andi %425, %419 : vector<1x512xi1>
    %427 = arith.andi %426, %421 : vector<1x512xi1>
    %428 = arith.andi %427, %423 : vector<1x512xi1>
    %cst_226 = arith.constant 0.000000e+00 : f32
    %429 = vector.shape_cast %428 : vector<1x512xi1> to vector<1x512xi1>
    %430 = vector.broadcast %429 : vector<1x512xi1> to vector<8x512xi1>
    %431 = vector.broadcast %cst_226 : f32 to vector<8x512xf32>
    %432 = arith.select %430, %411, %431 : vector<8x512xi1>, vector<8x512xf32>
    %c2_227 = arith.constant 2 : index
    %c0_228 = arith.constant 0 : index
    %c2_229 = arith.constant 2 : index
    %c0_230 = arith.constant 0 : index
    %c0_231 = arith.constant 0 : index
    %433 = vector.load %arg2[%c2_227, %c0_228, %c2_229, %c0_230, %c0_231] : memref<3x3x3x16x8xbf16, #tpu.memory_space<vmem>>, vector<1x1x1x16x8xbf16>
    %434 = vector.shape_cast %433 : vector<1x1x1x16x8xbf16> to vector<16x8xbf16>
    %435 = arith.truncf %432 : vector<8x512xf32> to vector<8x512xbf16>
    %cst_232 = arith.constant dense<0.000000e+00> : vector<16x512xf32>
    %436 = tpu.matmul %434, %435, %cst_232 {dimension_numbers = #tpu.dot_dimension_numbers<[1], [0], [0], [1], [0, 0, 1, 1], [], []>} : vector<16x8xbf16>, vector<8x512xbf16>, vector<16x512xf32> -> vector<16x512xf32>
    %437 = arith.addf %410, %436 : vector<16x512xf32>
    %c449_i32 = arith.constant 449 : i32
    %438 = tpu.dynamic_rotate %2 by %c449_i32 dim 1 : vector<8x512xf32>, i32 -> vector<8x512xf32>
    %c-1_i32_233 = arith.constant -1 : i32
    %439 = vector.broadcast %c-1_i32_233 : i32 to vector<1x512xi32>
    %440 = arith.cmpi sge, %3, %439 : vector<1x512xi32>
    %c7_i32_234 = arith.constant 7 : i32
    %441 = vector.broadcast %c7_i32_234 : i32 to vector<1x512xi32>
    %442 = arith.cmpi slt, %3, %441 : vector<1x512xi32>
    %c1_i32_235 = arith.constant 1 : i32
    %443 = vector.broadcast %c1_i32_235 : i32 to vector<1x512xi32>
    %444 = arith.cmpi sge, %5, %443 : vector<1x512xi32>
    %c9_i32_236 = arith.constant 9 : i32
    %445 = vector.broadcast %c9_i32_236 : i32 to vector<1x512xi32>
    %446 = arith.cmpi slt, %5, %445 : vector<1x512xi32>
    %447 = arith.andi %440, %442 : vector<1x512xi1>
    %448 = arith.andi %447, %444 : vector<1x512xi1>
    %449 = arith.andi %448, %446 : vector<1x512xi1>
    %cst_237 = arith.constant 0.000000e+00 : f32
    %450 = vector.shape_cast %449 : vector<1x512xi1> to vector<1x512xi1>
    %451 = vector.broadcast %450 : vector<1x512xi1> to vector<8x512xi1>
    %452 = vector.broadcast %cst_237 : f32 to vector<8x512xf32>
    %453 = arith.select %451, %438, %452 : vector<8x512xi1>, vector<8x512xf32>
    %c2_238 = arith.constant 2 : index
    %c1_239 = arith.constant 1 : index
    %c0_240 = arith.constant 0 : index
    %c0_241 = arith.constant 0 : index
    %c0_242 = arith.constant 0 : index
    %454 = vector.load %arg2[%c2_238, %c1_239, %c0_240, %c0_241, %c0_242] : memref<3x3x3x16x8xbf16, #tpu.memory_space<vmem>>, vector<1x1x1x16x8xbf16>
    %455 = vector.shape_cast %454 : vector<1x1x1x16x8xbf16> to vector<16x8xbf16>
    %456 = arith.truncf %453 : vector<8x512xf32> to vector<8x512xbf16>
    %cst_243 = arith.constant dense<0.000000e+00> : vector<16x512xf32>
    %457 = tpu.matmul %455, %456, %cst_243 {dimension_numbers = #tpu.dot_dimension_numbers<[1], [0], [0], [1], [0, 0, 1, 1], [], []>} : vector<16x8xbf16>, vector<8x512xbf16>, vector<16x512xf32> -> vector<16x512xf32>
    %458 = arith.addf %437, %457 : vector<16x512xf32>
    %c448_i32 = arith.constant 448 : i32
    %459 = tpu.dynamic_rotate %2 by %c448_i32 dim 1 : vector<8x512xf32>, i32 -> vector<8x512xf32>
    %c-1_i32_244 = arith.constant -1 : i32
    %460 = vector.broadcast %c-1_i32_244 : i32 to vector<1x512xi32>
    %461 = arith.cmpi sge, %3, %460 : vector<1x512xi32>
    %c7_i32_245 = arith.constant 7 : i32
    %462 = vector.broadcast %c7_i32_245 : i32 to vector<1x512xi32>
    %463 = arith.cmpi slt, %3, %462 : vector<1x512xi32>
    %464 = arith.andi %461, %463 : vector<1x512xi1>
    %cst_246 = arith.constant 0.000000e+00 : f32
    %465 = vector.shape_cast %464 : vector<1x512xi1> to vector<1x512xi1>
    %466 = vector.broadcast %465 : vector<1x512xi1> to vector<8x512xi1>
    %467 = vector.broadcast %cst_246 : f32 to vector<8x512xf32>
    %468 = arith.select %466, %459, %467 : vector<8x512xi1>, vector<8x512xf32>
    %c2_247 = arith.constant 2 : index
    %c1_248 = arith.constant 1 : index
    %c1_249 = arith.constant 1 : index
    %c0_250 = arith.constant 0 : index
    %c0_251 = arith.constant 0 : index
    %469 = vector.load %arg2[%c2_247, %c1_248, %c1_249, %c0_250, %c0_251] : memref<3x3x3x16x8xbf16, #tpu.memory_space<vmem>>, vector<1x1x1x16x8xbf16>
    %470 = vector.shape_cast %469 : vector<1x1x1x16x8xbf16> to vector<16x8xbf16>
    %471 = arith.truncf %468 : vector<8x512xf32> to vector<8x512xbf16>
    %cst_252 = arith.constant dense<0.000000e+00> : vector<16x512xf32>
    %472 = tpu.matmul %470, %471, %cst_252 {dimension_numbers = #tpu.dot_dimension_numbers<[1], [0], [0], [1], [0, 0, 1, 1], [], []>} : vector<16x8xbf16>, vector<8x512xbf16>, vector<16x512xf32> -> vector<16x512xf32>
    %473 = arith.addf %458, %472 : vector<16x512xf32>
    %c447_i32 = arith.constant 447 : i32
    %474 = tpu.dynamic_rotate %2 by %c447_i32 dim 1 : vector<8x512xf32>, i32 -> vector<8x512xf32>
    %c-1_i32_253 = arith.constant -1 : i32
    %475 = vector.broadcast %c-1_i32_253 : i32 to vector<1x512xi32>
    %476 = arith.cmpi sge, %3, %475 : vector<1x512xi32>
    %c7_i32_254 = arith.constant 7 : i32
    %477 = vector.broadcast %c7_i32_254 : i32 to vector<1x512xi32>
    %478 = arith.cmpi slt, %3, %477 : vector<1x512xi32>
    %c-1_i32_255 = arith.constant -1 : i32
    %479 = vector.broadcast %c-1_i32_255 : i32 to vector<1x512xi32>
    %480 = arith.cmpi sge, %5, %479 : vector<1x512xi32>
    %c7_i32_256 = arith.constant 7 : i32
    %481 = vector.broadcast %c7_i32_256 : i32 to vector<1x512xi32>
    %482 = arith.cmpi slt, %5, %481 : vector<1x512xi32>
    %483 = arith.andi %476, %478 : vector<1x512xi1>
    %484 = arith.andi %483, %480 : vector<1x512xi1>
    %485 = arith.andi %484, %482 : vector<1x512xi1>
    %cst_257 = arith.constant 0.000000e+00 : f32
    %486 = vector.shape_cast %485 : vector<1x512xi1> to vector<1x512xi1>
    %487 = vector.broadcast %486 : vector<1x512xi1> to vector<8x512xi1>
    %488 = vector.broadcast %cst_257 : f32 to vector<8x512xf32>
    %489 = arith.select %487, %474, %488 : vector<8x512xi1>, vector<8x512xf32>
    %c2_258 = arith.constant 2 : index
    %c1_259 = arith.constant 1 : index
    %c2_260 = arith.constant 2 : index
    %c0_261 = arith.constant 0 : index
    %c0_262 = arith.constant 0 : index
    %490 = vector.load %arg2[%c2_258, %c1_259, %c2_260, %c0_261, %c0_262] : memref<3x3x3x16x8xbf16, #tpu.memory_space<vmem>>, vector<1x1x1x16x8xbf16>
    %491 = vector.shape_cast %490 : vector<1x1x1x16x8xbf16> to vector<16x8xbf16>
    %492 = arith.truncf %489 : vector<8x512xf32> to vector<8x512xbf16>
    %cst_263 = arith.constant dense<0.000000e+00> : vector<16x512xf32>
    %493 = tpu.matmul %491, %492, %cst_263 {dimension_numbers = #tpu.dot_dimension_numbers<[1], [0], [0], [1], [0, 0, 1, 1], [], []>} : vector<16x8xbf16>, vector<8x512xbf16>, vector<16x512xf32> -> vector<16x512xf32>
    %494 = arith.addf %473, %493 : vector<16x512xf32>
    %c441_i32 = arith.constant 441 : i32
    %495 = tpu.dynamic_rotate %2 by %c441_i32 dim 1 : vector<8x512xf32>, i32 -> vector<8x512xf32>
    %c-1_i32_264 = arith.constant -1 : i32
    %496 = vector.broadcast %c-1_i32_264 : i32 to vector<1x512xi32>
    %497 = arith.cmpi sge, %3, %496 : vector<1x512xi32>
    %c7_i32_265 = arith.constant 7 : i32
    %498 = vector.broadcast %c7_i32_265 : i32 to vector<1x512xi32>
    %499 = arith.cmpi slt, %3, %498 : vector<1x512xi32>
    %c-1_i32_266 = arith.constant -1 : i32
    %500 = vector.broadcast %c-1_i32_266 : i32 to vector<1x512xi32>
    %501 = arith.cmpi sge, %4, %500 : vector<1x512xi32>
    %c7_i32_267 = arith.constant 7 : i32
    %502 = vector.broadcast %c7_i32_267 : i32 to vector<1x512xi32>
    %503 = arith.cmpi slt, %4, %502 : vector<1x512xi32>
    %c1_i32_268 = arith.constant 1 : i32
    %504 = vector.broadcast %c1_i32_268 : i32 to vector<1x512xi32>
    %505 = arith.cmpi sge, %5, %504 : vector<1x512xi32>
    %c9_i32_269 = arith.constant 9 : i32
    %506 = vector.broadcast %c9_i32_269 : i32 to vector<1x512xi32>
    %507 = arith.cmpi slt, %5, %506 : vector<1x512xi32>
    %508 = arith.andi %497, %499 : vector<1x512xi1>
    %509 = arith.andi %508, %501 : vector<1x512xi1>
    %510 = arith.andi %509, %503 : vector<1x512xi1>
    %511 = arith.andi %510, %505 : vector<1x512xi1>
    %512 = arith.andi %511, %507 : vector<1x512xi1>
    %cst_270 = arith.constant 0.000000e+00 : f32
    %513 = vector.shape_cast %512 : vector<1x512xi1> to vector<1x512xi1>
    %514 = vector.broadcast %513 : vector<1x512xi1> to vector<8x512xi1>
    %515 = vector.broadcast %cst_270 : f32 to vector<8x512xf32>
    %516 = arith.select %514, %495, %515 : vector<8x512xi1>, vector<8x512xf32>
    %c2_271 = arith.constant 2 : index
    %c2_272 = arith.constant 2 : index
    %c0_273 = arith.constant 0 : index
    %c0_274 = arith.constant 0 : index
    %c0_275 = arith.constant 0 : index
    %517 = vector.load %arg2[%c2_271, %c2_272, %c0_273, %c0_274, %c0_275] : memref<3x3x3x16x8xbf16, #tpu.memory_space<vmem>>, vector<1x1x1x16x8xbf16>
    %518 = vector.shape_cast %517 : vector<1x1x1x16x8xbf16> to vector<16x8xbf16>
    %519 = arith.truncf %516 : vector<8x512xf32> to vector<8x512xbf16>
    %cst_276 = arith.constant dense<0.000000e+00> : vector<16x512xf32>
    %520 = tpu.matmul %518, %519, %cst_276 {dimension_numbers = #tpu.dot_dimension_numbers<[1], [0], [0], [1], [0, 0, 1, 1], [], []>} : vector<16x8xbf16>, vector<8x512xbf16>, vector<16x512xf32> -> vector<16x512xf32>
    %521 = arith.addf %494, %520 : vector<16x512xf32>
    %c440_i32 = arith.constant 440 : i32
    %522 = tpu.dynamic_rotate %2 by %c440_i32 dim 1 : vector<8x512xf32>, i32 -> vector<8x512xf32>
    %c-1_i32_277 = arith.constant -1 : i32
    %523 = vector.broadcast %c-1_i32_277 : i32 to vector<1x512xi32>
    %524 = arith.cmpi sge, %3, %523 : vector<1x512xi32>
    %c7_i32_278 = arith.constant 7 : i32
    %525 = vector.broadcast %c7_i32_278 : i32 to vector<1x512xi32>
    %526 = arith.cmpi slt, %3, %525 : vector<1x512xi32>
    %c-1_i32_279 = arith.constant -1 : i32
    %527 = vector.broadcast %c-1_i32_279 : i32 to vector<1x512xi32>
    %528 = arith.cmpi sge, %4, %527 : vector<1x512xi32>
    %c7_i32_280 = arith.constant 7 : i32
    %529 = vector.broadcast %c7_i32_280 : i32 to vector<1x512xi32>
    %530 = arith.cmpi slt, %4, %529 : vector<1x512xi32>
    %531 = arith.andi %524, %526 : vector<1x512xi1>
    %532 = arith.andi %531, %528 : vector<1x512xi1>
    %533 = arith.andi %532, %530 : vector<1x512xi1>
    %cst_281 = arith.constant 0.000000e+00 : f32
    %534 = vector.shape_cast %533 : vector<1x512xi1> to vector<1x512xi1>
    %535 = vector.broadcast %534 : vector<1x512xi1> to vector<8x512xi1>
    %536 = vector.broadcast %cst_281 : f32 to vector<8x512xf32>
    %537 = arith.select %535, %522, %536 : vector<8x512xi1>, vector<8x512xf32>
    %c2_282 = arith.constant 2 : index
    %c2_283 = arith.constant 2 : index
    %c1_284 = arith.constant 1 : index
    %c0_285 = arith.constant 0 : index
    %c0_286 = arith.constant 0 : index
    %538 = vector.load %arg2[%c2_282, %c2_283, %c1_284, %c0_285, %c0_286] : memref<3x3x3x16x8xbf16, #tpu.memory_space<vmem>>, vector<1x1x1x16x8xbf16>
    %539 = vector.shape_cast %538 : vector<1x1x1x16x8xbf16> to vector<16x8xbf16>
    %540 = arith.truncf %537 : vector<8x512xf32> to vector<8x512xbf16>
    %cst_287 = arith.constant dense<0.000000e+00> : vector<16x512xf32>
    %541 = tpu.matmul %539, %540, %cst_287 {dimension_numbers = #tpu.dot_dimension_numbers<[1], [0], [0], [1], [0, 0, 1, 1], [], []>} : vector<16x8xbf16>, vector<8x512xbf16>, vector<16x512xf32> -> vector<16x512xf32>
    %542 = arith.addf %521, %541 : vector<16x512xf32>
    %c439_i32 = arith.constant 439 : i32
    %543 = tpu.dynamic_rotate %2 by %c439_i32 dim 1 : vector<8x512xf32>, i32 -> vector<8x512xf32>
    %c-1_i32_288 = arith.constant -1 : i32
    %544 = vector.broadcast %c-1_i32_288 : i32 to vector<1x512xi32>
    %545 = arith.cmpi sge, %3, %544 : vector<1x512xi32>
    %c7_i32_289 = arith.constant 7 : i32
    %546 = vector.broadcast %c7_i32_289 : i32 to vector<1x512xi32>
    %547 = arith.cmpi slt, %3, %546 : vector<1x512xi32>
    %c-1_i32_290 = arith.constant -1 : i32
    %548 = vector.broadcast %c-1_i32_290 : i32 to vector<1x512xi32>
    %549 = arith.cmpi sge, %4, %548 : vector<1x512xi32>
    %c7_i32_291 = arith.constant 7 : i32
    %550 = vector.broadcast %c7_i32_291 : i32 to vector<1x512xi32>
    %551 = arith.cmpi slt, %4, %550 : vector<1x512xi32>
    %c-1_i32_292 = arith.constant -1 : i32
    %552 = vector.broadcast %c-1_i32_292 : i32 to vector<1x512xi32>
    %553 = arith.cmpi sge, %5, %552 : vector<1x512xi32>
    %c7_i32_293 = arith.constant 7 : i32
    %554 = vector.broadcast %c7_i32_293 : i32 to vector<1x512xi32>
    %555 = arith.cmpi slt, %5, %554 : vector<1x512xi32>
    %556 = arith.andi %545, %547 : vector<1x512xi1>
    %557 = arith.andi %556, %549 : vector<1x512xi1>
    %558 = arith.andi %557, %551 : vector<1x512xi1>
    %559 = arith.andi %558, %553 : vector<1x512xi1>
    %560 = arith.andi %559, %555 : vector<1x512xi1>
    %cst_294 = arith.constant 0.000000e+00 : f32
    %561 = vector.shape_cast %560 : vector<1x512xi1> to vector<1x512xi1>
    %562 = vector.broadcast %561 : vector<1x512xi1> to vector<8x512xi1>
    %563 = vector.broadcast %cst_294 : f32 to vector<8x512xf32>
    %564 = arith.select %562, %543, %563 : vector<8x512xi1>, vector<8x512xf32>
    %c2_295 = arith.constant 2 : index
    %c2_296 = arith.constant 2 : index
    %c2_297 = arith.constant 2 : index
    %c0_298 = arith.constant 0 : index
    %c0_299 = arith.constant 0 : index
    %565 = vector.load %arg2[%c2_295, %c2_296, %c2_297, %c0_298, %c0_299] : memref<3x3x3x16x8xbf16, #tpu.memory_space<vmem>>, vector<1x1x1x16x8xbf16>
    %566 = vector.shape_cast %565 : vector<1x1x1x16x8xbf16> to vector<16x8xbf16>
    %567 = arith.truncf %564 : vector<8x512xf32> to vector<8x512xbf16>
    %cst_300 = arith.constant dense<0.000000e+00> : vector<16x512xf32>
    %568 = tpu.matmul %566, %567, %cst_300 {dimension_numbers = #tpu.dot_dimension_numbers<[1], [0], [0], [1], [0, 0, 1, 1], [], []>} : vector<16x8xbf16>, vector<8x512xbf16>, vector<16x512xf32> -> vector<16x512xf32>
    %569 = arith.addf %542, %568 : vector<16x512xf32>
    %c0_301 = arith.constant 0 : index
    %c0_302 = arith.constant 0 : index
    %570 = vector.load %arg6[%c0_301, %c0_302] : memref<16x1xf32, #tpu.memory_space<vmem>>, vector<16x1xf32>
    %571 = vector.broadcast %570 : vector<16x1xf32> to vector<16x512xf32>
    %572 = arith.mulf %569, %571 : vector<16x512xf32>
    %c0_303 = arith.constant 0 : index
    %c0_304 = arith.constant 0 : index
    %573 = vector.load %arg7[%c0_303, %c0_304] : memref<16x1xf32, #tpu.memory_space<vmem>>, vector<16x1xf32>
    %574 = vector.broadcast %573 : vector<16x1xf32> to vector<16x512xf32>
    %575 = arith.addf %572, %574 : vector<16x512xf32>
    %cst_305 = arith.constant 0.000000e+00 : f32
    %576 = vector.broadcast %cst_305 : f32 to vector<16x512xf32>
    %577 = arith.maximumf %575, %576 : vector<16x512xf32>
    %578 = vector.shape_cast %577 : vector<16x512xf32> to vector<1x16x512xf32>
    %579 = arith.truncf %578 : vector<1x16x512xf32> to vector<1x16x512xbf16>
    %c0_306 = arith.constant 0 : index
    %c0_307 = arith.constant 0 : index
    %c0_308 = arith.constant 0 : index
    %580 = vector.load %arg8[%c0_306, %c0_307, %c0_308] : memref<1x16x512xbf16, #tpu.memory_space<vmem>>, vector<1x16x512xbf16>
    tpu.vector_store %arg8[%c0_306, %c0_307, %c0_308], %579 {strides = array<i32>} : memref<1x16x512xbf16, #tpu.memory_space<vmem>>, vector<1x16x512xbf16>,
    return
  }
  func.func @transform_0(%arg0: i32) -> (i32, i32, i32) {
    %c0_i32 = arith.constant 0 : i32
    %c0_i32_0 = arith.constant 0 : i32
    %c0_i32_1 = arith.constant 0 : i32
    return %arg0, %c0_i32, %c0_i32_0 : i32, i32, i32
  }
  func.func @transform_1(%arg0: i32) -> (i32, i32, i32, i32, i32) {
    %c0_i32 = arith.constant 0 : i32
    %c0_i32_0 = arith.constant 0 : i32
    %c0_i32_1 = arith.constant 0 : i32
    %c0_i32_2 = arith.constant 0 : i32
    %c0_i32_3 = arith.constant 0 : i32
    %c0_i32_4 = arith.constant 0 : i32
    return %c0_i32, %c0_i32_0, %c0_i32_1, %c0_i32_2, %c0_i32_3 : i32, i32, i32, i32, i32
  }
  func.func @transform_2(%arg0: i32) -> (i32, i32) {
    %c0_i32 = arith.constant 0 : i32
    %c0_i32_0 = arith.constant 0 : i32
    %c0_i32_1 = arith.constant 0 : i32
    return %c0_i32, %c0_i32_0 : i32, i32
  }
  func.func @transform_3(%arg0: i32) -> (i32, i32) {
    %c0_i32 = arith.constant 0 : i32
    %c0_i32_0 = arith.constant 0 : i32
    %c0_i32_1 = arith.constant 0 : i32
    return %c0_i32, %c0_i32_0 : i32, i32
  }
  func.func @transform_4(%arg0: i32) -> (i32, i32) {
    %c0_i32 = arith.constant 0 : i32
    %c0_i32_0 = arith.constant 0 : i32
    %c0_i32_1 = arith.constant 0 : i32
    return %c0_i32, %c0_i32_0 : i32, i32
  }
  func.func @transform_5(%arg0: i32) -> (i32, i32) {
    %c0_i32 = arith.constant 0 : i32
    %c0_i32_0 = arith.constant 0 : i32
    %c0_i32_1 = arith.constant 0 : i32
    return %c0_i32, %c0_i32_0 : i32, i32
  }
  func.func @transform_6(%arg0: i32) -> (i32, i32) {
    %c0_i32 = arith.constant 0 : i32
    %c0_i32_0 = arith.constant 0 : i32
    %c0_i32_1 = arith.constant 0 : i32
    return %c0_i32, %c0_i32_0 : i32, i32
  }
  func.func @transform_7(%arg0: i32) -> (i32, i32, i32) {
    %c0_i32 = arith.constant 0 : i32
    %c0_i32_0 = arith.constant 0 : i32
    %c0_i32_1 = arith.constant 0 : i32
    return %arg0, %c0_i32, %c0_i32_0 : i32, i32, i32
  }
}

</mosaic_0001>

<llo_original>
// kernel: mfunit_forward.3
$region0: #{mfunit_forward.3}
  #allocation0 [shape = 'u32[]', space=smem, size = 0x4, offset = 0x4, fixed_abs, tag = 'smem constant byte address 0x4 - core index']
  #allocation1 [shape = 'u32[72,128]{1,0:T(1,128)}', space=vmem, size = 0x9000, scoped, tag = 'internal scratch']
  %s0 = inlined_call_operand.vmem [shape: f32[2,8,512], index: 0, kind: input, shape index: {}]
  %s1 = inlined_call_operand.vmem [shape: f32[8,1], index: 1, kind: input, shape index: {}]
  %s2 = inlined_call_operand.vmem [shape: f32[8,1], index: 2, kind: input, shape index: {}]
  %s3 = inlined_call_operand.vmem [shape: bf16[2,8], index: 3, kind: input, shape index: {}]
  %s4 = inlined_call_operand.vmem [shape: f32[2,1], index: 4, kind: input, shape index: {}]
  %s5 = inlined_call_operand.vmem [shape: f32[2,1], index: 5, kind: input, shape index: {}]
  %s6 = inlined_call_operand.vmem [shape: bf16[8,2], index: 6, kind: input, shape index: {}]
  %s7 = inlined_call_operand.vmem [shape: f32[8,1], index: 7, kind: input, shape index: {}]
  %s8 = inlined_call_operand.vmem [shape: f32[8,1], index: 8, kind: input, shape index: {}]
  %s9 = inlined_call_operand.vmem [shape: f32[8,1], index: 9, kind: input, shape index: {}]
  %s10 = inlined_call_operand.vmem [shape: f32[8,1], index: 10, kind: input, shape index: {}]
  %s11 = inlined_call_operand.vmem [shape: bf16[16,8], index: 11, kind: input, shape index: {}]
  %s12 = inlined_call_operand.vmem [shape: bf16[2,8,512], index: 12, kind: output, shape index: {0}]
  %s13 = inlined_call_operand.vmem [shape: f32[2,16,512], index: 13, kind: output, shape index: {1}]
  %14 = xla_tuple %s12, %s13
  %s15 = sld [smem:[#allocation0]]
  $region89: #{mfunit_forward.3} parent=0
    _
  %s17 = ssub.s32 1, %s15
  %s18 = scalar_select 0, %s17, %s15
  loop: start=0, step=1, limit=4
  $region2: #{mfunit_forward.3} parent=0 // loop_pre_header
    _
  $region3: #{mfunit_forward.3} parent=0 // loop_header
    %s20 = sphi 0, %s24
    %p21 = scmp.ge.s32.totalorder %s20, 4
    %s27 = sphi 0, %s39
    %s28 = sphi 0, %s35
    %s29 = sphi 0, %s27
    %s30 = sphi 0, %s28
    %s31 = sphi 0, %s29
    %s32 = sphi 0, %s30
    %s44 = sphi 0, %s46
    %s47 = sphi 0, %s44
    %s48 = sphi 0, %s47
    %s64 = sphi 0, %s48
    %s68 = sphi 0, %s68
    %s70 = sphi 0, %s68
    %s71 = sphi 0, %s70
    %s85 = sphi 0, %s71
    %s89 = sphi 0, %s89
    %s91 = sphi 0, %s89
    %s92 = sphi 0, %s91
    %s106 = sphi 0, %s92
    %s110 = sphi 0, %s110
    %s112 = sphi 0, %s110
    %s113 = sphi 0, %s112
    %s127 = sphi 0, %s113
    %s131 = sphi 0, %s131
    %s133 = sphi 0, %s131
    %s134 = sphi 0, %s133
    %s148 = sphi 0, %s134
    %s152 = sphi 0, %s152
    %s154 = sphi 0, %s152
    %s155 = sphi 0, %s154
    %s169 = sphi 0, %s155
    %s173 = sphi 0, %s173
    %s175 = sphi 0, %s173
    %s176 = sphi 0, %s175
    %s190 = sphi 0, %s176
    %s194 = sphi 0, %s194
    %s196 = sphi 0, %s194
    %s197 = sphi 0, %s196
    %s211 = sphi 0, %s197
    %s215 = sphi 0, %s215
    %s217 = sphi 0, %s215
    %s218 = sphi 0, %s217
    %s232 = sphi 0, %s218
    %s236 = sphi 0, %s236
    %s238 = sphi 0, %s236
    %s239 = sphi 0, %s238
    %s253 = sphi 0, %s239
    %s257 = sphi 0, %s257
    %s259 = sphi 0, %s257
    %s260 = sphi 0, %s259
    %s274 = sphi 0, %s260
    %s278 = sphi 0, %s278
    %s280 = sphi 0, %s278
    %s281 = sphi 0, %s280
    %s295 = sphi 0, %s281
    %s303 = sphi 0, %s305
    %s306 = sphi 0, %s303
    %s307 = sphi 0, %s306
    %s323 = sphi 0, %s307
    %s331 = sphi 0, %s333
    %s334 = sphi 0, %s331
    %s335 = sphi 0, %s334
    %s351 = sphi 0, %s335
  $region4: #{mfunit_forward.3} parent=0 // loop_header_branch
    %23 = sbr.rel (%p21) target = $region8
  $region5: #{mfunit_forward.3} parent=0 // loop_body
    %s25 = ssub.s32 %s20, 1
    %s26 = ssub.s32 %s20, 2
    %s33 = sadd.s32 1, %s28
    %p34 = scmp.ge.s32.totalorder %s33, 1
    %s35 = scalar_select %p34, 0, %s33
    %s36 = sadd.s32 1, %s27
    %s37 = scalar_select %p34, %s36, %s27
    %p38 = scmp.ge.s32.totalorder %s37, 2
    %s39 = scalar_select %p38, 0, %s37
    %s40 = ssub.s32 %s27, %s39
    %s41 = ssub.s32 %s28, %s35
    %s42 = sor.u32 %s40, %s41
    %p43 = scmp.eq.s32.totalorder %s42, 0
    %s45 = sadd.s32 %s44, 1
    %s46 = scalar_select %p43, %s44, %s45
    %p49 = pneg %p43
    %p50 = scmp.eq.s32.totalorder %s20, 1
    %p51 = por %p49, %p50
    %p52 = scmp.ne.s32.totalorder %s44, %s47
    %p53 = scmp.eq.s32.totalorder %s20, 0
    %p54 = por %p52, %p53
    %p55 = scmp.ne.s32.totalorder %s44, %s47
    %p56 = scmp.eq.s32.totalorder %s25, 1
    %p57 = por %p55, %p56
    %p58 = scmp.ne.s32.totalorder %s47, %s48
    %p59 = scmp.eq.s32.totalorder %s25, 0
    %p60 = por %p58, %p59
    %p61 = scmp.ne.s32.totalorder %s47, %s48
    %p62 = scmp.eq.s32.totalorder %s26, 1
    %p63 = por %p61, %p62
    %p65 = scmp.ne.s32.totalorder %s48, %s64
    %p66 = scmp.eq.s32.totalorder %s26, 0
    %p67 = por %p65, %p66
    %s69 = sadd.s32 %s68, 1
    %p72 = scmp.eq.s32.totalorder %s20, 1
    %p73 = scmp.ne.s32.totalorder %s68, %s70
    %p74 = scmp.eq.s32.totalorder %s20, 0
    %p75 = por %p73, %p74
    %p76 = scmp.ne.s32.totalorder %s68, %s70
    %p77 = scmp.eq.s32.totalorder %s25, 1
    %p78 = por %p76, %p77
    %p79 = scmp.ne.s32.totalorder %s70, %s71
    %p80 = scmp.eq.s32.totalorder %s25, 0
    %p81 = por %p79, %p80
    %p82 = scmp.ne.s32.totalorder %s70, %s71
    %p83 = scmp.eq.s32.totalorder %s26, 1
    %p84 = por %p82, %p83
    %p86 = scmp.ne.s32.totalorder %s71, %s85
    %p87 = scmp.eq.s32.totalorder %s26, 0
    %p88 = por %p86, %p87
    %s90 = sadd.s32 %s89, 1
    %p93 = scmp.eq.s32.totalorder %s20, 1
    %p94 = scmp.ne.s32.totalorder %s89, %s91
    %p95 = scmp.eq.s32.totalorder %s20, 0
    %p96 = por %p94, %p95
    %p97 = scmp.ne.s32.totalorder %s89, %s91
    %p98 = scmp.eq.s32.totalorder %s25, 1
    %p99 = por %p97, %p98
    %p100 = scmp.ne.s32.totalorder %s91, %s92
    %p101 = scmp.eq.s32.totalorder %s25, 0
    %p102 = por %p100, %p101
    %p103 = scmp.ne.s32.totalorder %s91, %s92
    %p104 = scmp.eq.s32.totalorder %s26, 1
    %p105 = por %p103, %p104
    %p107 = scmp.ne.s32.totalorder %s92, %s106
    %p108 = scmp.eq.s32.totalorder %s26, 0
    %p109 = por %p107, %p108
    %s111 = sadd.s32 %s110, 1
    %p114 = scmp.eq.s32.totalorder %s20, 1
    %p115 = scmp.ne.s32.totalorder %s110, %s112
    %p116 = scmp.eq.s32.totalorder %s20, 0
    %p117 = por %p115, %p116
    %p118 = scmp.ne.s32.totalorder %s110, %s112
    %p119 = scmp.eq.s32.totalorder %s25, 1
    %p120 = por %p118, %p119
    %p121 = scmp.ne.s32.totalorder %s112, %s113
    %p122 = scmp.eq.s32.totalorder %s25, 0
    %p123 = por %p121, %p122
    %p124 = scmp.ne.s32.totalorder %s112, %s113
    %p125 = scmp.eq.s32.totalorder %s26, 1
    %p126 = por %p124, %p125
    %p128 = scmp.ne.s32.totalorder %s113, %s127
    %p129 = scmp.eq.s32.totalorder %s26, 0
    %p130 = por %p128, %p129
    %s132 = sadd.s32 %s131, 1
    %p135 = scmp.eq.s32.totalorder %s20, 1
    %p136 = scmp.ne.s32.totalorder %s131, %s133
    %p137 = scmp.eq.s32.totalorder %s20, 0
    %p138 = por %p136, %p137
    %p139 = scmp.ne.s32.totalorder %s131, %s133
    %p140 = scmp.eq.s32.totalorder %s25, 1
    %p141 = por %p139, %p140
    %p142 = scmp.ne.s32.totalorder %s133, %s134
    %p143 = scmp.eq.s32.totalorder %s25, 0
    %p144 = por %p142, %p143
    %p145 = scmp.ne.s32.totalorder %s133, %s134
    %p146 = scmp.eq.s32.totalorder %s26, 1
    %p147 = por %p145, %p146
    %p149 = scmp.ne.s32.totalorder %s134, %s148
    %p150 = scmp.eq.s32.totalorder %s26, 0
    %p151 = por %p149, %p150
    %s153 = sadd.s32 %s152, 1
    %p156 = scmp.eq.s32.totalorder %s20, 1
    %p157 = scmp.ne.s32.totalorder %s152, %s154
    %p158 = scmp.eq.s32.totalorder %s20, 0
    %p159 = por %p157, %p158
    %p160 = scmp.ne.s32.totalorder %s152, %s154
    %p161 = scmp.eq.s32.totalorder %s25, 1
    %p162 = por %p160, %p161
    %p163 = scmp.ne.s32.totalorder %s154, %s155
    %p164 = scmp.eq.s32.totalorder %s25, 0
    %p165 = por %p163, %p164
    %p166 = scmp.ne.s32.totalorder %s154, %s155
    %p167 = scmp.eq.s32.totalorder %s26, 1
    %p168 = por %p166, %p167
    %p170 = scmp.ne.s32.totalorder %s155, %s169
    %p171 = scmp.eq.s32.totalorder %s26, 0
    %p172 = por %p170, %p171
    %s174 = sadd.s32 %s173, 1
    %p177 = scmp.eq.s32.totalorder %s20, 1
    %p178 = scmp.ne.s32.totalorder %s173, %s175
    %p179 = scmp.eq.s32.totalorder %s20, 0
    %p180 = por %p178, %p179
    %p181 = scmp.ne.s32.totalorder %s173, %s175
    %p182 = scmp.eq.s32.totalorder %s25, 1
    %p183 = por %p181, %p182
    %p184 = scmp.ne.s32.totalorder %s175, %s176
    %p185 = scmp.eq.s32.totalorder %s25, 0
    %p186 = por %p184, %p185
    %p187 = scmp.ne.s32.totalorder %s175, %s176
    %p188 = scmp.eq.s32.totalorder %s26, 1
    %p189 = por %p187, %p188
    %p191 = scmp.ne.s32.totalorder %s176, %s190
    %p192 = scmp.eq.s32.totalorder %s26, 0
    %p193 = por %p191, %p192
    %s195 = sadd.s32 %s194, 1
    %p198 = scmp.eq.s32.totalorder %s20, 1
    %p199 = scmp.ne.s32.totalorder %s194, %s196
    %p200 = scmp.eq.s32.totalorder %s20, 0
    %p201 = por %p199, %p200
    %p202 = scmp.ne.s32.totalorder %s194, %s196
    %p203 = scmp.eq.s32.totalorder %s25, 1
    %p204 = por %p202, %p203
    %p205 = scmp.ne.s32.totalorder %s196, %s197
    %p206 = scmp.eq.s32.totalorder %s25, 0
    %p207 = por %p205, %p206
    %p208 = scmp.ne.s32.totalorder %s196, %s197
    %p209 = scmp.eq.s32.totalorder %s26, 1
    %p210 = por %p208, %p209
    %p212 = scmp.ne.s32.totalorder %s197, %s211
    %p213 = scmp.eq.s32.totalorder %s26, 0
    %p214 = por %p212, %p213
    %s216 = sadd.s32 %s215, 1
    %p219 = scmp.eq.s32.totalorder %s20, 1
    %p220 = scmp.ne.s32.totalorder %s215, %s217
    %p221 = scmp.eq.s32.totalorder %s20, 0
    %p222 = por %p220, %p221
    %p223 = scmp.ne.s32.totalorder %s215, %s217
    %p224 = scmp.eq.s32.totalorder %s25, 1
    %p225 = por %p223, %p224
    %p226 = scmp.ne.s32.totalorder %s217, %s218
    %p227 = scmp.eq.s32.totalorder %s25, 0
    %p228 = por %p226, %p227
    %p229 = scmp.ne.s32.totalorder %s217, %s218
    %p230 = scmp.eq.s32.totalorder %s26, 1
    %p231 = por %p229, %p230
    %p233 = scmp.ne.s32.totalorder %s218, %s232
    %p234 = scmp.eq.s32.totalorder %s26, 0
    %p235 = por %p233, %p234
    %s237 = sadd.s32 %s236, 1
    %p240 = scmp.eq.s32.totalorder %s20, 1
    %p241 = scmp.ne.s32.totalorder %s236, %s238
    %p242 = scmp.eq.s32.totalorder %s20, 0
    %p243 = por %p241, %p242
    %p244 = scmp.ne.s32.totalorder %s236, %s238
    %p245 = scmp.eq.s32.totalorder %s25, 1
    %p246 = por %p244, %p245
    %p247 = scmp.ne.s32.totalorder %s238, %s239
    %p248 = scmp.eq.s32.totalorder %s25, 0
    %p249 = por %p247, %p248
    %p250 = scmp.ne.s32.totalorder %s238, %s239
    %p251 = scmp.eq.s32.totalorder %s26, 1
    %p252 = por %p250, %p251
    %p254 = scmp.ne.s32.totalorder %s239, %s253
    %p255 = scmp.eq.s32.totalorder %s26, 0
    %p256 = por %p254, %p255
    %s258 = sadd.s32 %s257, 1
    %p261 = scmp.eq.s32.totalorder %s20, 1
    %p262 = scmp.ne.s32.totalorder %s257, %s259
    %p263 = scmp.eq.s32.totalorder %s20, 0
    %p264 = por %p262, %p263
    %p265 = scmp.ne.s32.totalorder %s257, %s259
    %p266 = scmp.eq.s32.totalorder %s25, 1
    %p267 = por %p265, %p266
    %p268 = scmp.ne.s32.totalorder %s259, %s260
    %p269 = scmp.eq.s32.totalorder %s25, 0
    %p270 = por %p268, %p269
    %p271 = scmp.ne.s32.totalorder %s259, %s260
    %p272 = scmp.eq.s32.totalorder %s26, 1
    %p273 = por %p271, %p272
    %p275 = scmp.ne.s32.totalorder %s260, %s274
    %p276 = scmp.eq.s32.totalorder %s26, 0
    %p277 = por %p275, %p276
    %s279 = sadd.s32 %s278, 1
    %p282 = scmp.eq.s32.totalorder %s20, 1
    %p283 = scmp.ne.s32.totalorder %s278, %s280
    %p284 = scmp.eq.s32.totalorder %s20, 0
    %p285 = por %p283, %p284
    %p286 = scmp.ne.s32.totalorder %s278, %s280
    %p287 = scmp.eq.s32.totalorder %s25, 1
    %p288 = por %p286, %p287
    %p289 = scmp.ne.s32.totalorder %s280, %s281
    %p290 = scmp.eq.s32.totalorder %s25, 0
    %p291 = por %p289, %p290
    %p292 = scmp.ne.s32.totalorder %s280, %s281
    %p293 = scmp.eq.s32.totalorder %s26, 1
    %p294 = por %p292, %p293
    %p296 = scmp.ne.s32.totalorder %s281, %s295
    %p297 = scmp.eq.s32.totalorder %s26, 0
    %p298 = por %p296, %p297
    %s299 = ssub.s32 %s27, %s39
    %s300 = ssub.s32 %s28, %s35
    %s301 = sor.u32 %s299, %s300
    %p302 = scmp.eq.s32.totalorder %s301, 0
    %s304 = sadd.s32 %s303, 1
    %s305 = scalar_select %p302, %s303, %s304
    %p308 = pneg %p302
    %p309 = scmp.eq.s32.totalorder %s20, 1
    %p310 = por %p308, %p309
    %p311 = scmp.ne.s32.totalorder %s303, %s306
    %p312 = scmp.eq.s32.totalorder %s20, 0
    %p313 = por %p311, %p312
    %p314 = scmp.ne.s32.totalorder %s303, %s306
    %p315 = scmp.eq.s32.totalorder %s25, 1
    %p316 = por %p314, %p315
    %p317 = scmp.ne.s32.totalorder %s306, %s307
    %p318 = scmp.eq.s32.totalorder %s25, 0
    %p319 = por %p317, %p318
    %p320 = scmp.ne.s32.totalorder %s306, %s307
    %p321 = scmp.eq.s32.totalorder %s26, 1
    %p322 = por %p320, %p321
    %p324 = scmp.ne.s32.totalorder %s307, %s323
    %p325 = scmp.eq.s32.totalorder %s26, 0
    %p326 = por %p324, %p325
    %s327 = ssub.s32 %s27, %s39
    %s328 = ssub.s32 %s28, %s35
    %s329 = sor.u32 %s327, %s328
    %p330 = scmp.eq.s32.totalorder %s329, 0
    %s332 = sadd.s32 %s331, 1
    %s333 = scalar_select %p330, %s331, %s332
    %p336 = pneg %p330
    %p337 = scmp.eq.s32.totalorder %s20, 1
    %p338 = por %p336, %p337
    %p339 = scmp.ne.s32.totalorder %s331, %s334
    %p340 = scmp.eq.s32.totalorder %s20, 0
    %p341 = por %p339, %p340
    %p342 = scmp.ne.s32.totalorder %s331, %s334
    %p343 = scmp.eq.s32.totalorder %s25, 1
    %p344 = por %p342, %p343
    %p345 = scmp.ne.s32.totalorder %s334, %s335
    %p346 = scmp.eq.s32.totalorder %s25, 0
    %p347 = por %p345, %p346
    %p348 = scmp.ne.s32.totalorder %s334, %s335
    %p349 = scmp.eq.s32.totalorder %s26, 1
    %p350 = por %p348, %p349
    %p352 = scmp.ne.s32.totalorder %s335, %s351
    %p353 = scmp.eq.s32.totalorder %s26, 0
    %p354 = por %p352, %p353
    %p355 = scmp.le.s32.totalorder 1, %s20
    %p356 = scmp.lt.s32.totalorder %s20, 3
    %p357 = pnand %p355, %p356
    %p358 = pneg %p357
    // Predicated region
    $region9: #{mfunit_forward.3} parent=5 // pred_check
      _
    $region10: #{mfunit_forward.3} parent=5 // pred_check_branch
      %360 = sbr.rel (%p357) target = $region12
    $region11: #{mfunit_forward.3} parent=5 // pred_region
      %s361 = ssub.s32 %s20, 1
      // Predicated region
      $region13: #{mfunit_forward.3} parent=11 // pred_check
        %p362 = pneg %p81
      $region14: #{mfunit_forward.3} parent=11 // pred_check_branch
        %364 = sbr.rel (%p362) target = $region16
      $region15: #{mfunit_forward.3} parent=11 // pred_region
        _
      $region16: #{mfunit_forward.3} parent=11 // pred_fallthru
        _
      // Predicated region
      $region17: #{mfunit_forward.3} parent=11 // pred_check
        %p365 = pneg %p102
      $region18: #{mfunit_forward.3} parent=11 // pred_check_branch
        %367 = sbr.rel (%p365) target = $region20
      $region19: #{mfunit_forward.3} parent=11 // pred_region
        _
      $region20: #{mfunit_forward.3} parent=11 // pred_fallthru
        _
      // Predicated region
      $region21: #{mfunit_forward.3} parent=11 // pred_check
        %p368 = pneg %p123
      $region22: #{mfunit_forward.3} parent=11 // pred_check_branch
        %370 = sbr.rel (%p368) target = $region24
      $region23: #{mfunit_forward.3} parent=11 // pred_region
        _
      $region24: #{mfunit_forward.3} parent=11 // pred_fallthru
        _
      // Predicated region
      $region25: #{mfunit_forward.3} parent=11 // pred_check
        %p371 = pneg %p144
      $region26: #{mfunit_forward.3} parent=11 // pred_check_branch
        %373 = sbr.rel (%p371) target = $region28
      $region27: #{mfunit_forward.3} parent=11 // pred_region
        _
      $region28: #{mfunit_forward.3} parent=11 // pred_fallthru
        _
      // Predicated region
      $region29: #{mfunit_forward.3} parent=11 // pred_check
        %p374 = pneg %p165
      $region30: #{mfunit_forward.3} parent=11 // pred_check_branch
        %376 = sbr.rel (%p374) target = $region32
      $region31: #{mfunit_forward.3} parent=11 // pred_region
        _
      $region32: #{mfunit_forward.3} parent=11 // pred_fallthru
        _
      // Predicated region
      $region33: #{mfunit_forward.3} parent=11 // pred_check
        %p377 = pneg %p186
      $region34: #{mfunit_forward.3} parent=11 // pred_check_branch
        %379 = sbr.rel (%p377) target = $region36
      $region35: #{mfunit_forward.3} parent=11 // pred_region
        _
      $region36: #{mfunit_forward.3} parent=11 // pred_fallthru
        _
      // Predicated region
      $region37: #{mfunit_forward.3} parent=11 // pred_check
        %p380 = pneg %p207
      $region38: #{mfunit_forward.3} parent=11 // pred_check_branch
        %382 = sbr.rel (%p380) target = $region40
      $region39: #{mfunit_forward.3} parent=11 // pred_region
        _
      $region40: #{mfunit_forward.3} parent=11 // pred_fallthru
        _
      // Predicated region
      $region41: #{mfunit_forward.3} parent=11 // pred_check
        %p383 = pneg %p228
      $region42: #{mfunit_forward.3} parent=11 // pred_check_branch
        %385 = sbr.rel (%p383) target = $region44
      $region43: #{mfunit_forward.3} parent=11 // pred_region
        _
      $region44: #{mfunit_forward.3} parent=11 // pred_fallthru
        _
      // Predicated region
      $region45: #{mfunit_forward.3} parent=11 // pred_check
        %p386 = pneg %p249
      $region46: #{mfunit_forward.3} parent=11 // pred_check_branch
        %388 = sbr.rel (%p386) target = $region48
      $region47: #{mfunit_forward.3} parent=11 // pred_region
        _
      $region48: #{mfunit_forward.3} parent=11 // pred_fallthru
        _
      // Predicated region
      $region49: #{mfunit_forward.3} parent=11 // pred_check
        %p389 = pneg %p270
      $region50: #{mfunit_forward.3} parent=11 // pred_check_branch
        %391 = sbr.rel (%p389) target = $region52
      $region51: #{mfunit_forward.3} parent=11 // pred_region
        _
      $region52: #{mfunit_forward.3} parent=11 // pred_fallthru
        _
      // Predicated region
      $region53: #{mfunit_forward.3} parent=11 // pred_check
        %p392 = pneg %p291
      $region54: #{mfunit_forward.3} parent=11 // pred_check_branch
        %394 = sbr.rel (%p392) target = $region56
      $region55: #{mfunit_forward.3} parent=11 // pred_region
        _
      $region56: #{mfunit_forward.3} parent=11 // pred_fallthru
        _
    $region12: #{mfunit_forward.3} parent=5 // pred_fallthru
      _
    %p395 = scmp.lt.s32.totalorder %s20, 2
    // Predicated region
    $region57: #{mfunit_forward.3} parent=5 // pred_check
      %p396 = pneg %p395
    $region58: #{mfunit_forward.3} parent=5 // pred_check_branch
      %398 = sbr.rel (%p396) target = $region60
    $region59: #{mfunit_forward.3} parent=5 // pred_region
      // Predicated region
      $region61: #{mfunit_forward.3} parent=59 // pred_check
        %p399 = pneg %p54
      $region62: #{mfunit_forward.3} parent=59 // pred_check_branch
        %401 = sbr.rel (%p399) target = $region64
      $region63: #{mfunit_forward.3} parent=59 // pred_region
        %s402 = smul.u32 4, %s28
        %p403 = scmp.lt.s32.totalorder %s27, 1
        %s404 = scalar_select %p403, %s27, 1
        %p405 = scmp.lt.s32.totalorder %s402, 3
        %s406 = scalar_select %p405, %s402, 3
        %s407 = smul.addr %s404, 4
        %s408 = sadd.s32 %s406, %s407
        %s409 = smul.addr %s408, 8
        %s410 = scalar_lea.vmem %s0, %s409
        %s411 = smul.u32 4, %s28
      $region64: #{mfunit_forward.3} parent=59 // pred_fallthru
        _
    $region60: #{mfunit_forward.3} parent=5 // pred_fallthru
      _
    %p412 = scmp.le.s32.totalorder 1, %s20
    %p413 = scmp.lt.s32.totalorder %s20, 3
    %p414 = pnand %p412, %p413
    %p415 = pneg %p414
    // Predicated region
    $region65: #{mfunit_forward.3} parent=5 // pred_check
      _
    $region66: #{mfunit_forward.3} parent=5 // pred_check_branch
      %417 = sbr.rel (%p414) target = $region68
    $region67: #{mfunit_forward.3} parent=5 // pred_region
      %s418 = ssub.s32 %s20, 1
      %s419 = smul.u32 4, %s30
      %p420 = scmp.lt.s32.totalorder %s29, 1
      %s421 = scalar_select %p420, %s29, 1
      %p422 = scmp.lt.s32.totalorder %s419, 3
      %s423 = scalar_select %p422, %s419, 3
      %s424 = smul.addr %s421, 4
      %s425 = sadd.s32 %s423, %s424
      %s426 = smul.addr %s425, 8
      %s427 = scalar_lea.vmem %s0, %s426
      %p428 = pneg %p60
      %p429 = pneg %p57
      %p430 = pneg %p81
      %p431 = pneg %p78
      %p432 = pneg %p102
      %p433 = pneg %p99
      %p434 = pneg %p123
      %p435 = pneg %p120
      %p436 = pneg %p144
      %p437 = pneg %p141
      %p438 = pneg %p165
      %p439 = pneg %p162
      %p440 = pneg %p186
      %p441 = pneg %p183
      %p442 = pneg %p207
      %p443 = pneg %p204
      %p444 = pneg %p228
      %p445 = pneg %p225
      %p446 = pneg %p249
      %p447 = pneg %p246
      %p448 = pneg %p270
      %p449 = pneg %p267
      %p450 = pneg %p291
      %p451 = pneg %p288
      %p452 = pneg %p319
      %p453 = pneg %p316
      %s454 = smul.u32 4, %s30
      %p455 = scmp.lt.s32.totalorder %s29, 1
      %s456 = scalar_select %p455, %s29, 1
      %p457 = scmp.lt.s32.totalorder %s454, 3
      %s458 = scalar_select %p457, %s454, 3
      %s459 = smul.addr %s456, 4
      %s460 = sadd.s32 %s458, %s459
      %s461 = smul.addr %s460, 4
      %s462 = scalar_lea.vmem %s12, %s461
      %p463 = pneg %p347
      %p464 = pneg %p344
      %s465 = smul.u32 4, %s30
      %p466 = scmp.lt.s32.totalorder %s29, 1
      %s467 = scalar_select %p466, %s29, 1
      %p468 = scmp.lt.s32.totalorder %s465, 3
      %s469 = scalar_select %p468, %s465, 3
      %s470 = smul.addr %s467, 8
      %s471 = sadd.s32 %s469, %s470
      %s472 = smul.addr %s471, 8
      %s473 = scalar_lea.vmem %s13, %s472
      %s474 = smul.u32 4, %s30
      %p475 = scmp.lt.s32.totalorder %s29, 1
      %s476 = scalar_select %p475, %s29, 1
      %p477 = scmp.lt.s32.totalorder %s474, 3
      %s478 = scalar_select %p477, %s474, 3
      %s479 = smul.addr %s476, 4
      %s480 = sadd.s32 %s478, %s479
      %s481 = smul.addr %s480, 8
      %s482 = scalar_lea.vmem %s0, %s481
      %s483 = smul.u32 4, %s30
      %s484 = smul.u32 4, %s30
      %p485 = scmp.lt.s32.totalorder %s29, 1
      %s486 = scalar_select %p485, %s29, 1
      %p487 = scmp.lt.s32.totalorder %s484, 3
      %s488 = scalar_select %p487, %s484, 3
      %s489 = smul.addr %s486, 4
      %s490 = sadd.s32 %s488, %s489
      %s491 = smul.addr %s490, 4
      %s492 = scalar_lea.vmem %s12, %s491
      %s493 = smul.u32 4, %s30
      %s494 = smul.u32 4, %s30
      %p495 = scmp.lt.s32.totalorder %s29, 1
      %s496 = scalar_select %p495, %s29, 1
      %p497 = scmp.lt.s32.totalorder %s494, 3
      %s498 = scalar_select %p497, %s494, 3
      %s499 = smul.addr %s496, 8
      %s500 = sadd.s32 %s498, %s499
      %s501 = smul.addr %s500, 8
      %s502 = scalar_lea.vmem %s13, %s501
      %s503 = smul.u32 4, %s30
      %v505 = vld [vmem:[%s482] sm:$0xff]
      %v506 = vld [vmem:[%s482 + $0x8] sm:$0xff]
      %v507 = vld [vmem:[%s482 + $0x10] sm:$0xff]
      %v508 = vld [vmem:[%s482 + $0x18] sm:$0xff]
      %v509 = vld [vmem:[%s1] sm:$0xff]
      %511 = vset.pattern.permute.xlu0 0
      %512 = vperm.xlu0 %511, %v509
      %v513 = vpop.permute.xlu0 %512
      %v515 = vmul.f32 %v505, %v513
      %v516 = vmul.f32 %v506, %v513
      %v517 = vmul.f32 %v507, %v513
      %v518 = vmul.f32 %v508, %v513
      %v519 = vld [vmem:[%s2] sm:$0xff]
      %521 = vset.pattern.permute.xlu0 0
      %522 = vperm.xlu0 %521, %v519
      %v523 = vpop.permute.xlu0 %522
      %v525 = vadd.f32 %v515, %v523
      %v526 = vadd.f32 %v516, %v523
      %v527 = vadd.f32 %v517, %v523
      %v528 = vadd.f32 %v518, %v523
      %v529 = vmax.f32 %v525, 0.0
      %v530 = vmax.f32 %v526, 0.0
      %v531 = vmax.f32 %v527, 0.0
      %v532 = vmax.f32 %v528, 0.0
      %v533 = vld [vmem:[%s3] sm:$0x1]
      %v534 = vpack.c.bf16 %v529, %v529
      %v535 = vpack.c.bf16 %v530, %v530
      %v536 = vpack.c.bf16 %v531, %v531
      %v537 = vpack.c.bf16 %v532, %v532
      %vm538 = vcmask 64512
      %v540 = vsel %vm538, %v533, 0
      %vm542 = vcmask 1043456
      %v544 = vsel %vm542, %v534, 0
      %v547 = vsel %vm542, %v535, 0
      %v550 = vsel %vm542, %v536, 0
      %v553 = vsel %vm542, %v537, 0
      %555 = vmatpush.bf16.msra.mxu0 0
      %556 = vmatpush.bf16.msra.mxu0 0
      %557 = vmatpush.bf16.msra.mxu0 0
      %558 = vmatpush.bf16.msra.mxu0 0
      %559 = vmatpush.bf16.msra.mxu0 0
      %560 = vmatpush.bf16.msra.mxu0 0
      %561 = vmatpush.bf16.msra.mxu0 0
      %562 = vmatpush.bf16.msra.mxu0 %v544
      %563 = vmatmul.bf16.gmra.mxu0 %v540
      %v564 = vpop.f32.mrf.mxu0
      %v565 = vadd.f32 0.0, %v564
      %v566 = vpop.f32.mrf.mxu0
      %567 = vdwg.mxu0
      %568 = vmatpush.bf16.msra.mxu0 0
      %569 = vmatpush.bf16.msra.mxu0 0
      %570 = vmatpush.bf16.msra.mxu0 0
      %571 = vmatpush.bf16.msra.mxu0 0
      %572 = vmatpush.bf16.msra.mxu0 0
      %573 = vmatpush.bf16.msra.mxu0 0
      %574 = vmatpush.bf16.msra.mxu0 0
      %575 = vmatpush.bf16.msra.mxu0 %v547
      %576 = vmatmul.bf16.gmra.mxu0 %v540
      %v577 = vpop.f32.mrf.mxu0
      %v578 = vadd.f32 0.0, %v577
      %v579 = vpop.f32.mrf.mxu0
      %580 = vdwg.mxu0
      %581 = vmatpush.bf16.msra.mxu0 0
      %582 = vmatpush.bf16.msra.mxu0 0
      %583 = vmatpush.bf16.msra.mxu0 0
      %584 = vmatpush.bf16.msra.mxu0 0
      %585 = vmatpush.bf16.msra.mxu0 0
      %586 = vmatpush.bf16.msra.mxu0 0
      %587 = vmatpush.bf16.msra.mxu0 0
      %588 = vmatpush.bf16.msra.mxu0 %v550
      %589 = vmatmul.bf16.gmra.mxu0 %v540
      %v590 = vpop.f32.mrf.mxu0
      %v591 = vadd.f32 0.0, %v590
      %v592 = vpop.f32.mrf.mxu0
      %593 = vdwg.mxu0
      %594 = vmatpush.bf16.msra.mxu0 0
      %595 = vmatpush.bf16.msra.mxu0 0
      %596 = vmatpush.bf16.msra.mxu0 0
      %597 = vmatpush.bf16.msra.mxu0 0
      %598 = vmatpush.bf16.msra.mxu0 0
      %599 = vmatpush.bf16.msra.mxu0 0
      %600 = vmatpush.bf16.msra.mxu0 0
      %601 = vmatpush.bf16.msra.mxu0 %v553
      %602 = vmatmul.bf16.gmra.mxu0 %v540
      %v603 = vpop.f32.mrf.mxu0
      %v604 = vadd.f32 0.0, %v603
      %v605 = vpop.f32.mrf.mxu0
      %606 = vdwg.mxu0
      %v607 = vld [vmem:[%s4] sm:$0x3]
      %609 = vset.pattern.permute.xlu0 0
      %610 = vperm.xlu0 %609, %v607
      %v611 = vpop.permute.xlu0 %610
      %v613 = vmul.f32 %v565, %v611
      %v614 = vmul.f32 %v578, %v611
      %v615 = vmul.f32 %v591, %v611
      %v616 = vmul.f32 %v604, %v611
      %v617 = vld [vmem:[%s5] sm:$0x3]
      %619 = vset.pattern.permute.xlu0 0
      %620 = vperm.xlu0 %619, %v617
      %v621 = vpop.permute.xlu0 %620
      %v623 = vadd.f32 %v613, %v621
      %v624 = vadd.f32 %v614, %v621
      %v625 = vadd.f32 %v615, %v621
      %v626 = vadd.f32 %v616, %v621
      %v627 = vmax.f32 %v623, 0.0
      %v628 = vmax.f32 %v624, 0.0
      %v629 = vmax.f32 %v625, 0.0
      %v630 = vmax.f32 %v626, 0.0
      %v631 = vld [vmem:[%s6] sm:$0xf]
      %v632 = vpack.c.bf16 %v627, %v627
      %v633 = vpack.c.bf16 %v628, %v628
      %v634 = vpack.c.bf16 %v629, %v629
      %v635 = vpack.c.bf16 %v630, %v630
      %vm636 = vcmask 15360
      %v638 = vsel %vm636, %v631, 0
      %vm640 = vcmask 1040384
      %v642 = vsel %vm640, %v632, 0
      %v645 = vsel %vm640, %v633, 0
      %v648 = vsel %vm640, %v634, 0
      %v651 = vsel %vm640, %v635, 0
      %653 = vmatpush.bf16.msra.mxu0 0
      %654 = vmatpush.bf16.msra.mxu0 0
      %655 = vmatpush.bf16.msra.mxu0 0
      %656 = vmatpush.bf16.msra.mxu0 0
      %657 = vmatpush.bf16.msra.mxu0 0
      %658 = vmatpush.bf16.msra.mxu0 0
      %659 = vmatpush.bf16.msra.mxu0 0
      %660 = vmatpush.bf16.msra.mxu0 %v642
      %661 = vmatmul.bf16.gmra.mxu0 %v638
      %v662 = vpop.f32.mrf.mxu0
      %v663 = vadd.f32 0.0, %v662
      %v664 = vpop.f32.mrf.mxu0
      %665 = vdwg.mxu0
      %666 = vmatpush.bf16.msra.mxu0 0
      %667 = vmatpush.bf16.msra.mxu0 0
      %668 = vmatpush.bf16.msra.mxu0 0
      %669 = vmatpush.bf16.msra.mxu0 0
      %670 = vmatpush.bf16.msra.mxu0 0
      %671 = vmatpush.bf16.msra.mxu0 0
      %672 = vmatpush.bf16.msra.mxu0 0
      %673 = vmatpush.bf16.msra.mxu0 %v645
      %674 = vmatmul.bf16.gmra.mxu0 %v638
      %v675 = vpop.f32.mrf.mxu0
      %v676 = vadd.f32 0.0, %v675
      %v677 = vpop.f32.mrf.mxu0
      %678 = vdwg.mxu0
      %679 = vmatpush.bf16.msra.mxu0 0
      %680 = vmatpush.bf16.msra.mxu0 0
      %681 = vmatpush.bf16.msra.mxu0 0
      %682 = vmatpush.bf16.msra.mxu0 0
      %683 = vmatpush.bf16.msra.mxu0 0
      %684 = vmatpush.bf16.msra.mxu0 0
      %685 = vmatpush.bf16.msra.mxu0 0
      %686 = vmatpush.bf16.msra.mxu0 %v648
      %687 = vmatmul.bf16.gmra.mxu0 %v638
      %v688 = vpop.f32.mrf.mxu0
      %v689 = vadd.f32 0.0, %v688
      %v690 = vpop.f32.mrf.mxu0
      %691 = vdwg.mxu0
      %692 = vmatpush.bf16.msra.mxu0 0
      %693 = vmatpush.bf16.msra.mxu0 0
      %694 = vmatpush.bf16.msra.mxu0 0
      %695 = vmatpush.bf16.msra.mxu0 0
      %696 = vmatpush.bf16.msra.mxu0 0
      %697 = vmatpush.bf16.msra.mxu0 0
      %698 = vmatpush.bf16.msra.mxu0 0
      %699 = vmatpush.bf16.msra.mxu0 %v651
      %700 = vmatmul.bf16.gmra.mxu0 %v638
      %v701 = vpop.f32.mrf.mxu0
      %v702 = vadd.f32 0.0, %v701
      %v703 = vpop.f32.mrf.mxu0
      %704 = vdwg.mxu0
      %v705 = vld [vmem:[%s7] sm:$0xff]
      %707 = vset.pattern.permute.xlu0 0
      %708 = vperm.xlu0 %707, %v705
      %v709 = vpop.permute.xlu0 %708
      %v711 = vmul.f32 %v663, %v709
      %v712 = vmul.f32 %v676, %v709
      %v713 = vmul.f32 %v689, %v709
      %v714 = vmul.f32 %v702, %v709
      %v715 = vld [vmem:[%s8] sm:$0xff]
      %717 = vset.pattern.permute.xlu0 0
      %718 = vperm.xlu0 %717, %v715
      %v719 = vpop.permute.xlu0 %718
      %v721 = vadd.f32 %v711, %v719
      %v722 = vadd.f32 %v712, %v719
      %v723 = vadd.f32 %v713, %v719
      %v724 = vadd.f32 %v714, %v719
      %v725 = vmax.f32 %v721, 0.0
      %v726 = vmax.f32 %v722, 0.0
      %v727 = vmax.f32 %v723, 0.0
      %v728 = vmax.f32 %v724, 0.0
      %v729 = vpack.c.bf16 %v726, %v725
      %v730 = vpack.c.bf16 %v728, %v727
      %731 = vst [vmem:[%s492] sm:$0xff] %v729
      %732 = vst [vmem:[%s492 + $0x8] sm:$0xff] %v730
      %v733 = vld [vmem:[%s9] sm:$0xff]
      %735 = vset.pattern.permute.xlu0 0
      %736 = vperm.xlu0 %735, %v733
      %v737 = vpop.permute.xlu0 %736
      %v739 = vmul.f32 %v505, %v737
      %v740 = vmul.f32 %v506, %v737
      %v741 = vmul.f32 %v507, %v737
      %v742 = vmul.f32 %v508, %v737
      %v743 = vld [vmem:[%s10] sm:$0xff]
      %745 = vset.pattern.permute.xlu0 0
      %746 = vperm.xlu0 %745, %v743
      %v747 = vpop.permute.xlu0 %746
      %v749 = vadd.f32 %v739, %v747
      %v750 = vadd.f32 %v740, %v747
      %v751 = vadd.f32 %v741, %v747
      %v752 = vadd.f32 %v742, %v747
      %v753 = vmax.f32 %v749, 0.0
      %v754 = vmax.f32 %v750, 0.0
      %v755 = vmax.f32 %v751, 0.0
      %v756 = vmax.f32 %v752, 0.0
      %v757 = vld [vmem:[%s11] sm:$0xf]
      %v758 = vld [vmem:[%s11 + $0x4] sm:$0xf]
      %v759 = vpack.c.bf16 %v753, %v753
      %v760 = vpack.c.bf16 %v754, %v754
      %v761 = vpack.c.bf16 %v755, %v755
      %v762 = vpack.c.bf16 %v756, %v756
      %v765 = vunpack.c.l.b16 %v757
      %v766 = vunpack.c.l.b16 %v758
      %v767 = vpack.c.b16 %v766, %v765
      %v769 = vsel %vm538, %v767, 0
      %v772 = vsel %vm542, %v759, 0
      %v775 = vsel %vm542, %v760, 0
      %v778 = vsel %vm542, %v761, 0
      %v781 = vsel %vm542, %v762, 0
      %783 = vmatpush.bf16.msra.mxu0 0
      %784 = vmatpush.bf16.msra.mxu0 0
      %785 = vmatpush.bf16.msra.mxu0 0
      %786 = vmatpush.bf16.msra.mxu0 0
      %787 = vmatpush.bf16.msra.mxu0 0
      %788 = vmatpush.bf16.msra.mxu0 0
      %789 = vmatpush.bf16.msra.mxu0 0
      %790 = vmatpush.bf16.msra.mxu0 %v772
      %791 = vmatmul.bf16.gmra.mxu0 %v769
      %v792 = vpop.f32.mrf.mxu0
      %v793 = vadd.f32 0.0, %v792
      %v794 = vpop.f32.mrf.mxu0
      %v795 = vadd.f32 0.0, %v794
      %796 = vdwg.mxu0
      %797 = vmatpush.bf16.msra.mxu0 0
      %798 = vmatpush.bf16.msra.mxu0 0
      %799 = vmatpush.bf16.msra.mxu0 0
      %800 = vmatpush.bf16.msra.mxu0 0
      %801 = vmatpush.bf16.msra.mxu0 0
      %802 = vmatpush.bf16.msra.mxu0 0
      %803 = vmatpush.bf16.msra.mxu0 0
      %804 = vmatpush.bf16.msra.mxu0 %v775
      %805 = vmatmul.bf16.gmra.mxu0 %v769
      %v806 = vpop.f32.mrf.mxu0
      %v807 = vadd.f32 0.0, %v806
      %v808 = vpop.f32.mrf.mxu0
      %v809 = vadd.f32 0.0, %v808
      %810 = vdwg.mxu0
      %811 = vmatpush.bf16.msra.mxu0 0
      %812 = vmatpush.bf16.msra.mxu0 0
      %813 = vmatpush.bf16.msra.mxu0 0
      %814 = vmatpush.bf16.msra.mxu0 0
      %815 = vmatpush.bf16.msra.mxu0 0
      %816 = vmatpush.bf16.msra.mxu0 0
      %817 = vmatpush.bf16.msra.mxu0 0
      %818 = vmatpush.bf16.msra.mxu0 %v778
      %819 = vmatmul.bf16.gmra.mxu0 %v769
      %v820 = vpop.f32.mrf.mxu0
      %v821 = vadd.f32 0.0, %v820
      %v822 = vpop.f32.mrf.mxu0
      %v823 = vadd.f32 0.0, %v822
      %824 = vdwg.mxu0
      %825 = vmatpush.bf16.msra.mxu0 0
      %826 = vmatpush.bf16.msra.mxu0 0
      %827 = vmatpush.bf16.msra.mxu0 0
      %828 = vmatpush.bf16.msra.mxu0 0
      %829 = vmatpush.bf16.msra.mxu0 0
      %830 = vmatpush.bf16.msra.mxu0 0
      %831 = vmatpush.bf16.msra.mxu0 0
      %832 = vmatpush.bf16.msra.mxu0 %v781
      %833 = vmatmul.bf16.gmra.mxu0 %v769
      %v834 = vpop.f32.mrf.mxu0
      %v835 = vadd.f32 0.0, %v834
      %v836 = vpop.f32.mrf.mxu0
      %v837 = vadd.f32 0.0, %v836
      %838 = vdwg.mxu0
      %839 = vst [vmem:[%s502] sm:$0xff] %v793
      %840 = vst [vmem:[%s502 + $0x8] sm:$0xff] %v807
      %841 = vst [vmem:[%s502 + $0x10] sm:$0xff] %v821
      %842 = vst [vmem:[%s502 + $0x18] sm:$0xff] %v835
      %843 = vst [vmem:[%s502 + $0x20] sm:$0xff] %v795
      %844 = vst [vmem:[%s502 + $0x28] sm:$0xff] %v809
      %845 = vst [vmem:[%s502 + $0x30] sm:$0xff] %v823
      %846 = vst [vmem:[%s502 + $0x38] sm:$0xff] %v837
      %s847 = smul.u32 4, %s30
      %p848 = scmp.lt.s32.totalorder %s29, 1
      %s849 = scalar_select %p848, %s29, 1
      %p850 = scmp.lt.s32.totalorder %s847, 3
      %s851 = scalar_select %p850, %s847, 3
      %s852 = smul.addr %s849, 4
      %s853 = sadd.s32 %s851, %s852
      %s854 = smul.addr %s853, 4
      %s855 = scalar_lea.vmem %s12, %s854
      %s856 = smul.u32 4, %s30
      %p857 = scmp.lt.s32.totalorder %s29, 1
      %s858 = scalar_select %p857, %s29, 1
      %p859 = scmp.lt.s32.totalorder %s856, 3
      %s860 = scalar_select %p859, %s856, 3
      %s861 = smul.addr %s858, 8
      %s862 = sadd.s32 %s860, %s861
      %s863 = smul.addr %s862, 8
      %s864 = scalar_lea.vmem %s13, %s863
      // Predicated region
      $region69: #{mfunit_forward.3} parent=67 // pred_check
        %p865 = pneg %p316
      $region70: #{mfunit_forward.3} parent=67 // pred_check_branch
        %867 = sbr.rel (%p865) target = $region72
      $region71: #{mfunit_forward.3} parent=67 // pred_region
        %s868 = smul.u32 4, %s30
      $region72: #{mfunit_forward.3} parent=67 // pred_fallthru
        _
      // Predicated region
      $region73: #{mfunit_forward.3} parent=67 // pred_check
        %p869 = pneg %p344
      $region74: #{mfunit_forward.3} parent=67 // pred_check_branch
        %871 = sbr.rel (%p869) target = $region76
      $region75: #{mfunit_forward.3} parent=67 // pred_region
        %s872 = smul.u32 4, %s30
      $region76: #{mfunit_forward.3} parent=67 // pred_fallthru
        _
    $region68: #{mfunit_forward.3} parent=5 // pred_fallthru
      _
    %p873 = scmp.le.s32.totalorder 2, %s20
    // Predicated region
    $region77: #{mfunit_forward.3} parent=5 // pred_check
      %p874 = pneg %p873
    $region78: #{mfunit_forward.3} parent=5 // pred_check_branch
      %876 = sbr.rel (%p874) target = $region80
    $region79: #{mfunit_forward.3} parent=5 // pred_region
      %s877 = ssub.s32 %s20, 2
      // Predicated region
      $region81: #{mfunit_forward.3} parent=79 // pred_check
        %p878 = pneg %p322
      $region82: #{mfunit_forward.3} parent=79 // pred_check_branch
        %880 = sbr.rel (%p878) target = $region84
      $region83: #{mfunit_forward.3} parent=79 // pred_region
        %s881 = smul.u32 4, %s32
        %p882 = scmp.lt.s32.totalorder %s31, 1
        %s883 = scalar_select %p882, %s31, 1
        %p884 = scmp.lt.s32.totalorder %s881, 3
        %s885 = scalar_select %p884, %s881, 3
        %s886 = smul.addr %s883, 4
        %s887 = sadd.s32 %s885, %s886
        %s888 = smul.addr %s887, 4
        %s889 = scalar_lea.vmem %s12, %s888
      $region84: #{mfunit_forward.3} parent=79 // pred_fallthru
        _
      // Predicated region
      $region85: #{mfunit_forward.3} parent=79 // pred_check
        %p890 = pneg %p350
      $region86: #{mfunit_forward.3} parent=79 // pred_check_branch
        %892 = sbr.rel (%p890) target = $region88
      $region87: #{mfunit_forward.3} parent=79 // pred_region
        %s893 = smul.u32 4, %s32
        %p894 = scmp.lt.s32.totalorder %s31, 1
        %s895 = scalar_select %p894, %s31, 1
        %p896 = scmp.lt.s32.totalorder %s893, 3
        %s897 = scalar_select %p896, %s893, 3
        %s898 = smul.addr %s895, 8
        %s899 = sadd.s32 %s897, %s898
        %s900 = smul.addr %s899, 8
        %s901 = scalar_lea.vmem %s13, %s900
      $region88: #{mfunit_forward.3} parent=79 // pred_fallthru
        _
    $region80: #{mfunit_forward.3} parent=5 // pred_fallthru
      _
  $region6: #{mfunit_forward.3} parent=0 // loop_footer
    %s24 = sadd.s32 1, %s20
  $region7: #{mfunit_forward.3} parent=0 // loop_footer_branch
    %19 = sbr.rel target = $region3
  $region8: #{mfunit_forward.3} parent=0 // loop_exit
    _

// kernel: mfunit_forward.5
$region0: #{mfunit_forward.5}
  #allocation0 [shape = 'u32[]', space=smem, size = 0x4, offset = 0x4, fixed_abs, tag = 'smem constant byte address 0x4 - core index']
  #allocation1 [shape = 'u32[72,128]{1,0:T(1,128)}', space=vmem, size = 0x9000, scoped, tag = 'internal scratch']
  %s0 = inlined_call_operand.vmem [shape: bf16[2,16,512], index: 0, kind: input, shape index: {}]
  %s1 = inlined_call_operand.vmem [shape: bf16[3,3,1,16,16], index: 1, kind: input, shape index: {}]
  %s2 = inlined_call_operand.vmem [shape: s32[1,512], index: 2, kind: input, shape index: {}]
  %s3 = inlined_call_operand.vmem [shape: s32[1,512], index: 3, kind: input, shape index: {}]
  %s4 = inlined_call_operand.vmem [shape: s32[1,512], index: 4, kind: input, shape index: {}]
  %s5 = inlined_call_operand.vmem [shape: f32[2,16,512], index: 5, kind: input, shape index: {}]
  %s6 = inlined_call_operand.vmem [shape: f32[2,16,512], index: 6, kind: output, shape index: {}]
  %s7 = sld [smem:[#allocation0]]
  $region57: #{mfunit_forward.5} parent=0
    _
  %s9 = ssub.s32 1, %s7
  %s10 = scalar_select 0, %s9, %s7
  loop: start=0, step=1, limit=4
  $region2: #{mfunit_forward.5} parent=0 // loop_pre_header
    _
  $region3: #{mfunit_forward.5} parent=0 // loop_header
    %s12 = sphi 0, %s16
    %p13 = scmp.ge.s32.totalorder %s12, 4
    %s22 = sphi 0, %s24
    %s25 = sphi 0, %s22
    %s26 = sphi 0, %s25
    %s42 = sphi 0, %s26
    %s46 = sphi 0, %s46
    %s48 = sphi 0, %s46
    %s49 = sphi 0, %s48
    %s63 = sphi 0, %s49
    %s67 = sphi 0, %s67
    %s69 = sphi 0, %s67
    %s70 = sphi 0, %s69
    %s84 = sphi 0, %s70
    %s88 = sphi 0, %s88
    %s90 = sphi 0, %s88
    %s91 = sphi 0, %s90
    %s105 = sphi 0, %s91
    %s109 = sphi 0, %s109
    %s111 = sphi 0, %s109
    %s112 = sphi 0, %s111
    %s126 = sphi 0, %s112
    %s132 = sphi 0, %s134
    %s135 = sphi 0, %s132
    %s136 = sphi 0, %s135
    %s152 = sphi 0, %s136
    %s158 = sphi 0, %s160
    %s161 = sphi 0, %s158
    %s162 = sphi 0, %s161
    %s178 = sphi 0, %s162
  $region4: #{mfunit_forward.5} parent=0 // loop_header_branch
    %15 = sbr.rel (%p13) target = $region8
  $region5: #{mfunit_forward.5} parent=0 // loop_body
    %s17 = ssub.s32 %s12, 1
    %s18 = ssub.s32 %s12, 2
    %s19 = sadd.s32 %s12, 1
    %s20 = ssub.s32 %s12, %s19
    %p21 = scmp.eq.s32.totalorder %s20, 0
    %s23 = sadd.s32 %s22, 1
    %s24 = scalar_select %p21, %s22, %s23
    %p27 = pneg %p21
    %p28 = scmp.eq.s32.totalorder %s12, 1
    %p29 = por %p27, %p28
    %p30 = scmp.ne.s32.totalorder %s22, %s25
    %p31 = scmp.eq.s32.totalorder %s12, 0
    %p32 = por %p30, %p31
    %p33 = scmp.ne.s32.totalorder %s22, %s25
    %p34 = scmp.eq.s32.totalorder %s17, 1
    %p35 = por %p33, %p34
    %p36 = scmp.ne.s32.totalorder %s25, %s26
    %p37 = scmp.eq.s32.totalorder %s17, 0
    %p38 = por %p36, %p37
    %p39 = scmp.ne.s32.totalorder %s25, %s26
    %p40 = scmp.eq.s32.totalorder %s18, 1
    %p41 = por %p39, %p40
    %p43 = scmp.ne.s32.totalorder %s26, %s42
    %p44 = scmp.eq.s32.totalorder %s18, 0
    %p45 = por %p43, %p44
    %s47 = sadd.s32 %s46, 1
    %p50 = scmp.eq.s32.totalorder %s12, 1
    %p51 = scmp.ne.s32.totalorder %s46, %s48
    %p52 = scmp.eq.s32.totalorder %s12, 0
    %p53 = por %p51, %p52
    %p54 = scmp.ne.s32.totalorder %s46, %s48
    %p55 = scmp.eq.s32.totalorder %s17, 1
    %p56 = por %p54, %p55
    %p57 = scmp.ne.s32.totalorder %s48, %s49
    %p58 = scmp.eq.s32.totalorder %s17, 0
    %p59 = por %p57, %p58
    %p60 = scmp.ne.s32.totalorder %s48, %s49
    %p61 = scmp.eq.s32.totalorder %s18, 1
    %p62 = por %p60, %p61
    %p64 = scmp.ne.s32.totalorder %s49, %s63
    %p65 = scmp.eq.s32.totalorder %s18, 0
    %p66 = por %p64, %p65
    %s68 = sadd.s32 %s67, 1
    %p71 = scmp.eq.s32.totalorder %s12, 1
    %p72 = scmp.ne.s32.totalorder %s67, %s69
    %p73 = scmp.eq.s32.totalorder %s12, 0
    %p74 = por %p72, %p73
    %p75 = scmp.ne.s32.totalorder %s67, %s69
    %p76 = scmp.eq.s32.totalorder %s17, 1
    %p77 = por %p75, %p76
    %p78 = scmp.ne.s32.totalorder %s69, %s70
    %p79 = scmp.eq.s32.totalorder %s17, 0
    %p80 = por %p78, %p79
    %p81 = scmp.ne.s32.totalorder %s69, %s70
    %p82 = scmp.eq.s32.totalorder %s18, 1
    %p83 = por %p81, %p82
    %p85 = scmp.ne.s32.totalorder %s70, %s84
    %p86 = scmp.eq.s32.totalorder %s18, 0
    %p87 = por %p85, %p86
    %s89 = sadd.s32 %s88, 1
    %p92 = scmp.eq.s32.totalorder %s12, 1
    %p93 = scmp.ne.s32.totalorder %s88, %s90
    %p94 = scmp.eq.s32.totalorder %s12, 0
    %p95 = por %p93, %p94
    %p96 = scmp.ne.s32.totalorder %s88, %s90
    %p97 = scmp.eq.s32.totalorder %s17, 1
    %p98 = por %p96, %p97
    %p99 = scmp.ne.s32.totalorder %s90, %s91
    %p100 = scmp.eq.s32.totalorder %s17, 0
    %p101 = por %p99, %p100
    %p102 = scmp.ne.s32.totalorder %s90, %s91
    %p103 = scmp.eq.s32.totalorder %s18, 1
    %p104 = por %p102, %p103
    %p106 = scmp.ne.s32.totalorder %s91, %s105
    %p107 = scmp.eq.s32.totalorder %s18, 0
    %p108 = por %p106, %p107
    %s110 = sadd.s32 %s109, 1
    %p113 = scmp.eq.s32.totalorder %s12, 1
    %p114 = scmp.ne.s32.totalorder %s109, %s111
    %p115 = scmp.eq.s32.totalorder %s12, 0
    %p116 = por %p114, %p115
    %p117 = scmp.ne.s32.totalorder %s109, %s111
    %p118 = scmp.eq.s32.totalorder %s17, 1
    %p119 = por %p117, %p118
    %p120 = scmp.ne.s32.totalorder %s111, %s112
    %p121 = scmp.eq.s32.totalorder %s17, 0
    %p122 = por %p120, %p121
    %p123 = scmp.ne.s32.totalorder %s111, %s112
    %p124 = scmp.eq.s32.totalorder %s18, 1
    %p125 = por %p123, %p124
    %p127 = scmp.ne.s32.totalorder %s112, %s126
    %p128 = scmp.eq.s32.totalorder %s18, 0
    %p129 = por %p127, %p128
    %s130 = ssub.s32 %s12, %s19
    %p131 = scmp.eq.s32.totalorder %s130, 0
    %s133 = sadd.s32 %s132, 1
    %s134 = scalar_select %p131, %s132, %s133
    %p137 = pneg %p131
    %p138 = scmp.eq.s32.totalorder %s12, 1
    %p139 = por %p137, %p138
    %p140 = scmp.ne.s32.totalorder %s132, %s135
    %p141 = scmp.eq.s32.totalorder %s12, 0
    %p142 = por %p140, %p141
    %p143 = scmp.ne.s32.totalorder %s132, %s135
    %p144 = scmp.eq.s32.totalorder %s17, 1
    %p145 = por %p143, %p144
    %p146 = scmp.ne.s32.totalorder %s135, %s136
    %p147 = scmp.eq.s32.totalorder %s17, 0
    %p148 = por %p146, %p147
    %p149 = scmp.ne.s32.totalorder %s135, %s136
    %p150 = scmp.eq.s32.totalorder %s18, 1
    %p151 = por %p149, %p150
    %p153 = scmp.ne.s32.totalorder %s136, %s152
    %p154 = scmp.eq.s32.totalorder %s18, 0
    %p155 = por %p153, %p154
    %s156 = ssub.s32 %s12, %s19
    %p157 = scmp.eq.s32.totalorder %s156, 0
    %s159 = sadd.s32 %s158, 1
    %s160 = scalar_select %p157, %s158, %s159
    %p163 = pneg %p157
    %p164 = scmp.eq.s32.totalorder %s12, 1
    %p165 = por %p163, %p164
    %p166 = scmp.ne.s32.totalorder %s158, %s161
    %p167 = scmp.eq.s32.totalorder %s12, 0
    %p168 = por %p166, %p167
    %p169 = scmp.ne.s32.totalorder %s158, %s161
    %p170 = scmp.eq.s32.totalorder %s17, 1
    %p171 = por %p169, %p170
    %p172 = scmp.ne.s32.totalorder %s161, %s162
    %p173 = scmp.eq.s32.totalorder %s17, 0
    %p174 = por %p172, %p173
    %p175 = scmp.ne.s32.totalorder %s161, %s162
    %p176 = scmp.eq.s32.totalorder %s18, 1
    %p177 = por %p175, %p176
    %p179 = scmp.ne.s32.totalorder %s162, %s178
    %p180 = scmp.eq.s32.totalorder %s18, 0
    %p181 = por %p179, %p180
    %p182 = scmp.le.s32.totalorder 1, %s12
    %p183 = scmp.lt.s32.totalorder %s12, 3
    %p184 = pnand %p182, %p183
    %p185 = pneg %p184
    // Predicated region
    $region9: #{mfunit_forward.5} parent=5 // pred_check
      _
    $region10: #{mfunit_forward.5} parent=5 // pred_check_branch
      %187 = sbr.rel (%p184) target = $region12
    $region11: #{mfunit_forward.5} parent=5 // pred_region
      %s188 = ssub.s32 %s12, 1
      // Predicated region
      $region13: #{mfunit_forward.5} parent=11 // pred_check
        %p189 = pneg %p59
      $region14: #{mfunit_forward.5} parent=11 // pred_check_branch
        %191 = sbr.rel (%p189) target = $region16
      $region15: #{mfunit_forward.5} parent=11 // pred_region
        _
      $region16: #{mfunit_forward.5} parent=11 // pred_fallthru
        _
      // Predicated region
      $region17: #{mfunit_forward.5} parent=11 // pred_check
        %p192 = pneg %p80
      $region18: #{mfunit_forward.5} parent=11 // pred_check_branch
        %194 = sbr.rel (%p192) target = $region20
      $region19: #{mfunit_forward.5} parent=11 // pred_region
        _
      $region20: #{mfunit_forward.5} parent=11 // pred_fallthru
        _
      // Predicated region
      $region21: #{mfunit_forward.5} parent=11 // pred_check
        %p195 = pneg %p101
      $region22: #{mfunit_forward.5} parent=11 // pred_check_branch
        %197 = sbr.rel (%p195) target = $region24
      $region23: #{mfunit_forward.5} parent=11 // pred_region
        _
      $region24: #{mfunit_forward.5} parent=11 // pred_fallthru
        _
      // Predicated region
      $region25: #{mfunit_forward.5} parent=11 // pred_check
        %p198 = pneg %p122
      $region26: #{mfunit_forward.5} parent=11 // pred_check_branch
        %200 = sbr.rel (%p198) target = $region28
      $region27: #{mfunit_forward.5} parent=11 // pred_region
        _
      $region28: #{mfunit_forward.5} parent=11 // pred_fallthru
        _
    $region12: #{mfunit_forward.5} parent=5 // pred_fallthru
      _
    %p201 = scmp.lt.s32.totalorder %s12, 2
    // Predicated region
    $region29: #{mfunit_forward.5} parent=5 // pred_check
      %p202 = pneg %p201
    $region30: #{mfunit_forward.5} parent=5 // pred_check_branch
      %204 = sbr.rel (%p202) target = $region32
    $region31: #{mfunit_forward.5} parent=5 // pred_region
      // Predicated region
      $region33: #{mfunit_forward.5} parent=31 // pred_check
        %p205 = pneg %p32
      $region34: #{mfunit_forward.5} parent=31 // pred_check_branch
        %207 = sbr.rel (%p205) target = $region36
      $region35: #{mfunit_forward.5} parent=31 // pred_region
        %p208 = scmp.lt.s32.totalorder %s12, 1
        %s209 = scalar_select %p208, %s12, 1
        %s210 = smul.addr %s209, 8
        %s211 = smul.addr %s210, 4
        %s212 = scalar_lea.vmem %s0, %s211
      $region36: #{mfunit_forward.5} parent=31 // pred_fallthru
        _
      // Predicated region
      $region37: #{mfunit_forward.5} parent=31 // pred_check
        %p213 = pneg %p142
      $region38: #{mfunit_forward.5} parent=31 // pred_check_branch
        %215 = sbr.rel (%p213) target = $region40
      $region39: #{mfunit_forward.5} parent=31 // pred_region
        %p216 = scmp.lt.s32.totalorder %s12, 1
        %s217 = scalar_select %p216, %s12, 1
        %s218 = smul.addr %s217, 8
        %s219 = smul.addr %s218, 8
        %s220 = scalar_lea.vmem %s5, %s219
      $region40: #{mfunit_forward.5} parent=31 // pred_fallthru
        _
    $region32: #{mfunit_forward.5} parent=5 // pred_fallthru
      _
    %p221 = scmp.le.s32.totalorder 1, %s12
    %p222 = scmp.lt.s32.totalorder %s12, 3
    %p223 = pnand %p221, %p222
    %p224 = pneg %p223
    // Predicated region
    $region41: #{mfunit_forward.5} parent=5 // pred_check
      _
    $region42: #{mfunit_forward.5} parent=5 // pred_check_branch
      %226 = sbr.rel (%p223) target = $region44
    $region43: #{mfunit_forward.5} parent=5 // pred_region
      %s227 = ssub.s32 %s12, 1
      %p228 = scmp.lt.s32.totalorder %s17, 1
      %s229 = scalar_select %p228, %s17, 1
      %s230 = smul.addr %s229, 8
      %s231 = smul.addr %s230, 4
      %s232 = scalar_lea.vmem %s0, %s231
      %p233 = pneg %p38
      %p234 = pneg %p35
      %p235 = pneg %p59
      %p236 = pneg %p56
      %p237 = pneg %p80
      %p238 = pneg %p77
      %p239 = pneg %p101
      %p240 = pneg %p98
      %p241 = pneg %p122
      %p242 = pneg %p119
      %p243 = scmp.lt.s32.totalorder %s17, 1
      %s244 = scalar_select %p243, %s17, 1
      %s245 = smul.addr %s244, 8
      %s246 = smul.addr %s245, 8
      %s247 = scalar_lea.vmem %s5, %s246
      %p248 = pneg %p148
      %p249 = pneg %p145
      %p250 = pneg %p174
      %p251 = pneg %p171
      %p252 = scmp.lt.s32.totalorder %s17, 1
      %s253 = scalar_select %p252, %s17, 1
      %s254 = smul.addr %s253, 8
      %s255 = smul.addr %s254, 8
      %s256 = scalar_lea.vmem %s6, %s255
      %p257 = scmp.lt.s32.totalorder %s17, 1
      %s258 = scalar_select %p257, %s17, 1
      %s259 = smul.addr %s258, 8
      %s260 = smul.addr %s259, 4
      %s261 = scalar_lea.vmem %s0, %s260
      %p262 = scmp.lt.s32.totalorder %s17, 1
      %s263 = scalar_select %p262, %s17, 1
      %s264 = smul.addr %s263, 8
      %s265 = smul.addr %s264, 8
      %s266 = scalar_lea.vmem %s5, %s265
      %p267 = scmp.lt.s32.totalorder %s17, 1
      %s268 = scalar_select %p267, %s17, 1
      %s269 = smul.addr %s268, 8
      %s270 = smul.addr %s269, 8
      %s271 = scalar_lea.vmem %s6, %s270
      %v273 = vld [vmem:[%s261] sm:$0xff]
      %v274 = vld [vmem:[%s261 + $0x8] sm:$0xff]
      %v275 = vld [vmem:[%s261 + $0x10] sm:$0xff]
      %v276 = vld [vmem:[%s261 + $0x18] sm:$0xff]
      %v277 = vunpack.c.l.bf16 %v273
      %v278 = vunpack.c.h.bf16 %v273
      %v279 = vunpack.c.l.bf16 %v274
      %v280 = vunpack.c.h.bf16 %v274
      %v281 = vunpack.c.l.bf16 %v275
      %v282 = vunpack.c.h.bf16 %v275
      %v283 = vunpack.c.l.bf16 %v276
      %v284 = vunpack.c.h.bf16 %v276
      %v285 = vld [vmem:[%s2] sm:$0xf]
      %v286 = vld [vmem:[%s3] sm:$0xf]
      %287 = vrot.lane.b32.xlu0 %v277, 72
      %v288 = vpop.permute.xlu0 %287
      %289 = vrot.lane.b32.xlu0 %v281, 72
      %v290 = vpop.permute.xlu0 %289
      %291 = vrot.lane.b32.xlu0 %v278, 72
      %v292 = vpop.permute.xlu0 %291
      %293 = vrot.lane.b32.xlu0 %v282, 72
      %v294 = vpop.permute.xlu0 %293
      %295 = vrot.lane.b32.xlu0 %v279, 72
      %v296 = vpop.permute.xlu0 %295
      %297 = vrot.lane.b32.xlu0 %v283, 72
      %v298 = vpop.permute.xlu0 %297
      %299 = vrot.lane.b32.xlu0 %v280, 72
      %v300 = vpop.permute.xlu0 %299
      %301 = vrot.lane.b32.xlu0 %v284, 72
      %v302 = vpop.permute.xlu0 %301
      %v303 = vlaneseq
      %v304 = vand.u32 %v303, 127
      %vm305 = vcmp.lt.s32.totalorder %v304, 72
      %v306 = vsel %vm305, %v296, %v300
      %v307 = vsel %vm305, %v298, %v302
      %v308 = vsel %vm305, %v292, %v296
      %v309 = vsel %vm305, %v294, %v298
      %v310 = vsel %vm305, %v288, %v292
      %v311 = vsel %vm305, %v290, %v294
      %v312 = vsel %vm305, %v300, %v288
      %v313 = vsel %vm305, %v302, %v290
      %vm314 = vcmp.ge.s32.totalorder %v285, 1
      %vm315 = vcmp.lt.s32.totalorder %v285, 9
      %vm316 = vcmp.ge.s32.totalorder %v286, 1
      %vm317 = vcmp.lt.s32.totalorder %v286, 9
      %vm318 = vmand %vm314, %vm315
      %vm319 = vmand %vm318, %vm316
      %vm320 = vmand %vm319, %vm317
      %v321 = vsel %vm320, 1, 0
      %v322 = vperm.slane %v321, 0
      %v323 = vperm.slane %v321, 1
      %v324 = vperm.slane %v321, 2
      %v325 = vperm.slane %v321, 3
      %vm326 = vcmp.eq.s32.totalorder %v322, 1
      %vm327 = vcmp.eq.s32.totalorder %v323, 1
      %vm328 = vcmp.eq.s32.totalorder %v324, 1
      %vm329 = vcmp.eq.s32.totalorder %v325, 1
      %v330 = vsel %vm326, %v312, 0.0
      %v331 = vsel %vm327, %v310, 0.0
      %v332 = vsel %vm328, %v308, 0.0
      %v333 = vsel %vm329, %v306, 0.0
      %v334 = vsel %vm326, %v313, 0.0
      %v335 = vsel %vm327, %v311, 0.0
      %v336 = vsel %vm328, %v309, 0.0
      %v337 = vsel %vm329, %v307, 0.0
      %v338 = vld [vmem:[%s1] sm:$0xf]
      %v339 = vld [vmem:[%s1 + $0x4] sm:$0xf]
      %v340 = vpack.c.bf16 %v334, %v330
      %v341 = vpack.c.bf16 %v335, %v331
      %v342 = vpack.c.bf16 %v336, %v332
      %v343 = vpack.c.bf16 %v337, %v333
      %344 = vrot.lane.b32.xlu0 %v277, 64
      %v345 = vpop.permute.xlu0 %344
      %346 = vrot.lane.b32.xlu0 %v281, 64
      %v347 = vpop.permute.xlu0 %346
      %348 = vrot.lane.b32.xlu0 %v278, 64
      %v349 = vpop.permute.xlu0 %348
      %350 = vrot.lane.b32.xlu0 %v282, 64
      %v351 = vpop.permute.xlu0 %350
      %352 = vrot.lane.b32.xlu0 %v279, 64
      %v353 = vpop.permute.xlu0 %352
      %354 = vrot.lane.b32.xlu0 %v283, 64
      %v355 = vpop.permute.xlu0 %354
      %356 = vrot.lane.b32.xlu0 %v280, 64
      %v357 = vpop.permute.xlu0 %356
      %358 = vrot.lane.b32.xlu0 %v284, 64
      %v359 = vpop.permute.xlu0 %358
      %vm360 = vcmp.lt.s32.totalorder %v304, 64
      %v361 = vsel %vm360, %v353, %v357
      %v362 = vsel %vm360, %v355, %v359
      %v363 = vsel %vm360, %v349, %v353
      %v364 = vsel %vm360, %v351, %v355
      %v365 = vsel %vm360, %v345, %v349
      %v366 = vsel %vm360, %v347, %v351
      %v367 = vsel %vm360, %v357, %v345
      %v368 = vsel %vm360, %v359, %v347
      %v369 = vsel %vm318, 1, 0
      %v370 = vperm.slane %v369, 0
      %v371 = vperm.slane %v369, 1
      %v372 = vperm.slane %v369, 2
      %v373 = vperm.slane %v369, 3
      %vm374 = vcmp.eq.s32.totalorder %v370, 1
      %vm375 = vcmp.eq.s32.totalorder %v371, 1
      %vm376 = vcmp.eq.s32.totalorder %v372, 1
      %vm377 = vcmp.eq.s32.totalorder %v373, 1
      %v378 = vsel %vm374, %v367, 0.0
      %v379 = vsel %vm375, %v365, 0.0
      %v380 = vsel %vm376, %v363, 0.0
      %v381 = vsel %vm377, %v361, 0.0
      %v382 = vsel %vm374, %v368, 0.0
      %v383 = vsel %vm375, %v366, 0.0
      %v384 = vsel %vm376, %v364, 0.0
      %v385 = vsel %vm377, %v362, 0.0
      %s386 = scalar_lea.vmem %s1, 8
      %v387 = vld [vmem:[%s386] sm:$0xf]
      %v388 = vld [vmem:[%s386 + $0x4] sm:$0xf]
      %v389 = vpack.c.bf16 %v382, %v378
      %v390 = vpack.c.bf16 %v383, %v379
      %v391 = vpack.c.bf16 %v384, %v380
      %v392 = vpack.c.bf16 %v385, %v381
      %v395 = vunpack.c.l.b16 %v387
      %v396 = vunpack.c.l.b16 %v388
      %v397 = vpack.c.b16 %v396, %v395
      %vm398 = vcmask 130048
      %v400 = vsel %vm398, %v397, 0
      %402 = vmatpush.bf16.msra.mxu0 0
      %403 = vmatpush.bf16.msra.mxu0 0
      %404 = vmatpush.bf16.msra.mxu0 0
      %405 = vmatpush.bf16.msra.mxu0 0
      %406 = vmatpush.bf16.msra.mxu0 0
      %407 = vmatpush.bf16.msra.mxu0 0
      %408 = vmatpush.bf16.msra.mxu0 0
      %409 = vmatpush.bf16.msra.mxu0 %v389
      %410 = vmatmul.bf16.gmra.mxu0 %v400
      %v411 = vpop.f32.mrf.mxu0
      %v412 = vadd.f32 0.0, %v411
      %v413 = vpop.f32.mrf.mxu0
      %v414 = vadd.f32 0.0, %v413
      %415 = vdwg.mxu0
      %416 = vmatpush.bf16.msra.mxu0 0
      %417 = vmatpush.bf16.msra.mxu0 0
      %418 = vmatpush.bf16.msra.mxu0 0
      %419 = vmatpush.bf16.msra.mxu0 0
      %420 = vmatpush.bf16.msra.mxu0 0
      %421 = vmatpush.bf16.msra.mxu0 0
      %422 = vmatpush.bf16.msra.mxu0 0
      %423 = vmatpush.bf16.msra.mxu0 %v390
      %424 = vmatmul.bf16.gmra.mxu0 %v400
      %v425 = vpop.f32.mrf.mxu0
      %v426 = vadd.f32 0.0, %v425
      %v427 = vpop.f32.mrf.mxu0
      %v428 = vadd.f32 0.0, %v427
      %429 = vdwg.mxu0
      %430 = vmatpush.bf16.msra.mxu0 0
      %431 = vmatpush.bf16.msra.mxu0 0
      %432 = vmatpush.bf16.msra.mxu0 0
      %433 = vmatpush.bf16.msra.mxu0 0
      %434 = vmatpush.bf16.msra.mxu0 0
      %435 = vmatpush.bf16.msra.mxu0 0
      %436 = vmatpush.bf16.msra.mxu0 0
      %437 = vmatpush.bf16.msra.mxu0 %v391
      %438 = vmatmul.bf16.gmra.mxu0 %v400
      %v439 = vpop.f32.mrf.mxu0
      %v440 = vadd.f32 0.0, %v439
      %v441 = vpop.f32.mrf.mxu0
      %v442 = vadd.f32 0.0, %v441
      %443 = vdwg.mxu0
      %444 = vmatpush.bf16.msra.mxu0 0
      %445 = vmatpush.bf16.msra.mxu0 0
      %446 = vmatpush.bf16.msra.mxu0 0
      %447 = vmatpush.bf16.msra.mxu0 0
      %448 = vmatpush.bf16.msra.mxu0 0
      %449 = vmatpush.bf16.msra.mxu0 0
      %450 = vmatpush.bf16.msra.mxu0 0
      %451 = vmatpush.bf16.msra.mxu0 %v392
      %452 = vmatmul.bf16.gmra.mxu0 %v400
      %v453 = vpop.f32.mrf.mxu0
      %v454 = vadd.f32 0.0, %v453
      %v455 = vpop.f32.mrf.mxu0
      %v456 = vadd.f32 0.0, %v455
      %457 = vdwg.mxu0
      %v460 = vunpack.c.l.b16 %v338
      %v461 = vunpack.c.l.b16 %v339
      %v462 = vpack.c.b16 %v461, %v460
      %v464 = vsel %vm398, %v462, 0
      %466 = vmatpush.bf16.msra.mxu0 0
      %467 = vmatpush.bf16.msra.mxu0 0
      %468 = vmatpush.bf16.msra.mxu0 0
      %469 = vmatpush.bf16.msra.mxu0 0
      %470 = vmatpush.bf16.msra.mxu0 0
      %471 = vmatpush.bf16.msra.mxu0 0
      %472 = vmatpush.bf16.msra.mxu0 0
      %473 = vmatpush.bf16.msra.mxu0 %v340
      %474 = vmatmul.bf16.gmra.mxu0 %v464
      %v475 = vpop.f32.mrf.mxu0
      %v476 = vadd.f32 %v412, %v475
      %v477 = vpop.f32.mrf.mxu0
      %v478 = vadd.f32 %v414, %v477
      %479 = vdwg.mxu0
      %480 = vmatpush.bf16.msra.mxu0 0
      %481 = vmatpush.bf16.msra.mxu0 0
      %482 = vmatpush.bf16.msra.mxu0 0
      %483 = vmatpush.bf16.msra.mxu0 0
      %484 = vmatpush.bf16.msra.mxu0 0
      %485 = vmatpush.bf16.msra.mxu0 0
      %486 = vmatpush.bf16.msra.mxu0 0
      %487 = vmatpush.bf16.msra.mxu0 %v341
      %488 = vmatmul.bf16.gmra.mxu0 %v464
      %v489 = vpop.f32.mrf.mxu0
      %v490 = vadd.f32 %v426, %v489
      %v491 = vpop.f32.mrf.mxu0
      %v492 = vadd.f32 %v428, %v491
      %493 = vdwg.mxu0
      %494 = vmatpush.bf16.msra.mxu0 0
      %495 = vmatpush.bf16.msra.mxu0 0
      %496 = vmatpush.bf16.msra.mxu0 0
      %497 = vmatpush.bf16.msra.mxu0 0
      %498 = vmatpush.bf16.msra.mxu0 0
      %499 = vmatpush.bf16.msra.mxu0 0
      %500 = vmatpush.bf16.msra.mxu0 0
      %501 = vmatpush.bf16.msra.mxu0 %v342
      %502 = vmatmul.bf16.gmra.mxu0 %v464
      %v503 = vpop.f32.mrf.mxu0
      %v504 = vadd.f32 %v440, %v503
      %v505 = vpop.f32.mrf.mxu0
      %v506 = vadd.f32 %v442, %v505
      %507 = vdwg.mxu0
      %508 = vmatpush.bf16.msra.mxu0 0
      %509 = vmatpush.bf16.msra.mxu0 0
      %510 = vmatpush.bf16.msra.mxu0 0
      %511 = vmatpush.bf16.msra.mxu0 0
      %512 = vmatpush.bf16.msra.mxu0 0
      %513 = vmatpush.bf16.msra.mxu0 0
      %514 = vmatpush.bf16.msra.mxu0 0
      %515 = vmatpush.bf16.msra.mxu0 %v343
      %516 = vmatmul.bf16.gmra.mxu0 %v464
      %v517 = vpop.f32.mrf.mxu0
      %v518 = vadd.f32 %v454, %v517
      %v519 = vpop.f32.mrf.mxu0
      %v520 = vadd.f32 %v456, %v519
      %521 = vdwg.mxu0
      %522 = vrot.lane.b32.xlu0 %v277, 56
      %v523 = vpop.permute.xlu0 %522
      %524 = vrot.lane.b32.xlu0 %v281, 56
      %v525 = vpop.permute.xlu0 %524
      %526 = vrot.lane.b32.xlu0 %v278, 56
      %v527 = vpop.permute.xlu0 %526
      %528 = vrot.lane.b32.xlu0 %v282, 56
      %v529 = vpop.permute.xlu0 %528
      %530 = vrot.lane.b32.xlu0 %v279, 56
      %v531 = vpop.permute.xlu0 %530
      %532 = vrot.lane.b32.xlu0 %v283, 56
      %v533 = vpop.permute.xlu0 %532
      %534 = vrot.lane.b32.xlu0 %v280, 56
      %v535 = vpop.permute.xlu0 %534
      %536 = vrot.lane.b32.xlu0 %v284, 56
      %v537 = vpop.permute.xlu0 %536
      %vm538 = vcmp.lt.s32.totalorder %v304, 56
      %v539 = vsel %vm538, %v531, %v535
      %v540 = vsel %vm538, %v533, %v537
      %v541 = vsel %vm538, %v527, %v531
      %v542 = vsel %vm538, %v529, %v533
      %v543 = vsel %vm538, %v523, %v527
      %v544 = vsel %vm538, %v525, %v529
      %v545 = vsel %vm538, %v535, %v523
      %v546 = vsel %vm538, %v537, %v525
      %vm547 = vcmp.ge.s32.totalorder %v286, 4294967295
      %vm548 = vcmp.lt.s32.totalorder %v286, 7
      %vm549 = vmand %vm318, %vm547
      %vm550 = vmand %vm549, %vm548
      %v551 = vsel %vm550, 1, 0
      %v552 = vperm.slane %v551, 0
      %v553 = vperm.slane %v551, 1
      %v554 = vperm.slane %v551, 2
      %v555 = vperm.slane %v551, 3
      %vm556 = vcmp.eq.s32.totalorder %v552, 1
      %vm557 = vcmp.eq.s32.totalorder %v553, 1
      %vm558 = vcmp.eq.s32.totalorder %v554, 1
      %vm559 = vcmp.eq.s32.totalorder %v555, 1
      %v560 = vsel %vm556, %v545, 0.0
      %v561 = vsel %vm557, %v543, 0.0
      %v562 = vsel %vm558, %v541, 0.0
      %v563 = vsel %vm559, %v539, 0.0
      %v564 = vsel %vm556, %v546, 0.0
      %v565 = vsel %vm557, %v544, 0.0
      %v566 = vsel %vm558, %v542, 0.0
      %v567 = vsel %vm559, %v540, 0.0
      %s568 = scalar_lea.vmem %s1, 16
      %v569 = vld [vmem:[%s568] sm:$0xf]
      %v570 = vld [vmem:[%s568 + $0x4] sm:$0xf]
      %v571 = vpack.c.bf16 %v564, %v560
      %v572 = vpack.c.bf16 %v565, %v561
      %v573 = vpack.c.bf16 %v566, %v562
      %v574 = vpack.c.bf16 %v567, %v563
      %v577 = vunpack.c.l.b16 %v569
      %v578 = vunpack.c.l.b16 %v570
      %v579 = vpack.c.b16 %v578, %v577
      %v581 = vsel %vm398, %v579, 0
      %583 = vmatpush.bf16.msra.mxu0 0
      %584 = vmatpush.bf16.msra.mxu0 0
      %585 = vmatpush.bf16.msra.mxu0 0
      %586 = vmatpush.bf16.msra.mxu0 0
      %587 = vmatpush.bf16.msra.mxu0 0
      %588 = vmatpush.bf16.msra.mxu0 0
      %589 = vmatpush.bf16.msra.mxu0 0
      %590 = vmatpush.bf16.msra.mxu0 %v571
      %591 = vmatmul.bf16.gmra.mxu0 %v581
      %v592 = vpop.f32.mrf.mxu0
      %v593 = vadd.f32 0.0, %v592
      %v594 = vpop.f32.mrf.mxu0
      %v595 = vadd.f32 0.0, %v594
      %596 = vdwg.mxu0
      %597 = vmatpush.bf16.msra.mxu0 0
      %598 = vmatpush.bf16.msra.mxu0 0
      %599 = vmatpush.bf16.msra.mxu0 0
      %600 = vmatpush.bf16.msra.mxu0 0
      %601 = vmatpush.bf16.msra.mxu0 0
      %602 = vmatpush.bf16.msra.mxu0 0
      %603 = vmatpush.bf16.msra.mxu0 0
      %604 = vmatpush.bf16.msra.mxu0 %v572
      %605 = vmatmul.bf16.gmra.mxu0 %v581
      %v606 = vpop.f32.mrf.mxu0
      %v607 = vadd.f32 0.0, %v606
      %v608 = vpop.f32.mrf.mxu0
      %v609 = vadd.f32 0.0, %v608
      %610 = vdwg.mxu0
      %611 = vmatpush.bf16.msra.mxu0 0
      %612 = vmatpush.bf16.msra.mxu0 0
      %613 = vmatpush.bf16.msra.mxu0 0
      %614 = vmatpush.bf16.msra.mxu0 0
      %615 = vmatpush.bf16.msra.mxu0 0
      %616 = vmatpush.bf16.msra.mxu0 0
      %617 = vmatpush.bf16.msra.mxu0 0
      %618 = vmatpush.bf16.msra.mxu0 %v573
      %619 = vmatmul.bf16.gmra.mxu0 %v581
      %v620 = vpop.f32.mrf.mxu0
      %v621 = vadd.f32 0.0, %v620
      %v622 = vpop.f32.mrf.mxu0
      %v623 = vadd.f32 0.0, %v622
      %624 = vdwg.mxu0
      %625 = vmatpush.bf16.msra.mxu0 0
      %626 = vmatpush.bf16.msra.mxu0 0
      %627 = vmatpush.bf16.msra.mxu0 0
      %628 = vmatpush.bf16.msra.mxu0 0
      %629 = vmatpush.bf16.msra.mxu0 0
      %630 = vmatpush.bf16.msra.mxu0 0
      %631 = vmatpush.bf16.msra.mxu0 0
      %632 = vmatpush.bf16.msra.mxu0 %v574
      %633 = vmatmul.bf16.gmra.mxu0 %v581
      %v634 = vpop.f32.mrf.mxu0
      %v635 = vadd.f32 0.0, %v634
      %v636 = vpop.f32.mrf.mxu0
      %v637 = vadd.f32 0.0, %v636
      %638 = vdwg.mxu0
      %v639 = vadd.f32 %v476, %v593
      %v640 = vadd.f32 %v490, %v607
      %v641 = vadd.f32 %v504, %v621
      %v642 = vadd.f32 %v518, %v635
      %v643 = vadd.f32 %v478, %v595
      %v644 = vadd.f32 %v492, %v609
      %v645 = vadd.f32 %v506, %v623
      %v646 = vadd.f32 %v520, %v637
      %647 = vrot.lane.b32.xlu0 %v277, 8
      %v648 = vpop.permute.xlu0 %647
      %649 = vrot.lane.b32.xlu0 %v281, 8
      %v650 = vpop.permute.xlu0 %649
      %651 = vrot.lane.b32.xlu0 %v278, 8
      %v652 = vpop.permute.xlu0 %651
      %653 = vrot.lane.b32.xlu0 %v282, 8
      %v654 = vpop.permute.xlu0 %653
      %655 = vrot.lane.b32.xlu0 %v279, 8
      %v656 = vpop.permute.xlu0 %655
      %657 = vrot.lane.b32.xlu0 %v283, 8
      %v658 = vpop.permute.xlu0 %657
      %659 = vrot.lane.b32.xlu0 %v280, 8
      %v660 = vpop.permute.xlu0 %659
      %661 = vrot.lane.b32.xlu0 %v284, 8
      %v662 = vpop.permute.xlu0 %661
      %vm663 = vcmp.lt.s32.totalorder %v304, 8
      %v664 = vsel %vm663, %v656, %v660
      %v665 = vsel %vm663, %v658, %v662
      %v666 = vsel %vm663, %v652, %v656
      %v667 = vsel %vm663, %v654, %v658
      %v668 = vsel %vm663, %v648, %v652
      %v669 = vsel %vm663, %v650, %v654
      %v670 = vsel %vm663, %v660, %v648
      %v671 = vsel %vm663, %v662, %v650
      %vm672 = vmand %vm316, %vm317
      %v673 = vsel %vm672, 1, 0
      %v674 = vperm.slane %v673, 0
      %v675 = vperm.slane %v673, 1
      %v676 = vperm.slane %v673, 2
      %v677 = vperm.slane %v673, 3
      %vm678 = vcmp.eq.s32.totalorder %v674, 1
      %vm679 = vcmp.eq.s32.totalorder %v675, 1
      %vm680 = vcmp.eq.s32.totalorder %v676, 1
      %vm681 = vcmp.eq.s32.totalorder %v677, 1
      %v682 = vsel %vm678, %v670, 0.0
      %v683 = vsel %vm679, %v668, 0.0
      %v684 = vsel %vm680, %v666, 0.0
      %v685 = vsel %vm681, %v664, 0.0
      %v686 = vsel %vm678, %v671, 0.0
      %v687 = vsel %vm679, %v669, 0.0
      %v688 = vsel %vm680, %v667, 0.0
      %v689 = vsel %vm681, %v665, 0.0
      %s690 = scalar_lea.vmem %s1, 24
      %v691 = vld [vmem:[%s690] sm:$0xf]
      %v692 = vld [vmem:[%s690 + $0x4] sm:$0xf]
      %v693 = vpack.c.bf16 %v686, %v682
      %v694 = vpack.c.bf16 %v687, %v683
      %v695 = vpack.c.bf16 %v688, %v684
      %v696 = vpack.c.bf16 %v689, %v685
      %v699 = vunpack.c.l.b16 %v691
      %v700 = vunpack.c.l.b16 %v692
      %v701 = vpack.c.b16 %v700, %v699
      %v703 = vsel %vm398, %v701, 0
      %705 = vmatpush.bf16.msra.mxu0 0
      %706 = vmatpush.bf16.msra.mxu0 0
      %707 = vmatpush.bf16.msra.mxu0 0
      %708 = vmatpush.bf16.msra.mxu0 0
      %709 = vmatpush.bf16.msra.mxu0 0
      %710 = vmatpush.bf16.msra.mxu0 0
      %711 = vmatpush.bf16.msra.mxu0 0
      %712 = vmatpush.bf16.msra.mxu0 %v693
      %713 = vmatmul.bf16.gmra.mxu0 %v703
      %v714 = vpop.f32.mrf.mxu0
      %v715 = vadd.f32 0.0, %v714
      %v716 = vpop.f32.mrf.mxu0
      %v717 = vadd.f32 0.0, %v716
      %718 = vdwg.mxu0
      %719 = vmatpush.bf16.msra.mxu0 0
      %720 = vmatpush.bf16.msra.mxu0 0
      %721 = vmatpush.bf16.msra.mxu0 0
      %722 = vmatpush.bf16.msra.mxu0 0
      %723 = vmatpush.bf16.msra.mxu0 0
      %724 = vmatpush.bf16.msra.mxu0 0
      %725 = vmatpush.bf16.msra.mxu0 0
      %726 = vmatpush.bf16.msra.mxu0 %v694
      %727 = vmatmul.bf16.gmra.mxu0 %v703
      %v728 = vpop.f32.mrf.mxu0
      %v729 = vadd.f32 0.0, %v728
      %v730 = vpop.f32.mrf.mxu0
      %v731 = vadd.f32 0.0, %v730
      %732 = vdwg.mxu0
      %733 = vmatpush.bf16.msra.mxu0 0
      %734 = vmatpush.bf16.msra.mxu0 0
      %735 = vmatpush.bf16.msra.mxu0 0
      %736 = vmatpush.bf16.msra.mxu0 0
      %737 = vmatpush.bf16.msra.mxu0 0
      %738 = vmatpush.bf16.msra.mxu0 0
      %739 = vmatpush.bf16.msra.mxu0 0
      %740 = vmatpush.bf16.msra.mxu0 %v695
      %741 = vmatmul.bf16.gmra.mxu0 %v703
      %v742 = vpop.f32.mrf.mxu0
      %v743 = vadd.f32 0.0, %v742
      %v744 = vpop.f32.mrf.mxu0
      %v745 = vadd.f32 0.0, %v744
      %746 = vdwg.mxu0
      %747 = vmatpush.bf16.msra.mxu0 0
      %748 = vmatpush.bf16.msra.mxu0 0
      %749 = vmatpush.bf16.msra.mxu0 0
      %750 = vmatpush.bf16.msra.mxu0 0
      %751 = vmatpush.bf16.msra.mxu0 0
      %752 = vmatpush.bf16.msra.mxu0 0
      %753 = vmatpush.bf16.msra.mxu0 0
      %754 = vmatpush.bf16.msra.mxu0 %v696
      %755 = vmatmul.bf16.gmra.mxu0 %v703
      %v756 = vpop.f32.mrf.mxu0
      %v757 = vadd.f32 0.0, %v756
      %v758 = vpop.f32.mrf.mxu0
      %v759 = vadd.f32 0.0, %v758
      %760 = vdwg.mxu0
      %v761 = vadd.f32 %v639, %v715
      %v762 = vadd.f32 %v640, %v729
      %v763 = vadd.f32 %v641, %v743
      %v764 = vadd.f32 %v642, %v757
      %v765 = vadd.f32 %v643, %v717
      %v766 = vadd.f32 %v644, %v731
      %v767 = vadd.f32 %v645, %v745
      %v768 = vadd.f32 %v646, %v759
      %s769 = scalar_lea.vmem %s1, 32
      %v770 = vld [vmem:[%s769] sm:$0xf]
      %v771 = vld [vmem:[%s769 + $0x4] sm:$0xf]
      %v774 = vunpack.c.l.b16 %v770
      %v775 = vunpack.c.l.b16 %v771
      %v776 = vpack.c.b16 %v775, %v774
      %v781 = vunpack.c.l.b16 %v273
      %v782 = vunpack.c.h.b16 %v273
      %v783 = vunpack.c.l.b16 %v274
      %v784 = vunpack.c.h.b16 %v274
      %v785 = vunpack.c.l.b16 %v275
      %v786 = vunpack.c.h.b16 %v275
      %v787 = vunpack.c.l.b16 %v276
      %v788 = vunpack.c.h.b16 %v276
      %v789 = vpack.c.b16 %v785, %v781
      %v790 = vpack.c.b16 %v786, %v782
      %v791 = vpack.c.b16 %v787, %v783
      %v792 = vpack.c.b16 %v788, %v784
      %v798 = vsel %vm398, %v776, 0
      %800 = vmatpush.bf16.msra.mxu0 0
      %801 = vmatpush.bf16.msra.mxu0 0
      %802 = vmatpush.bf16.msra.mxu0 0
      %803 = vmatpush.bf16.msra.mxu0 0
      %804 = vmatpush.bf16.msra.mxu0 0
      %805 = vmatpush.bf16.msra.mxu0 0
      %806 = vmatpush.bf16.msra.mxu0 0
      %807 = vmatpush.bf16.msra.mxu0 %v789
      %808 = vmatmul.bf16.gmra.mxu0 %v798
      %v809 = vpop.f32.mrf.mxu0
      %v810 = vadd.f32 0.0, %v809
      %v811 = vpop.f32.mrf.mxu0
      %v812 = vadd.f32 0.0, %v811
      %813 = vdwg.mxu0
      %814 = vmatpush.bf16.msra.mxu0 0
      %815 = vmatpush.bf16.msra.mxu0 0
      %816 = vmatpush.bf16.msra.mxu0 0
      %817 = vmatpush.bf16.msra.mxu0 0
      %818 = vmatpush.bf16.msra.mxu0 0
      %819 = vmatpush.bf16.msra.mxu0 0
      %820 = vmatpush.bf16.msra.mxu0 0
      %821 = vmatpush.bf16.msra.mxu0 %v790
      %822 = vmatmul.bf16.gmra.mxu0 %v798
      %v823 = vpop.f32.mrf.mxu0
      %v824 = vadd.f32 0.0, %v823
      %v825 = vpop.f32.mrf.mxu0
      %v826 = vadd.f32 0.0, %v825
      %827 = vdwg.mxu0
      %828 = vmatpush.bf16.msra.mxu0 0
      %829 = vmatpush.bf16.msra.mxu0 0
      %830 = vmatpush.bf16.msra.mxu0 0
      %831 = vmatpush.bf16.msra.mxu0 0
      %832 = vmatpush.bf16.msra.mxu0 0
      %833 = vmatpush.bf16.msra.mxu0 0
      %834 = vmatpush.bf16.msra.mxu0 0
      %835 = vmatpush.bf16.msra.mxu0 %v791
      %836 = vmatmul.bf16.gmra.mxu0 %v798
      %v837 = vpop.f32.mrf.mxu0
      %v838 = vadd.f32 0.0, %v837
      %v839 = vpop.f32.mrf.mxu0
      %v840 = vadd.f32 0.0, %v839
      %841 = vdwg.mxu0
      %842 = vmatpush.bf16.msra.mxu0 0
      %843 = vmatpush.bf16.msra.mxu0 0
      %844 = vmatpush.bf16.msra.mxu0 0
      %845 = vmatpush.bf16.msra.mxu0 0
      %846 = vmatpush.bf16.msra.mxu0 0
      %847 = vmatpush.bf16.msra.mxu0 0
      %848 = vmatpush.bf16.msra.mxu0 0
      %849 = vmatpush.bf16.msra.mxu0 %v792
      %850 = vmatmul.bf16.gmra.mxu0 %v798
      %v851 = vpop.f32.mrf.mxu0
      %v852 = vadd.f32 0.0, %v851
      %v853 = vpop.f32.mrf.mxu0
      %v854 = vadd.f32 0.0, %v853
      %855 = vdwg.mxu0
      %v856 = vadd.f32 %v761, %v810
      %v857 = vadd.f32 %v762, %v824
      %v858 = vadd.f32 %v763, %v838
      %v859 = vadd.f32 %v764, %v852
      %v860 = vadd.f32 %v765, %v812
      %v861 = vadd.f32 %v766, %v826
      %v862 = vadd.f32 %v767, %v840
      %v863 = vadd.f32 %v768, %v854
      %864 = vrot.lane.b32.xlu0 %v277, 120
      %v865 = vpop.permute.xlu0 %864
      %866 = vrot.lane.b32.xlu0 %v281, 120
      %v867 = vpop.permute.xlu0 %866
      %868 = vrot.lane.b32.xlu0 %v278, 120
      %v869 = vpop.permute.xlu0 %868
      %870 = vrot.lane.b32.xlu0 %v282, 120
      %v871 = vpop.permute.xlu0 %870
      %872 = vrot.lane.b32.xlu0 %v279, 120
      %v873 = vpop.permute.xlu0 %872
      %874 = vrot.lane.b32.xlu0 %v283, 120
      %v875 = vpop.permute.xlu0 %874
      %876 = vrot.lane.b32.xlu0 %v280, 120
      %v877 = vpop.permute.xlu0 %876
      %878 = vrot.lane.b32.xlu0 %v284, 120
      %v879 = vpop.permute.xlu0 %878
      %vm880 = vcmp.lt.s32.totalorder %v304, 120
      %v881 = vsel %vm880, %v873, %v877
      %v882 = vsel %vm880, %v875, %v879
      %v883 = vsel %vm880, %v869, %v873
      %v884 = vsel %vm880, %v871, %v875
      %v885 = vsel %vm880, %v865, %v869
      %v886 = vsel %vm880, %v867, %v871
      %v887 = vsel %vm880, %v877, %v865
      %v888 = vsel %vm880, %v879, %v867
      %vm889 = vmand %vm547, %vm548
      %v890 = vsel %vm889, 1, 0
      %v891 = vperm.slane %v890, 0
      %v892 = vperm.slane %v890, 1
      %v893 = vperm.slane %v890, 2
      %v894 = vperm.slane %v890, 3
      %vm895 = vcmp.eq.s32.totalorder %v891, 1
      %vm896 = vcmp.eq.s32.totalorder %v892, 1
      %vm897 = vcmp.eq.s32.totalorder %v893, 1
      %vm898 = vcmp.eq.s32.totalorder %v894, 1
      %v899 = vsel %vm895, %v885, 0.0
      %v900 = vsel %vm896, %v883, 0.0
      %v901 = vsel %vm897, %v881, 0.0
      %v902 = vsel %vm898, %v887, 0.0
      %v903 = vsel %vm895, %v886, 0.0
      %v904 = vsel %vm896, %v884, 0.0
      %v905 = vsel %vm897, %v882, 0.0
      %v906 = vsel %vm898, %v888, 0.0
      %s907 = scalar_lea.vmem %s1, 40
      %v908 = vld [vmem:[%s907] sm:$0xf]
      %v909 = vld [vmem:[%s907 + $0x4] sm:$0xf]
      %v910 = vpack.c.bf16 %v903, %v899
      %v911 = vpack.c.bf16 %v904, %v900
      %v912 = vpack.c.bf16 %v905, %v901
      %v913 = vpack.c.bf16 %v906, %v902
      %v916 = vunpack.c.l.b16 %v908
      %v917 = vunpack.c.l.b16 %v909
      %v918 = vpack.c.b16 %v917, %v916
      %v920 = vsel %vm398, %v918, 0
      %922 = vmatpush.bf16.msra.mxu0 0
      %923 = vmatpush.bf16.msra.mxu0 0
      %924 = vmatpush.bf16.msra.mxu0 0
      %925 = vmatpush.bf16.msra.mxu0 0
      %926 = vmatpush.bf16.msra.mxu0 0
      %927 = vmatpush.bf16.msra.mxu0 0
      %928 = vmatpush.bf16.msra.mxu0 0
      %929 = vmatpush.bf16.msra.mxu0 %v910
      %930 = vmatmul.bf16.gmra.mxu0 %v920
      %v931 = vpop.f32.mrf.mxu0
      %v932 = vadd.f32 0.0, %v931
      %v933 = vpop.f32.mrf.mxu0
      %v934 = vadd.f32 0.0, %v933
      %935 = vdwg.mxu0
      %936 = vmatpush.bf16.msra.mxu0 0
      %937 = vmatpush.bf16.msra.mxu0 0
      %938 = vmatpush.bf16.msra.mxu0 0
      %939 = vmatpush.bf16.msra.mxu0 0
      %940 = vmatpush.bf16.msra.mxu0 0
      %941 = vmatpush.bf16.msra.mxu0 0
      %942 = vmatpush.bf16.msra.mxu0 0
      %943 = vmatpush.bf16.msra.mxu0 %v911
      %944 = vmatmul.bf16.gmra.mxu0 %v920
      %v945 = vpop.f32.mrf.mxu0
      %v946 = vadd.f32 0.0, %v945
      %v947 = vpop.f32.mrf.mxu0
      %v948 = vadd.f32 0.0, %v947
      %949 = vdwg.mxu0
      %950 = vmatpush.bf16.msra.mxu0 0
      %951 = vmatpush.bf16.msra.mxu0 0
      %952 = vmatpush.bf16.msra.mxu0 0
      %953 = vmatpush.bf16.msra.mxu0 0
      %954 = vmatpush.bf16.msra.mxu0 0
      %955 = vmatpush.bf16.msra.mxu0 0
      %956 = vmatpush.bf16.msra.mxu0 0
      %957 = vmatpush.bf16.msra.mxu0 %v912
      %958 = vmatmul.bf16.gmra.mxu0 %v920
      %v959 = vpop.f32.mrf.mxu0
      %v960 = vadd.f32 0.0, %v959
      %v961 = vpop.f32.mrf.mxu0
      %v962 = vadd.f32 0.0, %v961
      %963 = vdwg.mxu0
      %964 = vmatpush.bf16.msra.mxu0 0
      %965 = vmatpush.bf16.msra.mxu0 0
      %966 = vmatpush.bf16.msra.mxu0 0
      %967 = vmatpush.bf16.msra.mxu0 0
      %968 = vmatpush.bf16.msra.mxu0 0
      %969 = vmatpush.bf16.msra.mxu0 0
      %970 = vmatpush.bf16.msra.mxu0 0
      %971 = vmatpush.bf16.msra.mxu0 %v913
      %972 = vmatmul.bf16.gmra.mxu0 %v920
      %v973 = vpop.f32.mrf.mxu0
      %v974 = vadd.f32 0.0, %v973
      %v975 = vpop.f32.mrf.mxu0
      %v976 = vadd.f32 0.0, %v975
      %977 = vdwg.mxu0
      %v978 = vadd.f32 %v856, %v932
      %v979 = vadd.f32 %v857, %v946
      %v980 = vadd.f32 %v858, %v960
      %v981 = vadd.f32 %v859, %v974
      %v982 = vadd.f32 %v860, %v934
      %v983 = vadd.f32 %v861, %v948
      %v984 = vadd.f32 %v862, %v962
      %v985 = vadd.f32 %v863, %v976
      %vm986 = vcmp.ge.s32.totalorder %v285, 4294967295
      %vm987 = vcmp.lt.s32.totalorder %v285, 7
      %vm988 = vmand %vm986, %vm987
      %vm989 = vmand %vm988, %vm316
      %vm990 = vmand %vm989, %vm317
      %v991 = vsel %vm990, 1, 0
      %v992 = vperm.slane %v991, 0
      %v993 = vperm.slane %v991, 1
      %v994 = vperm.slane %v991, 2
      %v995 = vperm.slane %v991, 3
      %vm996 = vcmp.eq.s32.totalorder %v992, 1
      %vm997 = vcmp.eq.s32.totalorder %v993, 1
      %vm998 = vcmp.eq.s32.totalorder %v994, 1
      %vm999 = vcmp.eq.s32.totalorder %v995, 1
      %v1000 = vsel %vm996, %v310, 0.0
      %v1001 = vsel %vm997, %v308, 0.0
      %v1002 = vsel %vm998, %v306, 0.0
      %v1003 = vsel %vm999, %v312, 0.0
      %v1004 = vsel %vm996, %v311, 0.0
      %v1005 = vsel %vm997, %v309, 0.0
      %v1006 = vsel %vm998, %v307, 0.0
      %v1007 = vsel %vm999, %v313, 0.0
      %s1008 = scalar_lea.vmem %s1, 48
      %v1009 = vld [vmem:[%s1008] sm:$0xf]
      %v1010 = vld [vmem:[%s1008 + $0x4] sm:$0xf]
      %v1011 = vpack.c.bf16 %v1004, %v1000
      %v1012 = vpack.c.bf16 %v1005, %v1001
      %v1013 = vpack.c.bf16 %v1006, %v1002
      %v1014 = vpack.c.bf16 %v1007, %v1003
      %v1017 = vunpack.c.l.b16 %v1009
      %v1018 = vunpack.c.l.b16 %v1010
      %v1019 = vpack.c.b16 %v1018, %v1017
      %v1021 = vsel %vm398, %v1019, 0
      %1023 = vmatpush.bf16.msra.mxu0 0
      %1024 = vmatpush.bf16.msra.mxu0 0
      %1025 = vmatpush.bf16.msra.mxu0 0
      %1026 = vmatpush.bf16.msra.mxu0 0
      %1027 = vmatpush.bf16.msra.mxu0 0
      %1028 = vmatpush.bf16.msra.mxu0 0
      %1029 = vmatpush.bf16.msra.mxu0 0
      %1030 = vmatpush.bf16.msra.mxu0 %v1011
      %1031 = vmatmul.bf16.gmra.mxu0 %v1021
      %v1032 = vpop.f32.mrf.mxu0
      %v1033 = vadd.f32 0.0, %v1032
      %v1034 = vpop.f32.mrf.mxu0
      %v1035 = vadd.f32 0.0, %v1034
      %1036 = vdwg.mxu0
      %1037 = vmatpush.bf16.msra.mxu0 0
      %1038 = vmatpush.bf16.msra.mxu0 0
      %1039 = vmatpush.bf16.msra.mxu0 0
      %1040 = vmatpush.bf16.msra.mxu0 0
      %1041 = vmatpush.bf16.msra.mxu0 0
      %1042 = vmatpush.bf16.msra.mxu0 0
      %1043 = vmatpush.bf16.msra.mxu0 0
      %1044 = vmatpush.bf16.msra.mxu0 %v1012
      %1045 = vmatmul.bf16.gmra.mxu0 %v1021
      %v1046 = vpop.f32.mrf.mxu0
      %v1047 = vadd.f32 0.0, %v1046
      %v1048 = vpop.f32.mrf.mxu0
      %v1049 = vadd.f32 0.0, %v1048
      %1050 = vdwg.mxu0
      %1051 = vmatpush.bf16.msra.mxu0 0
      %1052 = vmatpush.bf16.msra.mxu0 0
      %1053 = vmatpush.bf16.msra.mxu0 0
      %1054 = vmatpush.bf16.msra.mxu0 0
      %1055 = vmatpush.bf16.msra.mxu0 0
      %1056 = vmatpush.bf16.msra.mxu0 0
      %1057 = vmatpush.bf16.msra.mxu0 0
      %1058 = vmatpush.bf16.msra.mxu0 %v1013
      %1059 = vmatmul.bf16.gmra.mxu0 %v1021
      %v1060 = vpop.f32.mrf.mxu0
      %v1061 = vadd.f32 0.0, %v1060
      %v1062 = vpop.f32.mrf.mxu0
      %v1063 = vadd.f32 0.0, %v1062
      %1064 = vdwg.mxu0
      %1065 = vmatpush.bf16.msra.mxu0 0
      %1066 = vmatpush.bf16.msra.mxu0 0
      %1067 = vmatpush.bf16.msra.mxu0 0
      %1068 = vmatpush.bf16.msra.mxu0 0
      %1069 = vmatpush.bf16.msra.mxu0 0
      %1070 = vmatpush.bf16.msra.mxu0 0
      %1071 = vmatpush.bf16.msra.mxu0 0
      %1072 = vmatpush.bf16.msra.mxu0 %v1014
      %1073 = vmatmul.bf16.gmra.mxu0 %v1021
      %v1074 = vpop.f32.mrf.mxu0
      %v1075 = vadd.f32 0.0, %v1074
      %v1076 = vpop.f32.mrf.mxu0
      %v1077 = vadd.f32 0.0, %v1076
      %1078 = vdwg.mxu0
      %v1079 = vadd.f32 %v978, %v1033
      %v1080 = vadd.f32 %v979, %v1047
      %v1081 = vadd.f32 %v980, %v1061
      %v1082 = vadd.f32 %v981, %v1075
      %v1083 = vadd.f32 %v982, %v1035
      %v1084 = vadd.f32 %v983, %v1049
      %v1085 = vadd.f32 %v984, %v1063
      %v1086 = vadd.f32 %v985, %v1077
      %v1087 = vsel %vm988, 1, 0
      %v1088 = vperm.slane %v1087, 0
      %v1089 = vperm.slane %v1087, 1
      %v1090 = vperm.slane %v1087, 2
      %v1091 = vperm.slane %v1087, 3
      %vm1092 = vcmp.eq.s32.totalorder %v1088, 1
      %vm1093 = vcmp.eq.s32.totalorder %v1089, 1
      %vm1094 = vcmp.eq.s32.totalorder %v1090, 1
      %vm1095 = vcmp.eq.s32.totalorder %v1091, 1
      %v1096 = vsel %vm1092, %v365, 0.0
      %v1097 = vsel %vm1093, %v363, 0.0
      %v1098 = vsel %vm1094, %v361, 0.0
      %v1099 = vsel %vm1095, %v367, 0.0
      %v1100 = vsel %vm1092, %v366, 0.0
      %v1101 = vsel %vm1093, %v364, 0.0
      %v1102 = vsel %vm1094, %v362, 0.0
      %v1103 = vsel %vm1095, %v368, 0.0
      %s1104 = scalar_lea.vmem %s1, 56
      %v1105 = vld [vmem:[%s1104] sm:$0xf]
      %v1106 = vld [vmem:[%s1104 + $0x4] sm:$0xf]
      %v1107 = vpack.c.bf16 %v1100, %v1096
      %v1108 = vpack.c.bf16 %v1101, %v1097
      %v1109 = vpack.c.bf16 %v1102, %v1098
      %v1110 = vpack.c.bf16 %v1103, %v1099
      %v1113 = vunpack.c.l.b16 %v1105
      %v1114 = vunpack.c.l.b16 %v1106
      %v1115 = vpack.c.b16 %v1114, %v1113
      %v1117 = vsel %vm398, %v1115, 0
      %1119 = vmatpush.bf16.msra.mxu0 0
      %1120 = vmatpush.bf16.msra.mxu0 0
      %1121 = vmatpush.bf16.msra.mxu0 0
      %1122 = vmatpush.bf16.msra.mxu0 0
      %1123 = vmatpush.bf16.msra.mxu0 0
      %1124 = vmatpush.bf16.msra.mxu0 0
      %1125 = vmatpush.bf16.msra.mxu0 0
      %1126 = vmatpush.bf16.msra.mxu0 %v1107
      %1127 = vmatmul.bf16.gmra.mxu0 %v1117
      %v1128 = vpop.f32.mrf.mxu0
      %v1129 = vadd.f32 0.0, %v1128
      %v1130 = vpop.f32.mrf.mxu0
      %v1131 = vadd.f32 0.0, %v1130
      %1132 = vdwg.mxu0
      %1133 = vmatpush.bf16.msra.mxu0 0
      %1134 = vmatpush.bf16.msra.mxu0 0
      %1135 = vmatpush.bf16.msra.mxu0 0
      %1136 = vmatpush.bf16.msra.mxu0 0
      %1137 = vmatpush.bf16.msra.mxu0 0
      %1138 = vmatpush.bf16.msra.mxu0 0
      %1139 = vmatpush.bf16.msra.mxu0 0
      %1140 = vmatpush.bf16.msra.mxu0 %v1108
      %1141 = vmatmul.bf16.gmra.mxu0 %v1117
      %v1142 = vpop.f32.mrf.mxu0
      %v1143 = vadd.f32 0.0, %v1142
      %v1144 = vpop.f32.mrf.mxu0
      %v1145 = vadd.f32 0.0, %v1144
      %1146 = vdwg.mxu0
      %1147 = vmatpush.bf16.msra.mxu0 0
      %1148 = vmatpush.bf16.msra.mxu0 0
      %1149 = vmatpush.bf16.msra.mxu0 0
      %1150 = vmatpush.bf16.msra.mxu0 0
      %1151 = vmatpush.bf16.msra.mxu0 0
      %1152 = vmatpush.bf16.msra.mxu0 0
      %1153 = vmatpush.bf16.msra.mxu0 0
      %1154 = vmatpush.bf16.msra.mxu0 %v1109
      %1155 = vmatmul.bf16.gmra.mxu0 %v1117
      %v1156 = vpop.f32.mrf.mxu0
      %v1157 = vadd.f32 0.0, %v1156
      %v1158 = vpop.f32.mrf.mxu0
      %v1159 = vadd.f32 0.0, %v1158
      %1160 = vdwg.mxu0
      %1161 = vmatpush.bf16.msra.mxu0 0
      %1162 = vmatpush.bf16.msra.mxu0 0
      %1163 = vmatpush.bf16.msra.mxu0 0
      %1164 = vmatpush.bf16.msra.mxu0 0
      %1165 = vmatpush.bf16.msra.mxu0 0
      %1166 = vmatpush.bf16.msra.mxu0 0
      %1167 = vmatpush.bf16.msra.mxu0 0
      %1168 = vmatpush.bf16.msra.mxu0 %v1110
      %1169 = vmatmul.bf16.gmra.mxu0 %v1117
      %v1170 = vpop.f32.mrf.mxu0
      %v1171 = vadd.f32 0.0, %v1170
      %v1172 = vpop.f32.mrf.mxu0
      %v1173 = vadd.f32 0.0, %v1172
      %1174 = vdwg.mxu0
      %v1175 = vadd.f32 %v1079, %v1129
      %v1176 = vadd.f32 %v1080, %v1143
      %v1177 = vadd.f32 %v1081, %v1157
      %v1178 = vadd.f32 %v1082, %v1171
      %v1179 = vadd.f32 %v1083, %v1131
      %v1180 = vadd.f32 %v1084, %v1145
      %v1181 = vadd.f32 %v1085, %v1159
      %v1182 = vadd.f32 %v1086, %v1173
      %vm1183 = vmand %vm988, %vm547
      %vm1184 = vmand %vm1183, %vm548
      %v1185 = vsel %vm1184, 1, 0
      %v1186 = vperm.slane %v1185, 0
      %v1187 = vperm.slane %v1185, 1
      %v1188 = vperm.slane %v1185, 2
      %v1189 = vperm.slane %v1185, 3
      %vm1190 = vcmp.eq.s32.totalorder %v1186, 1
      %vm1191 = vcmp.eq.s32.totalorder %v1187, 1
      %vm1192 = vcmp.eq.s32.totalorder %v1188, 1
      %vm1193 = vcmp.eq.s32.totalorder %v1189, 1
      %v1194 = vsel %vm1190, %v543, 0.0
      %v1195 = vsel %vm1191, %v541, 0.0
      %v1196 = vsel %vm1192, %v539, 0.0
      %v1197 = vsel %vm1193, %v545, 0.0
      %v1198 = vsel %vm1190, %v544, 0.0
      %v1199 = vsel %vm1191, %v542, 0.0
      %v1200 = vsel %vm1192, %v540, 0.0
      %v1201 = vsel %vm1193, %v546, 0.0
      %s1202 = scalar_lea.vmem %s1, 64
      %v1203 = vld [vmem:[%s1202] sm:$0xf]
      %v1204 = vld [vmem:[%s1202 + $0x4] sm:$0xf]
      %v1205 = vpack.c.bf16 %v1198, %v1194
      %v1206 = vpack.c.bf16 %v1199, %v1195
      %v1207 = vpack.c.bf16 %v1200, %v1196
      %v1208 = vpack.c.bf16 %v1201, %v1197
      %v1211 = vunpack.c.l.b16 %v1203
      %v1212 = vunpack.c.l.b16 %v1204
      %v1213 = vpack.c.b16 %v1212, %v1211
      %v1215 = vsel %vm398, %v1213, 0
      %1217 = vmatpush.bf16.msra.mxu0 0
      %1218 = vmatpush.bf16.msra.mxu0 0
      %1219 = vmatpush.bf16.msra.mxu0 0
      %1220 = vmatpush.bf16.msra.mxu0 0
      %1221 = vmatpush.bf16.msra.mxu0 0
      %1222 = vmatpush.bf16.msra.mxu0 0
      %1223 = vmatpush.bf16.msra.mxu0 0
      %1224 = vmatpush.bf16.msra.mxu0 %v1205
      %1225 = vmatmul.bf16.gmra.mxu0 %v1215
      %v1226 = vpop.f32.mrf.mxu0
      %v1227 = vadd.f32 0.0, %v1226
      %v1228 = vpop.f32.mrf.mxu0
      %v1229 = vadd.f32 0.0, %v1228
      %1230 = vdwg.mxu0
      %1231 = vmatpush.bf16.msra.mxu0 0
      %1232 = vmatpush.bf16.msra.mxu0 0
      %1233 = vmatpush.bf16.msra.mxu0 0
      %1234 = vmatpush.bf16.msra.mxu0 0
      %1235 = vmatpush.bf16.msra.mxu0 0
      %1236 = vmatpush.bf16.msra.mxu0 0
      %1237 = vmatpush.bf16.msra.mxu0 0
      %1238 = vmatpush.bf16.msra.mxu0 %v1206
      %1239 = vmatmul.bf16.gmra.mxu0 %v1215
      %v1240 = vpop.f32.mrf.mxu0
      %v1241 = vadd.f32 0.0, %v1240
      %v1242 = vpop.f32.mrf.mxu0
      %v1243 = vadd.f32 0.0, %v1242
      %1244 = vdwg.mxu0
      %1245 = vmatpush.bf16.msra.mxu0 0
      %1246 = vmatpush.bf16.msra.mxu0 0
      %1247 = vmatpush.bf16.msra.mxu0 0
      %1248 = vmatpush.bf16.msra.mxu0 0
      %1249 = vmatpush.bf16.msra.mxu0 0
      %1250 = vmatpush.bf16.msra.mxu0 0
      %1251 = vmatpush.bf16.msra.mxu0 0
      %1252 = vmatpush.bf16.msra.mxu0 %v1207
      %1253 = vmatmul.bf16.gmra.mxu0 %v1215
      %v1254 = vpop.f32.mrf.mxu0
      %v1255 = vadd.f32 0.0, %v1254
      %v1256 = vpop.f32.mrf.mxu0
      %v1257 = vadd.f32 0.0, %v1256
      %1258 = vdwg.mxu0
      %1259 = vmatpush.bf16.msra.mxu0 0
      %1260 = vmatpush.bf16.msra.mxu0 0
      %1261 = vmatpush.bf16.msra.mxu0 0
      %1262 = vmatpush.bf16.msra.mxu0 0
      %1263 = vmatpush.bf16.msra.mxu0 0
      %1264 = vmatpush.bf16.msra.mxu0 0
      %1265 = vmatpush.bf16.msra.mxu0 0
      %1266 = vmatpush.bf16.msra.mxu0 %v1208
      %1267 = vmatmul.bf16.gmra.mxu0 %v1215
      %v1268 = vpop.f32.mrf.mxu0
      %v1269 = vadd.f32 0.0, %v1268
      %v1270 = vpop.f32.mrf.mxu0
      %v1271 = vadd.f32 0.0, %v1270
      %1272 = vdwg.mxu0
      %v1273 = vadd.f32 %v1175, %v1227
      %v1274 = vadd.f32 %v1176, %v1241
      %v1275 = vadd.f32 %v1177, %v1255
      %v1276 = vadd.f32 %v1178, %v1269
      %v1277 = vadd.f32 %v1179, %v1229
      %v1278 = vadd.f32 %v1180, %v1243
      %v1279 = vadd.f32 %v1181, %v1257
      %v1280 = vadd.f32 %v1182, %v1271
      %v1281 = vld [vmem:[%s266] sm:$0xff]
      %v1282 = vld [vmem:[%s266 + $0x8] sm:$0xff]
      %v1283 = vld [vmem:[%s266 + $0x10] sm:$0xff]
      %v1284 = vld [vmem:[%s266 + $0x18] sm:$0xff]
      %v1285 = vld [vmem:[%s266 + $0x20] sm:$0xff]
      %v1286 = vld [vmem:[%s266 + $0x28] sm:$0xff]
      %v1287 = vld [vmem:[%s266 + $0x30] sm:$0xff]
      %v1288 = vld [vmem:[%s266 + $0x38] sm:$0xff]
      %v1289 = vadd.f32 %v1273, %v1281
      %v1290 = vadd.f32 %v1274, %v1282
      %v1291 = vadd.f32 %v1275, %v1283
      %v1292 = vadd.f32 %v1276, %v1284
      %v1293 = vadd.f32 %v1277, %v1285
      %v1294 = vadd.f32 %v1278, %v1286
      %v1295 = vadd.f32 %v1279, %v1287
      %v1296 = vadd.f32 %v1280, %v1288
      %1297 = vst [vmem:[%s271] sm:$0xff] %v1289
      %1298 = vst [vmem:[%s271 + $0x8] sm:$0xff] %v1290
      %1299 = vst [vmem:[%s271 + $0x10] sm:$0xff] %v1291
      %1300 = vst [vmem:[%s271 + $0x18] sm:$0xff] %v1292
      %1301 = vst [vmem:[%s271 + $0x20] sm:$0xff] %v1293
      %1302 = vst [vmem:[%s271 + $0x28] sm:$0xff] %v1294
      %1303 = vst [vmem:[%s271 + $0x30] sm:$0xff] %v1295
      %1304 = vst [vmem:[%s271 + $0x38] sm:$0xff] %v1296
      %p1305 = scmp.lt.s32.totalorder %s17, 1
      %s1306 = scalar_select %p1305, %s17, 1
      %s1307 = smul.addr %s1306, 8
      %s1308 = smul.addr %s1307, 8
      %s1309 = scalar_lea.vmem %s6, %s1308
      // Predicated region
      $region45: #{mfunit_forward.5} parent=43 // pred_check
        %p1310 = pneg %p171
      $region46: #{mfunit_forward.5} parent=43 // pred_check_branch
        %1312 = sbr.rel (%p1310) target = $region48
      $region47: #{mfunit_forward.5} parent=43 // pred_region
        _
      $region48: #{mfunit_forward.5} parent=43 // pred_fallthru
        _
    $region44: #{mfunit_forward.5} parent=5 // pred_fallthru
      _
    %p1313 = scmp.le.s32.totalorder 2, %s12
    // Predicated region
    $region49: #{mfunit_forward.5} parent=5 // pred_check
      %p1314 = pneg %p1313
    $region50: #{mfunit_forward.5} parent=5 // pred_check_branch
      %1316 = sbr.rel (%p1314) target = $region52
    $region51: #{mfunit_forward.5} parent=5 // pred_region
      %s1317 = ssub.s32 %s12, 2
      // Predicated region
      $region53: #{mfunit_forward.5} parent=51 // pred_check
        %p1318 = pneg %p177
      $region54: #{mfunit_forward.5} parent=51 // pred_check_branch
        %1320 = sbr.rel (%p1318) target = $region56
      $region55: #{mfunit_forward.5} parent=51 // pred_region
        %p1321 = scmp.lt.s32.totalorder %s18, 1
        %s1322 = scalar_select %p1321, %s18, 1
        %s1323 = smul.addr %s1322, 8
        %s1324 = smul.addr %s1323, 8
        %s1325 = scalar_lea.vmem %s6, %s1324
      $region56: #{mfunit_forward.5} parent=51 // pred_fallthru
        _
    $region52: #{mfunit_forward.5} parent=5 // pred_fallthru
      _
  $region6: #{mfunit_forward.5} parent=0 // loop_footer
    %s16 = sadd.s32 1, %s12
  $region7: #{mfunit_forward.5} parent=0 // loop_footer_branch
    %11 = sbr.rel target = $region3
  $region8: #{mfunit_forward.5} parent=0 // loop_exit
    _

// kernel: mfunit_forward.4
$region0: #{mfunit_forward.4}
  #allocation0 [shape = 'u32[]', space=smem, size = 0x4, offset = 0x4, fixed_abs, tag = 'smem constant byte address 0x4 - core index']
  #allocation1 [shape = 'u32[72,128]{1,0:T(1,128)}', space=vmem, size = 0x9000, scoped, tag = 'internal scratch']
  %s0 = inlined_call_operand.vmem [shape: bf16[2,8,512], index: 0, kind: input, shape index: {}]
  %s1 = inlined_call_operand.vmem [shape: bf16[3,3,3,16,8], index: 1, kind: input, shape index: {}]
  %s2 = inlined_call_operand.vmem [shape: s32[1,512], index: 2, kind: input, shape index: {}]
  %s3 = inlined_call_operand.vmem [shape: s32[1,512], index: 3, kind: input, shape index: {}]
  %s4 = inlined_call_operand.vmem [shape: s32[1,512], index: 4, kind: input, shape index: {}]
  %s5 = inlined_call_operand.vmem [shape: f32[16,1], index: 5, kind: input, shape index: {}]
  %s6 = inlined_call_operand.vmem [shape: f32[16,1], index: 6, kind: input, shape index: {}]
  %s7 = inlined_call_operand.vmem [shape: bf16[2,16,512], index: 7, kind: output, shape index: {}]
  %s8 = sld [smem:[#allocation0]]
  $region61: #{mfunit_forward.4} parent=0
    _
  %s10 = ssub.s32 1, %s8
  %s11 = scalar_select 0, %s10, %s8
  loop: start=0, step=1, limit=4
  $region2: #{mfunit_forward.4} parent=0 // loop_pre_header
    _
  $region3: #{mfunit_forward.4} parent=0 // loop_header
    %s13 = sphi 0, %s17
    %p14 = scmp.ge.s32.totalorder %s13, 4
    %s23 = sphi 0, %s25
    %s26 = sphi 0, %s23
    %s27 = sphi 0, %s26
    %s43 = sphi 0, %s27
    %s47 = sphi 0, %s47
    %s49 = sphi 0, %s47
    %s50 = sphi 0, %s49
    %s64 = sphi 0, %s50
    %s68 = sphi 0, %s68
    %s70 = sphi 0, %s68
    %s71 = sphi 0, %s70
    %s85 = sphi 0, %s71
    %s89 = sphi 0, %s89
    %s91 = sphi 0, %s89
    %s92 = sphi 0, %s91
    %s106 = sphi 0, %s92
    %s110 = sphi 0, %s110
    %s112 = sphi 0, %s110
    %s113 = sphi 0, %s112
    %s127 = sphi 0, %s113
    %s131 = sphi 0, %s131
    %s133 = sphi 0, %s131
    %s134 = sphi 0, %s133
    %s148 = sphi 0, %s134
    %s152 = sphi 0, %s152
    %s154 = sphi 0, %s152
    %s155 = sphi 0, %s154
    %s169 = sphi 0, %s155
    %s175 = sphi 0, %s177
    %s178 = sphi 0, %s175
    %s179 = sphi 0, %s178
    %s195 = sphi 0, %s179
  $region4: #{mfunit_forward.4} parent=0 // loop_header_branch
    %16 = sbr.rel (%p14) target = $region8
  $region5: #{mfunit_forward.4} parent=0 // loop_body
    %s18 = ssub.s32 %s13, 1
    %s19 = ssub.s32 %s13, 2
    %s20 = sadd.s32 %s13, 1
    %s21 = ssub.s32 %s13, %s20
    %p22 = scmp.eq.s32.totalorder %s21, 0
    %s24 = sadd.s32 %s23, 1
    %s25 = scalar_select %p22, %s23, %s24
    %p28 = pneg %p22
    %p29 = scmp.eq.s32.totalorder %s13, 1
    %p30 = por %p28, %p29
    %p31 = scmp.ne.s32.totalorder %s23, %s26
    %p32 = scmp.eq.s32.totalorder %s13, 0
    %p33 = por %p31, %p32
    %p34 = scmp.ne.s32.totalorder %s23, %s26
    %p35 = scmp.eq.s32.totalorder %s18, 1
    %p36 = por %p34, %p35
    %p37 = scmp.ne.s32.totalorder %s26, %s27
    %p38 = scmp.eq.s32.totalorder %s18, 0
    %p39 = por %p37, %p38
    %p40 = scmp.ne.s32.totalorder %s26, %s27
    %p41 = scmp.eq.s32.totalorder %s19, 1
    %p42 = por %p40, %p41
    %p44 = scmp.ne.s32.totalorder %s27, %s43
    %p45 = scmp.eq.s32.totalorder %s19, 0
    %p46 = por %p44, %p45
    %s48 = sadd.s32 %s47, 1
    %p51 = scmp.eq.s32.totalorder %s13, 1
    %p52 = scmp.ne.s32.totalorder %s47, %s49
    %p53 = scmp.eq.s32.totalorder %s13, 0
    %p54 = por %p52, %p53
    %p55 = scmp.ne.s32.totalorder %s47, %s49
    %p56 = scmp.eq.s32.totalorder %s18, 1
    %p57 = por %p55, %p56
    %p58 = scmp.ne.s32.totalorder %s49, %s50
    %p59 = scmp.eq.s32.totalorder %s18, 0
    %p60 = por %p58, %p59
    %p61 = scmp.ne.s32.totalorder %s49, %s50
    %p62 = scmp.eq.s32.totalorder %s19, 1
    %p63 = por %p61, %p62
    %p65 = scmp.ne.s32.totalorder %s50, %s64
    %p66 = scmp.eq.s32.totalorder %s19, 0
    %p67 = por %p65, %p66
    %s69 = sadd.s32 %s68, 1
    %p72 = scmp.eq.s32.totalorder %s13, 1
    %p73 = scmp.ne.s32.totalorder %s68, %s70
    %p74 = scmp.eq.s32.totalorder %s13, 0
    %p75 = por %p73, %p74
    %p76 = scmp.ne.s32.totalorder %s68, %s70
    %p77 = scmp.eq.s32.totalorder %s18, 1
    %p78 = por %p76, %p77
    %p79 = scmp.ne.s32.totalorder %s70, %s71
    %p80 = scmp.eq.s32.totalorder %s18, 0
    %p81 = por %p79, %p80
    %p82 = scmp.ne.s32.totalorder %s70, %s71
    %p83 = scmp.eq.s32.totalorder %s19, 1
    %p84 = por %p82, %p83
    %p86 = scmp.ne.s32.totalorder %s71, %s85
    %p87 = scmp.eq.s32.totalorder %s19, 0
    %p88 = por %p86, %p87
    %s90 = sadd.s32 %s89, 1
    %p93 = scmp.eq.s32.totalorder %s13, 1
    %p94 = scmp.ne.s32.totalorder %s89, %s91
    %p95 = scmp.eq.s32.totalorder %s13, 0
    %p96 = por %p94, %p95
    %p97 = scmp.ne.s32.totalorder %s89, %s91
    %p98 = scmp.eq.s32.totalorder %s18, 1
    %p99 = por %p97, %p98
    %p100 = scmp.ne.s32.totalorder %s91, %s92
    %p101 = scmp.eq.s32.totalorder %s18, 0
    %p102 = por %p100, %p101
    %p103 = scmp.ne.s32.totalorder %s91, %s92
    %p104 = scmp.eq.s32.totalorder %s19, 1
    %p105 = por %p103, %p104
    %p107 = scmp.ne.s32.totalorder %s92, %s106
    %p108 = scmp.eq.s32.totalorder %s19, 0
    %p109 = por %p107, %p108
    %s111 = sadd.s32 %s110, 1
    %p114 = scmp.eq.s32.totalorder %s13, 1
    %p115 = scmp.ne.s32.totalorder %s110, %s112
    %p116 = scmp.eq.s32.totalorder %s13, 0
    %p117 = por %p115, %p116
    %p118 = scmp.ne.s32.totalorder %s110, %s112
    %p119 = scmp.eq.s32.totalorder %s18, 1
    %p120 = por %p118, %p119
    %p121 = scmp.ne.s32.totalorder %s112, %s113
    %p122 = scmp.eq.s32.totalorder %s18, 0
    %p123 = por %p121, %p122
    %p124 = scmp.ne.s32.totalorder %s112, %s113
    %p125 = scmp.eq.s32.totalorder %s19, 1
    %p126 = por %p124, %p125
    %p128 = scmp.ne.s32.totalorder %s113, %s127
    %p129 = scmp.eq.s32.totalorder %s19, 0
    %p130 = por %p128, %p129
    %s132 = sadd.s32 %s131, 1
    %p135 = scmp.eq.s32.totalorder %s13, 1
    %p136 = scmp.ne.s32.totalorder %s131, %s133
    %p137 = scmp.eq.s32.totalorder %s13, 0
    %p138 = por %p136, %p137
    %p139 = scmp.ne.s32.totalorder %s131, %s133
    %p140 = scmp.eq.s32.totalorder %s18, 1
    %p141 = por %p139, %p140
    %p142 = scmp.ne.s32.totalorder %s133, %s134
    %p143 = scmp.eq.s32.totalorder %s18, 0
    %p144 = por %p142, %p143
    %p145 = scmp.ne.s32.totalorder %s133, %s134
    %p146 = scmp.eq.s32.totalorder %s19, 1
    %p147 = por %p145, %p146
    %p149 = scmp.ne.s32.totalorder %s134, %s148
    %p150 = scmp.eq.s32.totalorder %s19, 0
    %p151 = por %p149, %p150
    %s153 = sadd.s32 %s152, 1
    %p156 = scmp.eq.s32.totalorder %s13, 1
    %p157 = scmp.ne.s32.totalorder %s152, %s154
    %p158 = scmp.eq.s32.totalorder %s13, 0
    %p159 = por %p157, %p158
    %p160 = scmp.ne.s32.totalorder %s152, %s154
    %p161 = scmp.eq.s32.totalorder %s18, 1
    %p162 = por %p160, %p161
    %p163 = scmp.ne.s32.totalorder %s154, %s155
    %p164 = scmp.eq.s32.totalorder %s18, 0
    %p165 = por %p163, %p164
    %p166 = scmp.ne.s32.totalorder %s154, %s155
    %p167 = scmp.eq.s32.totalorder %s19, 1
    %p168 = por %p166, %p167
    %p170 = scmp.ne.s32.totalorder %s155, %s169
    %p171 = scmp.eq.s32.totalorder %s19, 0
    %p172 = por %p170, %p171
    %s173 = ssub.s32 %s13, %s20
    %p174 = scmp.eq.s32.totalorder %s173, 0
    %s176 = sadd.s32 %s175, 1
    %s177 = scalar_select %p174, %s175, %s176
    %p180 = pneg %p174
    %p181 = scmp.eq.s32.totalorder %s13, 1
    %p182 = por %p180, %p181
    %p183 = scmp.ne.s32.totalorder %s175, %s178
    %p184 = scmp.eq.s32.totalorder %s13, 0
    %p185 = por %p183, %p184
    %p186 = scmp.ne.s32.totalorder %s175, %s178
    %p187 = scmp.eq.s32.totalorder %s18, 1
    %p188 = por %p186, %p187
    %p189 = scmp.ne.s32.totalorder %s178, %s179
    %p190 = scmp.eq.s32.totalorder %s18, 0
    %p191 = por %p189, %p190
    %p192 = scmp.ne.s32.totalorder %s178, %s179
    %p193 = scmp.eq.s32.totalorder %s19, 1
    %p194 = por %p192, %p193
    %p196 = scmp.ne.s32.totalorder %s179, %s195
    %p197 = scmp.eq.s32.totalorder %s19, 0
    %p198 = por %p196, %p197
    %p199 = scmp.le.s32.totalorder 1, %s13
    %p200 = scmp.lt.s32.totalorder %s13, 3
    %p201 = pnand %p199, %p200
    %p202 = pneg %p201
    // Predicated region
    $region9: #{mfunit_forward.4} parent=5 // pred_check
      _
    $region10: #{mfunit_forward.4} parent=5 // pred_check_branch
      %204 = sbr.rel (%p201) target = $region12
    $region11: #{mfunit_forward.4} parent=5 // pred_region
      %s205 = ssub.s32 %s13, 1
      // Predicated region
      $region13: #{mfunit_forward.4} parent=11 // pred_check
        %p206 = pneg %p60
      $region14: #{mfunit_forward.4} parent=11 // pred_check_branch
        %208 = sbr.rel (%p206) target = $region16
      $region15: #{mfunit_forward.4} parent=11 // pred_region
        _
      $region16: #{mfunit_forward.4} parent=11 // pred_fallthru
        _
      // Predicated region
      $region17: #{mfunit_forward.4} parent=11 // pred_check
        %p209 = pneg %p81
      $region18: #{mfunit_forward.4} parent=11 // pred_check_branch
        %211 = sbr.rel (%p209) target = $region20
      $region19: #{mfunit_forward.4} parent=11 // pred_region
        _
      $region20: #{mfunit_forward.4} parent=11 // pred_fallthru
        _
      // Predicated region
      $region21: #{mfunit_forward.4} parent=11 // pred_check
        %p212 = pneg %p102
      $region22: #{mfunit_forward.4} parent=11 // pred_check_branch
        %214 = sbr.rel (%p212) target = $region24
      $region23: #{mfunit_forward.4} parent=11 // pred_region
        _
      $region24: #{mfunit_forward.4} parent=11 // pred_fallthru
        _
      // Predicated region
      $region25: #{mfunit_forward.4} parent=11 // pred_check
        %p215 = pneg %p123
      $region26: #{mfunit_forward.4} parent=11 // pred_check_branch
        %217 = sbr.rel (%p215) target = $region28
      $region27: #{mfunit_forward.4} parent=11 // pred_region
        _
      $region28: #{mfunit_forward.4} parent=11 // pred_fallthru
        _
      // Predicated region
      $region29: #{mfunit_forward.4} parent=11 // pred_check
        %p218 = pneg %p144
      $region30: #{mfunit_forward.4} parent=11 // pred_check_branch
        %220 = sbr.rel (%p218) target = $region32
      $region31: #{mfunit_forward.4} parent=11 // pred_region
        _
      $region32: #{mfunit_forward.4} parent=11 // pred_fallthru
        _
      // Predicated region
      $region33: #{mfunit_forward.4} parent=11 // pred_check
        %p221 = pneg %p165
      $region34: #{mfunit_forward.4} parent=11 // pred_check_branch
        %223 = sbr.rel (%p221) target = $region36
      $region35: #{mfunit_forward.4} parent=11 // pred_region
        _
      $region36: #{mfunit_forward.4} parent=11 // pred_fallthru
        _
    $region12: #{mfunit_forward.4} parent=5 // pred_fallthru
      _
    %p224 = scmp.lt.s32.totalorder %s13, 2
    // Predicated region
    $region37: #{mfunit_forward.4} parent=5 // pred_check
      %p225 = pneg %p224
    $region38: #{mfunit_forward.4} parent=5 // pred_check_branch
      %227 = sbr.rel (%p225) target = $region40
    $region39: #{mfunit_forward.4} parent=5 // pred_region
      // Predicated region
      $region41: #{mfunit_forward.4} parent=39 // pred_check
        %p228 = pneg %p33
      $region42: #{mfunit_forward.4} parent=39 // pred_check_branch
        %230 = sbr.rel (%p228) target = $region44
      $region43: #{mfunit_forward.4} parent=39 // pred_region
        %p231 = scmp.lt.s32.totalorder %s13, 1
        %s232 = scalar_select %p231, %s13, 1
        %s233 = smul.addr %s232, 4
        %s234 = smul.addr %s233, 4
        %s235 = scalar_lea.vmem %s0, %s234
      $region44: #{mfunit_forward.4} parent=39 // pred_fallthru
        _
    $region40: #{mfunit_forward.4} parent=5 // pred_fallthru
      _
    %p236 = scmp.le.s32.totalorder 1, %s13
    %p237 = scmp.lt.s32.totalorder %s13, 3
    %p238 = pnand %p236, %p237
    %p239 = pneg %p238
    // Predicated region
    $region45: #{mfunit_forward.4} parent=5 // pred_check
      _
    $region46: #{mfunit_forward.4} parent=5 // pred_check_branch
      %241 = sbr.rel (%p238) target = $region48
    $region47: #{mfunit_forward.4} parent=5 // pred_region
      %s242 = ssub.s32 %s13, 1
      %p243 = scmp.lt.s32.totalorder %s18, 1
      %s244 = scalar_select %p243, %s18, 1
      %s245 = smul.addr %s244, 4
      %s246 = smul.addr %s245, 4
      %s247 = scalar_lea.vmem %s0, %s246
      %p248 = pneg %p39
      %p249 = pneg %p36
      %p250 = pneg %p60
      %p251 = pneg %p57
      %p252 = pneg %p81
      %p253 = pneg %p78
      %p254 = pneg %p102
      %p255 = pneg %p99
      %p256 = pneg %p123
      %p257 = pneg %p120
      %p258 = pneg %p144
      %p259 = pneg %p141
      %p260 = pneg %p165
      %p261 = pneg %p162
      %p262 = pneg %p191
      %p263 = pneg %p188
      %p264 = scmp.lt.s32.totalorder %s18, 1
      %s265 = scalar_select %p264, %s18, 1
      %s266 = smul.addr %s265, 8
      %s267 = smul.addr %s266, 4
      %s268 = scalar_lea.vmem %s7, %s267
      %p269 = scmp.lt.s32.totalorder %s18, 1
      %s270 = scalar_select %p269, %s18, 1
      %s271 = smul.addr %s270, 4
      %s272 = smul.addr %s271, 4
      %s273 = scalar_lea.vmem %s0, %s272
      %p274 = scmp.lt.s32.totalorder %s18, 1
      %s275 = scalar_select %p274, %s18, 1
      %s276 = smul.addr %s275, 8
      %s277 = smul.addr %s276, 4
      %s278 = scalar_lea.vmem %s7, %s277
      %v280 = vld [vmem:[%s273] sm:$0xff]
      %v281 = vld [vmem:[%s273 + $0x8] sm:$0xff]
      %v282 = vunpack.c.l.bf16 %v280
      %v283 = vunpack.c.h.bf16 %v280
      %v284 = vunpack.c.l.bf16 %v281
      %v285 = vunpack.c.h.bf16 %v281
      %v286 = vld [vmem:[%s2] sm:$0xf]
      %v287 = vld [vmem:[%s3] sm:$0xf]
      %v288 = vld [vmem:[%s4] sm:$0xf]
      %289 = vrot.lane.b32.xlu0 %v282, 73
      %v290 = vpop.permute.xlu0 %289
      %291 = vrot.lane.b32.xlu0 %v283, 73
      %v292 = vpop.permute.xlu0 %291
      %293 = vrot.lane.b32.xlu0 %v284, 73
      %v294 = vpop.permute.xlu0 %293
      %295 = vrot.lane.b32.xlu0 %v285, 73
      %v296 = vpop.permute.xlu0 %295
      %v297 = vlaneseq
      %v298 = vand.u32 %v297, 127
      %vm299 = vcmp.lt.s32.totalorder %v298, 73
      %v300 = vsel %vm299, %v294, %v296
      %v301 = vsel %vm299, %v292, %v294
      %v302 = vsel %vm299, %v290, %v292
      %v303 = vsel %vm299, %v296, %v290
      %vm304 = vcmp.ge.s32.totalorder %v286, 1
      %vm305 = vcmp.lt.s32.totalorder %v286, 9
      %vm306 = vcmp.ge.s32.totalorder %v287, 1
      %vm307 = vcmp.lt.s32.totalorder %v287, 9
      %vm308 = vcmp.ge.s32.totalorder %v288, 1
      %vm309 = vcmp.lt.s32.totalorder %v288, 9
      %vm310 = vmand %vm304, %vm305
      %vm311 = vmand %vm310, %vm306
      %vm312 = vmand %vm311, %vm307
      %vm313 = vmand %vm312, %vm308
      %vm314 = vmand %vm313, %vm309
      %v315 = vsel %vm314, 1, 0
      %v316 = vperm.slane %v315, 0
      %v317 = vperm.slane %v315, 1
      %v318 = vperm.slane %v315, 2
      %v319 = vperm.slane %v315, 3
      %vm320 = vcmp.eq.s32.totalorder %v316, 1
      %vm321 = vcmp.eq.s32.totalorder %v317, 1
      %vm322 = vcmp.eq.s32.totalorder %v318, 1
      %vm323 = vcmp.eq.s32.totalorder %v319, 1
      %v324 = vsel %vm320, %v303, 0.0
      %v325 = vsel %vm321, %v302, 0.0
      %v326 = vsel %vm322, %v301, 0.0
      %v327 = vsel %vm323, %v300, 0.0
      %v328 = vld [vmem:[%s1] sm:$0xf]
      %v329 = vld [vmem:[%s1 + $0x4] sm:$0xf]
      %v330 = vpack.c.bf16 %v324, %v324
      %v331 = vpack.c.bf16 %v325, %v325
      %v332 = vpack.c.bf16 %v326, %v326
      %v333 = vpack.c.bf16 %v327, %v327
      %334 = vrot.lane.b32.xlu0 %v282, 72
      %v335 = vpop.permute.xlu0 %334
      %336 = vrot.lane.b32.xlu0 %v283, 72
      %v337 = vpop.permute.xlu0 %336
      %338 = vrot.lane.b32.xlu0 %v284, 72
      %v339 = vpop.permute.xlu0 %338
      %340 = vrot.lane.b32.xlu0 %v285, 72
      %v341 = vpop.permute.xlu0 %340
      %vm342 = vcmp.lt.s32.totalorder %v298, 72
      %v343 = vsel %vm342, %v339, %v341
      %v344 = vsel %vm342, %v337, %v339
      %v345 = vsel %vm342, %v335, %v337
      %v346 = vsel %vm342, %v341, %v335
      %v347 = vsel %vm312, 1, 0
      %v348 = vperm.slane %v347, 0
      %v349 = vperm.slane %v347, 1
      %v350 = vperm.slane %v347, 2
      %v351 = vperm.slane %v347, 3
      %vm352 = vcmp.eq.s32.totalorder %v348, 1
      %vm353 = vcmp.eq.s32.totalorder %v349, 1
      %vm354 = vcmp.eq.s32.totalorder %v350, 1
      %vm355 = vcmp.eq.s32.totalorder %v351, 1
      %v356 = vsel %vm352, %v346, 0.0
      %v357 = vsel %vm353, %v345, 0.0
      %v358 = vsel %vm354, %v344, 0.0
      %v359 = vsel %vm355, %v343, 0.0
      %s360 = scalar_lea.vmem %s1, 8
      %v361 = vld [vmem:[%s360] sm:$0xf]
      %v362 = vld [vmem:[%s360 + $0x4] sm:$0xf]
      %v363 = vpack.c.bf16 %v356, %v356
      %v364 = vpack.c.bf16 %v357, %v357
      %v365 = vpack.c.bf16 %v358, %v358
      %v366 = vpack.c.bf16 %v359, %v359
      %v369 = vunpack.c.l.b16 %v361
      %v370 = vunpack.c.l.b16 %v362
      %v371 = vpack.c.b16 %v370, %v369
      %vm372 = vcmask 64512
      %v374 = vsel %vm372, %v371, 0
      %vm376 = vcmask 1043456
      %v378 = vsel %vm376, %v363, 0
      %v381 = vsel %vm376, %v364, 0
      %v384 = vsel %vm376, %v365, 0
      %v387 = vsel %vm376, %v366, 0
      %389 = vmatpush.bf16.msra.mxu0 0
      %390 = vmatpush.bf16.msra.mxu0 0
      %391 = vmatpush.bf16.msra.mxu0 0
      %392 = vmatpush.bf16.msra.mxu0 0
      %393 = vmatpush.bf16.msra.mxu0 0
      %394 = vmatpush.bf16.msra.mxu0 0
      %395 = vmatpush.bf16.msra.mxu0 0
      %396 = vmatpush.bf16.msra.mxu0 %v378
      %397 = vmatmul.bf16.gmra.mxu0 %v374
      %v398 = vpop.f32.mrf.mxu0
      %v399 = vadd.f32 0.0, %v398
      %v400 = vpop.f32.mrf.mxu0
      %v401 = vadd.f32 0.0, %v400
      %402 = vdwg.mxu0
      %403 = vmatpush.bf16.msra.mxu0 0
      %404 = vmatpush.bf16.msra.mxu0 0
      %405 = vmatpush.bf16.msra.mxu0 0
      %406 = vmatpush.bf16.msra.mxu0 0
      %407 = vmatpush.bf16.msra.mxu0 0
      %408 = vmatpush.bf16.msra.mxu0 0
      %409 = vmatpush.bf16.msra.mxu0 0
      %410 = vmatpush.bf16.msra.mxu0 %v381
      %411 = vmatmul.bf16.gmra.mxu0 %v374
      %v412 = vpop.f32.mrf.mxu0
      %v413 = vadd.f32 0.0, %v412
      %v414 = vpop.f32.mrf.mxu0
      %v415 = vadd.f32 0.0, %v414
      %416 = vdwg.mxu0
      %417 = vmatpush.bf16.msra.mxu0 0
      %418 = vmatpush.bf16.msra.mxu0 0
      %419 = vmatpush.bf16.msra.mxu0 0
      %420 = vmatpush.bf16.msra.mxu0 0
      %421 = vmatpush.bf16.msra.mxu0 0
      %422 = vmatpush.bf16.msra.mxu0 0
      %423 = vmatpush.bf16.msra.mxu0 0
      %424 = vmatpush.bf16.msra.mxu0 %v384
      %425 = vmatmul.bf16.gmra.mxu0 %v374
      %v426 = vpop.f32.mrf.mxu0
      %v427 = vadd.f32 0.0, %v426
      %v428 = vpop.f32.mrf.mxu0
      %v429 = vadd.f32 0.0, %v428
      %430 = vdwg.mxu0
      %431 = vmatpush.bf16.msra.mxu0 0
      %432 = vmatpush.bf16.msra.mxu0 0
      %433 = vmatpush.bf16.msra.mxu0 0
      %434 = vmatpush.bf16.msra.mxu0 0
      %435 = vmatpush.bf16.msra.mxu0 0
      %436 = vmatpush.bf16.msra.mxu0 0
      %437 = vmatpush.bf16.msra.mxu0 0
      %438 = vmatpush.bf16.msra.mxu0 %v387
      %439 = vmatmul.bf16.gmra.mxu0 %v374
      %v440 = vpop.f32.mrf.mxu0
      %v441 = vadd.f32 0.0, %v440
      %v442 = vpop.f32.mrf.mxu0
      %v443 = vadd.f32 0.0, %v442
      %444 = vdwg.mxu0
      %v447 = vunpack.c.l.b16 %v328
      %v448 = vunpack.c.l.b16 %v329
      %v449 = vpack.c.b16 %v448, %v447
      %v451 = vsel %vm372, %v449, 0
      %v454 = vsel %vm376, %v330, 0
      %v457 = vsel %vm376, %v331, 0
      %v460 = vsel %vm376, %v332, 0
      %v463 = vsel %vm376, %v333, 0
      %465 = vmatpush.bf16.msra.mxu0 0
      %466 = vmatpush.bf16.msra.mxu0 0
      %467 = vmatpush.bf16.msra.mxu0 0
      %468 = vmatpush.bf16.msra.mxu0 0
      %469 = vmatpush.bf16.msra.mxu0 0
      %470 = vmatpush.bf16.msra.mxu0 0
      %471 = vmatpush.bf16.msra.mxu0 0
      %472 = vmatpush.bf16.msra.mxu0 %v454
      %473 = vmatmul.bf16.gmra.mxu0 %v451
      %v474 = vpop.f32.mrf.mxu0
      %v475 = vadd.f32 %v399, %v474
      %v476 = vpop.f32.mrf.mxu0
      %v477 = vadd.f32 %v401, %v476
      %478 = vdwg.mxu0
      %479 = vmatpush.bf16.msra.mxu0 0
      %480 = vmatpush.bf16.msra.mxu0 0
      %481 = vmatpush.bf16.msra.mxu0 0
      %482 = vmatpush.bf16.msra.mxu0 0
      %483 = vmatpush.bf16.msra.mxu0 0
      %484 = vmatpush.bf16.msra.mxu0 0
      %485 = vmatpush.bf16.msra.mxu0 0
      %486 = vmatpush.bf16.msra.mxu0 %v457
      %487 = vmatmul.bf16.gmra.mxu0 %v451
      %v488 = vpop.f32.mrf.mxu0
      %v489 = vadd.f32 %v413, %v488
      %v490 = vpop.f32.mrf.mxu0
      %v491 = vadd.f32 %v415, %v490
      %492 = vdwg.mxu0
      %493 = vmatpush.bf16.msra.mxu0 0
      %494 = vmatpush.bf16.msra.mxu0 0
      %495 = vmatpush.bf16.msra.mxu0 0
      %496 = vmatpush.bf16.msra.mxu0 0
      %497 = vmatpush.bf16.msra.mxu0 0
      %498 = vmatpush.bf16.msra.mxu0 0
      %499 = vmatpush.bf16.msra.mxu0 0
      %500 = vmatpush.bf16.msra.mxu0 %v460
      %501 = vmatmul.bf16.gmra.mxu0 %v451
      %v502 = vpop.f32.mrf.mxu0
      %v503 = vadd.f32 %v427, %v502
      %v504 = vpop.f32.mrf.mxu0
      %v505 = vadd.f32 %v429, %v504
      %506 = vdwg.mxu0
      %507 = vmatpush.bf16.msra.mxu0 0
      %508 = vmatpush.bf16.msra.mxu0 0
      %509 = vmatpush.bf16.msra.mxu0 0
      %510 = vmatpush.bf16.msra.mxu0 0
      %511 = vmatpush.bf16.msra.mxu0 0
      %512 = vmatpush.bf16.msra.mxu0 0
      %513 = vmatpush.bf16.msra.mxu0 0
      %514 = vmatpush.bf16.msra.mxu0 %v463
      %515 = vmatmul.bf16.gmra.mxu0 %v451
      %v516 = vpop.f32.mrf.mxu0
      %v517 = vadd.f32 %v441, %v516
      %v518 = vpop.f32.mrf.mxu0
      %v519 = vadd.f32 %v443, %v518
      %520 = vdwg.mxu0
      %521 = vrot.lane.b32.xlu0 %v282, 71
      %v522 = vpop.permute.xlu0 %521
      %523 = vrot.lane.b32.xlu0 %v283, 71
      %v524 = vpop.permute.xlu0 %523
      %525 = vrot.lane.b32.xlu0 %v284, 71
      %v526 = vpop.permute.xlu0 %525
      %527 = vrot.lane.b32.xlu0 %v285, 71
      %v528 = vpop.permute.xlu0 %527
      %vm529 = vcmp.lt.s32.totalorder %v298, 71
      %v530 = vsel %vm529, %v526, %v528
      %v531 = vsel %vm529, %v524, %v526
      %v532 = vsel %vm529, %v522, %v524
      %v533 = vsel %vm529, %v528, %v522
      %vm534 = vcmp.ge.s32.totalorder %v288, 4294967295
      %vm535 = vcmp.lt.s32.totalorder %v288, 7
      %vm536 = vmand %vm312, %vm534
      %vm537 = vmand %vm536, %vm535
      %v538 = vsel %vm537, 1, 0
      %v539 = vperm.slane %v538, 0
      %v540 = vperm.slane %v538, 1
      %v541 = vperm.slane %v538, 2
      %v542 = vperm.slane %v538, 3
      %vm543 = vcmp.eq.s32.totalorder %v539, 1
      %vm544 = vcmp.eq.s32.totalorder %v540, 1
      %vm545 = vcmp.eq.s32.totalorder %v541, 1
      %vm546 = vcmp.eq.s32.totalorder %v542, 1
      %v547 = vsel %vm543, %v533, 0.0
      %v548 = vsel %vm544, %v532, 0.0
      %v549 = vsel %vm545, %v531, 0.0
      %v550 = vsel %vm546, %v530, 0.0
      %s551 = scalar_lea.vmem %s1, 16
      %v552 = vld [vmem:[%s551] sm:$0xf]
      %v553 = vld [vmem:[%s551 + $0x4] sm:$0xf]
      %v554 = vpack.c.bf16 %v547, %v547
      %v555 = vpack.c.bf16 %v548, %v548
      %v556 = vpack.c.bf16 %v549, %v549
      %v557 = vpack.c.bf16 %v550, %v550
      %v560 = vunpack.c.l.b16 %v552
      %v561 = vunpack.c.l.b16 %v553
      %v562 = vpack.c.b16 %v561, %v560
      %v564 = vsel %vm372, %v562, 0
      %v567 = vsel %vm376, %v554, 0
      %v570 = vsel %vm376, %v555, 0
      %v573 = vsel %vm376, %v556, 0
      %v576 = vsel %vm376, %v557, 0
      %578 = vmatpush.bf16.msra.mxu0 0
      %579 = vmatpush.bf16.msra.mxu0 0
      %580 = vmatpush.bf16.msra.mxu0 0
      %581 = vmatpush.bf16.msra.mxu0 0
      %582 = vmatpush.bf16.msra.mxu0 0
      %583 = vmatpush.bf16.msra.mxu0 0
      %584 = vmatpush.bf16.msra.mxu0 0
      %585 = vmatpush.bf16.msra.mxu0 %v567
      %586 = vmatmul.bf16.gmra.mxu0 %v564
      %v587 = vpop.f32.mrf.mxu0
      %v588 = vadd.f32 0.0, %v587
      %v589 = vpop.f32.mrf.mxu0
      %v590 = vadd.f32 0.0, %v589
      %591 = vdwg.mxu0
      %592 = vmatpush.bf16.msra.mxu0 0
      %593 = vmatpush.bf16.msra.mxu0 0
      %594 = vmatpush.bf16.msra.mxu0 0
      %595 = vmatpush.bf16.msra.mxu0 0
      %596 = vmatpush.bf16.msra.mxu0 0
      %597 = vmatpush.bf16.msra.mxu0 0
      %598 = vmatpush.bf16.msra.mxu0 0
      %599 = vmatpush.bf16.msra.mxu0 %v570
      %600 = vmatmul.bf16.gmra.mxu0 %v564
      %v601 = vpop.f32.mrf.mxu0
      %v602 = vadd.f32 0.0, %v601
      %v603 = vpop.f32.mrf.mxu0
      %v604 = vadd.f32 0.0, %v603
      %605 = vdwg.mxu0
      %606 = vmatpush.bf16.msra.mxu0 0
      %607 = vmatpush.bf16.msra.mxu0 0
      %608 = vmatpush.bf16.msra.mxu0 0
      %609 = vmatpush.bf16.msra.mxu0 0
      %610 = vmatpush.bf16.msra.mxu0 0
      %611 = vmatpush.bf16.msra.mxu0 0
      %612 = vmatpush.bf16.msra.mxu0 0
      %613 = vmatpush.bf16.msra.mxu0 %v573
      %614 = vmatmul.bf16.gmra.mxu0 %v564
      %v615 = vpop.f32.mrf.mxu0
      %v616 = vadd.f32 0.0, %v615
      %v617 = vpop.f32.mrf.mxu0
      %v618 = vadd.f32 0.0, %v617
      %619 = vdwg.mxu0
      %620 = vmatpush.bf16.msra.mxu0 0
      %621 = vmatpush.bf16.msra.mxu0 0
      %622 = vmatpush.bf16.msra.mxu0 0
      %623 = vmatpush.bf16.msra.mxu0 0
      %624 = vmatpush.bf16.msra.mxu0 0
      %625 = vmatpush.bf16.msra.mxu0 0
      %626 = vmatpush.bf16.msra.mxu0 0
      %627 = vmatpush.bf16.msra.mxu0 %v576
      %628 = vmatmul.bf16.gmra.mxu0 %v564
      %v629 = vpop.f32.mrf.mxu0
      %v630 = vadd.f32 0.0, %v629
      %v631 = vpop.f32.mrf.mxu0
      %v632 = vadd.f32 0.0, %v631
      %633 = vdwg.mxu0
      %v634 = vadd.f32 %v475, %v588
      %v635 = vadd.f32 %v489, %v602
      %v636 = vadd.f32 %v503, %v616
      %v637 = vadd.f32 %v517, %v630
      %v638 = vadd.f32 %v477, %v590
      %v639 = vadd.f32 %v491, %v604
      %v640 = vadd.f32 %v505, %v618
      %v641 = vadd.f32 %v519, %v632
      %642 = vrot.lane.b32.xlu0 %v282, 65
      %v643 = vpop.permute.xlu0 %642
      %644 = vrot.lane.b32.xlu0 %v283, 65
      %v645 = vpop.permute.xlu0 %644
      %646 = vrot.lane.b32.xlu0 %v284, 65
      %v647 = vpop.permute.xlu0 %646
      %648 = vrot.lane.b32.xlu0 %v285, 65
      %v649 = vpop.permute.xlu0 %648
      %vm650 = vcmp.lt.s32.totalorder %v298, 65
      %v651 = vsel %vm650, %v647, %v649
      %v652 = vsel %vm650, %v645, %v647
      %v653 = vsel %vm650, %v643, %v645
      %v654 = vsel %vm650, %v649, %v643
      %vm655 = vmand %vm310, %vm308
      %vm656 = vmand %vm655, %vm309
      %v657 = vsel %vm656, 1, 0
      %v658 = vperm.slane %v657, 0
      %v659 = vperm.slane %v657, 1
      %v660 = vperm.slane %v657, 2
      %v661 = vperm.slane %v657, 3
      %vm662 = vcmp.eq.s32.totalorder %v658, 1
      %vm663 = vcmp.eq.s32.totalorder %v659, 1
      %vm664 = vcmp.eq.s32.totalorder %v660, 1
      %vm665 = vcmp.eq.s32.totalorder %v661, 1
      %v666 = vsel %vm662, %v654, 0.0
      %v667 = vsel %vm663, %v653, 0.0
      %v668 = vsel %vm664, %v652, 0.0
      %v669 = vsel %vm665, %v651, 0.0
      %s670 = scalar_lea.vmem %s1, 24
      %v671 = vld [vmem:[%s670] sm:$0xf]
      %v672 = vld [vmem:[%s670 + $0x4] sm:$0xf]
      %v673 = vpack.c.bf16 %v666, %v666
      %v674 = vpack.c.bf16 %v667, %v667
      %v675 = vpack.c.bf16 %v668, %v668
      %v676 = vpack.c.bf16 %v669, %v669
      %v679 = vunpack.c.l.b16 %v671
      %v680 = vunpack.c.l.b16 %v672
      %v681 = vpack.c.b16 %v680, %v679
      %v683 = vsel %vm372, %v681, 0
      %v686 = vsel %vm376, %v673, 0
      %v689 = vsel %vm376, %v674, 0
      %v692 = vsel %vm376, %v675, 0
      %v695 = vsel %vm376, %v676, 0
      %697 = vmatpush.bf16.msra.mxu0 0
      %698 = vmatpush.bf16.msra.mxu0 0
      %699 = vmatpush.bf16.msra.mxu0 0
      %700 = vmatpush.bf16.msra.mxu0 0
      %701 = vmatpush.bf16.msra.mxu0 0
      %702 = vmatpush.bf16.msra.mxu0 0
      %703 = vmatpush.bf16.msra.mxu0 0
      %704 = vmatpush.bf16.msra.mxu0 %v686
      %705 = vmatmul.bf16.gmra.mxu0 %v683
      %v706 = vpop.f32.mrf.mxu0
      %v707 = vadd.f32 0.0, %v706
      %v708 = vpop.f32.mrf.mxu0
      %v709 = vadd.f32 0.0, %v708
      %710 = vdwg.mxu0
      %711 = vmatpush.bf16.msra.mxu0 0
      %712 = vmatpush.bf16.msra.mxu0 0
      %713 = vmatpush.bf16.msra.mxu0 0
      %714 = vmatpush.bf16.msra.mxu0 0
      %715 = vmatpush.bf16.msra.mxu0 0
      %716 = vmatpush.bf16.msra.mxu0 0
      %717 = vmatpush.bf16.msra.mxu0 0
      %718 = vmatpush.bf16.msra.mxu0 %v689
      %719 = vmatmul.bf16.gmra.mxu0 %v683
      %v720 = vpop.f32.mrf.mxu0
      %v721 = vadd.f32 0.0, %v720
      %v722 = vpop.f32.mrf.mxu0
      %v723 = vadd.f32 0.0, %v722
      %724 = vdwg.mxu0
      %725 = vmatpush.bf16.msra.mxu0 0
      %726 = vmatpush.bf16.msra.mxu0 0
      %727 = vmatpush.bf16.msra.mxu0 0
      %728 = vmatpush.bf16.msra.mxu0 0
      %729 = vmatpush.bf16.msra.mxu0 0
      %730 = vmatpush.bf16.msra.mxu0 0
      %731 = vmatpush.bf16.msra.mxu0 0
      %732 = vmatpush.bf16.msra.mxu0 %v692
      %733 = vmatmul.bf16.gmra.mxu0 %v683
      %v734 = vpop.f32.mrf.mxu0
      %v735 = vadd.f32 0.0, %v734
      %v736 = vpop.f32.mrf.mxu0
      %v737 = vadd.f32 0.0, %v736
      %738 = vdwg.mxu0
      %739 = vmatpush.bf16.msra.mxu0 0
      %740 = vmatpush.bf16.msra.mxu0 0
      %741 = vmatpush.bf16.msra.mxu0 0
      %742 = vmatpush.bf16.msra.mxu0 0
      %743 = vmatpush.bf16.msra.mxu0 0
      %744 = vmatpush.bf16.msra.mxu0 0
      %745 = vmatpush.bf16.msra.mxu0 0
      %746 = vmatpush.bf16.msra.mxu0 %v695
      %747 = vmatmul.bf16.gmra.mxu0 %v683
      %v748 = vpop.f32.mrf.mxu0
      %v749 = vadd.f32 0.0, %v748
      %v750 = vpop.f32.mrf.mxu0
      %v751 = vadd.f32 0.0, %v750
      %752 = vdwg.mxu0
      %v753 = vadd.f32 %v634, %v707
      %v754 = vadd.f32 %v635, %v721
      %v755 = vadd.f32 %v636, %v735
      %v756 = vadd.f32 %v637, %v749
      %v757 = vadd.f32 %v638, %v709
      %v758 = vadd.f32 %v639, %v723
      %v759 = vadd.f32 %v640, %v737
      %v760 = vadd.f32 %v641, %v751
      %761 = vrot.lane.b32.xlu0 %v282, 64
      %v762 = vpop.permute.xlu0 %761
      %763 = vrot.lane.b32.xlu0 %v283, 64
      %v764 = vpop.permute.xlu0 %763
      %765 = vrot.lane.b32.xlu0 %v284, 64
      %v766 = vpop.permute.xlu0 %765
      %767 = vrot.lane.b32.xlu0 %v285, 64
      %v768 = vpop.permute.xlu0 %767
      %vm769 = vcmp.lt.s32.totalorder %v298, 64
      %v770 = vsel %vm769, %v766, %v768
      %v771 = vsel %vm769, %v764, %v766
      %v772 = vsel %vm769, %v762, %v764
      %v773 = vsel %vm769, %v768, %v762
      %v774 = vsel %vm310, 1, 0
      %v775 = vperm.slane %v774, 0
      %v776 = vperm.slane %v774, 1
      %v777 = vperm.slane %v774, 2
      %v778 = vperm.slane %v774, 3
      %vm779 = vcmp.eq.s32.totalorder %v775, 1
      %vm780 = vcmp.eq.s32.totalorder %v776, 1
      %vm781 = vcmp.eq.s32.totalorder %v777, 1
      %vm782 = vcmp.eq.s32.totalorder %v778, 1
      %v783 = vsel %vm779, %v773, 0.0
      %v784 = vsel %vm780, %v772, 0.0
      %v785 = vsel %vm781, %v771, 0.0
      %v786 = vsel %vm782, %v770, 0.0
      %s787 = scalar_lea.vmem %s1, 32
      %v788 = vld [vmem:[%s787] sm:$0xf]
      %v789 = vld [vmem:[%s787 + $0x4] sm:$0xf]
      %v790 = vpack.c.bf16 %v783, %v783
      %v791 = vpack.c.bf16 %v784, %v784
      %v792 = vpack.c.bf16 %v785, %v785
      %v793 = vpack.c.bf16 %v786, %v786
      %v796 = vunpack.c.l.b16 %v788
      %v797 = vunpack.c.l.b16 %v789
      %v798 = vpack.c.b16 %v797, %v796
      %v800 = vsel %vm372, %v798, 0
      %v803 = vsel %vm376, %v790, 0
      %v806 = vsel %vm376, %v791, 0
      %v809 = vsel %vm376, %v792, 0
      %v812 = vsel %vm376, %v793, 0
      %814 = vmatpush.bf16.msra.mxu0 0
      %815 = vmatpush.bf16.msra.mxu0 0
      %816 = vmatpush.bf16.msra.mxu0 0
      %817 = vmatpush.bf16.msra.mxu0 0
      %818 = vmatpush.bf16.msra.mxu0 0
      %819 = vmatpush.bf16.msra.mxu0 0
      %820 = vmatpush.bf16.msra.mxu0 0
      %821 = vmatpush.bf16.msra.mxu0 %v803
      %822 = vmatmul.bf16.gmra.mxu0 %v800
      %v823 = vpop.f32.mrf.mxu0
      %v824 = vadd.f32 0.0, %v823
      %v825 = vpop.f32.mrf.mxu0
      %v826 = vadd.f32 0.0, %v825
      %827 = vdwg.mxu0
      %828 = vmatpush.bf16.msra.mxu0 0
      %829 = vmatpush.bf16.msra.mxu0 0
      %830 = vmatpush.bf16.msra.mxu0 0
      %831 = vmatpush.bf16.msra.mxu0 0
      %832 = vmatpush.bf16.msra.mxu0 0
      %833 = vmatpush.bf16.msra.mxu0 0
      %834 = vmatpush.bf16.msra.mxu0 0
      %835 = vmatpush.bf16.msra.mxu0 %v806
      %836 = vmatmul.bf16.gmra.mxu0 %v800
      %v837 = vpop.f32.mrf.mxu0
      %v838 = vadd.f32 0.0, %v837
      %v839 = vpop.f32.mrf.mxu0
      %v840 = vadd.f32 0.0, %v839
      %841 = vdwg.mxu0
      %842 = vmatpush.bf16.msra.mxu0 0
      %843 = vmatpush.bf16.msra.mxu0 0
      %844 = vmatpush.bf16.msra.mxu0 0
      %845 = vmatpush.bf16.msra.mxu0 0
      %846 = vmatpush.bf16.msra.mxu0 0
      %847 = vmatpush.bf16.msra.mxu0 0
      %848 = vmatpush.bf16.msra.mxu0 0
      %849 = vmatpush.bf16.msra.mxu0 %v809
      %850 = vmatmul.bf16.gmra.mxu0 %v800
      %v851 = vpop.f32.mrf.mxu0
      %v852 = vadd.f32 0.0, %v851
      %v853 = vpop.f32.mrf.mxu0
      %v854 = vadd.f32 0.0, %v853
      %855 = vdwg.mxu0
      %856 = vmatpush.bf16.msra.mxu0 0
      %857 = vmatpush.bf16.msra.mxu0 0
      %858 = vmatpush.bf16.msra.mxu0 0
      %859 = vmatpush.bf16.msra.mxu0 0
      %860 = vmatpush.bf16.msra.mxu0 0
      %861 = vmatpush.bf16.msra.mxu0 0
      %862 = vmatpush.bf16.msra.mxu0 0
      %863 = vmatpush.bf16.msra.mxu0 %v812
      %864 = vmatmul.bf16.gmra.mxu0 %v800
      %v865 = vpop.f32.mrf.mxu0
      %v866 = vadd.f32 0.0, %v865
      %v867 = vpop.f32.mrf.mxu0
      %v868 = vadd.f32 0.0, %v867
      %869 = vdwg.mxu0
      %v870 = vadd.f32 %v753, %v824
      %v871 = vadd.f32 %v754, %v838
      %v872 = vadd.f32 %v755, %v852
      %v873 = vadd.f32 %v756, %v866
      %v874 = vadd.f32 %v757, %v826
      %v875 = vadd.f32 %v758, %v840
      %v876 = vadd.f32 %v759, %v854
      %v877 = vadd.f32 %v760, %v868
      %878 = vrot.lane.b32.xlu0 %v282, 63
      %v879 = vpop.permute.xlu0 %878
      %880 = vrot.lane.b32.xlu0 %v283, 63
      %v881 = vpop.permute.xlu0 %880
      %882 = vrot.lane.b32.xlu0 %v284, 63
      %v883 = vpop.permute.xlu0 %882
      %884 = vrot.lane.b32.xlu0 %v285, 63
      %v885 = vpop.permute.xlu0 %884
      %vm886 = vcmp.lt.s32.totalorder %v298, 63
      %v887 = vsel %vm886, %v883, %v885
      %v888 = vsel %vm886, %v881, %v883
      %v889 = vsel %vm886, %v879, %v881
      %v890 = vsel %vm886, %v885, %v879
      %vm891 = vmand %vm310, %vm534
      %vm892 = vmand %vm891, %vm535
      %v893 = vsel %vm892, 1, 0
      %v894 = vperm.slane %v893, 0
      %v895 = vperm.slane %v893, 1
      %v896 = vperm.slane %v893, 2
      %v897 = vperm.slane %v893, 3
      %vm898 = vcmp.eq.s32.totalorder %v894, 1
      %vm899 = vcmp.eq.s32.totalorder %v895, 1
      %vm900 = vcmp.eq.s32.totalorder %v896, 1
      %vm901 = vcmp.eq.s32.totalorder %v897, 1
      %v902 = vsel %vm898, %v890, 0.0
      %v903 = vsel %vm899, %v889, 0.0
      %v904 = vsel %vm900, %v888, 0.0
      %v905 = vsel %vm901, %v887, 0.0
      %s906 = scalar_lea.vmem %s1, 40
      %v907 = vld [vmem:[%s906] sm:$0xf]
      %v908 = vld [vmem:[%s906 + $0x4] sm:$0xf]
      %v909 = vpack.c.bf16 %v902, %v902
      %v910 = vpack.c.bf16 %v903, %v903
      %v911 = vpack.c.bf16 %v904, %v904
      %v912 = vpack.c.bf16 %v905, %v905
      %v915 = vunpack.c.l.b16 %v907
      %v916 = vunpack.c.l.b16 %v908
      %v917 = vpack.c.b16 %v916, %v915
      %v919 = vsel %vm372, %v917, 0
      %v922 = vsel %vm376, %v909, 0
      %v925 = vsel %vm376, %v910, 0
      %v928 = vsel %vm376, %v911, 0
      %v931 = vsel %vm376, %v912, 0
      %933 = vmatpush.bf16.msra.mxu0 0
      %934 = vmatpush.bf16.msra.mxu0 0
      %935 = vmatpush.bf16.msra.mxu0 0
      %936 = vmatpush.bf16.msra.mxu0 0
      %937 = vmatpush.bf16.msra.mxu0 0
      %938 = vmatpush.bf16.msra.mxu0 0
      %939 = vmatpush.bf16.msra.mxu0 0
      %940 = vmatpush.bf16.msra.mxu0 %v922
      %941 = vmatmul.bf16.gmra.mxu0 %v919
      %v942 = vpop.f32.mrf.mxu0
      %v943 = vadd.f32 0.0, %v942
      %v944 = vpop.f32.mrf.mxu0
      %v945 = vadd.f32 0.0, %v944
      %946 = vdwg.mxu0
      %947 = vmatpush.bf16.msra.mxu0 0
      %948 = vmatpush.bf16.msra.mxu0 0
      %949 = vmatpush.bf16.msra.mxu0 0
      %950 = vmatpush.bf16.msra.mxu0 0
      %951 = vmatpush.bf16.msra.mxu0 0
      %952 = vmatpush.bf16.msra.mxu0 0
      %953 = vmatpush.bf16.msra.mxu0 0
      %954 = vmatpush.bf16.msra.mxu0 %v925
      %955 = vmatmul.bf16.gmra.mxu0 %v919
      %v956 = vpop.f32.mrf.mxu0
      %v957 = vadd.f32 0.0, %v956
      %v958 = vpop.f32.mrf.mxu0
      %v959 = vadd.f32 0.0, %v958
      %960 = vdwg.mxu0
      %961 = vmatpush.bf16.msra.mxu0 0
      %962 = vmatpush.bf16.msra.mxu0 0
      %963 = vmatpush.bf16.msra.mxu0 0
      %964 = vmatpush.bf16.msra.mxu0 0
      %965 = vmatpush.bf16.msra.mxu0 0
      %966 = vmatpush.bf16.msra.mxu0 0
      %967 = vmatpush.bf16.msra.mxu0 0
      %968 = vmatpush.bf16.msra.mxu0 %v928
      %969 = vmatmul.bf16.gmra.mxu0 %v919
      %v970 = vpop.f32.mrf.mxu0
      %v971 = vadd.f32 0.0, %v970
      %v972 = vpop.f32.mrf.mxu0
      %v973 = vadd.f32 0.0, %v972
      %974 = vdwg.mxu0
      %975 = vmatpush.bf16.msra.mxu0 0
      %976 = vmatpush.bf16.msra.mxu0 0
      %977 = vmatpush.bf16.msra.mxu0 0
      %978 = vmatpush.bf16.msra.mxu0 0
      %979 = vmatpush.bf16.msra.mxu0 0
      %980 = vmatpush.bf16.msra.mxu0 0
      %981 = vmatpush.bf16.msra.mxu0 0
      %982 = vmatpush.bf16.msra.mxu0 %v931
      %983 = vmatmul.bf16.gmra.mxu0 %v919
      %v984 = vpop.f32.mrf.mxu0
      %v985 = vadd.f32 0.0, %v984
      %v986 = vpop.f32.mrf.mxu0
      %v987 = vadd.f32 0.0, %v986
      %988 = vdwg.mxu0
      %v989 = vadd.f32 %v870, %v943
      %v990 = vadd.f32 %v871, %v957
      %v991 = vadd.f32 %v872, %v971
      %v992 = vadd.f32 %v873, %v985
      %v993 = vadd.f32 %v874, %v945
      %v994 = vadd.f32 %v875, %v959
      %v995 = vadd.f32 %v876, %v973
      %v996 = vadd.f32 %v877, %v987
      %997 = vrot.lane.b32.xlu0 %v282, 57
      %v998 = vpop.permute.xlu0 %997
      %999 = vrot.lane.b32.xlu0 %v283, 57
      %v1000 = vpop.permute.xlu0 %999
      %1001 = vrot.lane.b32.xlu0 %v284, 57
      %v1002 = vpop.permute.xlu0 %1001
      %1003 = vrot.lane.b32.xlu0 %v285, 57
      %v1004 = vpop.permute.xlu0 %1003
      %vm1005 = vcmp.lt.s32.totalorder %v298, 57
      %v1006 = vsel %vm1005, %v1002, %v1004
      %v1007 = vsel %vm1005, %v1000, %v1002
      %v1008 = vsel %vm1005, %v998, %v1000
      %v1009 = vsel %vm1005, %v1004, %v998
      %vm1010 = vcmp.ge.s32.totalorder %v287, 4294967295
      %vm1011 = vcmp.lt.s32.totalorder %v287, 7
      %vm1012 = vmand %vm310, %vm1010
      %vm1013 = vmand %vm1012, %vm1011
      %vm1014 = vmand %vm1013, %vm308
      %vm1015 = vmand %vm1014, %vm309
      %v1016 = vsel %vm1015, 1, 0
      %v1017 = vperm.slane %v1016, 0
      %v1018 = vperm.slane %v1016, 1
      %v1019 = vperm.slane %v1016, 2
      %v1020 = vperm.slane %v1016, 3
      %vm1021 = vcmp.eq.s32.totalorder %v1017, 1
      %vm1022 = vcmp.eq.s32.totalorder %v1018, 1
      %vm1023 = vcmp.eq.s32.totalorder %v1019, 1
      %vm1024 = vcmp.eq.s32.totalorder %v1020, 1
      %v1025 = vsel %vm1021, %v1009, 0.0
      %v1026 = vsel %vm1022, %v1008, 0.0
      %v1027 = vsel %vm1023, %v1007, 0.0
      %v1028 = vsel %vm1024, %v1006, 0.0
      %s1029 = scalar_lea.vmem %s1, 48
      %v1030 = vld [vmem:[%s1029] sm:$0xf]
      %v1031 = vld [vmem:[%s1029 + $0x4] sm:$0xf]
      %v1032 = vpack.c.bf16 %v1025, %v1025
      %v1033 = vpack.c.bf16 %v1026, %v1026
      %v1034 = vpack.c.bf16 %v1027, %v1027
      %v1035 = vpack.c.bf16 %v1028, %v1028
      %v1038 = vunpack.c.l.b16 %v1030
      %v1039 = vunpack.c.l.b16 %v1031
      %v1040 = vpack.c.b16 %v1039, %v1038
      %v1042 = vsel %vm372, %v1040, 0
      %v1045 = vsel %vm376, %v1032, 0
      %v1048 = vsel %vm376, %v1033, 0
      %v1051 = vsel %vm376, %v1034, 0
      %v1054 = vsel %vm376, %v1035, 0
      %1056 = vmatpush.bf16.msra.mxu0 0
      %1057 = vmatpush.bf16.msra.mxu0 0
      %1058 = vmatpush.bf16.msra.mxu0 0
      %1059 = vmatpush.bf16.msra.mxu0 0
      %1060 = vmatpush.bf16.msra.mxu0 0
      %1061 = vmatpush.bf16.msra.mxu0 0
      %1062 = vmatpush.bf16.msra.mxu0 0
      %1063 = vmatpush.bf16.msra.mxu0 %v1045
      %1064 = vmatmul.bf16.gmra.mxu0 %v1042
      %v1065 = vpop.f32.mrf.mxu0
      %v1066 = vadd.f32 0.0, %v1065
      %v1067 = vpop.f32.mrf.mxu0
      %v1068 = vadd.f32 0.0, %v1067
      %1069 = vdwg.mxu0
      %1070 = vmatpush.bf16.msra.mxu0 0
      %1071 = vmatpush.bf16.msra.mxu0 0
      %1072 = vmatpush.bf16.msra.mxu0 0
      %1073 = vmatpush.bf16.msra.mxu0 0
      %1074 = vmatpush.bf16.msra.mxu0 0
      %1075 = vmatpush.bf16.msra.mxu0 0
      %1076 = vmatpush.bf16.msra.mxu0 0
      %1077 = vmatpush.bf16.msra.mxu0 %v1048
      %1078 = vmatmul.bf16.gmra.mxu0 %v1042
      %v1079 = vpop.f32.mrf.mxu0
      %v1080 = vadd.f32 0.0, %v1079
      %v1081 = vpop.f32.mrf.mxu0
      %v1082 = vadd.f32 0.0, %v1081
      %1083 = vdwg.mxu0
      %1084 = vmatpush.bf16.msra.mxu0 0
      %1085 = vmatpush.bf16.msra.mxu0 0
      %1086 = vmatpush.bf16.msra.mxu0 0
      %1087 = vmatpush.bf16.msra.mxu0 0
      %1088 = vmatpush.bf16.msra.mxu0 0
      %1089 = vmatpush.bf16.msra.mxu0 0
      %1090 = vmatpush.bf16.msra.mxu0 0
      %1091 = vmatpush.bf16.msra.mxu0 %v1051
      %1092 = vmatmul.bf16.gmra.mxu0 %v1042
      %v1093 = vpop.f32.mrf.mxu0
      %v1094 = vadd.f32 0.0, %v1093
      %v1095 = vpop.f32.mrf.mxu0
      %v1096 = vadd.f32 0.0, %v1095
      %1097 = vdwg.mxu0
      %1098 = vmatpush.bf16.msra.mxu0 0
      %1099 = vmatpush.bf16.msra.mxu0 0
      %1100 = vmatpush.bf16.msra.mxu0 0
      %1101 = vmatpush.bf16.msra.mxu0 0
      %1102 = vmatpush.bf16.msra.mxu0 0
      %1103 = vmatpush.bf16.msra.mxu0 0
      %1104 = vmatpush.bf16.msra.mxu0 0
      %1105 = vmatpush.bf16.msra.mxu0 %v1054
      %1106 = vmatmul.bf16.gmra.mxu0 %v1042
      %v1107 = vpop.f32.mrf.mxu0
      %v1108 = vadd.f32 0.0, %v1107
      %v1109 = vpop.f32.mrf.mxu0
      %v1110 = vadd.f32 0.0, %v1109
      %1111 = vdwg.mxu0
      %v1112 = vadd.f32 %v989, %v1066
      %v1113 = vadd.f32 %v990, %v1080
      %v1114 = vadd.f32 %v991, %v1094
      %v1115 = vadd.f32 %v992, %v1108
      %v1116 = vadd.f32 %v993, %v1068
      %v1117 = vadd.f32 %v994, %v1082
      %v1118 = vadd.f32 %v995, %v1096
      %v1119 = vadd.f32 %v996, %v1110
      %1120 = vrot.lane.b32.xlu0 %v282, 56
      %v1121 = vpop.permute.xlu0 %1120
      %1122 = vrot.lane.b32.xlu0 %v283, 56
      %v1123 = vpop.permute.xlu0 %1122
      %1124 = vrot.lane.b32.xlu0 %v284, 56
      %v1125 = vpop.permute.xlu0 %1124
      %1126 = vrot.lane.b32.xlu0 %v285, 56
      %v1127 = vpop.permute.xlu0 %1126
      %vm1128 = vcmp.lt.s32.totalorder %v298, 56
      %v1129 = vsel %vm1128, %v1125, %v1127
      %v1130 = vsel %vm1128, %v1123, %v1125
      %v1131 = vsel %vm1128, %v1121, %v1123
      %v1132 = vsel %vm1128, %v1127, %v1121
      %v1133 = vsel %vm1013, 1, 0
      %v1134 = vperm.slane %v1133, 0
      %v1135 = vperm.slane %v1133, 1
      %v1136 = vperm.slane %v1133, 2
      %v1137 = vperm.slane %v1133, 3
      %vm1138 = vcmp.eq.s32.totalorder %v1134, 1
      %vm1139 = vcmp.eq.s32.totalorder %v1135, 1
      %vm1140 = vcmp.eq.s32.totalorder %v1136, 1
      %vm1141 = vcmp.eq.s32.totalorder %v1137, 1
      %v1142 = vsel %vm1138, %v1132, 0.0
      %v1143 = vsel %vm1139, %v1131, 0.0
      %v1144 = vsel %vm1140, %v1130, 0.0
      %v1145 = vsel %vm1141, %v1129, 0.0
      %s1146 = scalar_lea.vmem %s1, 56
      %v1147 = vld [vmem:[%s1146] sm:$0xf]
      %v1148 = vld [vmem:[%s1146 + $0x4] sm:$0xf]
      %v1149 = vpack.c.bf16 %v1142, %v1142
      %v1150 = vpack.c.bf16 %v1143, %v1143
      %v1151 = vpack.c.bf16 %v1144, %v1144
      %v1152 = vpack.c.bf16 %v1145, %v1145
      %v1155 = vunpack.c.l.b16 %v1147
      %v1156 = vunpack.c.l.b16 %v1148
      %v1157 = vpack.c.b16 %v1156, %v1155
      %v1159 = vsel %vm372, %v1157, 0
      %v1162 = vsel %vm376, %v1149, 0
      %v1165 = vsel %vm376, %v1150, 0
      %v1168 = vsel %vm376, %v1151, 0
      %v1171 = vsel %vm376, %v1152, 0
      %1173 = vmatpush.bf16.msra.mxu0 0
      %1174 = vmatpush.bf16.msra.mxu0 0
      %1175 = vmatpush.bf16.msra.mxu0 0
      %1176 = vmatpush.bf16.msra.mxu0 0
      %1177 = vmatpush.bf16.msra.mxu0 0
      %1178 = vmatpush.bf16.msra.mxu0 0
      %1179 = vmatpush.bf16.msra.mxu0 0
      %1180 = vmatpush.bf16.msra.mxu0 %v1162
      %1181 = vmatmul.bf16.gmra.mxu0 %v1159
      %v1182 = vpop.f32.mrf.mxu0
      %v1183 = vadd.f32 0.0, %v1182
      %v1184 = vpop.f32.mrf.mxu0
      %v1185 = vadd.f32 0.0, %v1184
      %1186 = vdwg.mxu0
      %1187 = vmatpush.bf16.msra.mxu0 0
      %1188 = vmatpush.bf16.msra.mxu0 0
      %1189 = vmatpush.bf16.msra.mxu0 0
      %1190 = vmatpush.bf16.msra.mxu0 0
      %1191 = vmatpush.bf16.msra.mxu0 0
      %1192 = vmatpush.bf16.msra.mxu0 0
      %1193 = vmatpush.bf16.msra.mxu0 0
      %1194 = vmatpush.bf16.msra.mxu0 %v1165
      %1195 = vmatmul.bf16.gmra.mxu0 %v1159
      %v1196 = vpop.f32.mrf.mxu0
      %v1197 = vadd.f32 0.0, %v1196
      %v1198 = vpop.f32.mrf.mxu0
      %v1199 = vadd.f32 0.0, %v1198
      %1200 = vdwg.mxu0
      %1201 = vmatpush.bf16.msra.mxu0 0
      %1202 = vmatpush.bf16.msra.mxu0 0
      %1203 = vmatpush.bf16.msra.mxu0 0
      %1204 = vmatpush.bf16.msra.mxu0 0
      %1205 = vmatpush.bf16.msra.mxu0 0
      %1206 = vmatpush.bf16.msra.mxu0 0
      %1207 = vmatpush.bf16.msra.mxu0 0
      %1208 = vmatpush.bf16.msra.mxu0 %v1168
      %1209 = vmatmul.bf16.gmra.mxu0 %v1159
      %v1210 = vpop.f32.mrf.mxu0
      %v1211 = vadd.f32 0.0, %v1210
      %v1212 = vpop.f32.mrf.mxu0
      %v1213 = vadd.f32 0.0, %v1212
      %1214 = vdwg.mxu0
      %1215 = vmatpush.bf16.msra.mxu0 0
      %1216 = vmatpush.bf16.msra.mxu0 0
      %1217 = vmatpush.bf16.msra.mxu0 0
      %1218 = vmatpush.bf16.msra.mxu0 0
      %1219 = vmatpush.bf16.msra.mxu0 0
      %1220 = vmatpush.bf16.msra.mxu0 0
      %1221 = vmatpush.bf16.msra.mxu0 0
      %1222 = vmatpush.bf16.msra.mxu0 %v1171
      %1223 = vmatmul.bf16.gmra.mxu0 %v1159
      %v1224 = vpop.f32.mrf.mxu0
      %v1225 = vadd.f32 0.0, %v1224
      %v1226 = vpop.f32.mrf.mxu0
      %v1227 = vadd.f32 0.0, %v1226
      %1228 = vdwg.mxu0
      %v1229 = vadd.f32 %v1112, %v1183
      %v1230 = vadd.f32 %v1113, %v1197
      %v1231 = vadd.f32 %v1114, %v1211
      %v1232 = vadd.f32 %v1115, %v1225
      %v1233 = vadd.f32 %v1116, %v1185
      %v1234 = vadd.f32 %v1117, %v1199
      %v1235 = vadd.f32 %v1118, %v1213
      %v1236 = vadd.f32 %v1119, %v1227
      %1237 = vrot.lane.b32.xlu0 %v282, 55
      %v1238 = vpop.permute.xlu0 %1237
      %1239 = vrot.lane.b32.xlu0 %v283, 55
      %v1240 = vpop.permute.xlu0 %1239
      %1241 = vrot.lane.b32.xlu0 %v284, 55
      %v1242 = vpop.permute.xlu0 %1241
      %1243 = vrot.lane.b32.xlu0 %v285, 55
      %v1244 = vpop.permute.xlu0 %1243
      %vm1245 = vcmp.lt.s32.totalorder %v298, 55
      %v1246 = vsel %vm1245, %v1242, %v1244
      %v1247 = vsel %vm1245, %v1240, %v1242
      %v1248 = vsel %vm1245, %v1238, %v1240
      %v1249 = vsel %vm1245, %v1244, %v1238
      %vm1250 = vmand %vm1013, %vm534
      %vm1251 = vmand %vm1250, %vm535
      %v1252 = vsel %vm1251, 1, 0
      %v1253 = vperm.slane %v1252, 0
      %v1254 = vperm.slane %v1252, 1
      %v1255 = vperm.slane %v1252, 2
      %v1256 = vperm.slane %v1252, 3
      %vm1257 = vcmp.eq.s32.totalorder %v1253, 1
      %vm1258 = vcmp.eq.s32.totalorder %v1254, 1
      %vm1259 = vcmp.eq.s32.totalorder %v1255, 1
      %vm1260 = vcmp.eq.s32.totalorder %v1256, 1
      %v1261 = vsel %vm1257, %v1249, 0.0
      %v1262 = vsel %vm1258, %v1248, 0.0
      %v1263 = vsel %vm1259, %v1247, 0.0
      %v1264 = vsel %vm1260, %v1246, 0.0
      %s1265 = scalar_lea.vmem %s1, 64
      %v1266 = vld [vmem:[%s1265] sm:$0xf]
      %v1267 = vld [vmem:[%s1265 + $0x4] sm:$0xf]
      %v1268 = vpack.c.bf16 %v1261, %v1261
      %v1269 = vpack.c.bf16 %v1262, %v1262
      %v1270 = vpack.c.bf16 %v1263, %v1263
      %v1271 = vpack.c.bf16 %v1264, %v1264
      %v1274 = vunpack.c.l.b16 %v1266
      %v1275 = vunpack.c.l.b16 %v1267
      %v1276 = vpack.c.b16 %v1275, %v1274
      %v1278 = vsel %vm372, %v1276, 0
      %v1281 = vsel %vm376, %v1268, 0
      %v1284 = vsel %vm376, %v1269, 0
      %v1287 = vsel %vm376, %v1270, 0
      %v1290 = vsel %vm376, %v1271, 0
      %1292 = vmatpush.bf16.msra.mxu0 0
      %1293 = vmatpush.bf16.msra.mxu0 0
      %1294 = vmatpush.bf16.msra.mxu0 0
      %1295 = vmatpush.bf16.msra.mxu0 0
      %1296 = vmatpush.bf16.msra.mxu0 0
      %1297 = vmatpush.bf16.msra.mxu0 0
      %1298 = vmatpush.bf16.msra.mxu0 0
      %1299 = vmatpush.bf16.msra.mxu0 %v1281
      %1300 = vmatmul.bf16.gmra.mxu0 %v1278
      %v1301 = vpop.f32.mrf.mxu0
      %v1302 = vadd.f32 0.0, %v1301
      %v1303 = vpop.f32.mrf.mxu0
      %v1304 = vadd.f32 0.0, %v1303
      %1305 = vdwg.mxu0
      %1306 = vmatpush.bf16.msra.mxu0 0
      %1307 = vmatpush.bf16.msra.mxu0 0
      %1308 = vmatpush.bf16.msra.mxu0 0
      %1309 = vmatpush.bf16.msra.mxu0 0
      %1310 = vmatpush.bf16.msra.mxu0 0
      %1311 = vmatpush.bf16.msra.mxu0 0
      %1312 = vmatpush.bf16.msra.mxu0 0
      %1313 = vmatpush.bf16.msra.mxu0 %v1284
      %1314 = vmatmul.bf16.gmra.mxu0 %v1278
      %v1315 = vpop.f32.mrf.mxu0
      %v1316 = vadd.f32 0.0, %v1315
      %v1317 = vpop.f32.mrf.mxu0
      %v1318 = vadd.f32 0.0, %v1317
      %1319 = vdwg.mxu0
      %1320 = vmatpush.bf16.msra.mxu0 0
      %1321 = vmatpush.bf16.msra.mxu0 0
      %1322 = vmatpush.bf16.msra.mxu0 0
      %1323 = vmatpush.bf16.msra.mxu0 0
      %1324 = vmatpush.bf16.msra.mxu0 0
      %1325 = vmatpush.bf16.msra.mxu0 0
      %1326 = vmatpush.bf16.msra.mxu0 0
      %1327 = vmatpush.bf16.msra.mxu0 %v1287
      %1328 = vmatmul.bf16.gmra.mxu0 %v1278
      %v1329 = vpop.f32.mrf.mxu0
      %v1330 = vadd.f32 0.0, %v1329
      %v1331 = vpop.f32.mrf.mxu0
      %v1332 = vadd.f32 0.0, %v1331
      %1333 = vdwg.mxu0
      %1334 = vmatpush.bf16.msra.mxu0 0
      %1335 = vmatpush.bf16.msra.mxu0 0
      %1336 = vmatpush.bf16.msra.mxu0 0
      %1337 = vmatpush.bf16.msra.mxu0 0
      %1338 = vmatpush.bf16.msra.mxu0 0
      %1339 = vmatpush.bf16.msra.mxu0 0
      %1340 = vmatpush.bf16.msra.mxu0 0
      %1341 = vmatpush.bf16.msra.mxu0 %v1290
      %1342 = vmatmul.bf16.gmra.mxu0 %v1278
      %v1343 = vpop.f32.mrf.mxu0
      %v1344 = vadd.f32 0.0, %v1343
      %v1345 = vpop.f32.mrf.mxu0
      %v1346 = vadd.f32 0.0, %v1345
      %1347 = vdwg.mxu0
      %v1348 = vadd.f32 %v1229, %v1302
      %v1349 = vadd.f32 %v1230, %v1316
      %v1350 = vadd.f32 %v1231, %v1330
      %v1351 = vadd.f32 %v1232, %v1344
      %v1352 = vadd.f32 %v1233, %v1304
      %v1353 = vadd.f32 %v1234, %v1318
      %v1354 = vadd.f32 %v1235, %v1332
      %v1355 = vadd.f32 %v1236, %v1346
      %1356 = vrot.lane.b32.xlu0 %v282, 9
      %v1357 = vpop.permute.xlu0 %1356
      %1358 = vrot.lane.b32.xlu0 %v283, 9
      %v1359 = vpop.permute.xlu0 %1358
      %1360 = vrot.lane.b32.xlu0 %v284, 9
      %v1361 = vpop.permute.xlu0 %1360
      %1362 = vrot.lane.b32.xlu0 %v285, 9
      %v1363 = vpop.permute.xlu0 %1362
      %vm1364 = vcmp.lt.s32.totalorder %v298, 9
      %v1365 = vsel %vm1364, %v1361, %v1363
      %v1366 = vsel %vm1364, %v1359, %v1361
      %v1367 = vsel %vm1364, %v1357, %v1359
      %v1368 = vsel %vm1364, %v1363, %v1357
      %vm1369 = vmand %vm306, %vm307
      %vm1370 = vmand %vm1369, %vm308
      %vm1371 = vmand %vm1370, %vm309
      %v1372 = vsel %vm1371, 1, 0
      %v1373 = vperm.slane %v1372, 0
      %v1374 = vperm.slane %v1372, 1
      %v1375 = vperm.slane %v1372, 2
      %v1376 = vperm.slane %v1372, 3
      %vm1377 = vcmp.eq.s32.totalorder %v1373, 1
      %vm1378 = vcmp.eq.s32.totalorder %v1374, 1
      %vm1379 = vcmp.eq.s32.totalorder %v1375, 1
      %vm1380 = vcmp.eq.s32.totalorder %v1376, 1
      %v1381 = vsel %vm1377, %v1368, 0.0
      %v1382 = vsel %vm1378, %v1367, 0.0
      %v1383 = vsel %vm1379, %v1366, 0.0
      %v1384 = vsel %vm1380, %v1365, 0.0
      %s1385 = scalar_lea.vmem %s1, 72
      %v1386 = vld [vmem:[%s1385] sm:$0xf]
      %v1387 = vld [vmem:[%s1385 + $0x4] sm:$0xf]
      %v1388 = vpack.c.bf16 %v1381, %v1381
      %v1389 = vpack.c.bf16 %v1382, %v1382
      %v1390 = vpack.c.bf16 %v1383, %v1383
      %v1391 = vpack.c.bf16 %v1384, %v1384
      %v1394 = vunpack.c.l.b16 %v1386
      %v1395 = vunpack.c.l.b16 %v1387
      %v1396 = vpack.c.b16 %v1395, %v1394
      %v1398 = vsel %vm372, %v1396, 0
      %v1401 = vsel %vm376, %v1388, 0
      %v1404 = vsel %vm376, %v1389, 0
      %v1407 = vsel %vm376, %v1390, 0
      %v1410 = vsel %vm376, %v1391, 0
      %1412 = vmatpush.bf16.msra.mxu0 0
      %1413 = vmatpush.bf16.msra.mxu0 0
      %1414 = vmatpush.bf16.msra.mxu0 0
      %1415 = vmatpush.bf16.msra.mxu0 0
      %1416 = vmatpush.bf16.msra.mxu0 0
      %1417 = vmatpush.bf16.msra.mxu0 0
      %1418 = vmatpush.bf16.msra.mxu0 0
      %1419 = vmatpush.bf16.msra.mxu0 %v1401
      %1420 = vmatmul.bf16.gmra.mxu0 %v1398
      %v1421 = vpop.f32.mrf.mxu0
      %v1422 = vadd.f32 0.0, %v1421
      %v1423 = vpop.f32.mrf.mxu0
      %v1424 = vadd.f32 0.0, %v1423
      %1425 = vdwg.mxu0
      %1426 = vmatpush.bf16.msra.mxu0 0
      %1427 = vmatpush.bf16.msra.mxu0 0
      %1428 = vmatpush.bf16.msra.mxu0 0
      %1429 = vmatpush.bf16.msra.mxu0 0
      %1430 = vmatpush.bf16.msra.mxu0 0
      %1431 = vmatpush.bf16.msra.mxu0 0
      %1432 = vmatpush.bf16.msra.mxu0 0
      %1433 = vmatpush.bf16.msra.mxu0 %v1404
      %1434 = vmatmul.bf16.gmra.mxu0 %v1398
      %v1435 = vpop.f32.mrf.mxu0
      %v1436 = vadd.f32 0.0, %v1435
      %v1437 = vpop.f32.mrf.mxu0
      %v1438 = vadd.f32 0.0, %v1437
      %1439 = vdwg.mxu0
      %1440 = vmatpush.bf16.msra.mxu0 0
      %1441 = vmatpush.bf16.msra.mxu0 0
      %1442 = vmatpush.bf16.msra.mxu0 0
      %1443 = vmatpush.bf16.msra.mxu0 0
      %1444 = vmatpush.bf16.msra.mxu0 0
      %1445 = vmatpush.bf16.msra.mxu0 0
      %1446 = vmatpush.bf16.msra.mxu0 0
      %1447 = vmatpush.bf16.msra.mxu0 %v1407
      %1448 = vmatmul.bf16.gmra.mxu0 %v1398
      %v1449 = vpop.f32.mrf.mxu0
      %v1450 = vadd.f32 0.0, %v1449
      %v1451 = vpop.f32.mrf.mxu0
      %v1452 = vadd.f32 0.0, %v1451
      %1453 = vdwg.mxu0
      %1454 = vmatpush.bf16.msra.mxu0 0
      %1455 = vmatpush.bf16.msra.mxu0 0
      %1456 = vmatpush.bf16.msra.mxu0 0
      %1457 = vmatpush.bf16.msra.mxu0 0
      %1458 = vmatpush.bf16.msra.mxu0 0
      %1459 = vmatpush.bf16.msra.mxu0 0
      %1460 = vmatpush.bf16.msra.mxu0 0
      %1461 = vmatpush.bf16.msra.mxu0 %v1410
      %1462 = vmatmul.bf16.gmra.mxu0 %v1398
      %v1463 = vpop.f32.mrf.mxu0
      %v1464 = vadd.f32 0.0, %v1463
      %v1465 = vpop.f32.mrf.mxu0
      %v1466 = vadd.f32 0.0, %v1465
      %1467 = vdwg.mxu0
      %v1468 = vadd.f32 %v1348, %v1422
      %v1469 = vadd.f32 %v1349, %v1436
      %v1470 = vadd.f32 %v1350, %v1450
      %v1471 = vadd.f32 %v1351, %v1464
      %v1472 = vadd.f32 %v1352, %v1424
      %v1473 = vadd.f32 %v1353, %v1438
      %v1474 = vadd.f32 %v1354, %v1452
      %v1475 = vadd.f32 %v1355, %v1466
      %1476 = vrot.lane.b32.xlu0 %v282, 8
      %v1477 = vpop.permute.xlu0 %1476
      %1478 = vrot.lane.b32.xlu0 %v283, 8
      %v1479 = vpop.permute.xlu0 %1478
      %1480 = vrot.lane.b32.xlu0 %v284, 8
      %v1481 = vpop.permute.xlu0 %1480
      %1482 = vrot.lane.b32.xlu0 %v285, 8
      %v1483 = vpop.permute.xlu0 %1482
      %vm1484 = vcmp.lt.s32.totalorder %v298, 8
      %v1485 = vsel %vm1484, %v1481, %v1483
      %v1486 = vsel %vm1484, %v1479, %v1481
      %v1487 = vsel %vm1484, %v1477, %v1479
      %v1488 = vsel %vm1484, %v1483, %v1477
      %v1489 = vsel %vm1369, 1, 0
      %v1490 = vperm.slane %v1489, 0
      %v1491 = vperm.slane %v1489, 1
      %v1492 = vperm.slane %v1489, 2
      %v1493 = vperm.slane %v1489, 3
      %vm1494 = vcmp.eq.s32.totalorder %v1490, 1
      %vm1495 = vcmp.eq.s32.totalorder %v1491, 1
      %vm1496 = vcmp.eq.s32.totalorder %v1492, 1
      %vm1497 = vcmp.eq.s32.totalorder %v1493, 1
      %v1498 = vsel %vm1494, %v1488, 0.0
      %v1499 = vsel %vm1495, %v1487, 0.0
      %v1500 = vsel %vm1496, %v1486, 0.0
      %v1501 = vsel %vm1497, %v1485, 0.0
      %s1502 = scalar_lea.vmem %s1, 80
      %v1503 = vld [vmem:[%s1502] sm:$0xf]
      %v1504 = vld [vmem:[%s1502 + $0x4] sm:$0xf]
      %v1505 = vpack.c.bf16 %v1498, %v1498
      %v1506 = vpack.c.bf16 %v1499, %v1499
      %v1507 = vpack.c.bf16 %v1500, %v1500
      %v1508 = vpack.c.bf16 %v1501, %v1501
      %v1511 = vunpack.c.l.b16 %v1503
      %v1512 = vunpack.c.l.b16 %v1504
      %v1513 = vpack.c.b16 %v1512, %v1511
      %v1515 = vsel %vm372, %v1513, 0
      %v1518 = vsel %vm376, %v1505, 0
      %v1521 = vsel %vm376, %v1506, 0
      %v1524 = vsel %vm376, %v1507, 0
      %v1527 = vsel %vm376, %v1508, 0
      %1529 = vmatpush.bf16.msra.mxu0 0
      %1530 = vmatpush.bf16.msra.mxu0 0
      %1531 = vmatpush.bf16.msra.mxu0 0
      %1532 = vmatpush.bf16.msra.mxu0 0
      %1533 = vmatpush.bf16.msra.mxu0 0
      %1534 = vmatpush.bf16.msra.mxu0 0
      %1535 = vmatpush.bf16.msra.mxu0 0
      %1536 = vmatpush.bf16.msra.mxu0 %v1518
      %1537 = vmatmul.bf16.gmra.mxu0 %v1515
      %v1538 = vpop.f32.mrf.mxu0
      %v1539 = vadd.f32 0.0, %v1538
      %v1540 = vpop.f32.mrf.mxu0
      %v1541 = vadd.f32 0.0, %v1540
      %1542 = vdwg.mxu0
      %1543 = vmatpush.bf16.msra.mxu0 0
      %1544 = vmatpush.bf16.msra.mxu0 0
      %1545 = vmatpush.bf16.msra.mxu0 0
      %1546 = vmatpush.bf16.msra.mxu0 0
      %1547 = vmatpush.bf16.msra.mxu0 0
      %1548 = vmatpush.bf16.msra.mxu0 0
      %1549 = vmatpush.bf16.msra.mxu0 0
      %1550 = vmatpush.bf16.msra.mxu0 %v1521
      %1551 = vmatmul.bf16.gmra.mxu0 %v1515
      %v1552 = vpop.f32.mrf.mxu0
      %v1553 = vadd.f32 0.0, %v1552
      %v1554 = vpop.f32.mrf.mxu0
      %v1555 = vadd.f32 0.0, %v1554
      %1556 = vdwg.mxu0
      %1557 = vmatpush.bf16.msra.mxu0 0
      %1558 = vmatpush.bf16.msra.mxu0 0
      %1559 = vmatpush.bf16.msra.mxu0 0
      %1560 = vmatpush.bf16.msra.mxu0 0
      %1561 = vmatpush.bf16.msra.mxu0 0
      %1562 = vmatpush.bf16.msra.mxu0 0
      %1563 = vmatpush.bf16.msra.mxu0 0
      %1564 = vmatpush.bf16.msra.mxu0 %v1524
      %1565 = vmatmul.bf16.gmra.mxu0 %v1515
      %v1566 = vpop.f32.mrf.mxu0
      %v1567 = vadd.f32 0.0, %v1566
      %v1568 = vpop.f32.mrf.mxu0
      %v1569 = vadd.f32 0.0, %v1568
      %1570 = vdwg.mxu0
      %1571 = vmatpush.bf16.msra.mxu0 0
      %1572 = vmatpush.bf16.msra.mxu0 0
      %1573 = vmatpush.bf16.msra.mxu0 0
      %1574 = vmatpush.bf16.msra.mxu0 0
      %1575 = vmatpush.bf16.msra.mxu0 0
      %1576 = vmatpush.bf16.msra.mxu0 0
      %1577 = vmatpush.bf16.msra.mxu0 0
      %1578 = vmatpush.bf16.msra.mxu0 %v1527
      %1579 = vmatmul.bf16.gmra.mxu0 %v1515
      %v1580 = vpop.f32.mrf.mxu0
      %v1581 = vadd.f32 0.0, %v1580
      %v1582 = vpop.f32.mrf.mxu0
      %v1583 = vadd.f32 0.0, %v1582
      %1584 = vdwg.mxu0
      %v1585 = vadd.f32 %v1468, %v1539
      %v1586 = vadd.f32 %v1469, %v1553
      %v1587 = vadd.f32 %v1470, %v1567
      %v1588 = vadd.f32 %v1471, %v1581
      %v1589 = vadd.f32 %v1472, %v1541
      %v1590 = vadd.f32 %v1473, %v1555
      %v1591 = vadd.f32 %v1474, %v1569
      %v1592 = vadd.f32 %v1475, %v1583
      %1593 = vrot.lane.b32.xlu0 %v282, 7
      %v1594 = vpop.permute.xlu0 %1593
      %1595 = vrot.lane.b32.xlu0 %v283, 7
      %v1596 = vpop.permute.xlu0 %1595
      %1597 = vrot.lane.b32.xlu0 %v284, 7
      %v1598 = vpop.permute.xlu0 %1597
      %1599 = vrot.lane.b32.xlu0 %v285, 7
      %v1600 = vpop.permute.xlu0 %1599
      %vm1601 = vcmp.lt.s32.totalorder %v298, 7
      %v1602 = vsel %vm1601, %v1598, %v1600
      %v1603 = vsel %vm1601, %v1596, %v1598
      %v1604 = vsel %vm1601, %v1594, %v1596
      %v1605 = vsel %vm1601, %v1600, %v1594
      %vm1606 = vmand %vm1369, %vm534
      %vm1607 = vmand %vm1606, %vm535
      %v1608 = vsel %vm1607, 1, 0
      %v1609 = vperm.slane %v1608, 0
      %v1610 = vperm.slane %v1608, 1
      %v1611 = vperm.slane %v1608, 2
      %v1612 = vperm.slane %v1608, 3
      %vm1613 = vcmp.eq.s32.totalorder %v1609, 1
      %vm1614 = vcmp.eq.s32.totalorder %v1610, 1
      %vm1615 = vcmp.eq.s32.totalorder %v1611, 1
      %vm1616 = vcmp.eq.s32.totalorder %v1612, 1
      %v1617 = vsel %vm1613, %v1605, 0.0
      %v1618 = vsel %vm1614, %v1604, 0.0
      %v1619 = vsel %vm1615, %v1603, 0.0
      %v1620 = vsel %vm1616, %v1602, 0.0
      %s1621 = scalar_lea.vmem %s1, 88
      %v1622 = vld [vmem:[%s1621] sm:$0xf]
      %v1623 = vld [vmem:[%s1621 + $0x4] sm:$0xf]
      %v1624 = vpack.c.bf16 %v1617, %v1617
      %v1625 = vpack.c.bf16 %v1618, %v1618
      %v1626 = vpack.c.bf16 %v1619, %v1619
      %v1627 = vpack.c.bf16 %v1620, %v1620
      %v1630 = vunpack.c.l.b16 %v1622
      %v1631 = vunpack.c.l.b16 %v1623
      %v1632 = vpack.c.b16 %v1631, %v1630
      %v1634 = vsel %vm372, %v1632, 0
      %v1637 = vsel %vm376, %v1624, 0
      %v1640 = vsel %vm376, %v1625, 0
      %v1643 = vsel %vm376, %v1626, 0
      %v1646 = vsel %vm376, %v1627, 0
      %1648 = vmatpush.bf16.msra.mxu0 0
      %1649 = vmatpush.bf16.msra.mxu0 0
      %1650 = vmatpush.bf16.msra.mxu0 0
      %1651 = vmatpush.bf16.msra.mxu0 0
      %1652 = vmatpush.bf16.msra.mxu0 0
      %1653 = vmatpush.bf16.msra.mxu0 0
      %1654 = vmatpush.bf16.msra.mxu0 0
      %1655 = vmatpush.bf16.msra.mxu0 %v1637
      %1656 = vmatmul.bf16.gmra.mxu0 %v1634
      %v1657 = vpop.f32.mrf.mxu0
      %v1658 = vadd.f32 0.0, %v1657
      %v1659 = vpop.f32.mrf.mxu0
      %v1660 = vadd.f32 0.0, %v1659
      %1661 = vdwg.mxu0
      %1662 = vmatpush.bf16.msra.mxu0 0
      %1663 = vmatpush.bf16.msra.mxu0 0
      %1664 = vmatpush.bf16.msra.mxu0 0
      %1665 = vmatpush.bf16.msra.mxu0 0
      %1666 = vmatpush.bf16.msra.mxu0 0
      %1667 = vmatpush.bf16.msra.mxu0 0
      %1668 = vmatpush.bf16.msra.mxu0 0
      %1669 = vmatpush.bf16.msra.mxu0 %v1640
      %1670 = vmatmul.bf16.gmra.mxu0 %v1634
      %v1671 = vpop.f32.mrf.mxu0
      %v1672 = vadd.f32 0.0, %v1671
      %v1673 = vpop.f32.mrf.mxu0
      %v1674 = vadd.f32 0.0, %v1673
      %1675 = vdwg.mxu0
      %1676 = vmatpush.bf16.msra.mxu0 0
      %1677 = vmatpush.bf16.msra.mxu0 0
      %1678 = vmatpush.bf16.msra.mxu0 0
      %1679 = vmatpush.bf16.msra.mxu0 0
      %1680 = vmatpush.bf16.msra.mxu0 0
      %1681 = vmatpush.bf16.msra.mxu0 0
      %1682 = vmatpush.bf16.msra.mxu0 0
      %1683 = vmatpush.bf16.msra.mxu0 %v1643
      %1684 = vmatmul.bf16.gmra.mxu0 %v1634
      %v1685 = vpop.f32.mrf.mxu0
      %v1686 = vadd.f32 0.0, %v1685
      %v1687 = vpop.f32.mrf.mxu0
      %v1688 = vadd.f32 0.0, %v1687
      %1689 = vdwg.mxu0
      %1690 = vmatpush.bf16.msra.mxu0 0
      %1691 = vmatpush.bf16.msra.mxu0 0
      %1692 = vmatpush.bf16.msra.mxu0 0
      %1693 = vmatpush.bf16.msra.mxu0 0
      %1694 = vmatpush.bf16.msra.mxu0 0
      %1695 = vmatpush.bf16.msra.mxu0 0
      %1696 = vmatpush.bf16.msra.mxu0 0
      %1697 = vmatpush.bf16.msra.mxu0 %v1646
      %1698 = vmatmul.bf16.gmra.mxu0 %v1634
      %v1699 = vpop.f32.mrf.mxu0
      %v1700 = vadd.f32 0.0, %v1699
      %v1701 = vpop.f32.mrf.mxu0
      %v1702 = vadd.f32 0.0, %v1701
      %1703 = vdwg.mxu0
      %v1704 = vadd.f32 %v1585, %v1658
      %v1705 = vadd.f32 %v1586, %v1672
      %v1706 = vadd.f32 %v1587, %v1686
      %v1707 = vadd.f32 %v1588, %v1700
      %v1708 = vadd.f32 %v1589, %v1660
      %v1709 = vadd.f32 %v1590, %v1674
      %v1710 = vadd.f32 %v1591, %v1688
      %v1711 = vadd.f32 %v1592, %v1702
      %1712 = vrot.lane.b32.xlu0 %v282, 1
      %v1713 = vpop.permute.xlu0 %1712
      %1714 = vrot.lane.b32.xlu0 %v283, 1
      %v1715 = vpop.permute.xlu0 %1714
      %1716 = vrot.lane.b32.xlu0 %v284, 1
      %v1717 = vpop.permute.xlu0 %1716
      %1718 = vrot.lane.b32.xlu0 %v285, 1
      %v1719 = vpop.permute.xlu0 %1718
      %vm1720 = vcmp.lt.s32.totalorder %v298, 1
      %v1721 = vsel %vm1720, %v1717, %v1719
      %v1722 = vsel %vm1720, %v1715, %v1717
      %v1723 = vsel %vm1720, %v1713, %v1715
      %v1724 = vsel %vm1720, %v1719, %v1713
      %vm1725 = vmand %vm308, %vm309
      %v1726 = vsel %vm1725, 1, 0
      %v1727 = vperm.slane %v1726, 0
      %v1728 = vperm.slane %v1726, 1
      %v1729 = vperm.slane %v1726, 2
      %v1730 = vperm.slane %v1726, 3
      %vm1731 = vcmp.eq.s32.totalorder %v1727, 1
      %vm1732 = vcmp.eq.s32.totalorder %v1728, 1
      %vm1733 = vcmp.eq.s32.totalorder %v1729, 1
      %vm1734 = vcmp.eq.s32.totalorder %v1730, 1
      %v1735 = vsel %vm1731, %v1724, 0.0
      %v1736 = vsel %vm1732, %v1723, 0.0
      %v1737 = vsel %vm1733, %v1722, 0.0
      %v1738 = vsel %vm1734, %v1721, 0.0
      %s1739 = scalar_lea.vmem %s1, 96
      %v1740 = vld [vmem:[%s1739] sm:$0xf]
      %v1741 = vld [vmem:[%s1739 + $0x4] sm:$0xf]
      %v1742 = vpack.c.bf16 %v1735, %v1735
      %v1743 = vpack.c.bf16 %v1736, %v1736
      %v1744 = vpack.c.bf16 %v1737, %v1737
      %v1745 = vpack.c.bf16 %v1738, %v1738
      %v1748 = vunpack.c.l.b16 %v1740
      %v1749 = vunpack.c.l.b16 %v1741
      %v1750 = vpack.c.b16 %v1749, %v1748
      %v1752 = vsel %vm372, %v1750, 0
      %v1755 = vsel %vm376, %v1742, 0
      %v1758 = vsel %vm376, %v1743, 0
      %v1761 = vsel %vm376, %v1744, 0
      %v1764 = vsel %vm376, %v1745, 0
      %1766 = vmatpush.bf16.msra.mxu0 0
      %1767 = vmatpush.bf16.msra.mxu0 0
      %1768 = vmatpush.bf16.msra.mxu0 0
      %1769 = vmatpush.bf16.msra.mxu0 0
      %1770 = vmatpush.bf16.msra.mxu0 0
      %1771 = vmatpush.bf16.msra.mxu0 0
      %1772 = vmatpush.bf16.msra.mxu0 0
      %1773 = vmatpush.bf16.msra.mxu0 %v1755
      %1774 = vmatmul.bf16.gmra.mxu0 %v1752
      %v1775 = vpop.f32.mrf.mxu0
      %v1776 = vadd.f32 0.0, %v1775
      %v1777 = vpop.f32.mrf.mxu0
      %v1778 = vadd.f32 0.0, %v1777
      %1779 = vdwg.mxu0
      %1780 = vmatpush.bf16.msra.mxu0 0
      %1781 = vmatpush.bf16.msra.mxu0 0
      %1782 = vmatpush.bf16.msra.mxu0 0
      %1783 = vmatpush.bf16.msra.mxu0 0
      %1784 = vmatpush.bf16.msra.mxu0 0
      %1785 = vmatpush.bf16.msra.mxu0 0
      %1786 = vmatpush.bf16.msra.mxu0 0
      %1787 = vmatpush.bf16.msra.mxu0 %v1758
      %1788 = vmatmul.bf16.gmra.mxu0 %v1752
      %v1789 = vpop.f32.mrf.mxu0
      %v1790 = vadd.f32 0.0, %v1789
      %v1791 = vpop.f32.mrf.mxu0
      %v1792 = vadd.f32 0.0, %v1791
      %1793 = vdwg.mxu0
      %1794 = vmatpush.bf16.msra.mxu0 0
      %1795 = vmatpush.bf16.msra.mxu0 0
      %1796 = vmatpush.bf16.msra.mxu0 0
      %1797 = vmatpush.bf16.msra.mxu0 0
      %1798 = vmatpush.bf16.msra.mxu0 0
      %1799 = vmatpush.bf16.msra.mxu0 0
      %1800 = vmatpush.bf16.msra.mxu0 0
      %1801 = vmatpush.bf16.msra.mxu0 %v1761
      %1802 = vmatmul.bf16.gmra.mxu0 %v1752
      %v1803 = vpop.f32.mrf.mxu0
      %v1804 = vadd.f32 0.0, %v1803
      %v1805 = vpop.f32.mrf.mxu0
      %v1806 = vadd.f32 0.0, %v1805
      %1807 = vdwg.mxu0
      %1808 = vmatpush.bf16.msra.mxu0 0
      %1809 = vmatpush.bf16.msra.mxu0 0
      %1810 = vmatpush.bf16.msra.mxu0 0
      %1811 = vmatpush.bf16.msra.mxu0 0
      %1812 = vmatpush.bf16.msra.mxu0 0
      %1813 = vmatpush.bf16.msra.mxu0 0
      %1814 = vmatpush.bf16.msra.mxu0 0
      %1815 = vmatpush.bf16.msra.mxu0 %v1764
      %1816 = vmatmul.bf16.gmra.mxu0 %v1752
      %v1817 = vpop.f32.mrf.mxu0
      %v1818 = vadd.f32 0.0, %v1817
      %v1819 = vpop.f32.mrf.mxu0
      %v1820 = vadd.f32 0.0, %v1819
      %1821 = vdwg.mxu0
      %v1822 = vadd.f32 %v1704, %v1776
      %v1823 = vadd.f32 %v1705, %v1790
      %v1824 = vadd.f32 %v1706, %v1804
      %v1825 = vadd.f32 %v1707, %v1818
      %v1826 = vadd.f32 %v1708, %v1778
      %v1827 = vadd.f32 %v1709, %v1792
      %v1828 = vadd.f32 %v1710, %v1806
      %v1829 = vadd.f32 %v1711, %v1820
      %s1830 = scalar_lea.vmem %s1, 104
      %v1831 = vld [vmem:[%s1830] sm:$0xf]
      %v1832 = vld [vmem:[%s1830 + $0x4] sm:$0xf]
      %v1835 = vunpack.c.l.b16 %v1831
      %v1836 = vunpack.c.l.b16 %v1832
      %v1837 = vpack.c.b16 %v1836, %v1835
      %v1840 = vunpack.c.l.b16 %v280
      %v1841 = vunpack.c.h.b16 %v280
      %v1842 = vunpack.c.l.b16 %v281
      %v1843 = vunpack.c.h.b16 %v281
      %v1844 = vpack.c.b16 %v1840, %v1840
      %v1845 = vpack.c.b16 %v1841, %v1841
      %v1846 = vpack.c.b16 %v1842, %v1842
      %v1847 = vpack.c.b16 %v1843, %v1843
      %v1849 = vsel %vm372, %v1837, 0
      %v1852 = vsel %vm376, %v1844, 0
      %v1855 = vsel %vm376, %v1845, 0
      %v1858 = vsel %vm376, %v1846, 0
      %v1861 = vsel %vm376, %v1847, 0
      %1863 = vmatpush.bf16.msra.mxu0 0
      %1864 = vmatpush.bf16.msra.mxu0 0
      %1865 = vmatpush.bf16.msra.mxu0 0
      %1866 = vmatpush.bf16.msra.mxu0 0
      %1867 = vmatpush.bf16.msra.mxu0 0
      %1868 = vmatpush.bf16.msra.mxu0 0
      %1869 = vmatpush.bf16.msra.mxu0 0
      %1870 = vmatpush.bf16.msra.mxu0 %v1852
      %1871 = vmatmul.bf16.gmra.mxu0 %v1849
      %v1872 = vpop.f32.mrf.mxu0
      %v1873 = vadd.f32 0.0, %v1872
      %v1874 = vpop.f32.mrf.mxu0
      %v1875 = vadd.f32 0.0, %v1874
      %1876 = vdwg.mxu0
      %1877 = vmatpush.bf16.msra.mxu0 0
      %1878 = vmatpush.bf16.msra.mxu0 0
      %1879 = vmatpush.bf16.msra.mxu0 0
      %1880 = vmatpush.bf16.msra.mxu0 0
      %1881 = vmatpush.bf16.msra.mxu0 0
      %1882 = vmatpush.bf16.msra.mxu0 0
      %1883 = vmatpush.bf16.msra.mxu0 0
      %1884 = vmatpush.bf16.msra.mxu0 %v1855
      %1885 = vmatmul.bf16.gmra.mxu0 %v1849
      %v1886 = vpop.f32.mrf.mxu0
      %v1887 = vadd.f32 0.0, %v1886
      %v1888 = vpop.f32.mrf.mxu0
      %v1889 = vadd.f32 0.0, %v1888
      %1890 = vdwg.mxu0
      %1891 = vmatpush.bf16.msra.mxu0 0
      %1892 = vmatpush.bf16.msra.mxu0 0
      %1893 = vmatpush.bf16.msra.mxu0 0
      %1894 = vmatpush.bf16.msra.mxu0 0
      %1895 = vmatpush.bf16.msra.mxu0 0
      %1896 = vmatpush.bf16.msra.mxu0 0
      %1897 = vmatpush.bf16.msra.mxu0 0
      %1898 = vmatpush.bf16.msra.mxu0 %v1858
      %1899 = vmatmul.bf16.gmra.mxu0 %v1849
      %v1900 = vpop.f32.mrf.mxu0
      %v1901 = vadd.f32 0.0, %v1900
      %v1902 = vpop.f32.mrf.mxu0
      %v1903 = vadd.f32 0.0, %v1902
      %1904 = vdwg.mxu0
      %1905 = vmatpush.bf16.msra.mxu0 0
      %1906 = vmatpush.bf16.msra.mxu0 0
      %1907 = vmatpush.bf16.msra.mxu0 0
      %1908 = vmatpush.bf16.msra.mxu0 0
      %1909 = vmatpush.bf16.msra.mxu0 0
      %1910 = vmatpush.bf16.msra.mxu0 0
      %1911 = vmatpush.bf16.msra.mxu0 0
      %1912 = vmatpush.bf16.msra.mxu0 %v1861
      %1913 = vmatmul.bf16.gmra.mxu0 %v1849
      %v1914 = vpop.f32.mrf.mxu0
      %v1915 = vadd.f32 0.0, %v1914
      %v1916 = vpop.f32.mrf.mxu0
      %v1917 = vadd.f32 0.0, %v1916
      %1918 = vdwg.mxu0
      %v1919 = vadd.f32 %v1822, %v1873
      %v1920 = vadd.f32 %v1823, %v1887
      %v1921 = vadd.f32 %v1824, %v1901
      %v1922 = vadd.f32 %v1825, %v1915
      %v1923 = vadd.f32 %v1826, %v1875
      %v1924 = vadd.f32 %v1827, %v1889
      %v1925 = vadd.f32 %v1828, %v1903
      %v1926 = vadd.f32 %v1829, %v1917
      %1927 = vrot.lane.b32.xlu0 %v282, 127
      %v1928 = vpop.permute.xlu0 %1927
      %1929 = vrot.lane.b32.xlu0 %v283, 127
      %v1930 = vpop.permute.xlu0 %1929
      %1931 = vrot.lane.b32.xlu0 %v284, 127
      %v1932 = vpop.permute.xlu0 %1931
      %1933 = vrot.lane.b32.xlu0 %v285, 127
      %v1934 = vpop.permute.xlu0 %1933
      %vm1935 = vcmp.lt.s32.totalorder %v298, 127
      %v1936 = vsel %vm1935, %v1932, %v1934
      %v1937 = vsel %vm1935, %v1930, %v1932
      %v1938 = vsel %vm1935, %v1928, %v1930
      %v1939 = vsel %vm1935, %v1934, %v1928
      %vm1940 = vmand %vm534, %vm535
      %v1941 = vsel %vm1940, 1, 0
      %v1942 = vperm.slane %v1941, 0
      %v1943 = vperm.slane %v1941, 1
      %v1944 = vperm.slane %v1941, 2
      %v1945 = vperm.slane %v1941, 3
      %vm1946 = vcmp.eq.s32.totalorder %v1942, 1
      %vm1947 = vcmp.eq.s32.totalorder %v1943, 1
      %vm1948 = vcmp.eq.s32.totalorder %v1944, 1
      %vm1949 = vcmp.eq.s32.totalorder %v1945, 1
      %v1950 = vsel %vm1946, %v1938, 0.0
      %v1951 = vsel %vm1947, %v1937, 0.0
      %v1952 = vsel %vm1948, %v1936, 0.0
      %v1953 = vsel %vm1949, %v1939, 0.0
      %s1954 = scalar_lea.vmem %s1, 112
      %v1955 = vld [vmem:[%s1954] sm:$0xf]
      %v1956 = vld [vmem:[%s1954 + $0x4] sm:$0xf]
      %v1957 = vpack.c.bf16 %v1950, %v1950
      %v1958 = vpack.c.bf16 %v1951, %v1951
      %v1959 = vpack.c.bf16 %v1952, %v1952
      %v1960 = vpack.c.bf16 %v1953, %v1953
      %v1963 = vunpack.c.l.b16 %v1955
      %v1964 = vunpack.c.l.b16 %v1956
      %v1965 = vpack.c.b16 %v1964, %v1963
      %v1967 = vsel %vm372, %v1965, 0
      %v1970 = vsel %vm376, %v1957, 0
      %v1973 = vsel %vm376, %v1958, 0
      %v1976 = vsel %vm376, %v1959, 0
      %v1979 = vsel %vm376, %v1960, 0
      %1981 = vmatpush.bf16.msra.mxu0 0
      %1982 = vmatpush.bf16.msra.mxu0 0
      %1983 = vmatpush.bf16.msra.mxu0 0
      %1984 = vmatpush.bf16.msra.mxu0 0
      %1985 = vmatpush.bf16.msra.mxu0 0
      %1986 = vmatpush.bf16.msra.mxu0 0
      %1987 = vmatpush.bf16.msra.mxu0 0
      %1988 = vmatpush.bf16.msra.mxu0 %v1970
      %1989 = vmatmul.bf16.gmra.mxu0 %v1967
      %v1990 = vpop.f32.mrf.mxu0
      %v1991 = vadd.f32 0.0, %v1990
      %v1992 = vpop.f32.mrf.mxu0
      %v1993 = vadd.f32 0.0, %v1992
      %1994 = vdwg.mxu0
      %1995 = vmatpush.bf16.msra.mxu0 0
      %1996 = vmatpush.bf16.msra.mxu0 0
      %1997 = vmatpush.bf16.msra.mxu0 0
      %1998 = vmatpush.bf16.msra.mxu0 0
      %1999 = vmatpush.bf16.msra.mxu0 0
      %2000 = vmatpush.bf16.msra.mxu0 0
      %2001 = vmatpush.bf16.msra.mxu0 0
      %2002 = vmatpush.bf16.msra.mxu0 %v1973
      %2003 = vmatmul.bf16.gmra.mxu0 %v1967
      %v2004 = vpop.f32.mrf.mxu0
      %v2005 = vadd.f32 0.0, %v2004
      %v2006 = vpop.f32.mrf.mxu0
      %v2007 = vadd.f32 0.0, %v2006
      %2008 = vdwg.mxu0
      %2009 = vmatpush.bf16.msra.mxu0 0
      %2010 = vmatpush.bf16.msra.mxu0 0
      %2011 = vmatpush.bf16.msra.mxu0 0
      %2012 = vmatpush.bf16.msra.mxu0 0
      %2013 = vmatpush.bf16.msra.mxu0 0
      %2014 = vmatpush.bf16.msra.mxu0 0
      %2015 = vmatpush.bf16.msra.mxu0 0
      %2016 = vmatpush.bf16.msra.mxu0 %v1976
      %2017 = vmatmul.bf16.gmra.mxu0 %v1967
      %v2018 = vpop.f32.mrf.mxu0
      %v2019 = vadd.f32 0.0, %v2018
      %v2020 = vpop.f32.mrf.mxu0
      %v2021 = vadd.f32 0.0, %v2020
      %2022 = vdwg.mxu0
      %2023 = vmatpush.bf16.msra.mxu0 0
      %2024 = vmatpush.bf16.msra.mxu0 0
      %2025 = vmatpush.bf16.msra.mxu0 0
      %2026 = vmatpush.bf16.msra.mxu0 0
      %2027 = vmatpush.bf16.msra.mxu0 0
      %2028 = vmatpush.bf16.msra.mxu0 0
      %2029 = vmatpush.bf16.msra.mxu0 0
      %2030 = vmatpush.bf16.msra.mxu0 %v1979
      %2031 = vmatmul.bf16.gmra.mxu0 %v1967
      %v2032 = vpop.f32.mrf.mxu0
      %v2033 = vadd.f32 0.0, %v2032
      %v2034 = vpop.f32.mrf.mxu0
      %v2035 = vadd.f32 0.0, %v2034
      %2036 = vdwg.mxu0
      %v2037 = vadd.f32 %v1919, %v1991
      %v2038 = vadd.f32 %v1920, %v2005
      %v2039 = vadd.f32 %v1921, %v2019
      %v2040 = vadd.f32 %v1922, %v2033
      %v2041 = vadd.f32 %v1923, %v1993
      %v2042 = vadd.f32 %v1924, %v2007
      %v2043 = vadd.f32 %v1925, %v2021
      %v2044 = vadd.f32 %v1926, %v2035
      %2045 = vrot.lane.b32.xlu0 %v282, 121
      %v2046 = vpop.permute.xlu0 %2045
      %2047 = vrot.lane.b32.xlu0 %v283, 121
      %v2048 = vpop.permute.xlu0 %2047
      %2049 = vrot.lane.b32.xlu0 %v284, 121
      %v2050 = vpop.permute.xlu0 %2049
      %2051 = vrot.lane.b32.xlu0 %v285, 121
      %v2052 = vpop.permute.xlu0 %2051
      %vm2053 = vcmp.lt.s32.totalorder %v298, 121
      %v2054 = vsel %vm2053, %v2050, %v2052
      %v2055 = vsel %vm2053, %v2048, %v2050
      %v2056 = vsel %vm2053, %v2046, %v2048
      %v2057 = vsel %vm2053, %v2052, %v2046
      %vm2058 = vmand %vm1010, %vm1011
      %vm2059 = vmand %vm2058, %vm308
      %vm2060 = vmand %vm2059, %vm309
      %v2061 = vsel %vm2060, 1, 0
      %v2062 = vperm.slane %v2061, 0
      %v2063 = vperm.slane %v2061, 1
      %v2064 = vperm.slane %v2061, 2
      %v2065 = vperm.slane %v2061, 3
      %vm2066 = vcmp.eq.s32.totalorder %v2062, 1
      %vm2067 = vcmp.eq.s32.totalorder %v2063, 1
      %vm2068 = vcmp.eq.s32.totalorder %v2064, 1
      %vm2069 = vcmp.eq.s32.totalorder %v2065, 1
      %v2070 = vsel %vm2066, %v2056, 0.0
      %v2071 = vsel %vm2067, %v2055, 0.0
      %v2072 = vsel %vm2068, %v2054, 0.0
      %v2073 = vsel %vm2069, %v2057, 0.0
      %s2074 = scalar_lea.vmem %s1, 120
      %v2075 = vld [vmem:[%s2074] sm:$0xf]
      %v2076 = vld [vmem:[%s2074 + $0x4] sm:$0xf]
      %v2077 = vpack.c.bf16 %v2070, %v2070
      %v2078 = vpack.c.bf16 %v2071, %v2071
      %v2079 = vpack.c.bf16 %v2072, %v2072
      %v2080 = vpack.c.bf16 %v2073, %v2073
      %v2083 = vunpack.c.l.b16 %v2075
      %v2084 = vunpack.c.l.b16 %v2076
      %v2085 = vpack.c.b16 %v2084, %v2083
      %v2087 = vsel %vm372, %v2085, 0
      %v2090 = vsel %vm376, %v2077, 0
      %v2093 = vsel %vm376, %v2078, 0
      %v2096 = vsel %vm376, %v2079, 0
      %v2099 = vsel %vm376, %v2080, 0
      %2101 = vmatpush.bf16.msra.mxu0 0
      %2102 = vmatpush.bf16.msra.mxu0 0
      %2103 = vmatpush.bf16.msra.mxu0 0
      %2104 = vmatpush.bf16.msra.mxu0 0
      %2105 = vmatpush.bf16.msra.mxu0 0
      %2106 = vmatpush.bf16.msra.mxu0 0
      %2107 = vmatpush.bf16.msra.mxu0 0
      %2108 = vmatpush.bf16.msra.mxu0 %v2090
      %2109 = vmatmul.bf16.gmra.mxu0 %v2087
      %v2110 = vpop.f32.mrf.mxu0
      %v2111 = vadd.f32 0.0, %v2110
      %v2112 = vpop.f32.mrf.mxu0
      %v2113 = vadd.f32 0.0, %v2112
      %2114 = vdwg.mxu0
      %2115 = vmatpush.bf16.msra.mxu0 0
      %2116 = vmatpush.bf16.msra.mxu0 0
      %2117 = vmatpush.bf16.msra.mxu0 0
      %2118 = vmatpush.bf16.msra.mxu0 0
      %2119 = vmatpush.bf16.msra.mxu0 0
      %2120 = vmatpush.bf16.msra.mxu0 0
      %2121 = vmatpush.bf16.msra.mxu0 0
      %2122 = vmatpush.bf16.msra.mxu0 %v2093
      %2123 = vmatmul.bf16.gmra.mxu0 %v2087
      %v2124 = vpop.f32.mrf.mxu0
      %v2125 = vadd.f32 0.0, %v2124
      %v2126 = vpop.f32.mrf.mxu0
      %v2127 = vadd.f32 0.0, %v2126
      %2128 = vdwg.mxu0
      %2129 = vmatpush.bf16.msra.mxu0 0
      %2130 = vmatpush.bf16.msra.mxu0 0
      %2131 = vmatpush.bf16.msra.mxu0 0
      %2132 = vmatpush.bf16.msra.mxu0 0
      %2133 = vmatpush.bf16.msra.mxu0 0
      %2134 = vmatpush.bf16.msra.mxu0 0
      %2135 = vmatpush.bf16.msra.mxu0 0
      %2136 = vmatpush.bf16.msra.mxu0 %v2096
      %2137 = vmatmul.bf16.gmra.mxu0 %v2087
      %v2138 = vpop.f32.mrf.mxu0
      %v2139 = vadd.f32 0.0, %v2138
      %v2140 = vpop.f32.mrf.mxu0
      %v2141 = vadd.f32 0.0, %v2140
      %2142 = vdwg.mxu0
      %2143 = vmatpush.bf16.msra.mxu0 0
      %2144 = vmatpush.bf16.msra.mxu0 0
      %2145 = vmatpush.bf16.msra.mxu0 0
      %2146 = vmatpush.bf16.msra.mxu0 0
      %2147 = vmatpush.bf16.msra.mxu0 0
      %2148 = vmatpush.bf16.msra.mxu0 0
      %2149 = vmatpush.bf16.msra.mxu0 0
      %2150 = vmatpush.bf16.msra.mxu0 %v2099
      %2151 = vmatmul.bf16.gmra.mxu0 %v2087
      %v2152 = vpop.f32.mrf.mxu0
      %v2153 = vadd.f32 0.0, %v2152
      %v2154 = vpop.f32.mrf.mxu0
      %v2155 = vadd.f32 0.0, %v2154
      %2156 = vdwg.mxu0
      %v2157 = vadd.f32 %v2037, %v2111
      %v2158 = vadd.f32 %v2038, %v2125
      %v2159 = vadd.f32 %v2039, %v2139
      %v2160 = vadd.f32 %v2040, %v2153
      %v2161 = vadd.f32 %v2041, %v2113
      %v2162 = vadd.f32 %v2042, %v2127
      %v2163 = vadd.f32 %v2043, %v2141
      %v2164 = vadd.f32 %v2044, %v2155
      %2165 = vrot.lane.b32.xlu0 %v282, 120
      %v2166 = vpop.permute.xlu0 %2165
      %2167 = vrot.lane.b32.xlu0 %v283, 120
      %v2168 = vpop.permute.xlu0 %2167
      %2169 = vrot.lane.b32.xlu0 %v284, 120
      %v2170 = vpop.permute.xlu0 %2169
      %2171 = vrot.lane.b32.xlu0 %v285, 120
      %v2172 = vpop.permute.xlu0 %2171
      %vm2173 = vcmp.lt.s32.totalorder %v298, 120
      %v2174 = vsel %vm2173, %v2170, %v2172
      %v2175 = vsel %vm2173, %v2168, %v2170
      %v2176 = vsel %vm2173, %v2166, %v2168
      %v2177 = vsel %vm2173, %v2172, %v2166
      %v2178 = vsel %vm2058, 1, 0
      %v2179 = vperm.slane %v2178, 0
      %v2180 = vperm.slane %v2178, 1
      %v2181 = vperm.slane %v2178, 2
      %v2182 = vperm.slane %v2178, 3
      %vm2183 = vcmp.eq.s32.totalorder %v2179, 1
      %vm2184 = vcmp.eq.s32.totalorder %v2180, 1
      %vm2185 = vcmp.eq.s32.totalorder %v2181, 1
      %vm2186 = vcmp.eq.s32.totalorder %v2182, 1
      %v2187 = vsel %vm2183, %v2176, 0.0
      %v2188 = vsel %vm2184, %v2175, 0.0
      %v2189 = vsel %vm2185, %v2174, 0.0
      %v2190 = vsel %vm2186, %v2177, 0.0
      %s2191 = scalar_lea.vmem %s1, 128
      %v2192 = vld [vmem:[%s2191] sm:$0xf]
      %v2193 = vld [vmem:[%s2191 + $0x4] sm:$0xf]
      %v2194 = vpack.c.bf16 %v2187, %v2187
      %v2195 = vpack.c.bf16 %v2188, %v2188
      %v2196 = vpack.c.bf16 %v2189, %v2189
      %v2197 = vpack.c.bf16 %v2190, %v2190
      %v2200 = vunpack.c.l.b16 %v2192
      %v2201 = vunpack.c.l.b16 %v2193
      %v2202 = vpack.c.b16 %v2201, %v2200
      %v2204 = vsel %vm372, %v2202, 0
      %v2207 = vsel %vm376, %v2194, 0
      %v2210 = vsel %vm376, %v2195, 0
      %v2213 = vsel %vm376, %v2196, 0
      %v2216 = vsel %vm376, %v2197, 0
      %2218 = vmatpush.bf16.msra.mxu0 0
      %2219 = vmatpush.bf16.msra.mxu0 0
      %2220 = vmatpush.bf16.msra.mxu0 0
      %2221 = vmatpush.bf16.msra.mxu0 0
      %2222 = vmatpush.bf16.msra.mxu0 0
      %2223 = vmatpush.bf16.msra.mxu0 0
      %2224 = vmatpush.bf16.msra.mxu0 0
      %2225 = vmatpush.bf16.msra.mxu0 %v2207
      %2226 = vmatmul.bf16.gmra.mxu0 %v2204
      %v2227 = vpop.f32.mrf.mxu0
      %v2228 = vadd.f32 0.0, %v2227
      %v2229 = vpop.f32.mrf.mxu0
      %v2230 = vadd.f32 0.0, %v2229
      %2231 = vdwg.mxu0
      %2232 = vmatpush.bf16.msra.mxu0 0
      %2233 = vmatpush.bf16.msra.mxu0 0
      %2234 = vmatpush.bf16.msra.mxu0 0
      %2235 = vmatpush.bf16.msra.mxu0 0
      %2236 = vmatpush.bf16.msra.mxu0 0
      %2237 = vmatpush.bf16.msra.mxu0 0
      %2238 = vmatpush.bf16.msra.mxu0 0
      %2239 = vmatpush.bf16.msra.mxu0 %v2210
      %2240 = vmatmul.bf16.gmra.mxu0 %v2204
      %v2241 = vpop.f32.mrf.mxu0
      %v2242 = vadd.f32 0.0, %v2241
      %v2243 = vpop.f32.mrf.mxu0
      %v2244 = vadd.f32 0.0, %v2243
      %2245 = vdwg.mxu0
      %2246 = vmatpush.bf16.msra.mxu0 0
      %2247 = vmatpush.bf16.msra.mxu0 0
      %2248 = vmatpush.bf16.msra.mxu0 0
      %2249 = vmatpush.bf16.msra.mxu0 0
      %2250 = vmatpush.bf16.msra.mxu0 0
      %2251 = vmatpush.bf16.msra.mxu0 0
      %2252 = vmatpush.bf16.msra.mxu0 0
      %2253 = vmatpush.bf16.msra.mxu0 %v2213
      %2254 = vmatmul.bf16.gmra.mxu0 %v2204
      %v2255 = vpop.f32.mrf.mxu0
      %v2256 = vadd.f32 0.0, %v2255
      %v2257 = vpop.f32.mrf.mxu0
      %v2258 = vadd.f32 0.0, %v2257
      %2259 = vdwg.mxu0
      %2260 = vmatpush.bf16.msra.mxu0 0
      %2261 = vmatpush.bf16.msra.mxu0 0
      %2262 = vmatpush.bf16.msra.mxu0 0
      %2263 = vmatpush.bf16.msra.mxu0 0
      %2264 = vmatpush.bf16.msra.mxu0 0
      %2265 = vmatpush.bf16.msra.mxu0 0
      %2266 = vmatpush.bf16.msra.mxu0 0
      %2267 = vmatpush.bf16.msra.mxu0 %v2216
      %2268 = vmatmul.bf16.gmra.mxu0 %v2204
      %v2269 = vpop.f32.mrf.mxu0
      %v2270 = vadd.f32 0.0, %v2269
      %v2271 = vpop.f32.mrf.mxu0
      %v2272 = vadd.f32 0.0, %v2271
      %2273 = vdwg.mxu0
      %v2274 = vadd.f32 %v2157, %v2228
      %v2275 = vadd.f32 %v2158, %v2242
      %v2276 = vadd.f32 %v2159, %v2256
      %v2277 = vadd.f32 %v2160, %v2270
      %v2278 = vadd.f32 %v2161, %v2230
      %v2279 = vadd.f32 %v2162, %v2244
      %v2280 = vadd.f32 %v2163, %v2258
      %v2281 = vadd.f32 %v2164, %v2272
      %2282 = vrot.lane.b32.xlu0 %v282, 119
      %v2283 = vpop.permute.xlu0 %2282
      %2284 = vrot.lane.b32.xlu0 %v283, 119
      %v2285 = vpop.permute.xlu0 %2284
      %2286 = vrot.lane.b32.xlu0 %v284, 119
      %v2287 = vpop.permute.xlu0 %2286
      %2288 = vrot.lane.b32.xlu0 %v285, 119
      %v2289 = vpop.permute.xlu0 %2288
      %vm2290 = vcmp.lt.s32.totalorder %v298, 119
      %v2291 = vsel %vm2290, %v2287, %v2289
      %v2292 = vsel %vm2290, %v2285, %v2287
      %v2293 = vsel %vm2290, %v2283, %v2285
      %v2294 = vsel %vm2290, %v2289, %v2283
      %vm2295 = vmand %vm2058, %vm534
      %vm2296 = vmand %vm2295, %vm535
      %v2297 = vsel %vm2296, 1, 0
      %v2298 = vperm.slane %v2297, 0
      %v2299 = vperm.slane %v2297, 1
      %v2300 = vperm.slane %v2297, 2
      %v2301 = vperm.slane %v2297, 3
      %vm2302 = vcmp.eq.s32.totalorder %v2298, 1
      %vm2303 = vcmp.eq.s32.totalorder %v2299, 1
      %vm2304 = vcmp.eq.s32.totalorder %v2300, 1
      %vm2305 = vcmp.eq.s32.totalorder %v2301, 1
      %v2306 = vsel %vm2302, %v2293, 0.0
      %v2307 = vsel %vm2303, %v2292, 0.0
      %v2308 = vsel %vm2304, %v2291, 0.0
      %v2309 = vsel %vm2305, %v2294, 0.0
      %s2310 = scalar_lea.vmem %s1, 136
      %v2311 = vld [vmem:[%s2310] sm:$0xf]
      %v2312 = vld [vmem:[%s2310 + $0x4] sm:$0xf]
      %v2313 = vpack.c.bf16 %v2306, %v2306
      %v2314 = vpack.c.bf16 %v2307, %v2307
      %v2315 = vpack.c.bf16 %v2308, %v2308
      %v2316 = vpack.c.bf16 %v2309, %v2309
      %v2319 = vunpack.c.l.b16 %v2311
      %v2320 = vunpack.c.l.b16 %v2312
      %v2321 = vpack.c.b16 %v2320, %v2319
      %v2323 = vsel %vm372, %v2321, 0
      %v2326 = vsel %vm376, %v2313, 0
      %v2329 = vsel %vm376, %v2314, 0
      %v2332 = vsel %vm376, %v2315, 0
      %v2335 = vsel %vm376, %v2316, 0
      %2337 = vmatpush.bf16.msra.mxu0 0
      %2338 = vmatpush.bf16.msra.mxu0 0
      %2339 = vmatpush.bf16.msra.mxu0 0
      %2340 = vmatpush.bf16.msra.mxu0 0
      %2341 = vmatpush.bf16.msra.mxu0 0
      %2342 = vmatpush.bf16.msra.mxu0 0
      %2343 = vmatpush.bf16.msra.mxu0 0
      %2344 = vmatpush.bf16.msra.mxu0 %v2326
      %2345 = vmatmul.bf16.gmra.mxu0 %v2323
      %v2346 = vpop.f32.mrf.mxu0
      %v2347 = vadd.f32 0.0, %v2346
      %v2348 = vpop.f32.mrf.mxu0
      %v2349 = vadd.f32 0.0, %v2348
      %2350 = vdwg.mxu0
      %2351 = vmatpush.bf16.msra.mxu0 0
      %2352 = vmatpush.bf16.msra.mxu0 0
      %2353 = vmatpush.bf16.msra.mxu0 0
      %2354 = vmatpush.bf16.msra.mxu0 0
      %2355 = vmatpush.bf16.msra.mxu0 0
      %2356 = vmatpush.bf16.msra.mxu0 0
      %2357 = vmatpush.bf16.msra.mxu0 0
      %2358 = vmatpush.bf16.msra.mxu0 %v2329
      %2359 = vmatmul.bf16.gmra.mxu0 %v2323
      %v2360 = vpop.f32.mrf.mxu0
      %v2361 = vadd.f32 0.0, %v2360
      %v2362 = vpop.f32.mrf.mxu0
      %v2363 = vadd.f32 0.0, %v2362
      %2364 = vdwg.mxu0
      %2365 = vmatpush.bf16.msra.mxu0 0
      %2366 = vmatpush.bf16.msra.mxu0 0
      %2367 = vmatpush.bf16.msra.mxu0 0
      %2368 = vmatpush.bf16.msra.mxu0 0
      %2369 = vmatpush.bf16.msra.mxu0 0
      %2370 = vmatpush.bf16.msra.mxu0 0
      %2371 = vmatpush.bf16.msra.mxu0 0
      %2372 = vmatpush.bf16.msra.mxu0 %v2332
      %2373 = vmatmul.bf16.gmra.mxu0 %v2323
      %v2374 = vpop.f32.mrf.mxu0
      %v2375 = vadd.f32 0.0, %v2374
      %v2376 = vpop.f32.mrf.mxu0
      %v2377 = vadd.f32 0.0, %v2376
      %2378 = vdwg.mxu0
      %2379 = vmatpush.bf16.msra.mxu0 0
      %2380 = vmatpush.bf16.msra.mxu0 0
      %2381 = vmatpush.bf16.msra.mxu0 0
      %2382 = vmatpush.bf16.msra.mxu0 0
      %2383 = vmatpush.bf16.msra.mxu0 0
      %2384 = vmatpush.bf16.msra.mxu0 0
      %2385 = vmatpush.bf16.msra.mxu0 0
      %2386 = vmatpush.bf16.msra.mxu0 %v2335
      %2387 = vmatmul.bf16.gmra.mxu0 %v2323
      %v2388 = vpop.f32.mrf.mxu0
      %v2389 = vadd.f32 0.0, %v2388
      %v2390 = vpop.f32.mrf.mxu0
      %v2391 = vadd.f32 0.0, %v2390
      %2392 = vdwg.mxu0
      %v2393 = vadd.f32 %v2274, %v2347
      %v2394 = vadd.f32 %v2275, %v2361
      %v2395 = vadd.f32 %v2276, %v2375
      %v2396 = vadd.f32 %v2277, %v2389
      %v2397 = vadd.f32 %v2278, %v2349
      %v2398 = vadd.f32 %v2279, %v2363
      %v2399 = vadd.f32 %v2280, %v2377
      %v2400 = vadd.f32 %v2281, %v2391
      %vm2401 = vcmp.ge.s32.totalorder %v286, 4294967295
      %vm2402 = vcmp.lt.s32.totalorder %v286, 7
      %vm2403 = vmand %vm2401, %vm2402
      %vm2404 = vmand %vm2403, %vm306
      %vm2405 = vmand %vm2404, %vm307
      %vm2406 = vmand %vm2405, %vm308
      %vm2407 = vmand %vm2406, %vm309
      %v2408 = vsel %vm2407, 1, 0
      %v2409 = vperm.slane %v2408, 0
      %v2410 = vperm.slane %v2408, 1
      %v2411 = vperm.slane %v2408, 2
      %v2412 = vperm.slane %v2408, 3
      %vm2413 = vcmp.eq.s32.totalorder %v2409, 1
      %vm2414 = vcmp.eq.s32.totalorder %v2410, 1
      %vm2415 = vcmp.eq.s32.totalorder %v2411, 1
      %vm2416 = vcmp.eq.s32.totalorder %v2412, 1
      %v2417 = vsel %vm2413, %v302, 0.0
      %v2418 = vsel %vm2414, %v301, 0.0
      %v2419 = vsel %vm2415, %v300, 0.0
      %v2420 = vsel %vm2416, %v303, 0.0
      %s2421 = scalar_lea.vmem %s1, 144
      %v2422 = vld [vmem:[%s2421] sm:$0xf]
      %v2423 = vld [vmem:[%s2421 + $0x4] sm:$0xf]
      %v2424 = vpack.c.bf16 %v2417, %v2417
      %v2425 = vpack.c.bf16 %v2418, %v2418
      %v2426 = vpack.c.bf16 %v2419, %v2419
      %v2427 = vpack.c.bf16 %v2420, %v2420
      %v2430 = vunpack.c.l.b16 %v2422
      %v2431 = vunpack.c.l.b16 %v2423
      %v2432 = vpack.c.b16 %v2431, %v2430
      %v2434 = vsel %vm372, %v2432, 0
      %v2437 = vsel %vm376, %v2424, 0
      %v2440 = vsel %vm376, %v2425, 0
      %v2443 = vsel %vm376, %v2426, 0
      %v2446 = vsel %vm376, %v2427, 0
      %2448 = vmatpush.bf16.msra.mxu0 0
      %2449 = vmatpush.bf16.msra.mxu0 0
      %2450 = vmatpush.bf16.msra.mxu0 0
      %2451 = vmatpush.bf16.msra.mxu0 0
      %2452 = vmatpush.bf16.msra.mxu0 0
      %2453 = vmatpush.bf16.msra.mxu0 0
      %2454 = vmatpush.bf16.msra.mxu0 0
      %2455 = vmatpush.bf16.msra.mxu0 %v2437
      %2456 = vmatmul.bf16.gmra.mxu0 %v2434
      %v2457 = vpop.f32.mrf.mxu0
      %v2458 = vadd.f32 0.0, %v2457
      %v2459 = vpop.f32.mrf.mxu0
      %v2460 = vadd.f32 0.0, %v2459
      %2461 = vdwg.mxu0
      %2462 = vmatpush.bf16.msra.mxu0 0
      %2463 = vmatpush.bf16.msra.mxu0 0
      %2464 = vmatpush.bf16.msra.mxu0 0
      %2465 = vmatpush.bf16.msra.mxu0 0
      %2466 = vmatpush.bf16.msra.mxu0 0
      %2467 = vmatpush.bf16.msra.mxu0 0
      %2468 = vmatpush.bf16.msra.mxu0 0
      %2469 = vmatpush.bf16.msra.mxu0 %v2440
      %2470 = vmatmul.bf16.gmra.mxu0 %v2434
      %v2471 = vpop.f32.mrf.mxu0
      %v2472 = vadd.f32 0.0, %v2471
      %v2473 = vpop.f32.mrf.mxu0
      %v2474 = vadd.f32 0.0, %v2473
      %2475 = vdwg.mxu0
      %2476 = vmatpush.bf16.msra.mxu0 0
      %2477 = vmatpush.bf16.msra.mxu0 0
      %2478 = vmatpush.bf16.msra.mxu0 0
      %2479 = vmatpush.bf16.msra.mxu0 0
      %2480 = vmatpush.bf16.msra.mxu0 0
      %2481 = vmatpush.bf16.msra.mxu0 0
      %2482 = vmatpush.bf16.msra.mxu0 0
      %2483 = vmatpush.bf16.msra.mxu0 %v2443
      %2484 = vmatmul.bf16.gmra.mxu0 %v2434
      %v2485 = vpop.f32.mrf.mxu0
      %v2486 = vadd.f32 0.0, %v2485
      %v2487 = vpop.f32.mrf.mxu0
      %v2488 = vadd.f32 0.0, %v2487
      %2489 = vdwg.mxu0
      %2490 = vmatpush.bf16.msra.mxu0 0
      %2491 = vmatpush.bf16.msra.mxu0 0
      %2492 = vmatpush.bf16.msra.mxu0 0
      %2493 = vmatpush.bf16.msra.mxu0 0
      %2494 = vmatpush.bf16.msra.mxu0 0
      %2495 = vmatpush.bf16.msra.mxu0 0
      %2496 = vmatpush.bf16.msra.mxu0 0
      %2497 = vmatpush.bf16.msra.mxu0 %v2446
      %2498 = vmatmul.bf16.gmra.mxu0 %v2434
      %v2499 = vpop.f32.mrf.mxu0
      %v2500 = vadd.f32 0.0, %v2499
      %v2501 = vpop.f32.mrf.mxu0
      %v2502 = vadd.f32 0.0, %v2501
      %2503 = vdwg.mxu0
      %v2504 = vadd.f32 %v2393, %v2458
      %v2505 = vadd.f32 %v2394, %v2472
      %v2506 = vadd.f32 %v2395, %v2486
      %v2507 = vadd.f32 %v2396, %v2500
      %v2508 = vadd.f32 %v2397, %v2460
      %v2509 = vadd.f32 %v2398, %v2474
      %v2510 = vadd.f32 %v2399, %v2488
      %v2511 = vadd.f32 %v2400, %v2502
      %v2512 = vsel %vm2405, 1, 0
      %v2513 = vperm.slane %v2512, 0
      %v2514 = vperm.slane %v2512, 1
      %v2515 = vperm.slane %v2512, 2
      %v2516 = vperm.slane %v2512, 3
      %vm2517 = vcmp.eq.s32.totalorder %v2513, 1
      %vm2518 = vcmp.eq.s32.totalorder %v2514, 1
      %vm2519 = vcmp.eq.s32.totalorder %v2515, 1
      %vm2520 = vcmp.eq.s32.totalorder %v2516, 1
      %v2521 = vsel %vm2517, %v345, 0.0
      %v2522 = vsel %vm2518, %v344, 0.0
      %v2523 = vsel %vm2519, %v343, 0.0
      %v2524 = vsel %vm2520, %v346, 0.0
      %s2525 = scalar_lea.vmem %s1, 152
      %v2526 = vld [vmem:[%s2525] sm:$0xf]
      %v2527 = vld [vmem:[%s2525 + $0x4] sm:$0xf]
      %v2528 = vpack.c.bf16 %v2521, %v2521
      %v2529 = vpack.c.bf16 %v2522, %v2522
      %v2530 = vpack.c.bf16 %v2523, %v2523
      %v2531 = vpack.c.bf16 %v2524, %v2524
      %v2534 = vunpack.c.l.b16 %v2526
      %v2535 = vunpack.c.l.b16 %v2527
      %v2536 = vpack.c.b16 %v2535, %v2534
      %v2538 = vsel %vm372, %v2536, 0
      %v2541 = vsel %vm376, %v2528, 0
      %v2544 = vsel %vm376, %v2529, 0
      %v2547 = vsel %vm376, %v2530, 0
      %v2550 = vsel %vm376, %v2531, 0
      %2552 = vmatpush.bf16.msra.mxu0 0
      %2553 = vmatpush.bf16.msra.mxu0 0
      %2554 = vmatpush.bf16.msra.mxu0 0
      %2555 = vmatpush.bf16.msra.mxu0 0
      %2556 = vmatpush.bf16.msra.mxu0 0
      %2557 = vmatpush.bf16.msra.mxu0 0
      %2558 = vmatpush.bf16.msra.mxu0 0
      %2559 = vmatpush.bf16.msra.mxu0 %v2541
      %2560 = vmatmul.bf16.gmra.mxu0 %v2538
      %v2561 = vpop.f32.mrf.mxu0
      %v2562 = vadd.f32 0.0, %v2561
      %v2563 = vpop.f32.mrf.mxu0
      %v2564 = vadd.f32 0.0, %v2563
      %2565 = vdwg.mxu0
      %2566 = vmatpush.bf16.msra.mxu0 0
      %2567 = vmatpush.bf16.msra.mxu0 0
      %2568 = vmatpush.bf16.msra.mxu0 0
      %2569 = vmatpush.bf16.msra.mxu0 0
      %2570 = vmatpush.bf16.msra.mxu0 0
      %2571 = vmatpush.bf16.msra.mxu0 0
      %2572 = vmatpush.bf16.msra.mxu0 0
      %2573 = vmatpush.bf16.msra.mxu0 %v2544
      %2574 = vmatmul.bf16.gmra.mxu0 %v2538
      %v2575 = vpop.f32.mrf.mxu0
      %v2576 = vadd.f32 0.0, %v2575
      %v2577 = vpop.f32.mrf.mxu0
      %v2578 = vadd.f32 0.0, %v2577
      %2579 = vdwg.mxu0
      %2580 = vmatpush.bf16.msra.mxu0 0
      %2581 = vmatpush.bf16.msra.mxu0 0
      %2582 = vmatpush.bf16.msra.mxu0 0
      %2583 = vmatpush.bf16.msra.mxu0 0
      %2584 = vmatpush.bf16.msra.mxu0 0
      %2585 = vmatpush.bf16.msra.mxu0 0
      %2586 = vmatpush.bf16.msra.mxu0 0
      %2587 = vmatpush.bf16.msra.mxu0 %v2547
      %2588 = vmatmul.bf16.gmra.mxu0 %v2538
      %v2589 = vpop.f32.mrf.mxu0
      %v2590 = vadd.f32 0.0, %v2589
      %v2591 = vpop.f32.mrf.mxu0
      %v2592 = vadd.f32 0.0, %v2591
      %2593 = vdwg.mxu0
      %2594 = vmatpush.bf16.msra.mxu0 0
      %2595 = vmatpush.bf16.msra.mxu0 0
      %2596 = vmatpush.bf16.msra.mxu0 0
      %2597 = vmatpush.bf16.msra.mxu0 0
      %2598 = vmatpush.bf16.msra.mxu0 0
      %2599 = vmatpush.bf16.msra.mxu0 0
      %2600 = vmatpush.bf16.msra.mxu0 0
      %2601 = vmatpush.bf16.msra.mxu0 %v2550
      %2602 = vmatmul.bf16.gmra.mxu0 %v2538
      %v2603 = vpop.f32.mrf.mxu0
      %v2604 = vadd.f32 0.0, %v2603
      %v2605 = vpop.f32.mrf.mxu0
      %v2606 = vadd.f32 0.0, %v2605
      %2607 = vdwg.mxu0
      %v2608 = vadd.f32 %v2504, %v2562
      %v2609 = vadd.f32 %v2505, %v2576
      %v2610 = vadd.f32 %v2506, %v2590
      %v2611 = vadd.f32 %v2507, %v2604
      %v2612 = vadd.f32 %v2508, %v2564
      %v2613 = vadd.f32 %v2509, %v2578
      %v2614 = vadd.f32 %v2510, %v2592
      %v2615 = vadd.f32 %v2511, %v2606
      %vm2616 = vmand %vm2405, %vm534
      %vm2617 = vmand %vm2616, %vm535
      %v2618 = vsel %vm2617, 1, 0
      %v2619 = vperm.slane %v2618, 0
      %v2620 = vperm.slane %v2618, 1
      %v2621 = vperm.slane %v2618, 2
      %v2622 = vperm.slane %v2618, 3
      %vm2623 = vcmp.eq.s32.totalorder %v2619, 1
      %vm2624 = vcmp.eq.s32.totalorder %v2620, 1
      %vm2625 = vcmp.eq.s32.totalorder %v2621, 1
      %vm2626 = vcmp.eq.s32.totalorder %v2622, 1
      %v2627 = vsel %vm2623, %v532, 0.0
      %v2628 = vsel %vm2624, %v531, 0.0
      %v2629 = vsel %vm2625, %v530, 0.0
      %v2630 = vsel %vm2626, %v533, 0.0
      %s2631 = scalar_lea.vmem %s1, 160
      %v2632 = vld [vmem:[%s2631] sm:$0xf]
      %v2633 = vld [vmem:[%s2631 + $0x4] sm:$0xf]
      %v2634 = vpack.c.bf16 %v2627, %v2627
      %v2635 = vpack.c.bf16 %v2628, %v2628
      %v2636 = vpack.c.bf16 %v2629, %v2629
      %v2637 = vpack.c.bf16 %v2630, %v2630
      %v2640 = vunpack.c.l.b16 %v2632
      %v2641 = vunpack.c.l.b16 %v2633
      %v2642 = vpack.c.b16 %v2641, %v2640
      %v2644 = vsel %vm372, %v2642, 0
      %v2647 = vsel %vm376, %v2634, 0
      %v2650 = vsel %vm376, %v2635, 0
      %v2653 = vsel %vm376, %v2636, 0
      %v2656 = vsel %vm376, %v2637, 0
      %2658 = vmatpush.bf16.msra.mxu0 0
      %2659 = vmatpush.bf16.msra.mxu0 0
      %2660 = vmatpush.bf16.msra.mxu0 0
      %2661 = vmatpush.bf16.msra.mxu0 0
      %2662 = vmatpush.bf16.msra.mxu0 0
      %2663 = vmatpush.bf16.msra.mxu0 0
      %2664 = vmatpush.bf16.msra.mxu0 0
      %2665 = vmatpush.bf16.msra.mxu0 %v2647
      %2666 = vmatmul.bf16.gmra.mxu0 %v2644
      %v2667 = vpop.f32.mrf.mxu0
      %v2668 = vadd.f32 0.0, %v2667
      %v2669 = vpop.f32.mrf.mxu0
      %v2670 = vadd.f32 0.0, %v2669
      %2671 = vdwg.mxu0
      %2672 = vmatpush.bf16.msra.mxu0 0
      %2673 = vmatpush.bf16.msra.mxu0 0
      %2674 = vmatpush.bf16.msra.mxu0 0
      %2675 = vmatpush.bf16.msra.mxu0 0
      %2676 = vmatpush.bf16.msra.mxu0 0
      %2677 = vmatpush.bf16.msra.mxu0 0
      %2678 = vmatpush.bf16.msra.mxu0 0
      %2679 = vmatpush.bf16.msra.mxu0 %v2650
      %2680 = vmatmul.bf16.gmra.mxu0 %v2644
      %v2681 = vpop.f32.mrf.mxu0
      %v2682 = vadd.f32 0.0, %v2681
      %v2683 = vpop.f32.mrf.mxu0
      %v2684 = vadd.f32 0.0, %v2683
      %2685 = vdwg.mxu0
      %2686 = vmatpush.bf16.msra.mxu0 0
      %2687 = vmatpush.bf16.msra.mxu0 0
      %2688 = vmatpush.bf16.msra.mxu0 0
      %2689 = vmatpush.bf16.msra.mxu0 0
      %2690 = vmatpush.bf16.msra.mxu0 0
      %2691 = vmatpush.bf16.msra.mxu0 0
      %2692 = vmatpush.bf16.msra.mxu0 0
      %2693 = vmatpush.bf16.msra.mxu0 %v2653
      %2694 = vmatmul.bf16.gmra.mxu0 %v2644
      %v2695 = vpop.f32.mrf.mxu0
      %v2696 = vadd.f32 0.0, %v2695
      %v2697 = vpop.f32.mrf.mxu0
      %v2698 = vadd.f32 0.0, %v2697
      %2699 = vdwg.mxu0
      %2700 = vmatpush.bf16.msra.mxu0 0
      %2701 = vmatpush.bf16.msra.mxu0 0
      %2702 = vmatpush.bf16.msra.mxu0 0
      %2703 = vmatpush.bf16.msra.mxu0 0
      %2704 = vmatpush.bf16.msra.mxu0 0
      %2705 = vmatpush.bf16.msra.mxu0 0
      %2706 = vmatpush.bf16.msra.mxu0 0
      %2707 = vmatpush.bf16.msra.mxu0 %v2656
      %2708 = vmatmul.bf16.gmra.mxu0 %v2644
      %v2709 = vpop.f32.mrf.mxu0
      %v2710 = vadd.f32 0.0, %v2709
      %v2711 = vpop.f32.mrf.mxu0
      %v2712 = vadd.f32 0.0, %v2711
      %2713 = vdwg.mxu0
      %v2714 = vadd.f32 %v2608, %v2668
      %v2715 = vadd.f32 %v2609, %v2682
      %v2716 = vadd.f32 %v2610, %v2696
      %v2717 = vadd.f32 %v2611, %v2710
      %v2718 = vadd.f32 %v2612, %v2670
      %v2719 = vadd.f32 %v2613, %v2684
      %v2720 = vadd.f32 %v2614, %v2698
      %v2721 = vadd.f32 %v2615, %v2712
      %vm2722 = vmand %vm2403, %vm308
      %vm2723 = vmand %vm2722, %vm309
      %v2724 = vsel %vm2723, 1, 0
      %v2725 = vperm.slane %v2724, 0
      %v2726 = vperm.slane %v2724, 1
      %v2727 = vperm.slane %v2724, 2
      %v2728 = vperm.slane %v2724, 3
      %vm2729 = vcmp.eq.s32.totalorder %v2725, 1
      %vm2730 = vcmp.eq.s32.totalorder %v2726, 1
      %vm2731 = vcmp.eq.s32.totalorder %v2727, 1
      %vm2732 = vcmp.eq.s32.totalorder %v2728, 1
      %v2733 = vsel %vm2729, %v653, 0.0
      %v2734 = vsel %vm2730, %v652, 0.0
      %v2735 = vsel %vm2731, %v651, 0.0
      %v2736 = vsel %vm2732, %v654, 0.0
      %s2737 = scalar_lea.vmem %s1, 168
      %v2738 = vld [vmem:[%s2737] sm:$0xf]
      %v2739 = vld [vmem:[%s2737 + $0x4] sm:$0xf]
      %v2740 = vpack.c.bf16 %v2733, %v2733
      %v2741 = vpack.c.bf16 %v2734, %v2734
      %v2742 = vpack.c.bf16 %v2735, %v2735
      %v2743 = vpack.c.bf16 %v2736, %v2736
      %v2746 = vunpack.c.l.b16 %v2738
      %v2747 = vunpack.c.l.b16 %v2739
      %v2748 = vpack.c.b16 %v2747, %v2746
      %v2750 = vsel %vm372, %v2748, 0
      %v2753 = vsel %vm376, %v2740, 0
      %v2756 = vsel %vm376, %v2741, 0
      %v2759 = vsel %vm376, %v2742, 0
      %v2762 = vsel %vm376, %v2743, 0
      %2764 = vmatpush.bf16.msra.mxu0 0
      %2765 = vmatpush.bf16.msra.mxu0 0
      %2766 = vmatpush.bf16.msra.mxu0 0
      %2767 = vmatpush.bf16.msra.mxu0 0
      %2768 = vmatpush.bf16.msra.mxu0 0
      %2769 = vmatpush.bf16.msra.mxu0 0
      %2770 = vmatpush.bf16.msra.mxu0 0
      %2771 = vmatpush.bf16.msra.mxu0 %v2753
      %2772 = vmatmul.bf16.gmra.mxu0 %v2750
      %v2773 = vpop.f32.mrf.mxu0
      %v2774 = vadd.f32 0.0, %v2773
      %v2775 = vpop.f32.mrf.mxu0
      %v2776 = vadd.f32 0.0, %v2775
      %2777 = vdwg.mxu0
      %2778 = vmatpush.bf16.msra.mxu0 0
      %2779 = vmatpush.bf16.msra.mxu0 0
      %2780 = vmatpush.bf16.msra.mxu0 0
      %2781 = vmatpush.bf16.msra.mxu0 0
      %2782 = vmatpush.bf16.msra.mxu0 0
      %2783 = vmatpush.bf16.msra.mxu0 0
      %2784 = vmatpush.bf16.msra.mxu0 0
      %2785 = vmatpush.bf16.msra.mxu0 %v2756
      %2786 = vmatmul.bf16.gmra.mxu0 %v2750
      %v2787 = vpop.f32.mrf.mxu0
      %v2788 = vadd.f32 0.0, %v2787
      %v2789 = vpop.f32.mrf.mxu0
      %v2790 = vadd.f32 0.0, %v2789
      %2791 = vdwg.mxu0
      %2792 = vmatpush.bf16.msra.mxu0 0
      %2793 = vmatpush.bf16.msra.mxu0 0
      %2794 = vmatpush.bf16.msra.mxu0 0
      %2795 = vmatpush.bf16.msra.mxu0 0
      %2796 = vmatpush.bf16.msra.mxu0 0
      %2797 = vmatpush.bf16.msra.mxu0 0
      %2798 = vmatpush.bf16.msra.mxu0 0
      %2799 = vmatpush.bf16.msra.mxu0 %v2759
      %2800 = vmatmul.bf16.gmra.mxu0 %v2750
      %v2801 = vpop.f32.mrf.mxu0
      %v2802 = vadd.f32 0.0, %v2801
      %v2803 = vpop.f32.mrf.mxu0
      %v2804 = vadd.f32 0.0, %v2803
      %2805 = vdwg.mxu0
      %2806 = vmatpush.bf16.msra.mxu0 0
      %2807 = vmatpush.bf16.msra.mxu0 0
      %2808 = vmatpush.bf16.msra.mxu0 0
      %2809 = vmatpush.bf16.msra.mxu0 0
      %2810 = vmatpush.bf16.msra.mxu0 0
      %2811 = vmatpush.bf16.msra.mxu0 0
      %2812 = vmatpush.bf16.msra.mxu0 0
      %2813 = vmatpush.bf16.msra.mxu0 %v2762
      %2814 = vmatmul.bf16.gmra.mxu0 %v2750
      %v2815 = vpop.f32.mrf.mxu0
      %v2816 = vadd.f32 0.0, %v2815
      %v2817 = vpop.f32.mrf.mxu0
      %v2818 = vadd.f32 0.0, %v2817
      %2819 = vdwg.mxu0
      %v2820 = vadd.f32 %v2714, %v2774
      %v2821 = vadd.f32 %v2715, %v2788
      %v2822 = vadd.f32 %v2716, %v2802
      %v2823 = vadd.f32 %v2717, %v2816
      %v2824 = vadd.f32 %v2718, %v2776
      %v2825 = vadd.f32 %v2719, %v2790
      %v2826 = vadd.f32 %v2720, %v2804
      %v2827 = vadd.f32 %v2721, %v2818
      %v2828 = vsel %vm2403, 1, 0
      %v2829 = vperm.slane %v2828, 0
      %v2830 = vperm.slane %v2828, 1
      %v2831 = vperm.slane %v2828, 2
      %v2832 = vperm.slane %v2828, 3
      %vm2833 = vcmp.eq.s32.totalorder %v2829, 1
      %vm2834 = vcmp.eq.s32.totalorder %v2830, 1
      %vm2835 = vcmp.eq.s32.totalorder %v2831, 1
      %vm2836 = vcmp.eq.s32.totalorder %v2832, 1
      %v2837 = vsel %vm2833, %v772, 0.0
      %v2838 = vsel %vm2834, %v771, 0.0
      %v2839 = vsel %vm2835, %v770, 0.0
      %v2840 = vsel %vm2836, %v773, 0.0
      %s2841 = scalar_lea.vmem %s1, 176
      %v2842 = vld [vmem:[%s2841] sm:$0xf]
      %v2843 = vld [vmem:[%s2841 + $0x4] sm:$0xf]
      %v2844 = vpack.c.bf16 %v2837, %v2837
      %v2845 = vpack.c.bf16 %v2838, %v2838
      %v2846 = vpack.c.bf16 %v2839, %v2839
      %v2847 = vpack.c.bf16 %v2840, %v2840
      %v2850 = vunpack.c.l.b16 %v2842
      %v2851 = vunpack.c.l.b16 %v2843
      %v2852 = vpack.c.b16 %v2851, %v2850
      %v2854 = vsel %vm372, %v2852, 0
      %v2857 = vsel %vm376, %v2844, 0
      %v2860 = vsel %vm376, %v2845, 0
      %v2863 = vsel %vm376, %v2846, 0
      %v2866 = vsel %vm376, %v2847, 0
      %2868 = vmatpush.bf16.msra.mxu0 0
      %2869 = vmatpush.bf16.msra.mxu0 0
      %2870 = vmatpush.bf16.msra.mxu0 0
      %2871 = vmatpush.bf16.msra.mxu0 0
      %2872 = vmatpush.bf16.msra.mxu0 0
      %2873 = vmatpush.bf16.msra.mxu0 0
      %2874 = vmatpush.bf16.msra.mxu0 0
      %2875 = vmatpush.bf16.msra.mxu0 %v2857
      %2876 = vmatmul.bf16.gmra.mxu0 %v2854
      %v2877 = vpop.f32.mrf.mxu0
      %v2878 = vadd.f32 0.0, %v2877
      %v2879 = vpop.f32.mrf.mxu0
      %v2880 = vadd.f32 0.0, %v2879
      %2881 = vdwg.mxu0
      %2882 = vmatpush.bf16.msra.mxu0 0
      %2883 = vmatpush.bf16.msra.mxu0 0
      %2884 = vmatpush.bf16.msra.mxu0 0
      %2885 = vmatpush.bf16.msra.mxu0 0
      %2886 = vmatpush.bf16.msra.mxu0 0
      %2887 = vmatpush.bf16.msra.mxu0 0
      %2888 = vmatpush.bf16.msra.mxu0 0
      %2889 = vmatpush.bf16.msra.mxu0 %v2860
      %2890 = vmatmul.bf16.gmra.mxu0 %v2854
      %v2891 = vpop.f32.mrf.mxu0
      %v2892 = vadd.f32 0.0, %v2891
      %v2893 = vpop.f32.mrf.mxu0
      %v2894 = vadd.f32 0.0, %v2893
      %2895 = vdwg.mxu0
      %2896 = vmatpush.bf16.msra.mxu0 0
      %2897 = vmatpush.bf16.msra.mxu0 0
      %2898 = vmatpush.bf16.msra.mxu0 0
      %2899 = vmatpush.bf16.msra.mxu0 0
      %2900 = vmatpush.bf16.msra.mxu0 0
      %2901 = vmatpush.bf16.msra.mxu0 0
      %2902 = vmatpush.bf16.msra.mxu0 0
      %2903 = vmatpush.bf16.msra.mxu0 %v2863
      %2904 = vmatmul.bf16.gmra.mxu0 %v2854
      %v2905 = vpop.f32.mrf.mxu0
      %v2906 = vadd.f32 0.0, %v2905
      %v2907 = vpop.f32.mrf.mxu0
      %v2908 = vadd.f32 0.0, %v2907
      %2909 = vdwg.mxu0
      %2910 = vmatpush.bf16.msra.mxu0 0
      %2911 = vmatpush.bf16.msra.mxu0 0
      %2912 = vmatpush.bf16.msra.mxu0 0
      %2913 = vmatpush.bf16.msra.mxu0 0
      %2914 = vmatpush.bf16.msra.mxu0 0
      %2915 = vmatpush.bf16.msra.mxu0 0
      %2916 = vmatpush.bf16.msra.mxu0 0
      %2917 = vmatpush.bf16.msra.mxu0 %v2866
      %2918 = vmatmul.bf16.gmra.mxu0 %v2854
      %v2919 = vpop.f32.mrf.mxu0
      %v2920 = vadd.f32 0.0, %v2919
      %v2921 = vpop.f32.mrf.mxu0
      %v2922 = vadd.f32 0.0, %v2921
      %2923 = vdwg.mxu0
      %v2924 = vadd.f32 %v2820, %v2878
      %v2925 = vadd.f32 %v2821, %v2892
      %v2926 = vadd.f32 %v2822, %v2906
      %v2927 = vadd.f32 %v2823, %v2920
      %v2928 = vadd.f32 %v2824, %v2880
      %v2929 = vadd.f32 %v2825, %v2894
      %v2930 = vadd.f32 %v2826, %v2908
      %v2931 = vadd.f32 %v2827, %v2922
      %vm2932 = vmand %vm2403, %vm534
      %vm2933 = vmand %vm2932, %vm535
      %v2934 = vsel %vm2933, 1, 0
      %v2935 = vperm.slane %v2934, 0
      %v2936 = vperm.slane %v2934, 1
      %v2937 = vperm.slane %v2934, 2
      %v2938 = vperm.slane %v2934, 3
      %vm2939 = vcmp.eq.s32.totalorder %v2935, 1
      %vm2940 = vcmp.eq.s32.totalorder %v2936, 1
      %vm2941 = vcmp.eq.s32.totalorder %v2937, 1
      %vm2942 = vcmp.eq.s32.totalorder %v2938, 1
      %v2943 = vsel %vm2939, %v889, 0.0
      %v2944 = vsel %vm2940, %v888, 0.0
      %v2945 = vsel %vm2941, %v887, 0.0
      %v2946 = vsel %vm2942, %v890, 0.0
      %s2947 = scalar_lea.vmem %s1, 184
      %v2948 = vld [vmem:[%s2947] sm:$0xf]
      %v2949 = vld [vmem:[%s2947 + $0x4] sm:$0xf]
      %v2950 = vpack.c.bf16 %v2943, %v2943
      %v2951 = vpack.c.bf16 %v2944, %v2944
      %v2952 = vpack.c.bf16 %v2945, %v2945
      %v2953 = vpack.c.bf16 %v2946, %v2946
      %v2956 = vunpack.c.l.b16 %v2948
      %v2957 = vunpack.c.l.b16 %v2949
      %v2958 = vpack.c.b16 %v2957, %v2956
      %v2960 = vsel %vm372, %v2958, 0
      %v2963 = vsel %vm376, %v2950, 0
      %v2966 = vsel %vm376, %v2951, 0
      %v2969 = vsel %vm376, %v2952, 0
      %v2972 = vsel %vm376, %v2953, 0
      %2974 = vmatpush.bf16.msra.mxu0 0
      %2975 = vmatpush.bf16.msra.mxu0 0
      %2976 = vmatpush.bf16.msra.mxu0 0
      %2977 = vmatpush.bf16.msra.mxu0 0
      %2978 = vmatpush.bf16.msra.mxu0 0
      %2979 = vmatpush.bf16.msra.mxu0 0
      %2980 = vmatpush.bf16.msra.mxu0 0
      %2981 = vmatpush.bf16.msra.mxu0 %v2963
      %2982 = vmatmul.bf16.gmra.mxu0 %v2960
      %v2983 = vpop.f32.mrf.mxu0
      %v2984 = vadd.f32 0.0, %v2983
      %v2985 = vpop.f32.mrf.mxu0
      %v2986 = vadd.f32 0.0, %v2985
      %2987 = vdwg.mxu0
      %2988 = vmatpush.bf16.msra.mxu0 0
      %2989 = vmatpush.bf16.msra.mxu0 0
      %2990 = vmatpush.bf16.msra.mxu0 0
      %2991 = vmatpush.bf16.msra.mxu0 0
      %2992 = vmatpush.bf16.msra.mxu0 0
      %2993 = vmatpush.bf16.msra.mxu0 0
      %2994 = vmatpush.bf16.msra.mxu0 0
      %2995 = vmatpush.bf16.msra.mxu0 %v2966
      %2996 = vmatmul.bf16.gmra.mxu0 %v2960
      %v2997 = vpop.f32.mrf.mxu0
      %v2998 = vadd.f32 0.0, %v2997
      %v2999 = vpop.f32.mrf.mxu0
      %v3000 = vadd.f32 0.0, %v2999
      %3001 = vdwg.mxu0
      %3002 = vmatpush.bf16.msra.mxu0 0
      %3003 = vmatpush.bf16.msra.mxu0 0
      %3004 = vmatpush.bf16.msra.mxu0 0
      %3005 = vmatpush.bf16.msra.mxu0 0
      %3006 = vmatpush.bf16.msra.mxu0 0
      %3007 = vmatpush.bf16.msra.mxu0 0
      %3008 = vmatpush.bf16.msra.mxu0 0
      %3009 = vmatpush.bf16.msra.mxu0 %v2969
      %3010 = vmatmul.bf16.gmra.mxu0 %v2960
      %v3011 = vpop.f32.mrf.mxu0
      %v3012 = vadd.f32 0.0, %v3011
      %v3013 = vpop.f32.mrf.mxu0
      %v3014 = vadd.f32 0.0, %v3013
      %3015 = vdwg.mxu0
      %3016 = vmatpush.bf16.msra.mxu0 0
      %3017 = vmatpush.bf16.msra.mxu0 0
      %3018 = vmatpush.bf16.msra.mxu0 0
      %3019 = vmatpush.bf16.msra.mxu0 0
      %3020 = vmatpush.bf16.msra.mxu0 0
      %3021 = vmatpush.bf16.msra.mxu0 0
      %3022 = vmatpush.bf16.msra.mxu0 0
      %3023 = vmatpush.bf16.msra.mxu0 %v2972
      %3024 = vmatmul.bf16.gmra.mxu0 %v2960
      %v3025 = vpop.f32.mrf.mxu0
      %v3026 = vadd.f32 0.0, %v3025
      %v3027 = vpop.f32.mrf.mxu0
      %v3028 = vadd.f32 0.0, %v3027
      %3029 = vdwg.mxu0
      %v3030 = vadd.f32 %v2924, %v2984
      %v3031 = vadd.f32 %v2925, %v2998
      %v3032 = vadd.f32 %v2926, %v3012
      %v3033 = vadd.f32 %v2927, %v3026
      %v3034 = vadd.f32 %v2928, %v2986
      %v3035 = vadd.f32 %v2929, %v3000
      %v3036 = vadd.f32 %v2930, %v3014
      %v3037 = vadd.f32 %v2931, %v3028
      %vm3038 = vmand %vm2403, %vm1010
      %vm3039 = vmand %vm3038, %vm1011
      %vm3040 = vmand %vm3039, %vm308
      %vm3041 = vmand %vm3040, %vm309
      %v3042 = vsel %vm3041, 1, 0
      %v3043 = vperm.slane %v3042, 0
      %v3044 = vperm.slane %v3042, 1
      %v3045 = vperm.slane %v3042, 2
      %v3046 = vperm.slane %v3042, 3
      %vm3047 = vcmp.eq.s32.totalorder %v3043, 1
      %vm3048 = vcmp.eq.s32.totalorder %v3044, 1
      %vm3049 = vcmp.eq.s32.totalorder %v3045, 1
      %vm3050 = vcmp.eq.s32.totalorder %v3046, 1
      %v3051 = vsel %vm3047, %v1008, 0.0
      %v3052 = vsel %vm3048, %v1007, 0.0
      %v3053 = vsel %vm3049, %v1006, 0.0
      %v3054 = vsel %vm3050, %v1009, 0.0
      %s3055 = scalar_lea.vmem %s1, 192
      %v3056 = vld [vmem:[%s3055] sm:$0xf]
      %v3057 = vld [vmem:[%s3055 + $0x4] sm:$0xf]
      %v3058 = vpack.c.bf16 %v3051, %v3051
      %v3059 = vpack.c.bf16 %v3052, %v3052
      %v3060 = vpack.c.bf16 %v3053, %v3053
      %v3061 = vpack.c.bf16 %v3054, %v3054
      %v3064 = vunpack.c.l.b16 %v3056
      %v3065 = vunpack.c.l.b16 %v3057
      %v3066 = vpack.c.b16 %v3065, %v3064
      %v3068 = vsel %vm372, %v3066, 0
      %v3071 = vsel %vm376, %v3058, 0
      %v3074 = vsel %vm376, %v3059, 0
      %v3077 = vsel %vm376, %v3060, 0
      %v3080 = vsel %vm376, %v3061, 0
      %3082 = vmatpush.bf16.msra.mxu0 0
      %3083 = vmatpush.bf16.msra.mxu0 0
      %3084 = vmatpush.bf16.msra.mxu0 0
      %3085 = vmatpush.bf16.msra.mxu0 0
      %3086 = vmatpush.bf16.msra.mxu0 0
      %3087 = vmatpush.bf16.msra.mxu0 0
      %3088 = vmatpush.bf16.msra.mxu0 0
      %3089 = vmatpush.bf16.msra.mxu0 %v3071
      %3090 = vmatmul.bf16.gmra.mxu0 %v3068
      %v3091 = vpop.f32.mrf.mxu0
      %v3092 = vadd.f32 0.0, %v3091
      %v3093 = vpop.f32.mrf.mxu0
      %v3094 = vadd.f32 0.0, %v3093
      %3095 = vdwg.mxu0
      %3096 = vmatpush.bf16.msra.mxu0 0
      %3097 = vmatpush.bf16.msra.mxu0 0
      %3098 = vmatpush.bf16.msra.mxu0 0
      %3099 = vmatpush.bf16.msra.mxu0 0
      %3100 = vmatpush.bf16.msra.mxu0 0
      %3101 = vmatpush.bf16.msra.mxu0 0
      %3102 = vmatpush.bf16.msra.mxu0 0
      %3103 = vmatpush.bf16.msra.mxu0 %v3074
      %3104 = vmatmul.bf16.gmra.mxu0 %v3068
      %v3105 = vpop.f32.mrf.mxu0
      %v3106 = vadd.f32 0.0, %v3105
      %v3107 = vpop.f32.mrf.mxu0
      %v3108 = vadd.f32 0.0, %v3107
      %3109 = vdwg.mxu0
      %3110 = vmatpush.bf16.msra.mxu0 0
      %3111 = vmatpush.bf16.msra.mxu0 0
      %3112 = vmatpush.bf16.msra.mxu0 0
      %3113 = vmatpush.bf16.msra.mxu0 0
      %3114 = vmatpush.bf16.msra.mxu0 0
      %3115 = vmatpush.bf16.msra.mxu0 0
      %3116 = vmatpush.bf16.msra.mxu0 0
      %3117 = vmatpush.bf16.msra.mxu0 %v3077
      %3118 = vmatmul.bf16.gmra.mxu0 %v3068
      %v3119 = vpop.f32.mrf.mxu0
      %v3120 = vadd.f32 0.0, %v3119
      %v3121 = vpop.f32.mrf.mxu0
      %v3122 = vadd.f32 0.0, %v3121
      %3123 = vdwg.mxu0
      %3124 = vmatpush.bf16.msra.mxu0 0
      %3125 = vmatpush.bf16.msra.mxu0 0
      %3126 = vmatpush.bf16.msra.mxu0 0
      %3127 = vmatpush.bf16.msra.mxu0 0
      %3128 = vmatpush.bf16.msra.mxu0 0
      %3129 = vmatpush.bf16.msra.mxu0 0
      %3130 = vmatpush.bf16.msra.mxu0 0
      %3131 = vmatpush.bf16.msra.mxu0 %v3080
      %3132 = vmatmul.bf16.gmra.mxu0 %v3068
      %v3133 = vpop.f32.mrf.mxu0
      %v3134 = vadd.f32 0.0, %v3133
      %v3135 = vpop.f32.mrf.mxu0
      %v3136 = vadd.f32 0.0, %v3135
      %3137 = vdwg.mxu0
      %v3138 = vadd.f32 %v3030, %v3092
      %v3139 = vadd.f32 %v3031, %v3106
      %v3140 = vadd.f32 %v3032, %v3120
      %v3141 = vadd.f32 %v3033, %v3134
      %v3142 = vadd.f32 %v3034, %v3094
      %v3143 = vadd.f32 %v3035, %v3108
      %v3144 = vadd.f32 %v3036, %v3122
      %v3145 = vadd.f32 %v3037, %v3136
      %v3146 = vsel %vm3039, 1, 0
      %v3147 = vperm.slane %v3146, 0
      %v3148 = vperm.slane %v3146, 1
      %v3149 = vperm.slane %v3146, 2
      %v3150 = vperm.slane %v3146, 3
      %vm3151 = vcmp.eq.s32.totalorder %v3147, 1
      %vm3152 = vcmp.eq.s32.totalorder %v3148, 1
      %vm3153 = vcmp.eq.s32.totalorder %v3149, 1
      %vm3154 = vcmp.eq.s32.totalorder %v3150, 1
      %v3155 = vsel %vm3151, %v1131, 0.0
      %v3156 = vsel %vm3152, %v1130, 0.0
      %v3157 = vsel %vm3153, %v1129, 0.0
      %v3158 = vsel %vm3154, %v1132, 0.0
      %s3159 = scalar_lea.vmem %s1, 200
      %v3160 = vld [vmem:[%s3159] sm:$0xf]
      %v3161 = vld [vmem:[%s3159 + $0x4] sm:$0xf]
      %v3162 = vpack.c.bf16 %v3155, %v3155
      %v3163 = vpack.c.bf16 %v3156, %v3156
      %v3164 = vpack.c.bf16 %v3157, %v3157
      %v3165 = vpack.c.bf16 %v3158, %v3158
      %v3168 = vunpack.c.l.b16 %v3160
      %v3169 = vunpack.c.l.b16 %v3161
      %v3170 = vpack.c.b16 %v3169, %v3168
      %v3172 = vsel %vm372, %v3170, 0
      %v3175 = vsel %vm376, %v3162, 0
      %v3178 = vsel %vm376, %v3163, 0
      %v3181 = vsel %vm376, %v3164, 0
      %v3184 = vsel %vm376, %v3165, 0
      %3186 = vmatpush.bf16.msra.mxu0 0
      %3187 = vmatpush.bf16.msra.mxu0 0
      %3188 = vmatpush.bf16.msra.mxu0 0
      %3189 = vmatpush.bf16.msra.mxu0 0
      %3190 = vmatpush.bf16.msra.mxu0 0
      %3191 = vmatpush.bf16.msra.mxu0 0
      %3192 = vmatpush.bf16.msra.mxu0 0
      %3193 = vmatpush.bf16.msra.mxu0 %v3175
      %3194 = vmatmul.bf16.gmra.mxu0 %v3172
      %v3195 = vpop.f32.mrf.mxu0
      %v3196 = vadd.f32 0.0, %v3195
      %v3197 = vpop.f32.mrf.mxu0
      %v3198 = vadd.f32 0.0, %v3197
      %3199 = vdwg.mxu0
      %3200 = vmatpush.bf16.msra.mxu0 0
      %3201 = vmatpush.bf16.msra.mxu0 0
      %3202 = vmatpush.bf16.msra.mxu0 0
      %3203 = vmatpush.bf16.msra.mxu0 0
      %3204 = vmatpush.bf16.msra.mxu0 0
      %3205 = vmatpush.bf16.msra.mxu0 0
      %3206 = vmatpush.bf16.msra.mxu0 0
      %3207 = vmatpush.bf16.msra.mxu0 %v3178
      %3208 = vmatmul.bf16.gmra.mxu0 %v3172
      %v3209 = vpop.f32.mrf.mxu0
      %v3210 = vadd.f32 0.0, %v3209
      %v3211 = vpop.f32.mrf.mxu0
      %v3212 = vadd.f32 0.0, %v3211
      %3213 = vdwg.mxu0
      %3214 = vmatpush.bf16.msra.mxu0 0
      %3215 = vmatpush.bf16.msra.mxu0 0
      %3216 = vmatpush.bf16.msra.mxu0 0
      %3217 = vmatpush.bf16.msra.mxu0 0
      %3218 = vmatpush.bf16.msra.mxu0 0
      %3219 = vmatpush.bf16.msra.mxu0 0
      %3220 = vmatpush.bf16.msra.mxu0 0
      %3221 = vmatpush.bf16.msra.mxu0 %v3181
      %3222 = vmatmul.bf16.gmra.mxu0 %v3172
      %v3223 = vpop.f32.mrf.mxu0
      %v3224 = vadd.f32 0.0, %v3223
      %v3225 = vpop.f32.mrf.mxu0
      %v3226 = vadd.f32 0.0, %v3225
      %3227 = vdwg.mxu0
      %3228 = vmatpush.bf16.msra.mxu0 0
      %3229 = vmatpush.bf16.msra.mxu0 0
      %3230 = vmatpush.bf16.msra.mxu0 0
      %3231 = vmatpush.bf16.msra.mxu0 0
      %3232 = vmatpush.bf16.msra.mxu0 0
      %3233 = vmatpush.bf16.msra.mxu0 0
      %3234 = vmatpush.bf16.msra.mxu0 0
      %3235 = vmatpush.bf16.msra.mxu0 %v3184
      %3236 = vmatmul.bf16.gmra.mxu0 %v3172
      %v3237 = vpop.f32.mrf.mxu0
      %v3238 = vadd.f32 0.0, %v3237
      %v3239 = vpop.f32.mrf.mxu0
      %v3240 = vadd.f32 0.0, %v3239
      %3241 = vdwg.mxu0
      %v3242 = vadd.f32 %v3138, %v3196
      %v3243 = vadd.f32 %v3139, %v3210
      %v3244 = vadd.f32 %v3140, %v3224
      %v3245 = vadd.f32 %v3141, %v3238
      %v3246 = vadd.f32 %v3142, %v3198
      %v3247 = vadd.f32 %v3143, %v3212
      %v3248 = vadd.f32 %v3144, %v3226
      %v3249 = vadd.f32 %v3145, %v3240
      %vm3250 = vmand %vm3039, %vm534
      %vm3251 = vmand %vm3250, %vm535
      %v3252 = vsel %vm3251, 1, 0
      %v3253 = vperm.slane %v3252, 0
      %v3254 = vperm.slane %v3252, 1
      %v3255 = vperm.slane %v3252, 2
      %v3256 = vperm.slane %v3252, 3
      %vm3257 = vcmp.eq.s32.totalorder %v3253, 1
      %vm3258 = vcmp.eq.s32.totalorder %v3254, 1
      %vm3259 = vcmp.eq.s32.totalorder %v3255, 1
      %vm3260 = vcmp.eq.s32.totalorder %v3256, 1
      %v3261 = vsel %vm3257, %v1248, 0.0
      %v3262 = vsel %vm3258, %v1247, 0.0
      %v3263 = vsel %vm3259, %v1246, 0.0
      %v3264 = vsel %vm3260, %v1249, 0.0
      %s3265 = scalar_lea.vmem %s1, 208
      %v3266 = vld [vmem:[%s3265] sm:$0xf]
      %v3267 = vld [vmem:[%s3265 + $0x4] sm:$0xf]
      %v3268 = vpack.c.bf16 %v3261, %v3261
      %v3269 = vpack.c.bf16 %v3262, %v3262
      %v3270 = vpack.c.bf16 %v3263, %v3263
      %v3271 = vpack.c.bf16 %v3264, %v3264
      %v3274 = vunpack.c.l.b16 %v3266
      %v3275 = vunpack.c.l.b16 %v3267
      %v3276 = vpack.c.b16 %v3275, %v3274
      %v3278 = vsel %vm372, %v3276, 0
      %v3281 = vsel %vm376, %v3268, 0
      %v3284 = vsel %vm376, %v3269, 0
      %v3287 = vsel %vm376, %v3270, 0
      %v3290 = vsel %vm376, %v3271, 0
      %3292 = vmatpush.bf16.msra.mxu0 0
      %3293 = vmatpush.bf16.msra.mxu0 0
      %3294 = vmatpush.bf16.msra.mxu0 0
      %3295 = vmatpush.bf16.msra.mxu0 0
      %3296 = vmatpush.bf16.msra.mxu0 0
      %3297 = vmatpush.bf16.msra.mxu0 0
      %3298 = vmatpush.bf16.msra.mxu0 0
      %3299 = vmatpush.bf16.msra.mxu0 %v3281
      %3300 = vmatmul.bf16.gmra.mxu0 %v3278
      %v3301 = vpop.f32.mrf.mxu0
      %v3302 = vadd.f32 0.0, %v3301
      %v3303 = vpop.f32.mrf.mxu0
      %v3304 = vadd.f32 0.0, %v3303
      %3305 = vdwg.mxu0
      %3306 = vmatpush.bf16.msra.mxu0 0
      %3307 = vmatpush.bf16.msra.mxu0 0
      %3308 = vmatpush.bf16.msra.mxu0 0
      %3309 = vmatpush.bf16.msra.mxu0 0
      %3310 = vmatpush.bf16.msra.mxu0 0
      %3311 = vmatpush.bf16.msra.mxu0 0
      %3312 = vmatpush.bf16.msra.mxu0 0
      %3313 = vmatpush.bf16.msra.mxu0 %v3284
      %3314 = vmatmul.bf16.gmra.mxu0 %v3278
      %v3315 = vpop.f32.mrf.mxu0
      %v3316 = vadd.f32 0.0, %v3315
      %v3317 = vpop.f32.mrf.mxu0
      %v3318 = vadd.f32 0.0, %v3317
      %3319 = vdwg.mxu0
      %3320 = vmatpush.bf16.msra.mxu0 0
      %3321 = vmatpush.bf16.msra.mxu0 0
      %3322 = vmatpush.bf16.msra.mxu0 0
      %3323 = vmatpush.bf16.msra.mxu0 0
      %3324 = vmatpush.bf16.msra.mxu0 0
      %3325 = vmatpush.bf16.msra.mxu0 0
      %3326 = vmatpush.bf16.msra.mxu0 0
      %3327 = vmatpush.bf16.msra.mxu0 %v3287
      %3328 = vmatmul.bf16.gmra.mxu0 %v3278
      %v3329 = vpop.f32.mrf.mxu0
      %v3330 = vadd.f32 0.0, %v3329
      %v3331 = vpop.f32.mrf.mxu0
      %v3332 = vadd.f32 0.0, %v3331
      %3333 = vdwg.mxu0
      %3334 = vmatpush.bf16.msra.mxu0 0
      %3335 = vmatpush.bf16.msra.mxu0 0
      %3336 = vmatpush.bf16.msra.mxu0 0
      %3337 = vmatpush.bf16.msra.mxu0 0
      %3338 = vmatpush.bf16.msra.mxu0 0
      %3339 = vmatpush.bf16.msra.mxu0 0
      %3340 = vmatpush.bf16.msra.mxu0 0
      %3341 = vmatpush.bf16.msra.mxu0 %v3290
      %3342 = vmatmul.bf16.gmra.mxu0 %v3278
      %v3343 = vpop.f32.mrf.mxu0
      %v3344 = vadd.f32 0.0, %v3343
      %v3345 = vpop.f32.mrf.mxu0
      %v3346 = vadd.f32 0.0, %v3345
      %3347 = vdwg.mxu0
      %v3348 = vadd.f32 %v3242, %v3302
      %v3349 = vadd.f32 %v3243, %v3316
      %v3350 = vadd.f32 %v3244, %v3330
      %v3351 = vadd.f32 %v3245, %v3344
      %v3352 = vadd.f32 %v3246, %v3304
      %v3353 = vadd.f32 %v3247, %v3318
      %v3354 = vadd.f32 %v3248, %v3332
      %v3355 = vadd.f32 %v3249, %v3346
      %v3356 = vld [vmem:[%s5] sm:$0xff]
      %v3357 = vld [vmem:[%s5 + $0x8] sm:$0xff]
      %3359 = vset.pattern.permute.xlu0 0
      %3360 = vperm.xlu0 %3359, %v3356
      %v3361 = vpop.permute.xlu0 %3360
      %3364 = vset.pattern.permute.xlu0 0
      %3365 = vperm.xlu0 %3364, %v3357
      %v3366 = vpop.permute.xlu0 %3365
      %v3368 = vmul.f32 %v3348, %v3361
      %v3369 = vmul.f32 %v3349, %v3361
      %v3370 = vmul.f32 %v3350, %v3361
      %v3371 = vmul.f32 %v3351, %v3361
      %v3372 = vmul.f32 %v3352, %v3366
      %v3373 = vmul.f32 %v3353, %v3366
      %v3374 = vmul.f32 %v3354, %v3366
      %v3375 = vmul.f32 %v3355, %v3366
      %v3376 = vld [vmem:[%s6] sm:$0xff]
      %v3377 = vld [vmem:[%s6 + $0x8] sm:$0xff]
      %3379 = vset.pattern.permute.xlu0 0
      %3380 = vperm.xlu0 %3379, %v3376
      %v3381 = vpop.permute.xlu0 %3380
      %3384 = vset.pattern.permute.xlu0 0
      %3385 = vperm.xlu0 %3384, %v3377
      %v3386 = vpop.permute.xlu0 %3385
      %v3388 = vadd.f32 %v3368, %v3381
      %v3389 = vadd.f32 %v3369, %v3381
      %v3390 = vadd.f32 %v3370, %v3381
      %v3391 = vadd.f32 %v3371, %v3381
      %v3392 = vadd.f32 %v3372, %v3386
      %v3393 = vadd.f32 %v3373, %v3386
      %v3394 = vadd.f32 %v3374, %v3386
      %v3395 = vadd.f32 %v3375, %v3386
      %v3396 = vmax.f32 %v3388, 0.0
      %v3397 = vmax.f32 %v3389, 0.0
      %v3398 = vmax.f32 %v3390, 0.0
      %v3399 = vmax.f32 %v3391, 0.0
      %v3400 = vmax.f32 %v3392, 0.0
      %v3401 = vmax.f32 %v3393, 0.0
      %v3402 = vmax.f32 %v3394, 0.0
      %v3403 = vmax.f32 %v3395, 0.0
      %v3404 = vpack.c.bf16 %v3397, %v3396
      %v3405 = vpack.c.bf16 %v3399, %v3398
      %v3406 = vpack.c.bf16 %v3401, %v3400
      %v3407 = vpack.c.bf16 %v3403, %v3402
      %3408 = vst [vmem:[%s278] sm:$0xff] %v3404
      %3409 = vst [vmem:[%s278 + $0x8] sm:$0xff] %v3405
      %3410 = vst [vmem:[%s278 + $0x10] sm:$0xff] %v3406
      %3411 = vst [vmem:[%s278 + $0x18] sm:$0xff] %v3407
      %p3412 = scmp.lt.s32.totalorder %s18, 1
      %s3413 = scalar_select %p3412, %s18, 1
      %s3414 = smul.addr %s3413, 8
      %s3415 = smul.addr %s3414, 4
      %s3416 = scalar_lea.vmem %s7, %s3415
      // Predicated region
      $region49: #{mfunit_forward.4} parent=47 // pred_check
        %p3417 = pneg %p188
      $region50: #{mfunit_forward.4} parent=47 // pred_check_branch
        %3419 = sbr.rel (%p3417) target = $region52
      $region51: #{mfunit_forward.4} parent=47 // pred_region
        _
      $region52: #{mfunit_forward.4} parent=47 // pred_fallthru
        _
    $region48: #{mfunit_forward.4} parent=5 // pred_fallthru
      _
    %p3420 = scmp.le.s32.totalorder 2, %s13
    // Predicated region
    $region53: #{mfunit_forward.4} parent=5 // pred_check
      %p3421 = pneg %p3420
    $region54: #{mfunit_forward.4} parent=5 // pred_check_branch
      %3423 = sbr.rel (%p3421) target = $region56
    $region55: #{mfunit_forward.4} parent=5 // pred_region
      %s3424 = ssub.s32 %s13, 2
      // Predicated region
      $region57: #{mfunit_forward.4} parent=55 // pred_check
        %p3425 = pneg %p194
      $region58: #{mfunit_forward.4} parent=55 // pred_check_branch
        %3427 = sbr.rel (%p3425) target = $region60
      $region59: #{mfunit_forward.4} parent=55 // pred_region
        %p3428 = scmp.lt.s32.totalorder %s19, 1
        %s3429 = scalar_select %p3428, %s19, 1
        %s3430 = smul.addr %s3429, 8
        %s3431 = smul.addr %s3430, 4
        %s3432 = scalar_lea.vmem %s7, %s3431
      $region60: #{mfunit_forward.4} parent=55 // pred_fallthru
        _
    $region56: #{mfunit_forward.4} parent=5 // pred_fallthru
      _
  $region6: #{mfunit_forward.4} parent=0 // loop_footer
    %s17 = sadd.s32 1, %s13
  $region7: #{mfunit_forward.4} parent=0 // loop_footer_branch
    %12 = sbr.rel target = $region3
  $region8: #{mfunit_forward.4} parent=0 // loop_exit
    _

</llo_original>
